<compile_context>
chip_gen: v7x
topology: tpu7x:2x2x1
jax: 0.10.0
libtpu: 0.0.40
codegen_flags: <defaults>
</compile_context>

<pallas_src>
import numpy as np
import jax
import jax.numpy as jnp
from jax.experimental import pallas as pl
from jax.experimental.pallas import tpu as pltpu


# ----------------------------- parameter setup ------------------------------
def hippo_legt_transition(N):
    # Identical to HiPPO_LegT.transition
    Q = np.arange(N, dtype=np.float64)
    R = (2 * Q + 1)[:, None]
    j, i = np.meshgrid(Q, Q)
    A = np.where(i < j, -1, (-1.0) ** (i - j + 1)) * R
    B = (-1.0) ** Q[:, None] * R
    return A, B


def bilinear_discretize(A, B, dt):
    # Re-implements scipy.signal.cont2discrete(..., method='bilinear')
    # (generalized bilinear transform with alpha = 0.5).
    N = A.shape[0]
    I = np.eye(N)
    ima = I - 0.5 * dt * A
    Ad = np.linalg.solve(ima, I + 0.5 * dt * A)
    Bd = np.linalg.solve(ima, dt * B)
    return Ad, Bd.squeeze(-1)


def make_hippo_chunk_operators(N, dt, T):
    """Host-side float64 precompute of the fused chunked-scan operator.

    Returns (Wstack (N+T, T*N) f32, Ad (N,N) f64, Bd (N,) f64) with
      Wstack[:N]  = Pstack : Pstack[:, s*N:(s+1)*N] = (A^T)^(s+1)
      Wstack[N:]  = Gstack : Gstack[j, s*N:(s+1)*N] = B (A^T)^(s-j) for j <= s.
    """
    A, B = hippo_legt_transition(N)
    Ad, Bd = bilinear_discretize(A, B, dt)
    AdT = Ad.T
    pows = [np.eye(N)]
    for _ in range(T):
        pows.append(pows[-1] @ AdT)                                   # (A^T)^k
    Pstack = np.concatenate([pows[s + 1] for s in range(T)], axis=1)  # (N, T*N)
    bpow = [Bd @ pows[k] for k in range(T)]                           # B (A^T)^k
    G = np.zeros((T, T, N))
    for s in range(T):
        for j_ in range(s + 1):
            G[j_, s] = bpow[s - j_]
    Gstack = G.reshape(T, T * N)                                      # (T, T*N)
    Wstack = np.concatenate([Pstack, Gstack], axis=0)                 # (N+T, T*N)
    # TODO(synk): eval_matrix / reconstruct() are not part of forward(); omitted.
    return Wstack.astype(np.float32), Ad, Bd


# -------------------------------- kernel ------------------------------------
def hippo_chunk_kernel(x_ref, w_ref, o_ref, c_ref):
    """One grid step = T timesteps of the HiPPO recurrence for one M block.

    x_ref: (1, MB, T)     chunk inputs F (flattened batch rows x timesteps)
    w_ref: (N+T, T*N)     fused stacked operator [Pstack; Gstack] (grid-invariant)
    o_ref: (T, MB, N)     output states for the T timesteps of this chunk
    c_ref: (MB, N+T)      VMEM scratch: fused LHS [carry c | chunk inputs F]
    """
    T = o_ref.shape[0]
    N = o_ref.shape[2]

    # Reset the carry at the start of each M block's recurrence.
    @pl.when(pl.program_id(1) == 0)
    def _():
        c_ref[...] = jnp.zeros_like(c_ref)

    # Place this chunk's inputs F (MB, T) in the trailing T lanes of the fused LHS
    # (lane offset N is 128-aligned for N a multiple of 128).
    c_ref[:, N:] = x_ref[0]

    # All T states of the chunk from a single fused MXU matmul.
    # Full-f32 precision: the carry compounds across chunks and the MXU is idle.
    R = jnp.dot(c_ref[...], w_ref[...],
                preferred_element_type=jnp.float32,
                precision=jax.lax.Precision.HIGHEST)          # (MB, T*N)

    # Carry for the next chunk = state after the last step of this chunk.
    c_ref[:, :N] = R[:, (T - 1) * N:]

    # Static, lane-tile-aligned slices -> per-timestep (MB, N) output slabs.
    for s in range(T):
        o_ref[s] = R[:, s * N:(s + 1) * N].astype(o_ref.dtype)


def hippo_legt_forward(x, Wstack, *, n_order, t_steps):
    """x: (D0, D1, L);  returns (L, D0, D1, N) float32 (== torch.stack(cs, dim=0))."""
    D0, D1, L = x.shape
    N, T = n_order, t_steps
    M = D0 * D1

    # M blocking: sublane-aligned, capped at 128 rows (fills MXU rows when large,
    # exposes a "parallel" axis for v7x's two TensorCores).
    M8 = ((M + 7) // 8) * 8
    if M8 <= 128:
        MB = M8
        M_pad = M8
    else:
        MB = 128
        M_pad = ((M + 127) // 128) * 128
    n_mblocks = M_pad // MB

    L_pad = ((L + T - 1) // T) * T             # whole chunks
    n_chunks = L_pad // T

    xf = x.reshape(M, L).astype(jnp.float32)
    xf = jnp.pad(xf, ((0, M_pad - M), (0, L_pad - L)))
    x_t = xf.reshape(M_pad, n_chunks, T).transpose(1, 0, 2)   # (n_chunks, M_pad, T)

    out = pl.pallas_call(
        hippo_chunk_kernel,
        out_shape=jax.ShapeDtypeStruct((L_pad, M_pad, N), jnp.float32),
        grid_spec=pltpu.PrefetchScalarGridSpec(
            num_scalar_prefetch=0,
            grid=(n_mblocks, n_chunks),
            in_specs=[
                pl.BlockSpec((1, MB, T), lambda m, t: (t, m, 0)),       # chunk inputs
                pl.BlockSpec((N + T, T * N), lambda m, t: (0, 0)),      # fused operator
            ],
            out_specs=pl.BlockSpec((T, MB, N), lambda m, t: (t, m, 0)),
            scratch_shapes=[pltpu.VMEM((MB, N + T), jnp.float32)],      # fused LHS [c|F]
        ),
        compiler_params=pltpu.CompilerParams(
            # M blocks are independent recurrences -> parallel (v7x megacore);
            # the chunk axis is a true recurrence -> arbitrary, innermost.
            dimension_semantics=("parallel", "arbitrary"),
            # Footprint is a few MiB incl. double buffers; explicit limit keeps
            # headroom on v7x (64 MiB physical / 32 MiB default scoped VMEM).
            vmem_limit_bytes=32 * 1024 * 1024,
        ),
    )(x_t, Wstack.astype(jnp.float32))

    return out[:L, :M].reshape(L, D0, D1, N)


# ------------------------------ reference -----------------------------------
def hippo_legt_ref(x_np, Ad, Bd):
    """Stepwise float64 reference mirroring HiPPO_LegT.forward (torch loop)."""
    D0, D1, L = x_np.shape
    N = Ad.shape[0]
    c = np.zeros((D0, D1, N), dtype=np.float64)
    cs = []
    for t in range(L):
        f = x_np[..., t].astype(np.float64)            # (D0, D1)
        c = c @ Ad.T + f[..., None] * Bd               # F.linear(c, A) + f @ B
        cs.append(c)
    return np.stack(cs, axis=0)                        # (L, D0, D1, N)


def _max_scaled_err(out, ref):
    scale = max(float(np.max(np.abs(ref))), 1.0)
    return float(np.max(np.abs(np.asarray(out, dtype=np.float64) - ref))) / scale


# --------------------------------- main --------------------------------------
if __name__ == "__main__":
    batch, channels, seq_len = 2, 4, 48
    N = 128          # HiPPO order
    T = 16           # timesteps per grid step (chunk size)
    dt = 1.0 / seq_len

    Wstack_np, Ad64, Bd64 = make_hippo_chunk_operators(N, dt, T)
    Wstack = jnp.asarray(Wstack_np)

    key = jax.random.PRNGKey(0)
    x = jax.random.normal(key, (batch, channels, seq_len), dtype=jnp.float32)

    out = jax.block_until_ready(
        hippo_legt_forward(x, Wstack, n_order=N, t_steps=T))
    assert out.shape == (seq_len, batch, channels, N), out.shape
    ref = hippo_legt_ref(np.asarray(x), Ad64, Bd64)
    err = _max_scaled_err(out, ref)
    assert err < 2e-3, f"max scaled error {err}"

    # Second config: M not a multiple of 8 and L not a multiple of T (padding path).
    x2 = jax.random.normal(jax.random.PRNGKey(1), (1, 3, 13), dtype=jnp.float32)
    out2 = jax.block_until_ready(
        hippo_legt_forward(x2, Wstack, n_order=N, t_steps=T))
    assert out2.shape == (13, 1, 3, N), out2.shape
    ref2 = hippo_legt_ref(np.asarray(x2), Ad64, Bd64)
    err2 = _max_scaled_err(out2, ref2)
    assert err2 < 2e-3, f"max scaled error {err2}"

    print("KERNEL_OK")
</pallas_src>

<mosaic_0001>
module attributes {stable_mosaic.version = 11 : i64} {
  func.func @hippo_chunk_kernel(%arg0: i32, %arg1: i32, %arg2: memref<1x8x16xf32, #tpu.memory_space<vmem>>, %arg3: memref<144x2048xf32, #tpu.memory_space<vmem>>, %arg4: memref<16x8x128xf32, #tpu.memory_space<vmem>>, %arg5: memref<8x144xf32, #tpu.memory_space<vmem>>) attributes {dimension_semantics = [#tpu.dimension_semantics<parallel>, #tpu.dimension_semantics<arbitrary>], iteration_bounds = array<i64: 1, 3>, scalar_prefetch = 0 : i64, scratch_operands = 1 : i64, tpu.core_type = #tpu.core_type<tc>, window_params = [{transform_indices = @transform_0, window_bounds = array<i64: 1, 8, 16>}, {pipeline_mode = #tpu.pipeline_mode<synchronous>, transform_indices = @transform_1, window_bounds = array<i64: 144, 2048>}, {transform_indices = @transform_2, window_bounds = array<i64: 16, 8, 128>}]} {
    %c0_i32 = arith.constant 0 : i32
    %0 = arith.cmpi eq, %arg1, %c0_i32 : i32
    %1 = arith.extui %0 : i1 to i32
    %c0_i32_0 = arith.constant 0 : i32
    %2 = arith.cmpi ne, %1, %c0_i32_0 : i32
    scf.if %2 {
      %cst_43 = arith.constant 0.000000e+00 : f32
      %75 = vector.broadcast %cst_43 : f32 to vector<8x144xf32>
      %c0_44 = arith.constant 0 : index
      %c0_45 = arith.constant 0 : index
      %76 = vector.load %arg5[%c0_44, %c0_45] : memref<8x144xf32, #tpu.memory_space<vmem>>, vector<8x144xf32>
      tpu.vector_store %arg5[%c0_44, %c0_45], %75 {strides = array<i32>} : memref<8x144xf32, #tpu.memory_space<vmem>>, vector<8x144xf32>,
    } else {
    }
    %c0 = arith.constant 0 : index
    %c0_1 = arith.constant 0 : index
    %c0_2 = arith.constant 0 : index
    %3 = vector.load %arg2[%c0, %c0_1, %c0_2] : memref<1x8x16xf32, #tpu.memory_space<vmem>>, vector<1x8x16xf32>
    %4 = vector.shape_cast %3 : vector<1x8x16xf32> to vector<8x16xf32>
    %c0_3 = arith.constant 0 : index
    %c128 = arith.constant 128 : index
    %5 = vector.load %arg5[%c0_3, %c128] : memref<8x144xf32, #tpu.memory_space<vmem>>, vector<8x16xf32>
    tpu.vector_store %arg5[%c0_3, %c128], %4 {strides = array<i32>} : memref<8x144xf32, #tpu.memory_space<vmem>>, vector<8x16xf32>,
    %c0_4 = arith.constant 0 : index
    %c0_5 = arith.constant 0 : index
    %6 = vector.load %arg5[%c0_4, %c0_5] : memref<8x144xf32, #tpu.memory_space<vmem>>, vector<8x144xf32>
    %c0_6 = arith.constant 0 : index
    %c0_7 = arith.constant 0 : index
    %7 = vector.load %arg3[%c0_6, %c0_7] : memref<144x2048xf32, #tpu.memory_space<vmem>>, vector<144x2048xf32>
    %cst = arith.constant dense<0.000000e+00> : vector<8x2048xf32>
    %8 = tpu.matmul %6, %7, %cst {dimension_numbers = #tpu.dot_dimension_numbers<[1], [0], [0], [1], [0, 0, 1, 1], [], []>, precision = #tpu.contract_precision<fp32>} : vector<8x144xf32>, vector<144x2048xf32>, vector<8x2048xf32> -> vector<8x2048xf32>
    %9 = vector.extract_strided_slice %8 {offsets = [0, 1920], sizes = [8, 128], strides = [1, 1]} : vector<8x2048xf32> to vector<8x128xf32>
    %c0_8 = arith.constant 0 : index
    %c0_9 = arith.constant 0 : index
    %10 = vector.load %arg5[%c0_8, %c0_9] : memref<8x144xf32, #tpu.memory_space<vmem>>, vector<8x128xf32>
    tpu.vector_store %arg5[%c0_8, %c0_9], %9 {strides = array<i32>} : memref<8x144xf32, #tpu.memory_space<vmem>>, vector<8x128xf32>,
    %11 = vector.extract_strided_slice %8 {offsets = [0, 0], sizes = [8, 128], strides = [1, 1]} : vector<8x2048xf32> to vector<8x128xf32>
    %c0_10 = arith.constant 0 : index
    %c0_11 = arith.constant 0 : index
    %c0_12 = arith.constant 0 : index
    %12 = vector.load %arg4[%c0_10, %c0_11, %c0_12] : memref<16x8x128xf32, #tpu.memory_space<vmem>>, vector<1x8x128xf32>
    %13 = vector.shape_cast %12 : vector<1x8x128xf32> to vector<8x128xf32>
    %14 = vector.shape_cast %11 : vector<8x128xf32> to vector<1x8x128xf32>
    tpu.vector_store %arg4[%c0_10, %c0_11, %c0_12], %14 {strides = array<i32>} : memref<16x8x128xf32, #tpu.memory_space<vmem>>, vector<1x8x128xf32>,
    %15 = vector.extract_strided_slice %8 {offsets = [0, 128], sizes = [8, 128], strides = [1, 1]} : vector<8x2048xf32> to vector<8x128xf32>
    %c1 = arith.constant 1 : index
    %c0_13 = arith.constant 0 : index
    %c0_14 = arith.constant 0 : index
    %16 = vector.load %arg4[%c1, %c0_13, %c0_14] : memref<16x8x128xf32, #tpu.memory_space<vmem>>, vector<1x8x128xf32>
    %17 = vector.shape_cast %16 : vector<1x8x128xf32> to vector<8x128xf32>
    %18 = vector.shape_cast %15 : vector<8x128xf32> to vector<1x8x128xf32>
    tpu.vector_store %arg4[%c1, %c0_13, %c0_14], %18 {strides = array<i32>} : memref<16x8x128xf32, #tpu.memory_space<vmem>>, vector<1x8x128xf32>,
    %19 = vector.extract_strided_slice %8 {offsets = [0, 256], sizes = [8, 128], strides = [1, 1]} : vector<8x2048xf32> to vector<8x128xf32>
    %c2 = arith.constant 2 : index
    %c0_15 = arith.constant 0 : index
    %c0_16 = arith.constant 0 : index
    %20 = vector.load %arg4[%c2, %c0_15, %c0_16] : memref<16x8x128xf32, #tpu.memory_space<vmem>>, vector<1x8x128xf32>
    %21 = vector.shape_cast %20 : vector<1x8x128xf32> to vector<8x128xf32>
    %22 = vector.shape_cast %19 : vector<8x128xf32> to vector<1x8x128xf32>
    tpu.vector_store %arg4[%c2, %c0_15, %c0_16], %22 {strides = array<i32>} : memref<16x8x128xf32, #tpu.memory_space<vmem>>, vector<1x8x128xf32>,
    %23 = vector.extract_strided_slice %8 {offsets = [0, 384], sizes = [8, 128], strides = [1, 1]} : vector<8x2048xf32> to vector<8x128xf32>
    %c3 = arith.constant 3 : index
    %c0_17 = arith.constant 0 : index
    %c0_18 = arith.constant 0 : index
    %24 = vector.load %arg4[%c3, %c0_17, %c0_18] : memref<16x8x128xf32, #tpu.memory_space<vmem>>, vector<1x8x128xf32>
    %25 = vector.shape_cast %24 : vector<1x8x128xf32> to vector<8x128xf32>
    %26 = vector.shape_cast %23 : vector<8x128xf32> to vector<1x8x128xf32>
    tpu.vector_store %arg4[%c3, %c0_17, %c0_18], %26 {strides = array<i32>} : memref<16x8x128xf32, #tpu.memory_space<vmem>>, vector<1x8x128xf32>,
    %27 = vector.extract_strided_slice %8 {offsets = [0, 512], sizes = [8, 128], strides = [1, 1]} : vector<8x2048xf32> to vector<8x128xf32>
    %c4 = arith.constant 4 : index
    %c0_19 = arith.constant 0 : index
    %c0_20 = arith.constant 0 : index
    %28 = vector.load %arg4[%c4, %c0_19, %c0_20] : memref<16x8x128xf32, #tpu.memory_space<vmem>>, vector<1x8x128xf32>
    %29 = vector.shape_cast %28 : vector<1x8x128xf32> to vector<8x128xf32>
    %30 = vector.shape_cast %27 : vector<8x128xf32> to vector<1x8x128xf32>
    tpu.vector_store %arg4[%c4, %c0_19, %c0_20], %30 {strides = array<i32>} : memref<16x8x128xf32, #tpu.memory_space<vmem>>, vector<1x8x128xf32>,
    %31 = vector.extract_strided_slice %8 {offsets = [0, 640], sizes = [8, 128], strides = [1, 1]} : vector<8x2048xf32> to vector<8x128xf32>
    %c5 = arith.constant 5 : index
    %c0_21 = arith.constant 0 : index
    %c0_22 = arith.constant 0 : index
    %32 = vector.load %arg4[%c5, %c0_21, %c0_22] : memref<16x8x128xf32, #tpu.memory_space<vmem>>, vector<1x8x128xf32>
    %33 = vector.shape_cast %32 : vector<1x8x128xf32> to vector<8x128xf32>
    %34 = vector.shape_cast %31 : vector<8x128xf32> to vector<1x8x128xf32>
    tpu.vector_store %arg4[%c5, %c0_21, %c0_22], %34 {strides = array<i32>} : memref<16x8x128xf32, #tpu.memory_space<vmem>>, vector<1x8x128xf32>,
    %35 = vector.extract_strided_slice %8 {offsets = [0, 768], sizes = [8, 128], strides = [1, 1]} : vector<8x2048xf32> to vector<8x128xf32>
    %c6 = arith.constant 6 : index
    %c0_23 = arith.constant 0 : index
    %c0_24 = arith.constant 0 : index
    %36 = vector.load %arg4[%c6, %c0_23, %c0_24] : memref<16x8x128xf32, #tpu.memory_space<vmem>>, vector<1x8x128xf32>
    %37 = vector.shape_cast %36 : vector<1x8x128xf32> to vector<8x128xf32>
    %38 = vector.shape_cast %35 : vector<8x128xf32> to vector<1x8x128xf32>
    tpu.vector_store %arg4[%c6, %c0_23, %c0_24], %38 {strides = array<i32>} : memref<16x8x128xf32, #tpu.memory_space<vmem>>, vector<1x8x128xf32>,
    %39 = vector.extract_strided_slice %8 {offsets = [0, 896], sizes = [8, 128], strides = [1, 1]} : vector<8x2048xf32> to vector<8x128xf32>
    %c7 = arith.constant 7 : index
    %c0_25 = arith.constant 0 : index
    %c0_26 = arith.constant 0 : index
    %40 = vector.load %arg4[%c7, %c0_25, %c0_26] : memref<16x8x128xf32, #tpu.memory_space<vmem>>, vector<1x8x128xf32>
    %41 = vector.shape_cast %40 : vector<1x8x128xf32> to vector<8x128xf32>
    %42 = vector.shape_cast %39 : vector<8x128xf32> to vector<1x8x128xf32>
    tpu.vector_store %arg4[%c7, %c0_25, %c0_26], %42 {strides = array<i32>} : memref<16x8x128xf32, #tpu.memory_space<vmem>>, vector<1x8x128xf32>,
    %43 = vector.extract_strided_slice %8 {offsets = [0, 1024], sizes = [8, 128], strides = [1, 1]} : vector<8x2048xf32> to vector<8x128xf32>
    %c8 = arith.constant 8 : index
    %c0_27 = arith.constant 0 : index
    %c0_28 = arith.constant 0 : index
    %44 = vector.load %arg4[%c8, %c0_27, %c0_28] : memref<16x8x128xf32, #tpu.memory_space<vmem>>, vector<1x8x128xf32>
    %45 = vector.shape_cast %44 : vector<1x8x128xf32> to vector<8x128xf32>
    %46 = vector.shape_cast %43 : vector<8x128xf32> to vector<1x8x128xf32>
    tpu.vector_store %arg4[%c8, %c0_27, %c0_28], %46 {strides = array<i32>} : memref<16x8x128xf32, #tpu.memory_space<vmem>>, vector<1x8x128xf32>,
    %47 = vector.extract_strided_slice %8 {offsets = [0, 1152], sizes = [8, 128], strides = [1, 1]} : vector<8x2048xf32> to vector<8x128xf32>
    %c9 = arith.constant 9 : index
    %c0_29 = arith.constant 0 : index
    %c0_30 = arith.constant 0 : index
    %48 = vector.load %arg4[%c9, %c0_29, %c0_30] : memref<16x8x128xf32, #tpu.memory_space<vmem>>, vector<1x8x128xf32>
    %49 = vector.shape_cast %48 : vector<1x8x128xf32> to vector<8x128xf32>
    %50 = vector.shape_cast %47 : vector<8x128xf32> to vector<1x8x128xf32>
    tpu.vector_store %arg4[%c9, %c0_29, %c0_30], %50 {strides = array<i32>} : memref<16x8x128xf32, #tpu.memory_space<vmem>>, vector<1x8x128xf32>,
    %51 = vector.extract_strided_slice %8 {offsets = [0, 1280], sizes = [8, 128], strides = [1, 1]} : vector<8x2048xf32> to vector<8x128xf32>
    %c10 = arith.constant 10 : index
    %c0_31 = arith.constant 0 : index
    %c0_32 = arith.constant 0 : index
    %52 = vector.load %arg4[%c10, %c0_31, %c0_32] : memref<16x8x128xf32, #tpu.memory_space<vmem>>, vector<1x8x128xf32>
    %53 = vector.shape_cast %52 : vector<1x8x128xf32> to vector<8x128xf32>
    %54 = vector.shape_cast %51 : vector<8x128xf32> to vector<1x8x128xf32>
    tpu.vector_store %arg4[%c10, %c0_31, %c0_32], %54 {strides = array<i32>} : memref<16x8x128xf32, #tpu.memory_space<vmem>>, vector<1x8x128xf32>,
    %55 = vector.extract_strided_slice %8 {offsets = [0, 1408], sizes = [8, 128], strides = [1, 1]} : vector<8x2048xf32> to vector<8x128xf32>
    %c11 = arith.constant 11 : index
    %c0_33 = arith.constant 0 : index
    %c0_34 = arith.constant 0 : index
    %56 = vector.load %arg4[%c11, %c0_33, %c0_34] : memref<16x8x128xf32, #tpu.memory_space<vmem>>, vector<1x8x128xf32>
    %57 = vector.shape_cast %56 : vector<1x8x128xf32> to vector<8x128xf32>
    %58 = vector.shape_cast %55 : vector<8x128xf32> to vector<1x8x128xf32>
    tpu.vector_store %arg4[%c11, %c0_33, %c0_34], %58 {strides = array<i32>} : memref<16x8x128xf32, #tpu.memory_space<vmem>>, vector<1x8x128xf32>,
    %59 = vector.extract_strided_slice %8 {offsets = [0, 1536], sizes = [8, 128], strides = [1, 1]} : vector<8x2048xf32> to vector<8x128xf32>
    %c12 = arith.constant 12 : index
    %c0_35 = arith.constant 0 : index
    %c0_36 = arith.constant 0 : index
    %60 = vector.load %arg4[%c12, %c0_35, %c0_36] : memref<16x8x128xf32, #tpu.memory_space<vmem>>, vector<1x8x128xf32>
    %61 = vector.shape_cast %60 : vector<1x8x128xf32> to vector<8x128xf32>
    %62 = vector.shape_cast %59 : vector<8x128xf32> to vector<1x8x128xf32>
    tpu.vector_store %arg4[%c12, %c0_35, %c0_36], %62 {strides = array<i32>} : memref<16x8x128xf32, #tpu.memory_space<vmem>>, vector<1x8x128xf32>,
    %63 = vector.extract_strided_slice %8 {offsets = [0, 1664], sizes = [8, 128], strides = [1, 1]} : vector<8x2048xf32> to vector<8x128xf32>
    %c13 = arith.constant 13 : index
    %c0_37 = arith.constant 0 : index
    %c0_38 = arith.constant 0 : index
    %64 = vector.load %arg4[%c13, %c0_37, %c0_38] : memref<16x8x128xf32, #tpu.memory_space<vmem>>, vector<1x8x128xf32>
    %65 = vector.shape_cast %64 : vector<1x8x128xf32> to vector<8x128xf32>
    %66 = vector.shape_cast %63 : vector<8x128xf32> to vector<1x8x128xf32>
    tpu.vector_store %arg4[%c13, %c0_37, %c0_38], %66 {strides = array<i32>} : memref<16x8x128xf32, #tpu.memory_space<vmem>>, vector<1x8x128xf32>,
    %67 = vector.extract_strided_slice %8 {offsets = [0, 1792], sizes = [8, 128], strides = [1, 1]} : vector<8x2048xf32> to vector<8x128xf32>
    %c14 = arith.constant 14 : index
    %c0_39 = arith.constant 0 : index
    %c0_40 = arith.constant 0 : index
    %68 = vector.load %arg4[%c14, %c0_39, %c0_40] : memref<16x8x128xf32, #tpu.memory_space<vmem>>, vector<1x8x128xf32>
    %69 = vector.shape_cast %68 : vector<1x8x128xf32> to vector<8x128xf32>
    %70 = vector.shape_cast %67 : vector<8x128xf32> to vector<1x8x128xf32>
    tpu.vector_store %arg4[%c14, %c0_39, %c0_40], %70 {strides = array<i32>} : memref<16x8x128xf32, #tpu.memory_space<vmem>>, vector<1x8x128xf32>,
    %71 = vector.extract_strided_slice %8 {offsets = [0, 1920], sizes = [8, 128], strides = [1, 1]} : vector<8x2048xf32> to vector<8x128xf32>
    %c15 = arith.constant 15 : index
    %c0_41 = arith.constant 0 : index
    %c0_42 = arith.constant 0 : index
    %72 = vector.load %arg4[%c15, %c0_41, %c0_42] : memref<16x8x128xf32, #tpu.memory_space<vmem>>, vector<1x8x128xf32>
    %73 = vector.shape_cast %72 : vector<1x8x128xf32> to vector<8x128xf32>
    %74 = vector.shape_cast %71 : vector<8x128xf32> to vector<1x8x128xf32>
    tpu.vector_store %arg4[%c15, %c0_41, %c0_42], %74 {strides = array<i32>} : memref<16x8x128xf32, #tpu.memory_space<vmem>>, vector<1x8x128xf32>,
    return
  }
  func.func @transform_0(%arg0: i32, %arg1: i32) -> (i32, i32, i32) {
    %c0_i32 = arith.constant 0 : i32
    %c0_i32_0 = arith.constant 0 : i32
    return %arg1, %arg0, %c0_i32 : i32, i32, i32
  }
  func.func @transform_1(%arg0: i32, %arg1: i32) -> (i32, i32) {
    %c0_i32 = arith.constant 0 : i32
    %c0_i32_0 = arith.constant 0 : i32
    %c0_i32_1 = arith.constant 0 : i32
    return %c0_i32, %c0_i32_0 : i32, i32
  }
  func.func @transform_2(%arg0: i32, %arg1: i32) -> (i32, i32, i32) {
    %c0_i32 = arith.constant 0 : i32
    %c0_i32_0 = arith.constant 0 : i32
    return %arg1, %arg0, %c0_i32 : i32, i32, i32
  }
}

</mosaic_0001>

<llo_original>
// kernel: tpu_custom_call.1
$region0: #{tpu_custom_call.1}
  #allocation0 [shape = 'u32[]', space=smem, size = 0x4, offset = 0x4, fixed_abs, tag = 'smem constant byte address 0x4 - core index']
  #allocation1 [shape = 'u32[144,128]{1,0:T(1,128)}', space=vmem, size = 0x12000, scoped, tag = 'internal scratch']
  #allocation2 [shape = 'f32[8,144]{1,0:T(8,128)}', space=vmem, size = 0x2000, scoped, tag = 'scratch operand']
  %s0 = inlined_call_operand.hbm [shape: f32[3,8,16], index: 0, kind: input, shape index: {}]
  %s1 = inlined_call_operand.hbm [shape: f32[144,2048], index: 1, kind: input, shape index: {}]
  %s2 = inlined_call_operand.hbm [shape: f32[48,8,128], index: 2, kind: output, shape index: {}]
  %s3 = sld [smem:[#allocation0]]
  $region53: #{tpu_custom_call.1} parent=0
    _
  %s5 = ssub.s32 1, %s3
  %s6 = scalar_select 0, %s5, %s3
  $region1: #{tpu_custom_call.1} parent=0
    #allocation3 [shape = 'u8[8192]{0}', space=vmem, size = 0x2000, scoped, tag = 'input window, operand 0']
    #allocation4 [shape = 's32[2]{0}', space=sflag, size = 0x8, scoped, tag = 'scoped memory for tpu_custom_call.1']
    #allocation5 [shape = 's32[2]{0}', space=sflag, size = 0x8, scoped, tag = 'scoped memory for tpu_custom_call.1']
    #allocation6 [shape = 'u8[1179648]{0}', space=vmem, size = 0x120000, scoped, tag = 'input window, operand 1, single buffered']
    #allocation7 [shape = 's32[1]{0}', space=sflag, size = 0x4, scoped, tag = 'scoped memory for tpu_custom_call.1']
    #allocation8 [shape = 'u8[131072]{0}', space=vmem, size = 0x20000, scoped, tag = 'output window, operand 0']
    %7 = vsyncpa [#allocation4], 0
    %s8 = scalar_lea.sflag [#allocation4], 1
    %9 = vsyncpa %s8, 0
    %10 = vsyncpa [#allocation7], 0
    %11 = vsyncpa [#allocation5], 0
    %s12 = scalar_lea.sflag [#allocation5], 1
    %13 = vsyncpa %s12, 0
    loop: start=0, step=1, limit=5
    $region2: #{tpu_custom_call.1} parent=1 // loop_pre_header
      _
    $region3: #{tpu_custom_call.1} parent=1 // loop_header
      %s15 = sphi 0, %s19
      %p16 = scmp.ge.s32.totalorder %s15, 5
      %s22 = sphi 0, %s34
      %s23 = sphi 0, %s30
      %s24 = sphi 0, %s22
      %s25 = sphi 0, %s23
      %s26 = sphi 0, %s24
      %s27 = sphi 0, %s25
      %s39 = sphi 0, %s41
      %s42 = sphi 0, %s39
      %s43 = sphi 0, %s42
      %s59 = sphi 0, %s43
      %s63 = sphi 0, %s63
      %s65 = sphi 0, %s63
      %s66 = sphi 0, %s65
      %s80 = sphi 0, %s66
      %s88 = sphi 0, %s90
      %s91 = sphi 0, %s88
      %s92 = sphi 0, %s91
      %s108 = sphi 0, %s92
    $region4: #{tpu_custom_call.1} parent=1 // loop_header_branch
      %18 = sbr.rel (%p16) target = $region8
    $region5: #{tpu_custom_call.1} parent=1 // loop_body
      %s20 = ssub.s32 %s15, 1
      %s21 = ssub.s32 %s15, 2
      %s28 = sadd.s32 1, %s23
      %p29 = scmp.ge.s32.totalorder %s28, 3
      %s30 = scalar_select %p29, 0, %s28
      %s31 = sadd.s32 1, %s22
      %s32 = scalar_select %p29, %s31, %s22
      %p33 = scmp.ge.s32.totalorder %s32, 1
      %s34 = scalar_select %p33, 0, %s32
      %s35 = ssub.s32 %s23, %s30
      %s36 = ssub.s32 %s22, %s34
      %s37 = sor.u32 %s35, %s36
      %p38 = scmp.eq.s32.totalorder %s37, 0
      %s40 = sadd.s32 %s39, 1
      %s41 = scalar_select %p38, %s39, %s40
      %p44 = pneg %p38
      %p45 = scmp.eq.s32.totalorder %s15, 2
      %p46 = por %p44, %p45
      %p47 = scmp.ne.s32.totalorder %s39, %s42
      %p48 = scmp.eq.s32.totalorder %s15, 0
      %p49 = por %p47, %p48
      %p50 = scmp.ne.s32.totalorder %s39, %s42
      %p51 = scmp.eq.s32.totalorder %s20, 2
      %p52 = por %p50, %p51
      %p53 = scmp.ne.s32.totalorder %s42, %s43
      %p54 = scmp.eq.s32.totalorder %s20, 0
      %p55 = por %p53, %p54
      %p56 = scmp.ne.s32.totalorder %s42, %s43
      %p57 = scmp.eq.s32.totalorder %s21, 2
      %p58 = por %p56, %p57
      %p60 = scmp.ne.s32.totalorder %s43, %s59
      %p61 = scmp.eq.s32.totalorder %s21, 0
      %p62 = por %p60, %p61
      %s64 = sadd.s32 %s63, 1
      %p67 = scmp.eq.s32.totalorder %s15, 2
      %p68 = scmp.ne.s32.totalorder %s63, %s65
      %p69 = scmp.eq.s32.totalorder %s15, 0
      %p70 = por %p68, %p69
      %p71 = scmp.ne.s32.totalorder %s63, %s65
      %p72 = scmp.eq.s32.totalorder %s20, 2
      %p73 = por %p71, %p72
      %p74 = scmp.ne.s32.totalorder %s65, %s66
      %p75 = scmp.eq.s32.totalorder %s20, 0
      %p76 = por %p74, %p75
      %p77 = scmp.ne.s32.totalorder %s65, %s66
      %p78 = scmp.eq.s32.totalorder %s21, 2
      %p79 = por %p77, %p78
      %p81 = scmp.ne.s32.totalorder %s66, %s80
      %p82 = scmp.eq.s32.totalorder %s21, 0
      %p83 = por %p81, %p82
      %s84 = ssub.s32 %s23, %s30
      %s85 = ssub.s32 %s22, %s34
      %s86 = sor.u32 %s84, %s85
      %p87 = scmp.eq.s32.totalorder %s86, 0
      %s89 = sadd.s32 %s88, 1
      %s90 = scalar_select %p87, %s88, %s89
      %p93 = pneg %p87
      %p94 = scmp.eq.s32.totalorder %s15, 2
      %p95 = por %p93, %p94
      %p96 = scmp.ne.s32.totalorder %s88, %s91
      %p97 = scmp.eq.s32.totalorder %s15, 0
      %p98 = por %p96, %p97
      %p99 = scmp.ne.s32.totalorder %s88, %s91
      %p100 = scmp.eq.s32.totalorder %s20, 2
      %p101 = por %p99, %p100
      %p102 = scmp.ne.s32.totalorder %s91, %s92
      %p103 = scmp.eq.s32.totalorder %s20, 0
      %p104 = por %p102, %p103
      %p105 = scmp.ne.s32.totalorder %s91, %s92
      %p106 = scmp.eq.s32.totalorder %s21, 2
      %p107 = por %p105, %p106
      %p109 = scmp.ne.s32.totalorder %s92, %s108
      %p110 = scmp.eq.s32.totalorder %s21, 0
      %p111 = por %p109, %p110
      %p112 = scmp.le.s32.totalorder 1, %s15
      %p113 = scmp.lt.s32.totalorder %s15, 4
      %p114 = pnand %p112, %p113
      %p115 = pneg %p114
      // Predicated region
      $region9: #{tpu_custom_call.1} parent=5 // pred_check
        _
      $region10: #{tpu_custom_call.1} parent=5 // pred_check_branch
        %117 = sbr.rel (%p114) target = $region12
      $region11: #{tpu_custom_call.1} parent=5 // pred_region
        %s118 = ssub.s32 %s15, 1
        // Predicated region
        $region13: #{tpu_custom_call.1} parent=11 // pred_check
          %p119 = pneg %p76
        $region14: #{tpu_custom_call.1} parent=11 // pred_check_branch
          %121 = sbr.rel (%p119) target = $region16
        $region15: #{tpu_custom_call.1} parent=11 // pred_region
          %s123 = ssub.s32 36864, 36864
          %124 = vsyncadd [#allocation7], %s123
          %s125 = sshll.u32 [#allocation6], 4
          %s126 = int_to_ptr.vmem [resolvable:$true] %s125
          %131 = dma.hbm_to_vmem [thread:$0]  %s1, 36864, %s126, [#allocation7], 2048, 2048, 128
        $region16: #{tpu_custom_call.1} parent=11 // pred_fallthru
          _
      $region12: #{tpu_custom_call.1} parent=5 // pred_fallthru
        _
      %p132 = scmp.lt.s32.totalorder %s15, 3
      // Predicated region
      $region17: #{tpu_custom_call.1} parent=5 // pred_check
        %p133 = pneg %p132
      $region18: #{tpu_custom_call.1} parent=5 // pred_check_branch
        %135 = sbr.rel (%p133) target = $region20
      $region19: #{tpu_custom_call.1} parent=5 // pred_region
        // Predicated region
        $region21: #{tpu_custom_call.1} parent=19 // pred_check
          %p136 = pneg %p49
        $region22: #{tpu_custom_call.1} parent=19 // pred_check_branch
          %138 = sbr.rel (%p136) target = $region24
        $region23: #{tpu_custom_call.1} parent=19 // pred_region
          %s139 = sand.u32 %s39, 1
          %s140 = scalar_lea.sflag [#allocation4], %s139
          %s141 = sand.u32 %s39, 1
          %s142 = smul.addr %s141, 8
          %s143 = scalar_lea.vmem [#allocation3], %s142
          %s145 = ssub.s32 128, 128
          %146 = vsyncadd %s140, %s145
          %s147 = sadd.s32 %s22, %s23
          %s148 = smul.addr %s147, 128
          %s149 = scalar_lea.hbm %s0, %s148
          %s151 = sshll.u32 %s143, 4
          %s152 = int_to_ptr.vmem [resolvable:$true] %s151
          %154 = dma.hbm_to_vmem [thread:$0]  %s149, 128, %s152, %s140
        $region24: #{tpu_custom_call.1} parent=19 // pred_fallthru
          _
      $region20: #{tpu_custom_call.1} parent=5 // pred_fallthru
        _
      %p155 = scmp.le.s32.totalorder 1, %s15
      %p156 = scmp.lt.s32.totalorder %s15, 4
      %p157 = pnand %p155, %p156
      %p158 = pneg %p157
      // Predicated region
      $region25: #{tpu_custom_call.1} parent=5 // pred_check
        _
      $region26: #{tpu_custom_call.1} parent=5 // pred_check_branch
        %160 = sbr.rel (%p157) target = $region28
      $region27: #{tpu_custom_call.1} parent=5 // pred_region
        %s161 = ssub.s32 %s15, 1
        %s162 = sand.u32 %s42, 1
        %s163 = scalar_lea.sflag [#allocation4], %s162
        %s164 = sand.u32 %s42, 1
        %s165 = smul.addr %s164, 8
        %s166 = scalar_lea.vmem [#allocation3], %s165
        // Predicated region
        $region29: #{tpu_custom_call.1} parent=27 // pred_check
          %p167 = pneg %p55
        $region30: #{tpu_custom_call.1} parent=27 // pred_check_branch
          %169 = sbr.rel (%p167) target = $region32
        $region31: #{tpu_custom_call.1} parent=27 // pred_region
          %170 = dma.done %s163, 128
        $region32: #{tpu_custom_call.1} parent=27 // pred_fallthru
          _
        // Predicated region
        $region33: #{tpu_custom_call.1} parent=27 // pred_check
          %p171 = pneg %p76
        $region34: #{tpu_custom_call.1} parent=27 // pred_check_branch
          %173 = sbr.rel (%p171) target = $region36
        $region35: #{tpu_custom_call.1} parent=27 // pred_region
          %174 = dma.done [#allocation7], 36864
        $region36: #{tpu_custom_call.1} parent=27 // pred_fallthru
          _
        %s175 = sand.u32 %s42, 1
        %s176 = scalar_lea.sflag [#allocation4], %s175
        %s177 = sand.u32 %s42, 1
        %s178 = smul.addr %s177, 8
        %s179 = scalar_lea.vmem [#allocation3], %s178
        %p180 = pneg %p55
        %p181 = pneg %p52
        %p182 = pneg %p76
        %p183 = pneg %p73
        %p184 = pneg %p104
        %p185 = pneg %p101
        %s186 = sand.u32 %s91, 1
        %s187 = scalar_lea.sflag [#allocation5], %s186
        %s188 = sand.u32 %s91, 1
        %s189 = smul.addr %s188, 128
        %s190 = scalar_lea.vmem [#allocation8], %s189
        %s191 = smul.u32 16, %s25
        %p192 = scmp.eq.s32.totalorder %s25, 0
        // Predicated region
        $region37: #{tpu_custom_call.1} parent=27 // pred_check
          %p193 = pneg %p192
        $region38: #{tpu_custom_call.1} parent=27 // pred_check_branch
          %195 = sbr.rel (%p193) target = $region40
        $region39: #{tpu_custom_call.1} parent=27 // pred_region
          %196 = vst [vmem:[#allocation2] sm:$0xff] 0.0
          %vm197 = vcmask 130048
          %198 = vst.msk [vmem:[#allocation2 + $0x8] sm:$0xff] %vm197, 0.0
        $region40: #{tpu_custom_call.1} parent=27 // pred_fallthru
          _
        %v199 = vld [vmem:[%s166] sm:$0xff]
        %vm200 = vcmask 130048
        %201 = vst.msk [vmem:[#allocation2 + $0x8] sm:$0xff] %vm200, %v199
        %v202 = vld [vmem:[#allocation2] sm:$0xff]
        %v203 = vld [vmem:[#allocation2 + $0x8] sm:$0xff]
        %v204 = vld [vmem:[#allocation6] sm:$0xff]
        %v205 = vld [vmem:[#allocation6 + $0x8] sm:$0xff]
        %v206 = vld [vmem:[#allocation6 + $0x10] sm:$0xff]
        %v207 = vld [vmem:[#allocation6 + $0x18] sm:$0xff]
        %v208 = vld [vmem:[#allocation6 + $0x20] sm:$0xff]
        %v209 = vld [vmem:[#allocation6 + $0x28] sm:$0xff]
        %v210 = vld [vmem:[#allocation6 + $0x30] sm:$0xff]
        %v211 = vld [vmem:[#allocation6 + $0x38] sm:$0xff]
        %v212 = vld [vmem:[#allocation6 + $0x40] sm:$0xff]
        %v213 = vld [vmem:[#allocation6 + $0x48] sm:$0xff]
        %v214 = vld [vmem:[#allocation6 + $0x50] sm:$0xff]
        %v215 = vld [vmem:[#allocation6 + $0x58] sm:$0xff]
        %v216 = vld [vmem:[#allocation6 + $0x60] sm:$0xff]
        %v217 = vld [vmem:[#allocation6 + $0x68] sm:$0xff]
        %v218 = vld [vmem:[#allocation6 + $0x70] sm:$0xff]
        %v219 = vld [vmem:[#allocation6 + $0x78] sm:$0xff]
        %v220 = vld [vmem:[#allocation6 + $0x80] sm:$0xff]
        %v221 = vld [vmem:[#allocation6 + $0x88] sm:$0xff]
        %v222 = vld [vmem:[#allocation6 + $0x90] sm:$0xff]
        %v223 = vld [vmem:[#allocation6 + $0x98] sm:$0xff]
        %v224 = vld [vmem:[#allocation6 + $0xa0] sm:$0xff]
        %v225 = vld [vmem:[#allocation6 + $0xa8] sm:$0xff]
        %v226 = vld [vmem:[#allocation6 + $0xb0] sm:$0xff]
        %v227 = vld [vmem:[#allocation6 + $0xb8] sm:$0xff]
        %v228 = vld [vmem:[#allocation6 + $0xc0] sm:$0xff]
        %v229 = vld [vmem:[#allocation6 + $0xc8] sm:$0xff]
        %v230 = vld [vmem:[#allocation6 + $0xd0] sm:$0xff]
        %v231 = vld [vmem:[#allocation6 + $0xd8] sm:$0xff]
        %v232 = vld [vmem:[#allocation6 + $0xe0] sm:$0xff]
        %v233 = vld [vmem:[#allocation6 + $0xe8] sm:$0xff]
        %v234 = vld [vmem:[#allocation6 + $0xf0] sm:$0xff]
        %v235 = vld [vmem:[#allocation6 + $0xf8] sm:$0xff]
        %v236 = vld [vmem:[#allocation6 + $0x100] sm:$0xff]
        %v237 = vld [vmem:[#allocation6 + $0x108] sm:$0xff]
        %v238 = vld [vmem:[#allocation6 + $0x110] sm:$0xff]
        %v239 = vld [vmem:[#allocation6 + $0x118] sm:$0xff]
        %v240 = vld [vmem:[#allocation6 + $0x120] sm:$0xff]
        %v241 = vld [vmem:[#allocation6 + $0x128] sm:$0xff]
        %v242 = vld [vmem:[#allocation6 + $0x130] sm:$0xff]
        %v243 = vld [vmem:[#allocation6 + $0x138] sm:$0xff]
        %v244 = vld [vmem:[#allocation6 + $0x140] sm:$0xff]
        %v245 = vld [vmem:[#allocation6 + $0x148] sm:$0xff]
        %v246 = vld [vmem:[#allocation6 + $0x150] sm:$0xff]
        %v247 = vld [vmem:[#allocation6 + $0x158] sm:$0xff]
        %v248 = vld [vmem:[#allocation6 + $0x160] sm:$0xff]
        %v249 = vld [vmem:[#allocation6 + $0x168] sm:$0xff]
        %v250 = vld [vmem:[#allocation6 + $0x170] sm:$0xff]
        %v251 = vld [vmem:[#allocation6 + $0x178] sm:$0xff]
        %v252 = vld [vmem:[#allocation6 + $0x180] sm:$0xff]
        %v253 = vld [vmem:[#allocation6 + $0x188] sm:$0xff]
        %v254 = vld [vmem:[#allocation6 + $0x190] sm:$0xff]
        %v255 = vld [vmem:[#allocation6 + $0x198] sm:$0xff]
        %v256 = vld [vmem:[#allocation6 + $0x1a0] sm:$0xff]
        %v257 = vld [vmem:[#allocation6 + $0x1a8] sm:$0xff]
        %v258 = vld [vmem:[#allocation6 + $0x1b0] sm:$0xff]
        %v259 = vld [vmem:[#allocation6 + $0x1b8] sm:$0xff]
        %v260 = vld [vmem:[#allocation6 + $0x1c0] sm:$0xff]
        %v261 = vld [vmem:[#allocation6 + $0x1c8] sm:$0xff]
        %v262 = vld [vmem:[#allocation6 + $0x1d0] sm:$0xff]
        %v263 = vld [vmem:[#allocation6 + $0x1d8] sm:$0xff]
        %v264 = vld [vmem:[#allocation6 + $0x1e0] sm:$0xff]
        %v265 = vld [vmem:[#allocation6 + $0x1e8] sm:$0xff]
        %v266 = vld [vmem:[#allocation6 + $0x1f0] sm:$0xff]
        %v267 = vld [vmem:[#allocation6 + $0x1f8] sm:$0xff]
        %v268 = vld [vmem:[#allocation6 + $0x200] sm:$0xff]
        %v269 = vld [vmem:[#allocation6 + $0x208] sm:$0xff]
        %v270 = vld [vmem:[#allocation6 + $0x210] sm:$0xff]
        %v271 = vld [vmem:[#allocation6 + $0x218] sm:$0xff]
        %v272 = vld [vmem:[#allocation6 + $0x220] sm:$0xff]
        %v273 = vld [vmem:[#allocation6 + $0x228] sm:$0xff]
        %v274 = vld [vmem:[#allocation6 + $0x230] sm:$0xff]
        %v275 = vld [vmem:[#allocation6 + $0x238] sm:$0xff]
        %v276 = vld [vmem:[#allocation6 + $0x240] sm:$0xff]
        %v277 = vld [vmem:[#allocation6 + $0x248] sm:$0xff]
        %v278 = vld [vmem:[#allocation6 + $0x250] sm:$0xff]
        %v279 = vld [vmem:[#allocation6 + $0x258] sm:$0xff]
        %v280 = vld [vmem:[#allocation6 + $0x260] sm:$0xff]
        %v281 = vld [vmem:[#allocation6 + $0x268] sm:$0xff]
        %v282 = vld [vmem:[#allocation6 + $0x270] sm:$0xff]
        %v283 = vld [vmem:[#allocation6 + $0x278] sm:$0xff]
        %v284 = vld [vmem:[#allocation6 + $0x280] sm:$0xff]
        %v285 = vld [vmem:[#allocation6 + $0x288] sm:$0xff]
        %v286 = vld [vmem:[#allocation6 + $0x290] sm:$0xff]
        %v287 = vld [vmem:[#allocation6 + $0x298] sm:$0xff]
        %v288 = vld [vmem:[#allocation6 + $0x2a0] sm:$0xff]
        %v289 = vld [vmem:[#allocation6 + $0x2a8] sm:$0xff]
        %v290 = vld [vmem:[#allocation6 + $0x2b0] sm:$0xff]
        %v291 = vld [vmem:[#allocation6 + $0x2b8] sm:$0xff]
        %v292 = vld [vmem:[#allocation6 + $0x2c0] sm:$0xff]
        %v293 = vld [vmem:[#allocation6 + $0x2c8] sm:$0xff]
        %v294 = vld [vmem:[#allocation6 + $0x2d0] sm:$0xff]
        %v295 = vld [vmem:[#allocation6 + $0x2d8] sm:$0xff]
        %v296 = vld [vmem:[#allocation6 + $0x2e0] sm:$0xff]
        %v297 = vld [vmem:[#allocation6 + $0x2e8] sm:$0xff]
        %v298 = vld [vmem:[#allocation6 + $0x2f0] sm:$0xff]
        %v299 = vld [vmem:[#allocation6 + $0x2f8] sm:$0xff]
        %v300 = vld [vmem:[#allocation6 + $0x300] sm:$0xff]
        %v301 = vld [vmem:[#allocation6 + $0x308] sm:$0xff]
        %v302 = vld [vmem:[#allocation6 + $0x310] sm:$0xff]
        %v303 = vld [vmem:[#allocation6 + $0x318] sm:$0xff]
        %v304 = vld [vmem:[#allocation6 + $0x320] sm:$0xff]
        %v305 = vld [vmem:[#allocation6 + $0x328] sm:$0xff]
        %v306 = vld [vmem:[#allocation6 + $0x330] sm:$0xff]
        %v307 = vld [vmem:[#allocation6 + $0x338] sm:$0xff]
        %v308 = vld [vmem:[#allocation6 + $0x340] sm:$0xff]
        %v309 = vld [vmem:[#allocation6 + $0x348] sm:$0xff]
        %v310 = vld [vmem:[#allocation6 + $0x350] sm:$0xff]
        %v311 = vld [vmem:[#allocation6 + $0x358] sm:$0xff]
        %v312 = vld [vmem:[#allocation6 + $0x360] sm:$0xff]
        %v313 = vld [vmem:[#allocation6 + $0x368] sm:$0xff]
        %v314 = vld [vmem:[#allocation6 + $0x370] sm:$0xff]
        %v315 = vld [vmem:[#allocation6 + $0x378] sm:$0xff]
        %v316 = vld [vmem:[#allocation6 + $0x380] sm:$0xff]
        %v317 = vld [vmem:[#allocation6 + $0x388] sm:$0xff]
        %v318 = vld [vmem:[#allocation6 + $0x390] sm:$0xff]
        %v319 = vld [vmem:[#allocation6 + $0x398] sm:$0xff]
        %v320 = vld [vmem:[#allocation6 + $0x3a0] sm:$0xff]
        %v321 = vld [vmem:[#allocation6 + $0x3a8] sm:$0xff]
        %v322 = vld [vmem:[#allocation6 + $0x3b0] sm:$0xff]
        %v323 = vld [vmem:[#allocation6 + $0x3b8] sm:$0xff]
        %v324 = vld [vmem:[#allocation6 + $0x3c0] sm:$0xff]
        %v325 = vld [vmem:[#allocation6 + $0x3c8] sm:$0xff]
        %v326 = vld [vmem:[#allocation6 + $0x3d0] sm:$0xff]
        %v327 = vld [vmem:[#allocation6 + $0x3d8] sm:$0xff]
        %v328 = vld [vmem:[#allocation6 + $0x3e0] sm:$0xff]
        %v329 = vld [vmem:[#allocation6 + $0x3e8] sm:$0xff]
        %v330 = vld [vmem:[#allocation6 + $0x3f0] sm:$0xff]
        %v331 = vld [vmem:[#allocation6 + $0x3f8] sm:$0xff]
        %v332 = vld [vmem:[#allocation6 + $0x400] sm:$0xff]
        %v333 = vld [vmem:[#allocation6 + $0x408] sm:$0xff]
        %v334 = vld [vmem:[#allocation6 + $0x410] sm:$0xff]
        %v335 = vld [vmem:[#allocation6 + $0x418] sm:$0xff]
        %v336 = vld [vmem:[#allocation6 + $0x420] sm:$0xff]
        %v337 = vld [vmem:[#allocation6 + $0x428] sm:$0xff]
        %v338 = vld [vmem:[#allocation6 + $0x430] sm:$0xff]
        %v339 = vld [vmem:[#allocation6 + $0x438] sm:$0xff]
        %v340 = vld [vmem:[#allocation6 + $0x440] sm:$0xff]
        %v341 = vld [vmem:[#allocation6 + $0x448] sm:$0xff]
        %v342 = vld [vmem:[#allocation6 + $0x450] sm:$0xff]
        %v343 = vld [vmem:[#allocation6 + $0x458] sm:$0xff]
        %v344 = vld [vmem:[#allocation6 + $0x460] sm:$0xff]
        %v345 = vld [vmem:[#allocation6 + $0x468] sm:$0xff]
        %v346 = vld [vmem:[#allocation6 + $0x470] sm:$0xff]
        %v347 = vld [vmem:[#allocation6 + $0x478] sm:$0xff]
        %v348 = vld [vmem:[#allocation6 + $0x480] sm:$0xff]
        %v349 = vld [vmem:[#allocation6 + $0x488] sm:$0xff]
        %v350 = vld [vmem:[#allocation6 + $0x490] sm:$0xff]
        %v351 = vld [vmem:[#allocation6 + $0x498] sm:$0xff]
        %v352 = vld [vmem:[#allocation6 + $0x4a0] sm:$0xff]
        %v353 = vld [vmem:[#allocation6 + $0x4a8] sm:$0xff]
        %v354 = vld [vmem:[#allocation6 + $0x4b0] sm:$0xff]
        %v355 = vld [vmem:[#allocation6 + $0x4b8] sm:$0xff]
        %v356 = vld [vmem:[#allocation6 + $0x4c0] sm:$0xff]
        %v357 = vld [vmem:[#allocation6 + $0x4c8] sm:$0xff]
        %v358 = vld [vmem:[#allocation6 + $0x4d0] sm:$0xff]
        %v359 = vld [vmem:[#allocation6 + $0x4d8] sm:$0xff]
        %v360 = vld [vmem:[#allocation6 + $0x4e0] sm:$0xff]
        %v361 = vld [vmem:[#allocation6 + $0x4e8] sm:$0xff]
        %v362 = vld [vmem:[#allocation6 + $0x4f0] sm:$0xff]
        %v363 = vld [vmem:[#allocation6 + $0x4f8] sm:$0xff]
        %v364 = vld [vmem:[#allocation6 + $0x500] sm:$0xff]
        %v365 = vld [vmem:[#allocation6 + $0x508] sm:$0xff]
        %v366 = vld [vmem:[#allocation6 + $0x510] sm:$0xff]
        %v367 = vld [vmem:[#allocation6 + $0x518] sm:$0xff]
        %v368 = vld [vmem:[#allocation6 + $0x520] sm:$0xff]
        %v369 = vld [vmem:[#allocation6 + $0x528] sm:$0xff]
        %v370 = vld [vmem:[#allocation6 + $0x530] sm:$0xff]
        %v371 = vld [vmem:[#allocation6 + $0x538] sm:$0xff]
        %v372 = vld [vmem:[#allocation6 + $0x540] sm:$0xff]
        %v373 = vld [vmem:[#allocation6 + $0x548] sm:$0xff]
        %v374 = vld [vmem:[#allocation6 + $0x550] sm:$0xff]
        %v375 = vld [vmem:[#allocation6 + $0x558] sm:$0xff]
        %v376 = vld [vmem:[#allocation6 + $0x560] sm:$0xff]
        %v377 = vld [vmem:[#allocation6 + $0x568] sm:$0xff]
        %v378 = vld [vmem:[#allocation6 + $0x570] sm:$0xff]
        %v379 = vld [vmem:[#allocation6 + $0x578] sm:$0xff]
        %v380 = vld [vmem:[#allocation6 + $0x580] sm:$0xff]
        %v381 = vld [vmem:[#allocation6 + $0x588] sm:$0xff]
        %v382 = vld [vmem:[#allocation6 + $0x590] sm:$0xff]
        %v383 = vld [vmem:[#allocation6 + $0x598] sm:$0xff]
        %v384 = vld [vmem:[#allocation6 + $0x5a0] sm:$0xff]
        %v385 = vld [vmem:[#allocation6 + $0x5a8] sm:$0xff]
        %v386 = vld [vmem:[#allocation6 + $0x5b0] sm:$0xff]
        %v387 = vld [vmem:[#allocation6 + $0x5b8] sm:$0xff]
        %v388 = vld [vmem:[#allocation6 + $0x5c0] sm:$0xff]
        %v389 = vld [vmem:[#allocation6 + $0x5c8] sm:$0xff]
        %v390 = vld [vmem:[#allocation6 + $0x5d0] sm:$0xff]
        %v391 = vld [vmem:[#allocation6 + $0x5d8] sm:$0xff]
        %v392 = vld [vmem:[#allocation6 + $0x5e0] sm:$0xff]
        %v393 = vld [vmem:[#allocation6 + $0x5e8] sm:$0xff]
        %v394 = vld [vmem:[#allocation6 + $0x5f0] sm:$0xff]
        %v395 = vld [vmem:[#allocation6 + $0x5f8] sm:$0xff]
        %v396 = vld [vmem:[#allocation6 + $0x600] sm:$0xff]
        %v397 = vld [vmem:[#allocation6 + $0x608] sm:$0xff]
        %v398 = vld [vmem:[#allocation6 + $0x610] sm:$0xff]
        %v399 = vld [vmem:[#allocation6 + $0x618] sm:$0xff]
        %v400 = vld [vmem:[#allocation6 + $0x620] sm:$0xff]
        %v401 = vld [vmem:[#allocation6 + $0x628] sm:$0xff]
        %v402 = vld [vmem:[#allocation6 + $0x630] sm:$0xff]
        %v403 = vld [vmem:[#allocation6 + $0x638] sm:$0xff]
        %v404 = vld [vmem:[#allocation6 + $0x640] sm:$0xff]
        %v405 = vld [vmem:[#allocation6 + $0x648] sm:$0xff]
        %v406 = vld [vmem:[#allocation6 + $0x650] sm:$0xff]
        %v407 = vld [vmem:[#allocation6 + $0x658] sm:$0xff]
        %v408 = vld [vmem:[#allocation6 + $0x660] sm:$0xff]
        %v409 = vld [vmem:[#allocation6 + $0x668] sm:$0xff]
        %v410 = vld [vmem:[#allocation6 + $0x670] sm:$0xff]
        %v411 = vld [vmem:[#allocation6 + $0x678] sm:$0xff]
        %v412 = vld [vmem:[#allocation6 + $0x680] sm:$0xff]
        %v413 = vld [vmem:[#allocation6 + $0x688] sm:$0xff]
        %v414 = vld [vmem:[#allocation6 + $0x690] sm:$0xff]
        %v415 = vld [vmem:[#allocation6 + $0x698] sm:$0xff]
        %v416 = vld [vmem:[#allocation6 + $0x6a0] sm:$0xff]
        %v417 = vld [vmem:[#allocation6 + $0x6a8] sm:$0xff]
        %v418 = vld [vmem:[#allocation6 + $0x6b0] sm:$0xff]
        %v419 = vld [vmem:[#allocation6 + $0x6b8] sm:$0xff]
        %v420 = vld [vmem:[#allocation6 + $0x6c0] sm:$0xff]
        %v421 = vld [vmem:[#allocation6 + $0x6c8] sm:$0xff]
        %v422 = vld [vmem:[#allocation6 + $0x6d0] sm:$0xff]
        %v423 = vld [vmem:[#allocation6 + $0x6d8] sm:$0xff]
        %v424 = vld [vmem:[#allocation6 + $0x6e0] sm:$0xff]
        %v425 = vld [vmem:[#allocation6 + $0x6e8] sm:$0xff]
        %v426 = vld [vmem:[#allocation6 + $0x6f0] sm:$0xff]
        %v427 = vld [vmem:[#allocation6 + $0x6f8] sm:$0xff]
        %v428 = vld [vmem:[#allocation6 + $0x700] sm:$0xff]
        %v429 = vld [vmem:[#allocation6 + $0x708] sm:$0xff]
        %v430 = vld [vmem:[#allocation6 + $0x710] sm:$0xff]
        %v431 = vld [vmem:[#allocation6 + $0x718] sm:$0xff]
        %v432 = vld [vmem:[#allocation6 + $0x720] sm:$0xff]
        %v433 = vld [vmem:[#allocation6 + $0x728] sm:$0xff]
        %v434 = vld [vmem:[#allocation6 + $0x730] sm:$0xff]
        %v435 = vld [vmem:[#allocation6 + $0x738] sm:$0xff]
        %v436 = vld [vmem:[#allocation6 + $0x740] sm:$0xff]
        %v437 = vld [vmem:[#allocation6 + $0x748] sm:$0xff]
        %v438 = vld [vmem:[#allocation6 + $0x750] sm:$0xff]
        %v439 = vld [vmem:[#allocation6 + $0x758] sm:$0xff]
        %v440 = vld [vmem:[#allocation6 + $0x760] sm:$0xff]
        %v441 = vld [vmem:[#allocation6 + $0x768] sm:$0xff]
        %v442 = vld [vmem:[#allocation6 + $0x770] sm:$0xff]
        %v443 = vld [vmem:[#allocation6 + $0x778] sm:$0xff]
        %v444 = vld [vmem:[#allocation6 + $0x780] sm:$0xff]
        %v445 = vld [vmem:[#allocation6 + $0x788] sm:$0xff]
        %v446 = vld [vmem:[#allocation6 + $0x790] sm:$0xff]
        %v447 = vld [vmem:[#allocation6 + $0x798] sm:$0xff]
        %v448 = vld [vmem:[#allocation6 + $0x7a0] sm:$0xff]
        %v449 = vld [vmem:[#allocation6 + $0x7a8] sm:$0xff]
        %v450 = vld [vmem:[#allocation6 + $0x7b0] sm:$0xff]
        %v451 = vld [vmem:[#allocation6 + $0x7b8] sm:$0xff]
        %v452 = vld [vmem:[#allocation6 + $0x7c0] sm:$0xff]
        %v453 = vld [vmem:[#allocation6 + $0x7c8] sm:$0xff]
        %v454 = vld [vmem:[#allocation6 + $0x7d0] sm:$0xff]
        %v455 = vld [vmem:[#allocation6 + $0x7d8] sm:$0xff]
        %v456 = vld [vmem:[#allocation6 + $0x7e0] sm:$0xff]
        %v457 = vld [vmem:[#allocation6 + $0x7e8] sm:$0xff]
        %v458 = vld [vmem:[#allocation6 + $0x7f0] sm:$0xff]
        %v459 = vld [vmem:[#allocation6 + $0x7f8] sm:$0xff]
        %v460 = vld [vmem:[#allocation6 + $0x800] sm:$0xff]
        %v461 = vld [vmem:[#allocation6 + $0x808] sm:$0xff]
        %v462 = vld [vmem:[#allocation6 + $0x810] sm:$0xff]
        %v463 = vld [vmem:[#allocation6 + $0x818] sm:$0xff]
        %v464 = vld [vmem:[#allocation6 + $0x820] sm:$0xff]
        %v465 = vld [vmem:[#allocation6 + $0x828] sm:$0xff]
        %v466 = vld [vmem:[#allocation6 + $0x830] sm:$0xff]
        %v467 = vld [vmem:[#allocation6 + $0x838] sm:$0xff]
        %v468 = vld [vmem:[#allocation6 + $0x840] sm:$0xff]
        %v469 = vld [vmem:[#allocation6 + $0x848] sm:$0xff]
        %v470 = vld [vmem:[#allocation6 + $0x850] sm:$0xff]
        %v471 = vld [vmem:[#allocation6 + $0x858] sm:$0xff]
        %v472 = vld [vmem:[#allocation6 + $0x860] sm:$0xff]
        %v473 = vld [vmem:[#allocation6 + $0x868] sm:$0xff]
        %v474 = vld [vmem:[#allocation6 + $0x870] sm:$0xff]
        %v475 = vld [vmem:[#allocation6 + $0x878] sm:$0xff]
        %v476 = vld [vmem:[#allocation6 + $0x880] sm:$0xff]
        %v477 = vld [vmem:[#allocation6 + $0x888] sm:$0xff]
        %v478 = vld [vmem:[#allocation6 + $0x890] sm:$0xff]
        %v479 = vld [vmem:[#allocation6 + $0x898] sm:$0xff]
        %v480 = vld [vmem:[#allocation6 + $0x8a0] sm:$0xff]
        %v481 = vld [vmem:[#allocation6 + $0x8a8] sm:$0xff]
        %v482 = vld [vmem:[#allocation6 + $0x8b0] sm:$0xff]
        %v483 = vld [vmem:[#allocation6 + $0x8b8] sm:$0xff]
        %v484 = vld [vmem:[#allocation6 + $0x8c0] sm:$0xff]
        %v485 = vld [vmem:[#allocation6 + $0x8c8] sm:$0xff]
        %v486 = vld [vmem:[#allocation6 + $0x8d0] sm:$0xff]
        %v487 = vld [vmem:[#allocation6 + $0x8d8] sm:$0xff]
        %v488 = vld [vmem:[#allocation6 + $0x8e0] sm:$0xff]
        %v489 = vld [vmem:[#allocation6 + $0x8e8] sm:$0xff]
        %v490 = vld [vmem:[#allocation6 + $0x8f0] sm:$0xff]
        %v491 = vld [vmem:[#allocation6 + $0x8f8] sm:$0xff]
        %v493 = vsel %vm200, %v203, 0
        %v495 = vand.u32 %v205, 4294901760
        %496 = vmatprep.subr.mxu0 %v495
        %v497 = vand.u32 %v204, 4294901760
        %498 = vmatpush1.msra.mxu0 %v497
        %v499 = vand.u32 %v221, 4294901760
        %500 = vmatprep.subr.mxu0 %v499
        %v501 = vand.u32 %v220, 4294901760
        %502 = vmatpush1.msra.mxu0 %v501
        %v503 = vand.u32 %v237, 4294901760
        %504 = vmatprep.subr.mxu0 %v503
        %v505 = vand.u32 %v236, 4294901760
        %506 = vmatpush1.msra.mxu0 %v505
        %v507 = vand.u32 %v253, 4294901760
        %508 = vmatprep.subr.mxu0 %v507
        %v509 = vand.u32 %v252, 4294901760
        %510 = vmatpush1.msra.mxu0 %v509
        %v511 = vand.u32 %v269, 4294901760
        %512 = vmatprep.subr.mxu0 %v511
        %v513 = vand.u32 %v268, 4294901760
        %514 = vmatpush1.msra.mxu0 %v513
        %v515 = vand.u32 %v285, 4294901760
        %516 = vmatprep.subr.mxu0 %v515
        %v517 = vand.u32 %v284, 4294901760
        %518 = vmatpush1.msra.mxu0 %v517
        %v519 = vand.u32 %v301, 4294901760
        %520 = vmatprep.subr.mxu0 %v519
        %v521 = vand.u32 %v300, 4294901760
        %522 = vmatpush1.msra.mxu0 %v521
        %v523 = vand.u32 %v317, 4294901760
        %524 = vmatprep.subr.mxu0 %v523
        %v525 = vand.u32 %v316, 4294901760
        %526 = vmatpush1.msra.mxu0 %v525
        %v527 = vand.u32 %v333, 4294901760
        %528 = vmatprep.subr.mxu0 %v527
        %v529 = vand.u32 %v332, 4294901760
        %530 = vmatpush1.msra.mxu0 %v529
        %v531 = vand.u32 %v349, 4294901760
        %532 = vmatprep.subr.mxu0 %v531
        %v533 = vand.u32 %v348, 4294901760
        %534 = vmatpush1.msra.mxu0 %v533
        %v535 = vand.u32 %v365, 4294901760
        %536 = vmatprep.subr.mxu0 %v535
        %v537 = vand.u32 %v364, 4294901760
        %538 = vmatpush1.msra.mxu0 %v537
        %v539 = vand.u32 %v381, 4294901760
        %540 = vmatprep.subr.mxu0 %v539
        %v541 = vand.u32 %v380, 4294901760
        %542 = vmatpush1.msra.mxu0 %v541
        %v543 = vand.u32 %v397, 4294901760
        %544 = vmatprep.subr.mxu0 %v543
        %v545 = vand.u32 %v396, 4294901760
        %546 = vmatpush1.msra.mxu0 %v545
        %v547 = vand.u32 %v413, 4294901760
        %548 = vmatprep.subr.mxu0 %v547
        %v549 = vand.u32 %v412, 4294901760
        %550 = vmatpush1.msra.mxu0 %v549
        %v551 = vand.u32 %v429, 4294901760
        %552 = vmatprep.subr.mxu0 %v551
        %v553 = vand.u32 %v428, 4294901760
        %554 = vmatpush1.msra.mxu0 %v553
        %v555 = vand.u32 %v445, 4294901760
        %556 = vmatprep.subr.mxu0 %v555
        %v557 = vand.u32 %v444, 4294901760
        %558 = vmatpush1.msra.mxu0 %v557
        %v559 = vand.u32 %v461, 4294901760
        %560 = vmatprep.subr.mxu0 %v559
        %v561 = vand.u32 %v460, 4294901760
        %562 = vmatpush1.msra.mxu0 %v561
        %v563 = vand.u32 %v477, 4294901760
        %564 = vmatprep.subr.mxu0 %v563
        %v565 = vand.u32 %v476, 4294901760
        %566 = vmatpush1.msra.mxu0 %v565
        %567 = vmatprep.subr.mxu0 0.0
        %568 = vmatpush1.msra.mxu0 0.0
        %569 = vmatprep.subr.mxu0 0.0
        %570 = vmatpush1.msra.mxu0 0.0
        %571 = vmatprep.subr.mxu0 0.0
        %572 = vmatpush1.msra.mxu0 0.0
        %573 = vmatprep.subr.mxu0 0.0
        %574 = vmatpush1.msra.mxu0 0.0
        %575 = vmatprep.subr.mxu0 0.0
        %576 = vmatpush1.msra.mxu0 0.0
        %577 = vmatprep.subr.mxu0 0.0
        %578 = vmatpush1.msra.mxu0 0.0
        %579 = vmatprep.subr.mxu0 0.0
        %580 = vmatpush1.msra.mxu0 0.0
        %581 = vmatprep.subr.mxu0 0.0
        %582 = vmatpush1.msra.mxu0 0.0
        %583 = vmatprep.subr.mxu0 0.0
        %584 = vmatpush1.msra.mxu0 0.0
        %585 = vmatprep.subr.mxu0 0.0
        %586 = vmatpush1.msra.mxu0 0.0
        %587 = vmatprep.subr.mxu0 0.0
        %588 = vmatpush1.msra.mxu0 0.0
        %589 = vmatprep.subr.mxu0 0.0
        %590 = vmatpush1.msra.mxu0 0.0
        %591 = vmatprep.subr.mxu0 0.0
        %592 = vmatpush1.msra.mxu0 0.0
        %593 = vmatprep.subr.mxu0 0.0
        %594 = vmatpush1.msra.mxu0 0.0
        %v595 = vand.u32 %v493, 4294901760
        %v596 = vsub.f32 %v493, %v595
        %v597 = vand.u32 %v596, 4294901760
        %v598 = vsub.f32 %v596, %v597
        %v599 = vand.u32 %v598, 4294901760
        %600 = vmatprep.mubr.f32.mxu0 %v599
        %v601 = vand.u32 %v202, 4294901760
        %v602 = vsub.f32 %v202, %v601
        %v603 = vand.u32 %v602, 4294901760
        %v604 = vsub.f32 %v602, %v603
        %v605 = vand.u32 %v604, 4294901760
        %606 = vmatmul.mubr.f32.gmra.mrb[0].mxu0 %v605
        %v607 = vpop.f32.mrb[0].mxu0
        %v608 = vadd.f32 0.0, %v607
        %v609 = vpop.f32.mrb[0].mxu0
        %v610 = vadd.f32 0.0, %v609
        %611 = vdwg.mxu0
        %v612 = vand.u32 %v205, 4294901760
        %v613 = vsub.f32 %v205, %v612
        %v614 = vand.u32 %v613, 4294901760
        %v615 = vsub.f32 %v613, %v614
        %v616 = vand.u32 %v615, 4294901760
        %617 = vmatprep.subr.mxu0 %v616
        %v618 = vand.u32 %v204, 4294901760
        %v619 = vsub.f32 %v204, %v618
        %v620 = vand.u32 %v619, 4294901760
        %v621 = vsub.f32 %v619, %v620
        %v622 = vand.u32 %v621, 4294901760
        %623 = vmatpush1.msra.mxu0 %v622
        %v624 = vand.u32 %v221, 4294901760
        %v625 = vsub.f32 %v221, %v624
        %v626 = vand.u32 %v625, 4294901760
        %v627 = vsub.f32 %v625, %v626
        %v628 = vand.u32 %v627, 4294901760
        %629 = vmatprep.subr.mxu0 %v628
        %v630 = vand.u32 %v220, 4294901760
        %v631 = vsub.f32 %v220, %v630
        %v632 = vand.u32 %v631, 4294901760
        %v633 = vsub.f32 %v631, %v632
        %v634 = vand.u32 %v633, 4294901760
        %635 = vmatpush1.msra.mxu0 %v634
        %v636 = vand.u32 %v237, 4294901760
        %v637 = vsub.f32 %v237, %v636
        %v638 = vand.u32 %v637, 4294901760
        %v639 = vsub.f32 %v637, %v638
        %v640 = vand.u32 %v639, 4294901760
        %641 = vmatprep.subr.mxu0 %v640
        %v642 = vand.u32 %v236, 4294901760
        %v643 = vsub.f32 %v236, %v642
        %v644 = vand.u32 %v643, 4294901760
        %v645 = vsub.f32 %v643, %v644
        %v646 = vand.u32 %v645, 4294901760
        %647 = vmatpush1.msra.mxu0 %v646
        %v648 = vand.u32 %v253, 4294901760
        %v649 = vsub.f32 %v253, %v648
        %v650 = vand.u32 %v649, 4294901760
        %v651 = vsub.f32 %v649, %v650
        %v652 = vand.u32 %v651, 4294901760
        %653 = vmatprep.subr.mxu0 %v652
        %v654 = vand.u32 %v252, 4294901760
        %v655 = vsub.f32 %v252, %v654
        %v656 = vand.u32 %v655, 4294901760
        %v657 = vsub.f32 %v655, %v656
        %v658 = vand.u32 %v657, 4294901760
        %659 = vmatpush1.msra.mxu0 %v658
        %v660 = vand.u32 %v269, 4294901760
        %v661 = vsub.f32 %v269, %v660
        %v662 = vand.u32 %v661, 4294901760
        %v663 = vsub.f32 %v661, %v662
        %v664 = vand.u32 %v663, 4294901760
        %665 = vmatprep.subr.mxu0 %v664
        %v666 = vand.u32 %v268, 4294901760
        %v667 = vsub.f32 %v268, %v666
        %v668 = vand.u32 %v667, 4294901760
        %v669 = vsub.f32 %v667, %v668
        %v670 = vand.u32 %v669, 4294901760
        %671 = vmatpush1.msra.mxu0 %v670
        %v672 = vand.u32 %v285, 4294901760
        %v673 = vsub.f32 %v285, %v672
        %v674 = vand.u32 %v673, 4294901760
        %v675 = vsub.f32 %v673, %v674
        %v676 = vand.u32 %v675, 4294901760
        %677 = vmatprep.subr.mxu0 %v676
        %v678 = vand.u32 %v284, 4294901760
        %v679 = vsub.f32 %v284, %v678
        %v680 = vand.u32 %v679, 4294901760
        %v681 = vsub.f32 %v679, %v680
        %v682 = vand.u32 %v681, 4294901760
        %683 = vmatpush1.msra.mxu0 %v682
        %v684 = vand.u32 %v301, 4294901760
        %v685 = vsub.f32 %v301, %v684
        %v686 = vand.u32 %v685, 4294901760
        %v687 = vsub.f32 %v685, %v686
        %v688 = vand.u32 %v687, 4294901760
        %689 = vmatprep.subr.mxu0 %v688
        %v690 = vand.u32 %v300, 4294901760
        %v691 = vsub.f32 %v300, %v690
        %v692 = vand.u32 %v691, 4294901760
        %v693 = vsub.f32 %v691, %v692
        %v694 = vand.u32 %v693, 4294901760
        %695 = vmatpush1.msra.mxu0 %v694
        %v696 = vand.u32 %v317, 4294901760
        %v697 = vsub.f32 %v317, %v696
        %v698 = vand.u32 %v697, 4294901760
        %v699 = vsub.f32 %v697, %v698
        %v700 = vand.u32 %v699, 4294901760
        %701 = vmatprep.subr.mxu0 %v700
        %v702 = vand.u32 %v316, 4294901760
        %v703 = vsub.f32 %v316, %v702
        %v704 = vand.u32 %v703, 4294901760
        %v705 = vsub.f32 %v703, %v704
        %v706 = vand.u32 %v705, 4294901760
        %707 = vmatpush1.msra.mxu0 %v706
        %v708 = vand.u32 %v333, 4294901760
        %v709 = vsub.f32 %v333, %v708
        %v710 = vand.u32 %v709, 4294901760
        %v711 = vsub.f32 %v709, %v710
        %v712 = vand.u32 %v711, 4294901760
        %713 = vmatprep.subr.mxu0 %v712
        %v714 = vand.u32 %v332, 4294901760
        %v715 = vsub.f32 %v332, %v714
        %v716 = vand.u32 %v715, 4294901760
        %v717 = vsub.f32 %v715, %v716
        %v718 = vand.u32 %v717, 4294901760
        %719 = vmatpush1.msra.mxu0 %v718
        %v720 = vand.u32 %v349, 4294901760
        %v721 = vsub.f32 %v349, %v720
        %v722 = vand.u32 %v721, 4294901760
        %v723 = vsub.f32 %v721, %v722
        %v724 = vand.u32 %v723, 4294901760
        %725 = vmatprep.subr.mxu0 %v724
        %v726 = vand.u32 %v348, 4294901760
        %v727 = vsub.f32 %v348, %v726
        %v728 = vand.u32 %v727, 4294901760
        %v729 = vsub.f32 %v727, %v728
        %v730 = vand.u32 %v729, 4294901760
        %731 = vmatpush1.msra.mxu0 %v730
        %v732 = vand.u32 %v365, 4294901760
        %v733 = vsub.f32 %v365, %v732
        %v734 = vand.u32 %v733, 4294901760
        %v735 = vsub.f32 %v733, %v734
        %v736 = vand.u32 %v735, 4294901760
        %737 = vmatprep.subr.mxu0 %v736
        %v738 = vand.u32 %v364, 4294901760
        %v739 = vsub.f32 %v364, %v738
        %v740 = vand.u32 %v739, 4294901760
        %v741 = vsub.f32 %v739, %v740
        %v742 = vand.u32 %v741, 4294901760
        %743 = vmatpush1.msra.mxu0 %v742
        %v744 = vand.u32 %v381, 4294901760
        %v745 = vsub.f32 %v381, %v744
        %v746 = vand.u32 %v745, 4294901760
        %v747 = vsub.f32 %v745, %v746
        %v748 = vand.u32 %v747, 4294901760
        %749 = vmatprep.subr.mxu0 %v748
        %v750 = vand.u32 %v380, 4294901760
        %v751 = vsub.f32 %v380, %v750
        %v752 = vand.u32 %v751, 4294901760
        %v753 = vsub.f32 %v751, %v752
        %v754 = vand.u32 %v753, 4294901760
        %755 = vmatpush1.msra.mxu0 %v754
        %v756 = vand.u32 %v397, 4294901760
        %v757 = vsub.f32 %v397, %v756
        %v758 = vand.u32 %v757, 4294901760
        %v759 = vsub.f32 %v757, %v758
        %v760 = vand.u32 %v759, 4294901760
        %761 = vmatprep.subr.mxu0 %v760
        %v762 = vand.u32 %v396, 4294901760
        %v763 = vsub.f32 %v396, %v762
        %v764 = vand.u32 %v763, 4294901760
        %v765 = vsub.f32 %v763, %v764
        %v766 = vand.u32 %v765, 4294901760
        %767 = vmatpush1.msra.mxu0 %v766
        %v768 = vand.u32 %v413, 4294901760
        %v769 = vsub.f32 %v413, %v768
        %v770 = vand.u32 %v769, 4294901760
        %v771 = vsub.f32 %v769, %v770
        %v772 = vand.u32 %v771, 4294901760
        %773 = vmatprep.subr.mxu0 %v772
        %v774 = vand.u32 %v412, 4294901760
        %v775 = vsub.f32 %v412, %v774
        %v776 = vand.u32 %v775, 4294901760
        %v777 = vsub.f32 %v775, %v776
        %v778 = vand.u32 %v777, 4294901760
        %779 = vmatpush1.msra.mxu0 %v778
        %v780 = vand.u32 %v429, 4294901760
        %v781 = vsub.f32 %v429, %v780
        %v782 = vand.u32 %v781, 4294901760
        %v783 = vsub.f32 %v781, %v782
        %v784 = vand.u32 %v783, 4294901760
        %785 = vmatprep.subr.mxu0 %v784
        %v786 = vand.u32 %v428, 4294901760
        %v787 = vsub.f32 %v428, %v786
        %v788 = vand.u32 %v787, 4294901760
        %v789 = vsub.f32 %v787, %v788
        %v790 = vand.u32 %v789, 4294901760
        %791 = vmatpush1.msra.mxu0 %v790
        %v792 = vand.u32 %v445, 4294901760
        %v793 = vsub.f32 %v445, %v792
        %v794 = vand.u32 %v793, 4294901760
        %v795 = vsub.f32 %v793, %v794
        %v796 = vand.u32 %v795, 4294901760
        %797 = vmatprep.subr.mxu0 %v796
        %v798 = vand.u32 %v444, 4294901760
        %v799 = vsub.f32 %v444, %v798
        %v800 = vand.u32 %v799, 4294901760
        %v801 = vsub.f32 %v799, %v800
        %v802 = vand.u32 %v801, 4294901760
        %803 = vmatpush1.msra.mxu0 %v802
        %v804 = vand.u32 %v461, 4294901760
        %v805 = vsub.f32 %v461, %v804
        %v806 = vand.u32 %v805, 4294901760
        %v807 = vsub.f32 %v805, %v806
        %v808 = vand.u32 %v807, 4294901760
        %809 = vmatprep.subr.mxu0 %v808
        %v810 = vand.u32 %v460, 4294901760
        %v811 = vsub.f32 %v460, %v810
        %v812 = vand.u32 %v811, 4294901760
        %v813 = vsub.f32 %v811, %v812
        %v814 = vand.u32 %v813, 4294901760
        %815 = vmatpush1.msra.mxu0 %v814
        %v816 = vand.u32 %v477, 4294901760
        %v817 = vsub.f32 %v477, %v816
        %v818 = vand.u32 %v817, 4294901760
        %v819 = vsub.f32 %v817, %v818
        %v820 = vand.u32 %v819, 4294901760
        %821 = vmatprep.subr.mxu0 %v820
        %v822 = vand.u32 %v476, 4294901760
        %v823 = vsub.f32 %v476, %v822
        %v824 = vand.u32 %v823, 4294901760
        %v825 = vsub.f32 %v823, %v824
        %v826 = vand.u32 %v825, 4294901760
        %827 = vmatpush1.msra.mxu0 %v826
        %828 = vmatprep.subr.mxu0 0.0
        %829 = vmatpush1.msra.mxu0 0.0
        %830 = vmatprep.subr.mxu0 0.0
        %831 = vmatpush1.msra.mxu0 0.0
        %832 = vmatprep.subr.mxu0 0.0
        %833 = vmatpush1.msra.mxu0 0.0
        %834 = vmatprep.subr.mxu0 0.0
        %835 = vmatpush1.msra.mxu0 0.0
        %836 = vmatprep.subr.mxu0 0.0
        %837 = vmatpush1.msra.mxu0 0.0
        %838 = vmatprep.subr.mxu0 0.0
        %839 = vmatpush1.msra.mxu0 0.0
        %840 = vmatprep.subr.mxu0 0.0
        %841 = vmatpush1.msra.mxu0 0.0
        %842 = vmatprep.subr.mxu0 0.0
        %843 = vmatpush1.msra.mxu0 0.0
        %844 = vmatprep.subr.mxu0 0.0
        %845 = vmatpush1.msra.mxu0 0.0
        %846 = vmatprep.subr.mxu0 0.0
        %847 = vmatpush1.msra.mxu0 0.0
        %848 = vmatprep.subr.mxu0 0.0
        %849 = vmatpush1.msra.mxu0 0.0
        %850 = vmatprep.subr.mxu0 0.0
        %851 = vmatpush1.msra.mxu0 0.0
        %852 = vmatprep.subr.mxu0 0.0
        %853 = vmatpush1.msra.mxu0 0.0
        %854 = vmatprep.subr.mxu0 0.0
        %855 = vmatpush1.msra.mxu0 0.0
        %v856 = vand.u32 %v493, 4294901760
        %857 = vmatprep.mubr.f32.mxu0 %v856
        %v858 = vand.u32 %v202, 4294901760
        %859 = vmatmul.mubr.f32.gmra.mrb[0].mxu0 %v858
        %v860 = vpop.f32.mrb[0].mxu0
        %v861 = vadd.f32 %v608, %v860
        %v862 = vpop.f32.mrb[0].mxu0
        %v863 = vadd.f32 %v610, %v862
        %864 = vdwg.mxu0
        %v865 = vand.u32 %v205, 4294901760
        %v866 = vsub.f32 %v205, %v865
        %867 = vmatprep.subr.mxu0 %v866
        %v868 = vand.u32 %v204, 4294901760
        %v869 = vsub.f32 %v204, %v868
        %870 = vmatpush1.msra.mxu0 %v869
        %v871 = vand.u32 %v221, 4294901760
        %v872 = vsub.f32 %v221, %v871
        %873 = vmatprep.subr.mxu0 %v872
        %v874 = vand.u32 %v220, 4294901760
        %v875 = vsub.f32 %v220, %v874
        %876 = vmatpush1.msra.mxu0 %v875
        %v877 = vand.u32 %v237, 4294901760
        %v878 = vsub.f32 %v237, %v877
        %879 = vmatprep.subr.mxu0 %v878
        %v880 = vand.u32 %v236, 4294901760
        %v881 = vsub.f32 %v236, %v880
        %882 = vmatpush1.msra.mxu0 %v881
        %v883 = vand.u32 %v253, 4294901760
        %v884 = vsub.f32 %v253, %v883
        %885 = vmatprep.subr.mxu0 %v884
        %v886 = vand.u32 %v252, 4294901760
        %v887 = vsub.f32 %v252, %v886
        %888 = vmatpush1.msra.mxu0 %v887
        %v889 = vand.u32 %v269, 4294901760
        %v890 = vsub.f32 %v269, %v889
        %891 = vmatprep.subr.mxu0 %v890
        %v892 = vand.u32 %v268, 4294901760
        %v893 = vsub.f32 %v268, %v892
        %894 = vmatpush1.msra.mxu0 %v893
        %v895 = vand.u32 %v285, 4294901760
        %v896 = vsub.f32 %v285, %v895
        %897 = vmatprep.subr.mxu0 %v896
        %v898 = vand.u32 %v284, 4294901760
        %v899 = vsub.f32 %v284, %v898
        %900 = vmatpush1.msra.mxu0 %v899
        %v901 = vand.u32 %v301, 4294901760
        %v902 = vsub.f32 %v301, %v901
        %903 = vmatprep.subr.mxu0 %v902
        %v904 = vand.u32 %v300, 4294901760
        %v905 = vsub.f32 %v300, %v904
        %906 = vmatpush1.msra.mxu0 %v905
        %v907 = vand.u32 %v317, 4294901760
        %v908 = vsub.f32 %v317, %v907
        %909 = vmatprep.subr.mxu0 %v908
        %v910 = vand.u32 %v316, 4294901760
        %v911 = vsub.f32 %v316, %v910
        %912 = vmatpush1.msra.mxu0 %v911
        %v913 = vand.u32 %v333, 4294901760
        %v914 = vsub.f32 %v333, %v913
        %915 = vmatprep.subr.mxu0 %v914
        %v916 = vand.u32 %v332, 4294901760
        %v917 = vsub.f32 %v332, %v916
        %918 = vmatpush1.msra.mxu0 %v917
        %v919 = vand.u32 %v349, 4294901760
        %v920 = vsub.f32 %v349, %v919
        %921 = vmatprep.subr.mxu0 %v920
        %v922 = vand.u32 %v348, 4294901760
        %v923 = vsub.f32 %v348, %v922
        %924 = vmatpush1.msra.mxu0 %v923
        %v925 = vand.u32 %v365, 4294901760
        %v926 = vsub.f32 %v365, %v925
        %927 = vmatprep.subr.mxu0 %v926
        %v928 = vand.u32 %v364, 4294901760
        %v929 = vsub.f32 %v364, %v928
        %930 = vmatpush1.msra.mxu0 %v929
        %v931 = vand.u32 %v381, 4294901760
        %v932 = vsub.f32 %v381, %v931
        %933 = vmatprep.subr.mxu0 %v932
        %v934 = vand.u32 %v380, 4294901760
        %v935 = vsub.f32 %v380, %v934
        %936 = vmatpush1.msra.mxu0 %v935
        %v937 = vand.u32 %v397, 4294901760
        %v938 = vsub.f32 %v397, %v937
        %939 = vmatprep.subr.mxu0 %v938
        %v940 = vand.u32 %v396, 4294901760
        %v941 = vsub.f32 %v396, %v940
        %942 = vmatpush1.msra.mxu0 %v941
        %v943 = vand.u32 %v413, 4294901760
        %v944 = vsub.f32 %v413, %v943
        %945 = vmatprep.subr.mxu0 %v944
        %v946 = vand.u32 %v412, 4294901760
        %v947 = vsub.f32 %v412, %v946
        %948 = vmatpush1.msra.mxu0 %v947
        %v949 = vand.u32 %v429, 4294901760
        %v950 = vsub.f32 %v429, %v949
        %951 = vmatprep.subr.mxu0 %v950
        %v952 = vand.u32 %v428, 4294901760
        %v953 = vsub.f32 %v428, %v952
        %954 = vmatpush1.msra.mxu0 %v953
        %v955 = vand.u32 %v445, 4294901760
        %v956 = vsub.f32 %v445, %v955
        %957 = vmatprep.subr.mxu0 %v956
        %v958 = vand.u32 %v444, 4294901760
        %v959 = vsub.f32 %v444, %v958
        %960 = vmatpush1.msra.mxu0 %v959
        %v961 = vand.u32 %v461, 4294901760
        %v962 = vsub.f32 %v461, %v961
        %963 = vmatprep.subr.mxu0 %v962
        %v964 = vand.u32 %v460, 4294901760
        %v965 = vsub.f32 %v460, %v964
        %966 = vmatpush1.msra.mxu0 %v965
        %v967 = vand.u32 %v477, 4294901760
        %v968 = vsub.f32 %v477, %v967
        %969 = vmatprep.subr.mxu0 %v968
        %v970 = vand.u32 %v476, 4294901760
        %v971 = vsub.f32 %v476, %v970
        %972 = vmatpush1.msra.mxu0 %v971
        %973 = vmatprep.subr.mxu0 0.0
        %974 = vmatpush1.msra.mxu0 0.0
        %975 = vmatprep.subr.mxu0 0.0
        %976 = vmatpush1.msra.mxu0 0.0
        %977 = vmatprep.subr.mxu0 0.0
        %978 = vmatpush1.msra.mxu0 0.0
        %979 = vmatprep.subr.mxu0 0.0
        %980 = vmatpush1.msra.mxu0 0.0
        %981 = vmatprep.subr.mxu0 0.0
        %982 = vmatpush1.msra.mxu0 0.0
        %983 = vmatprep.subr.mxu0 0.0
        %984 = vmatpush1.msra.mxu0 0.0
        %985 = vmatprep.subr.mxu0 0.0
        %986 = vmatpush1.msra.mxu0 0.0
        %987 = vmatprep.subr.mxu0 0.0
        %988 = vmatpush1.msra.mxu0 0.0
        %989 = vmatprep.subr.mxu0 0.0
        %990 = vmatpush1.msra.mxu0 0.0
        %991 = vmatprep.subr.mxu0 0.0
        %992 = vmatpush1.msra.mxu0 0.0
        %993 = vmatprep.subr.mxu0 0.0
        %994 = vmatpush1.msra.mxu0 0.0
        %995 = vmatprep.subr.mxu0 0.0
        %996 = vmatpush1.msra.mxu0 0.0
        %997 = vmatprep.subr.mxu0 0.0
        %998 = vmatpush1.msra.mxu0 0.0
        %999 = vmatprep.subr.mxu0 0.0
        %1000 = vmatpush1.msra.mxu0 0.0
        %v1001 = vand.u32 %v493, 4294901760
        %v1002 = vsub.f32 %v493, %v1001
        %1003 = vmatprep.mubr.f32.mxu0 %v1002
        %v1004 = vand.u32 %v202, 4294901760
        %v1005 = vsub.f32 %v202, %v1004
        %1006 = vmatmul.mubr.f32.gmra.mrb[0].mxu0 %v1005
        %v1007 = vpop.f32.mrb[0].mxu0
        %v1008 = vadd.f32 %v861, %v1007
        %v1009 = vpop.f32.mrb[0].mxu0
        %v1010 = vadd.f32 %v863, %v1009
        %1011 = vdwg.mxu0
        %v1012 = vand.u32 %v205, 4294901760
        %1013 = vmatprep.subr.mxu0 %v1012
        %v1014 = vand.u32 %v204, 4294901760
        %1015 = vmatpush1.msra.mxu0 %v1014
        %v1016 = vand.u32 %v221, 4294901760
        %1017 = vmatprep.subr.mxu0 %v1016
        %v1018 = vand.u32 %v220, 4294901760
        %1019 = vmatpush1.msra.mxu0 %v1018
        %v1020 = vand.u32 %v237, 4294901760
        %1021 = vmatprep.subr.mxu0 %v1020
        %v1022 = vand.u32 %v236, 4294901760
        %1023 = vmatpush1.msra.mxu0 %v1022
        %v1024 = vand.u32 %v253, 4294901760
        %1025 = vmatprep.subr.mxu0 %v1024
        %v1026 = vand.u32 %v252, 4294901760
        %1027 = vmatpush1.msra.mxu0 %v1026
        %v1028 = vand.u32 %v269, 4294901760
        %1029 = vmatprep.subr.mxu0 %v1028
        %v1030 = vand.u32 %v268, 4294901760
        %1031 = vmatpush1.msra.mxu0 %v1030
        %v1032 = vand.u32 %v285, 4294901760
        %1033 = vmatprep.subr.mxu0 %v1032
        %v1034 = vand.u32 %v284, 4294901760
        %1035 = vmatpush1.msra.mxu0 %v1034
        %v1036 = vand.u32 %v301, 4294901760
        %1037 = vmatprep.subr.mxu0 %v1036
        %v1038 = vand.u32 %v300, 4294901760
        %1039 = vmatpush1.msra.mxu0 %v1038
        %v1040 = vand.u32 %v317, 4294901760
        %1041 = vmatprep.subr.mxu0 %v1040
        %v1042 = vand.u32 %v316, 4294901760
        %1043 = vmatpush1.msra.mxu0 %v1042
        %v1044 = vand.u32 %v333, 4294901760
        %1045 = vmatprep.subr.mxu0 %v1044
        %v1046 = vand.u32 %v332, 4294901760
        %1047 = vmatpush1.msra.mxu0 %v1046
        %v1048 = vand.u32 %v349, 4294901760
        %1049 = vmatprep.subr.mxu0 %v1048
        %v1050 = vand.u32 %v348, 4294901760
        %1051 = vmatpush1.msra.mxu0 %v1050
        %v1052 = vand.u32 %v365, 4294901760
        %1053 = vmatprep.subr.mxu0 %v1052
        %v1054 = vand.u32 %v364, 4294901760
        %1055 = vmatpush1.msra.mxu0 %v1054
        %v1056 = vand.u32 %v381, 4294901760
        %1057 = vmatprep.subr.mxu0 %v1056
        %v1058 = vand.u32 %v380, 4294901760
        %1059 = vmatpush1.msra.mxu0 %v1058
        %v1060 = vand.u32 %v397, 4294901760
        %1061 = vmatprep.subr.mxu0 %v1060
        %v1062 = vand.u32 %v396, 4294901760
        %1063 = vmatpush1.msra.mxu0 %v1062
        %v1064 = vand.u32 %v413, 4294901760
        %1065 = vmatprep.subr.mxu0 %v1064
        %v1066 = vand.u32 %v412, 4294901760
        %1067 = vmatpush1.msra.mxu0 %v1066
        %v1068 = vand.u32 %v429, 4294901760
        %1069 = vmatprep.subr.mxu0 %v1068
        %v1070 = vand.u32 %v428, 4294901760
        %1071 = vmatpush1.msra.mxu0 %v1070
        %v1072 = vand.u32 %v445, 4294901760
        %1073 = vmatprep.subr.mxu0 %v1072
        %v1074 = vand.u32 %v444, 4294901760
        %1075 = vmatpush1.msra.mxu0 %v1074
        %v1076 = vand.u32 %v461, 4294901760
        %1077 = vmatprep.subr.mxu0 %v1076
        %v1078 = vand.u32 %v460, 4294901760
        %1079 = vmatpush1.msra.mxu0 %v1078
        %v1080 = vand.u32 %v477, 4294901760
        %1081 = vmatprep.subr.mxu0 %v1080
        %v1082 = vand.u32 %v476, 4294901760
        %1083 = vmatpush1.msra.mxu0 %v1082
        %1084 = vmatprep.subr.mxu0 0.0
        %1085 = vmatpush1.msra.mxu0 0.0
        %1086 = vmatprep.subr.mxu0 0.0
        %1087 = vmatpush1.msra.mxu0 0.0
        %1088 = vmatprep.subr.mxu0 0.0
        %1089 = vmatpush1.msra.mxu0 0.0
        %1090 = vmatprep.subr.mxu0 0.0
        %1091 = vmatpush1.msra.mxu0 0.0
        %1092 = vmatprep.subr.mxu0 0.0
        %1093 = vmatpush1.msra.mxu0 0.0
        %1094 = vmatprep.subr.mxu0 0.0
        %1095 = vmatpush1.msra.mxu0 0.0
        %1096 = vmatprep.subr.mxu0 0.0
        %1097 = vmatpush1.msra.mxu0 0.0
        %1098 = vmatprep.subr.mxu0 0.0
        %1099 = vmatpush1.msra.mxu0 0.0
        %1100 = vmatprep.subr.mxu0 0.0
        %1101 = vmatpush1.msra.mxu0 0.0
        %1102 = vmatprep.subr.mxu0 0.0
        %1103 = vmatpush1.msra.mxu0 0.0
        %1104 = vmatprep.subr.mxu0 0.0
        %1105 = vmatpush1.msra.mxu0 0.0
        %1106 = vmatprep.subr.mxu0 0.0
        %1107 = vmatpush1.msra.mxu0 0.0
        %1108 = vmatprep.subr.mxu0 0.0
        %1109 = vmatpush1.msra.mxu0 0.0
        %1110 = vmatprep.subr.mxu0 0.0
        %1111 = vmatpush1.msra.mxu0 0.0
        %v1112 = vand.u32 %v493, 4294901760
        %v1113 = vsub.f32 %v493, %v1112
        %v1114 = vand.u32 %v1113, 4294901760
        %1115 = vmatprep.mubr.f32.mxu0 %v1114
        %v1116 = vand.u32 %v202, 4294901760
        %v1117 = vsub.f32 %v202, %v1116
        %v1118 = vand.u32 %v1117, 4294901760
        %1119 = vmatmul.mubr.f32.gmra.mrb[0].mxu0 %v1118
        %v1120 = vpop.f32.mrb[0].mxu0
        %v1121 = vadd.f32 %v1008, %v1120
        %v1122 = vpop.f32.mrb[0].mxu0
        %v1123 = vadd.f32 %v1010, %v1122
        %1124 = vdwg.mxu0
        %v1125 = vand.u32 %v205, 4294901760
        %v1126 = vsub.f32 %v205, %v1125
        %v1127 = vand.u32 %v1126, 4294901760
        %1128 = vmatprep.subr.mxu0 %v1127
        %v1129 = vand.u32 %v204, 4294901760
        %v1130 = vsub.f32 %v204, %v1129
        %v1131 = vand.u32 %v1130, 4294901760
        %1132 = vmatpush1.msra.mxu0 %v1131
        %v1133 = vand.u32 %v221, 4294901760
        %v1134 = vsub.f32 %v221, %v1133
        %v1135 = vand.u32 %v1134, 4294901760
        %1136 = vmatprep.subr.mxu0 %v1135
        %v1137 = vand.u32 %v220, 4294901760
        %v1138 = vsub.f32 %v220, %v1137
        %v1139 = vand.u32 %v1138, 4294901760
        %1140 = vmatpush1.msra.mxu0 %v1139
        %v1141 = vand.u32 %v237, 4294901760
        %v1142 = vsub.f32 %v237, %v1141
        %v1143 = vand.u32 %v1142, 4294901760
        %1144 = vmatprep.subr.mxu0 %v1143
        %v1145 = vand.u32 %v236, 4294901760
        %v1146 = vsub.f32 %v236, %v1145
        %v1147 = vand.u32 %v1146, 4294901760
        %1148 = vmatpush1.msra.mxu0 %v1147
        %v1149 = vand.u32 %v253, 4294901760
        %v1150 = vsub.f32 %v253, %v1149
        %v1151 = vand.u32 %v1150, 4294901760
        %1152 = vmatprep.subr.mxu0 %v1151
        %v1153 = vand.u32 %v252, 4294901760
        %v1154 = vsub.f32 %v252, %v1153
        %v1155 = vand.u32 %v1154, 4294901760
        %1156 = vmatpush1.msra.mxu0 %v1155
        %v1157 = vand.u32 %v269, 4294901760
        %v1158 = vsub.f32 %v269, %v1157
        %v1159 = vand.u32 %v1158, 4294901760
        %1160 = vmatprep.subr.mxu0 %v1159
        %v1161 = vand.u32 %v268, 4294901760
        %v1162 = vsub.f32 %v268, %v1161
        %v1163 = vand.u32 %v1162, 4294901760
        %1164 = vmatpush1.msra.mxu0 %v1163
        %v1165 = vand.u32 %v285, 4294901760
        %v1166 = vsub.f32 %v285, %v1165
        %v1167 = vand.u32 %v1166, 4294901760
        %1168 = vmatprep.subr.mxu0 %v1167
        %v1169 = vand.u32 %v284, 4294901760
        %v1170 = vsub.f32 %v284, %v1169
        %v1171 = vand.u32 %v1170, 4294901760
        %1172 = vmatpush1.msra.mxu0 %v1171
        %v1173 = vand.u32 %v301, 4294901760
        %v1174 = vsub.f32 %v301, %v1173
        %v1175 = vand.u32 %v1174, 4294901760
        %1176 = vmatprep.subr.mxu0 %v1175
        %v1177 = vand.u32 %v300, 4294901760
        %v1178 = vsub.f32 %v300, %v1177
        %v1179 = vand.u32 %v1178, 4294901760
        %1180 = vmatpush1.msra.mxu0 %v1179
        %v1181 = vand.u32 %v317, 4294901760
        %v1182 = vsub.f32 %v317, %v1181
        %v1183 = vand.u32 %v1182, 4294901760
        %1184 = vmatprep.subr.mxu0 %v1183
        %v1185 = vand.u32 %v316, 4294901760
        %v1186 = vsub.f32 %v316, %v1185
        %v1187 = vand.u32 %v1186, 4294901760
        %1188 = vmatpush1.msra.mxu0 %v1187
        %v1189 = vand.u32 %v333, 4294901760
        %v1190 = vsub.f32 %v333, %v1189
        %v1191 = vand.u32 %v1190, 4294901760
        %1192 = vmatprep.subr.mxu0 %v1191
        %v1193 = vand.u32 %v332, 4294901760
        %v1194 = vsub.f32 %v332, %v1193
        %v1195 = vand.u32 %v1194, 4294901760
        %1196 = vmatpush1.msra.mxu0 %v1195
        %v1197 = vand.u32 %v349, 4294901760
        %v1198 = vsub.f32 %v349, %v1197
        %v1199 = vand.u32 %v1198, 4294901760
        %1200 = vmatprep.subr.mxu0 %v1199
        %v1201 = vand.u32 %v348, 4294901760
        %v1202 = vsub.f32 %v348, %v1201
        %v1203 = vand.u32 %v1202, 4294901760
        %1204 = vmatpush1.msra.mxu0 %v1203
        %v1205 = vand.u32 %v365, 4294901760
        %v1206 = vsub.f32 %v365, %v1205
        %v1207 = vand.u32 %v1206, 4294901760
        %1208 = vmatprep.subr.mxu0 %v1207
        %v1209 = vand.u32 %v364, 4294901760
        %v1210 = vsub.f32 %v364, %v1209
        %v1211 = vand.u32 %v1210, 4294901760
        %1212 = vmatpush1.msra.mxu0 %v1211
        %v1213 = vand.u32 %v381, 4294901760
        %v1214 = vsub.f32 %v381, %v1213
        %v1215 = vand.u32 %v1214, 4294901760
        %1216 = vmatprep.subr.mxu0 %v1215
        %v1217 = vand.u32 %v380, 4294901760
        %v1218 = vsub.f32 %v380, %v1217
        %v1219 = vand.u32 %v1218, 4294901760
        %1220 = vmatpush1.msra.mxu0 %v1219
        %v1221 = vand.u32 %v397, 4294901760
        %v1222 = vsub.f32 %v397, %v1221
        %v1223 = vand.u32 %v1222, 4294901760
        %1224 = vmatprep.subr.mxu0 %v1223
        %v1225 = vand.u32 %v396, 4294901760
        %v1226 = vsub.f32 %v396, %v1225
        %v1227 = vand.u32 %v1226, 4294901760
        %1228 = vmatpush1.msra.mxu0 %v1227
        %v1229 = vand.u32 %v413, 4294901760
        %v1230 = vsub.f32 %v413, %v1229
        %v1231 = vand.u32 %v1230, 4294901760
        %1232 = vmatprep.subr.mxu0 %v1231
        %v1233 = vand.u32 %v412, 4294901760
        %v1234 = vsub.f32 %v412, %v1233
        %v1235 = vand.u32 %v1234, 4294901760
        %1236 = vmatpush1.msra.mxu0 %v1235
        %v1237 = vand.u32 %v429, 4294901760
        %v1238 = vsub.f32 %v429, %v1237
        %v1239 = vand.u32 %v1238, 4294901760
        %1240 = vmatprep.subr.mxu0 %v1239
        %v1241 = vand.u32 %v428, 4294901760
        %v1242 = vsub.f32 %v428, %v1241
        %v1243 = vand.u32 %v1242, 4294901760
        %1244 = vmatpush1.msra.mxu0 %v1243
        %v1245 = vand.u32 %v445, 4294901760
        %v1246 = vsub.f32 %v445, %v1245
        %v1247 = vand.u32 %v1246, 4294901760
        %1248 = vmatprep.subr.mxu0 %v1247
        %v1249 = vand.u32 %v444, 4294901760
        %v1250 = vsub.f32 %v444, %v1249
        %v1251 = vand.u32 %v1250, 4294901760
        %1252 = vmatpush1.msra.mxu0 %v1251
        %v1253 = vand.u32 %v461, 4294901760
        %v1254 = vsub.f32 %v461, %v1253
        %v1255 = vand.u32 %v1254, 4294901760
        %1256 = vmatprep.subr.mxu0 %v1255
        %v1257 = vand.u32 %v460, 4294901760
        %v1258 = vsub.f32 %v460, %v1257
        %v1259 = vand.u32 %v1258, 4294901760
        %1260 = vmatpush1.msra.mxu0 %v1259
        %v1261 = vand.u32 %v477, 4294901760
        %v1262 = vsub.f32 %v477, %v1261
        %v1263 = vand.u32 %v1262, 4294901760
        %1264 = vmatprep.subr.mxu0 %v1263
        %v1265 = vand.u32 %v476, 4294901760
        %v1266 = vsub.f32 %v476, %v1265
        %v1267 = vand.u32 %v1266, 4294901760
        %1268 = vmatpush1.msra.mxu0 %v1267
        %1269 = vmatprep.subr.mxu0 0.0
        %1270 = vmatpush1.msra.mxu0 0.0
        %1271 = vmatprep.subr.mxu0 0.0
        %1272 = vmatpush1.msra.mxu0 0.0
        %1273 = vmatprep.subr.mxu0 0.0
        %1274 = vmatpush1.msra.mxu0 0.0
        %1275 = vmatprep.subr.mxu0 0.0
        %1276 = vmatpush1.msra.mxu0 0.0
        %1277 = vmatprep.subr.mxu0 0.0
        %1278 = vmatpush1.msra.mxu0 0.0
        %1279 = vmatprep.subr.mxu0 0.0
        %1280 = vmatpush1.msra.mxu0 0.0
        %1281 = vmatprep.subr.mxu0 0.0
        %1282 = vmatpush1.msra.mxu0 0.0
        %1283 = vmatprep.subr.mxu0 0.0
        %1284 = vmatpush1.msra.mxu0 0.0
        %1285 = vmatprep.subr.mxu0 0.0
        %1286 = vmatpush1.msra.mxu0 0.0
        %1287 = vmatprep.subr.mxu0 0.0
        %1288 = vmatpush1.msra.mxu0 0.0
        %1289 = vmatprep.subr.mxu0 0.0
        %1290 = vmatpush1.msra.mxu0 0.0
        %1291 = vmatprep.subr.mxu0 0.0
        %1292 = vmatpush1.msra.mxu0 0.0
        %1293 = vmatprep.subr.mxu0 0.0
        %1294 = vmatpush1.msra.mxu0 0.0
        %1295 = vmatprep.subr.mxu0 0.0
        %1296 = vmatpush1.msra.mxu0 0.0
        %v1297 = vand.u32 %v493, 4294901760
        %1298 = vmatprep.mubr.f32.mxu0 %v1297
        %v1299 = vand.u32 %v202, 4294901760
        %1300 = vmatmul.mubr.f32.gmra.mrb[0].mxu0 %v1299
        %v1301 = vpop.f32.mrb[0].mxu0
        %v1302 = vadd.f32 %v1121, %v1301
        %v1303 = vpop.f32.mrb[0].mxu0
        %v1304 = vadd.f32 %v1123, %v1303
        %1305 = vdwg.mxu0
        %v1306 = vand.u32 %v205, 4294901760
        %1307 = vmatprep.subr.mxu0 %v1306
        %v1308 = vand.u32 %v204, 4294901760
        %1309 = vmatpush1.msra.mxu0 %v1308
        %v1310 = vand.u32 %v221, 4294901760
        %1311 = vmatprep.subr.mxu0 %v1310
        %v1312 = vand.u32 %v220, 4294901760
        %1313 = vmatpush1.msra.mxu0 %v1312
        %v1314 = vand.u32 %v237, 4294901760
        %1315 = vmatprep.subr.mxu0 %v1314
        %v1316 = vand.u32 %v236, 4294901760
        %1317 = vmatpush1.msra.mxu0 %v1316
        %v1318 = vand.u32 %v253, 4294901760
        %1319 = vmatprep.subr.mxu0 %v1318
        %v1320 = vand.u32 %v252, 4294901760
        %1321 = vmatpush1.msra.mxu0 %v1320
        %v1322 = vand.u32 %v269, 4294901760
        %1323 = vmatprep.subr.mxu0 %v1322
        %v1324 = vand.u32 %v268, 4294901760
        %1325 = vmatpush1.msra.mxu0 %v1324
        %v1326 = vand.u32 %v285, 4294901760
        %1327 = vmatprep.subr.mxu0 %v1326
        %v1328 = vand.u32 %v284, 4294901760
        %1329 = vmatpush1.msra.mxu0 %v1328
        %v1330 = vand.u32 %v301, 4294901760
        %1331 = vmatprep.subr.mxu0 %v1330
        %v1332 = vand.u32 %v300, 4294901760
        %1333 = vmatpush1.msra.mxu0 %v1332
        %v1334 = vand.u32 %v317, 4294901760
        %1335 = vmatprep.subr.mxu0 %v1334
        %v1336 = vand.u32 %v316, 4294901760
        %1337 = vmatpush1.msra.mxu0 %v1336
        %v1338 = vand.u32 %v333, 4294901760
        %1339 = vmatprep.subr.mxu0 %v1338
        %v1340 = vand.u32 %v332, 4294901760
        %1341 = vmatpush1.msra.mxu0 %v1340
        %v1342 = vand.u32 %v349, 4294901760
        %1343 = vmatprep.subr.mxu0 %v1342
        %v1344 = vand.u32 %v348, 4294901760
        %1345 = vmatpush1.msra.mxu0 %v1344
        %v1346 = vand.u32 %v365, 4294901760
        %1347 = vmatprep.subr.mxu0 %v1346
        %v1348 = vand.u32 %v364, 4294901760
        %1349 = vmatpush1.msra.mxu0 %v1348
        %v1350 = vand.u32 %v381, 4294901760
        %1351 = vmatprep.subr.mxu0 %v1350
        %v1352 = vand.u32 %v380, 4294901760
        %1353 = vmatpush1.msra.mxu0 %v1352
        %v1354 = vand.u32 %v397, 4294901760
        %1355 = vmatprep.subr.mxu0 %v1354
        %v1356 = vand.u32 %v396, 4294901760
        %1357 = vmatpush1.msra.mxu0 %v1356
        %v1358 = vand.u32 %v413, 4294901760
        %1359 = vmatprep.subr.mxu0 %v1358
        %v1360 = vand.u32 %v412, 4294901760
        %1361 = vmatpush1.msra.mxu0 %v1360
        %v1362 = vand.u32 %v429, 4294901760
        %1363 = vmatprep.subr.mxu0 %v1362
        %v1364 = vand.u32 %v428, 4294901760
        %1365 = vmatpush1.msra.mxu0 %v1364
        %v1366 = vand.u32 %v445, 4294901760
        %1367 = vmatprep.subr.mxu0 %v1366
        %v1368 = vand.u32 %v444, 4294901760
        %1369 = vmatpush1.msra.mxu0 %v1368
        %v1370 = vand.u32 %v461, 4294901760
        %1371 = vmatprep.subr.mxu0 %v1370
        %v1372 = vand.u32 %v460, 4294901760
        %1373 = vmatpush1.msra.mxu0 %v1372
        %v1374 = vand.u32 %v477, 4294901760
        %1375 = vmatprep.subr.mxu0 %v1374
        %v1376 = vand.u32 %v476, 4294901760
        %1377 = vmatpush1.msra.mxu0 %v1376
        %1378 = vmatprep.subr.mxu0 0.0
        %1379 = vmatpush1.msra.mxu0 0.0
        %1380 = vmatprep.subr.mxu0 0.0
        %1381 = vmatpush1.msra.mxu0 0.0
        %1382 = vmatprep.subr.mxu0 0.0
        %1383 = vmatpush1.msra.mxu0 0.0
        %1384 = vmatprep.subr.mxu0 0.0
        %1385 = vmatpush1.msra.mxu0 0.0
        %1386 = vmatprep.subr.mxu0 0.0
        %1387 = vmatpush1.msra.mxu0 0.0
        %1388 = vmatprep.subr.mxu0 0.0
        %1389 = vmatpush1.msra.mxu0 0.0
        %1390 = vmatprep.subr.mxu0 0.0
        %1391 = vmatpush1.msra.mxu0 0.0
        %1392 = vmatprep.subr.mxu0 0.0
        %1393 = vmatpush1.msra.mxu0 0.0
        %1394 = vmatprep.subr.mxu0 0.0
        %1395 = vmatpush1.msra.mxu0 0.0
        %1396 = vmatprep.subr.mxu0 0.0
        %1397 = vmatpush1.msra.mxu0 0.0
        %1398 = vmatprep.subr.mxu0 0.0
        %1399 = vmatpush1.msra.mxu0 0.0
        %1400 = vmatprep.subr.mxu0 0.0
        %1401 = vmatpush1.msra.mxu0 0.0
        %1402 = vmatprep.subr.mxu0 0.0
        %1403 = vmatpush1.msra.mxu0 0.0
        %1404 = vmatprep.subr.mxu0 0.0
        %1405 = vmatpush1.msra.mxu0 0.0
        %v1406 = vand.u32 %v493, 4294901760
        %1407 = vmatprep.mubr.f32.mxu0 %v1406
        %v1408 = vand.u32 %v202, 4294901760
        %1409 = vmatmul.mubr.f32.gmra.mrb[0].mxu0 %v1408
        %v1410 = vpop.f32.mrb[0].mxu0
        %v1411 = vadd.f32 %v1302, %v1410
        %v1412 = vpop.f32.mrb[0].mxu0
        %v1413 = vadd.f32 %v1304, %v1412
        %1414 = vdwg.mxu0
        %v1415 = vand.u32 %v207, 4294901760
        %1416 = vmatprep.subr.mxu0 %v1415
        %v1417 = vand.u32 %v206, 4294901760
        %1418 = vmatpush1.msra.mxu0 %v1417
        %v1419 = vand.u32 %v223, 4294901760
        %1420 = vmatprep.subr.mxu0 %v1419
        %v1421 = vand.u32 %v222, 4294901760
        %1422 = vmatpush1.msra.mxu0 %v1421
        %v1423 = vand.u32 %v239, 4294901760
        %1424 = vmatprep.subr.mxu0 %v1423
        %v1425 = vand.u32 %v238, 4294901760
        %1426 = vmatpush1.msra.mxu0 %v1425
        %v1427 = vand.u32 %v255, 4294901760
        %1428 = vmatprep.subr.mxu0 %v1427
        %v1429 = vand.u32 %v254, 4294901760
        %1430 = vmatpush1.msra.mxu0 %v1429
        %v1431 = vand.u32 %v271, 4294901760
        %1432 = vmatprep.subr.mxu0 %v1431
        %v1433 = vand.u32 %v270, 4294901760
        %1434 = vmatpush1.msra.mxu0 %v1433
        %v1435 = vand.u32 %v287, 4294901760
        %1436 = vmatprep.subr.mxu0 %v1435
        %v1437 = vand.u32 %v286, 4294901760
        %1438 = vmatpush1.msra.mxu0 %v1437
        %v1439 = vand.u32 %v303, 4294901760
        %1440 = vmatprep.subr.mxu0 %v1439
        %v1441 = vand.u32 %v302, 4294901760
        %1442 = vmatpush1.msra.mxu0 %v1441
        %v1443 = vand.u32 %v319, 4294901760
        %1444 = vmatprep.subr.mxu0 %v1443
        %v1445 = vand.u32 %v318, 4294901760
        %1446 = vmatpush1.msra.mxu0 %v1445
        %v1447 = vand.u32 %v335, 4294901760
        %1448 = vmatprep.subr.mxu0 %v1447
        %v1449 = vand.u32 %v334, 4294901760
        %1450 = vmatpush1.msra.mxu0 %v1449
        %v1451 = vand.u32 %v351, 4294901760
        %1452 = vmatprep.subr.mxu0 %v1451
        %v1453 = vand.u32 %v350, 4294901760
        %1454 = vmatpush1.msra.mxu0 %v1453
        %v1455 = vand.u32 %v367, 4294901760
        %1456 = vmatprep.subr.mxu0 %v1455
        %v1457 = vand.u32 %v366, 4294901760
        %1458 = vmatpush1.msra.mxu0 %v1457
        %v1459 = vand.u32 %v383, 4294901760
        %1460 = vmatprep.subr.mxu0 %v1459
        %v1461 = vand.u32 %v382, 4294901760
        %1462 = vmatpush1.msra.mxu0 %v1461
        %v1463 = vand.u32 %v399, 4294901760
        %1464 = vmatprep.subr.mxu0 %v1463
        %v1465 = vand.u32 %v398, 4294901760
        %1466 = vmatpush1.msra.mxu0 %v1465
        %v1467 = vand.u32 %v415, 4294901760
        %1468 = vmatprep.subr.mxu0 %v1467
        %v1469 = vand.u32 %v414, 4294901760
        %1470 = vmatpush1.msra.mxu0 %v1469
        %v1471 = vand.u32 %v431, 4294901760
        %1472 = vmatprep.subr.mxu0 %v1471
        %v1473 = vand.u32 %v430, 4294901760
        %1474 = vmatpush1.msra.mxu0 %v1473
        %v1475 = vand.u32 %v447, 4294901760
        %1476 = vmatprep.subr.mxu0 %v1475
        %v1477 = vand.u32 %v446, 4294901760
        %1478 = vmatpush1.msra.mxu0 %v1477
        %v1479 = vand.u32 %v463, 4294901760
        %1480 = vmatprep.subr.mxu0 %v1479
        %v1481 = vand.u32 %v462, 4294901760
        %1482 = vmatpush1.msra.mxu0 %v1481
        %v1483 = vand.u32 %v479, 4294901760
        %1484 = vmatprep.subr.mxu0 %v1483
        %v1485 = vand.u32 %v478, 4294901760
        %1486 = vmatpush1.msra.mxu0 %v1485
        %1487 = vmatprep.subr.mxu0 0.0
        %1488 = vmatpush1.msra.mxu0 0.0
        %1489 = vmatprep.subr.mxu0 0.0
        %1490 = vmatpush1.msra.mxu0 0.0
        %1491 = vmatprep.subr.mxu0 0.0
        %1492 = vmatpush1.msra.mxu0 0.0
        %1493 = vmatprep.subr.mxu0 0.0
        %1494 = vmatpush1.msra.mxu0 0.0
        %1495 = vmatprep.subr.mxu0 0.0
        %1496 = vmatpush1.msra.mxu0 0.0
        %1497 = vmatprep.subr.mxu0 0.0
        %1498 = vmatpush1.msra.mxu0 0.0
        %1499 = vmatprep.subr.mxu0 0.0
        %1500 = vmatpush1.msra.mxu0 0.0
        %1501 = vmatprep.subr.mxu0 0.0
        %1502 = vmatpush1.msra.mxu0 0.0
        %1503 = vmatprep.subr.mxu0 0.0
        %1504 = vmatpush1.msra.mxu0 0.0
        %1505 = vmatprep.subr.mxu0 0.0
        %1506 = vmatpush1.msra.mxu0 0.0
        %1507 = vmatprep.subr.mxu0 0.0
        %1508 = vmatpush1.msra.mxu0 0.0
        %1509 = vmatprep.subr.mxu0 0.0
        %1510 = vmatpush1.msra.mxu0 0.0
        %1511 = vmatprep.subr.mxu0 0.0
        %1512 = vmatpush1.msra.mxu0 0.0
        %1513 = vmatprep.subr.mxu0 0.0
        %1514 = vmatpush1.msra.mxu0 0.0
        %v1515 = vand.u32 %v493, 4294901760
        %v1516 = vsub.f32 %v493, %v1515
        %v1517 = vand.u32 %v1516, 4294901760
        %v1518 = vsub.f32 %v1516, %v1517
        %v1519 = vand.u32 %v1518, 4294901760
        %1520 = vmatprep.mubr.f32.mxu0 %v1519
        %v1521 = vand.u32 %v202, 4294901760
        %v1522 = vsub.f32 %v202, %v1521
        %v1523 = vand.u32 %v1522, 4294901760
        %v1524 = vsub.f32 %v1522, %v1523
        %v1525 = vand.u32 %v1524, 4294901760
        %1526 = vmatmul.mubr.f32.gmra.mrb[0].mxu0 %v1525
        %v1527 = vpop.f32.mrb[0].mxu0
        %v1528 = vadd.f32 0.0, %v1527
        %v1529 = vpop.f32.mrb[0].mxu0
        %v1530 = vadd.f32 0.0, %v1529
        %1531 = vdwg.mxu0
        %v1532 = vand.u32 %v207, 4294901760
        %v1533 = vsub.f32 %v207, %v1532
        %v1534 = vand.u32 %v1533, 4294901760
        %v1535 = vsub.f32 %v1533, %v1534
        %v1536 = vand.u32 %v1535, 4294901760
        %1537 = vmatprep.subr.mxu0 %v1536
        %v1538 = vand.u32 %v206, 4294901760
        %v1539 = vsub.f32 %v206, %v1538
        %v1540 = vand.u32 %v1539, 4294901760
        %v1541 = vsub.f32 %v1539, %v1540
        %v1542 = vand.u32 %v1541, 4294901760
        %1543 = vmatpush1.msra.mxu0 %v1542
        %v1544 = vand.u32 %v223, 4294901760
        %v1545 = vsub.f32 %v223, %v1544
        %v1546 = vand.u32 %v1545, 4294901760
        %v1547 = vsub.f32 %v1545, %v1546
        %v1548 = vand.u32 %v1547, 4294901760
        %1549 = vmatprep.subr.mxu0 %v1548
        %v1550 = vand.u32 %v222, 4294901760
        %v1551 = vsub.f32 %v222, %v1550
        %v1552 = vand.u32 %v1551, 4294901760
        %v1553 = vsub.f32 %v1551, %v1552
        %v1554 = vand.u32 %v1553, 4294901760
        %1555 = vmatpush1.msra.mxu0 %v1554
        %v1556 = vand.u32 %v239, 4294901760
        %v1557 = vsub.f32 %v239, %v1556
        %v1558 = vand.u32 %v1557, 4294901760
        %v1559 = vsub.f32 %v1557, %v1558
        %v1560 = vand.u32 %v1559, 4294901760
        %1561 = vmatprep.subr.mxu0 %v1560
        %v1562 = vand.u32 %v238, 4294901760
        %v1563 = vsub.f32 %v238, %v1562
        %v1564 = vand.u32 %v1563, 4294901760
        %v1565 = vsub.f32 %v1563, %v1564
        %v1566 = vand.u32 %v1565, 4294901760
        %1567 = vmatpush1.msra.mxu0 %v1566
        %v1568 = vand.u32 %v255, 4294901760
        %v1569 = vsub.f32 %v255, %v1568
        %v1570 = vand.u32 %v1569, 4294901760
        %v1571 = vsub.f32 %v1569, %v1570
        %v1572 = vand.u32 %v1571, 4294901760
        %1573 = vmatprep.subr.mxu0 %v1572
        %v1574 = vand.u32 %v254, 4294901760
        %v1575 = vsub.f32 %v254, %v1574
        %v1576 = vand.u32 %v1575, 4294901760
        %v1577 = vsub.f32 %v1575, %v1576
        %v1578 = vand.u32 %v1577, 4294901760
        %1579 = vmatpush1.msra.mxu0 %v1578
        %v1580 = vand.u32 %v271, 4294901760
        %v1581 = vsub.f32 %v271, %v1580
        %v1582 = vand.u32 %v1581, 4294901760
        %v1583 = vsub.f32 %v1581, %v1582
        %v1584 = vand.u32 %v1583, 4294901760
        %1585 = vmatprep.subr.mxu0 %v1584
        %v1586 = vand.u32 %v270, 4294901760
        %v1587 = vsub.f32 %v270, %v1586
        %v1588 = vand.u32 %v1587, 4294901760
        %v1589 = vsub.f32 %v1587, %v1588
        %v1590 = vand.u32 %v1589, 4294901760
        %1591 = vmatpush1.msra.mxu0 %v1590
        %v1592 = vand.u32 %v287, 4294901760
        %v1593 = vsub.f32 %v287, %v1592
        %v1594 = vand.u32 %v1593, 4294901760
        %v1595 = vsub.f32 %v1593, %v1594
        %v1596 = vand.u32 %v1595, 4294901760
        %1597 = vmatprep.subr.mxu0 %v1596
        %v1598 = vand.u32 %v286, 4294901760
        %v1599 = vsub.f32 %v286, %v1598
        %v1600 = vand.u32 %v1599, 4294901760
        %v1601 = vsub.f32 %v1599, %v1600
        %v1602 = vand.u32 %v1601, 4294901760
        %1603 = vmatpush1.msra.mxu0 %v1602
        %v1604 = vand.u32 %v303, 4294901760
        %v1605 = vsub.f32 %v303, %v1604
        %v1606 = vand.u32 %v1605, 4294901760
        %v1607 = vsub.f32 %v1605, %v1606
        %v1608 = vand.u32 %v1607, 4294901760
        %1609 = vmatprep.subr.mxu0 %v1608
        %v1610 = vand.u32 %v302, 4294901760
        %v1611 = vsub.f32 %v302, %v1610
        %v1612 = vand.u32 %v1611, 4294901760
        %v1613 = vsub.f32 %v1611, %v1612
        %v1614 = vand.u32 %v1613, 4294901760
        %1615 = vmatpush1.msra.mxu0 %v1614
        %v1616 = vand.u32 %v319, 4294901760
        %v1617 = vsub.f32 %v319, %v1616
        %v1618 = vand.u32 %v1617, 4294901760
        %v1619 = vsub.f32 %v1617, %v1618
        %v1620 = vand.u32 %v1619, 4294901760
        %1621 = vmatprep.subr.mxu0 %v1620
        %v1622 = vand.u32 %v318, 4294901760
        %v1623 = vsub.f32 %v318, %v1622
        %v1624 = vand.u32 %v1623, 4294901760
        %v1625 = vsub.f32 %v1623, %v1624
        %v1626 = vand.u32 %v1625, 4294901760
        %1627 = vmatpush1.msra.mxu0 %v1626
        %v1628 = vand.u32 %v335, 4294901760
        %v1629 = vsub.f32 %v335, %v1628
        %v1630 = vand.u32 %v1629, 4294901760
        %v1631 = vsub.f32 %v1629, %v1630
        %v1632 = vand.u32 %v1631, 4294901760
        %1633 = vmatprep.subr.mxu0 %v1632
        %v1634 = vand.u32 %v334, 4294901760
        %v1635 = vsub.f32 %v334, %v1634
        %v1636 = vand.u32 %v1635, 4294901760
        %v1637 = vsub.f32 %v1635, %v1636
        %v1638 = vand.u32 %v1637, 4294901760
        %1639 = vmatpush1.msra.mxu0 %v1638
        %v1640 = vand.u32 %v351, 4294901760
        %v1641 = vsub.f32 %v351, %v1640
        %v1642 = vand.u32 %v1641, 4294901760
        %v1643 = vsub.f32 %v1641, %v1642
        %v1644 = vand.u32 %v1643, 4294901760
        %1645 = vmatprep.subr.mxu0 %v1644
        %v1646 = vand.u32 %v350, 4294901760
        %v1647 = vsub.f32 %v350, %v1646
        %v1648 = vand.u32 %v1647, 4294901760
        %v1649 = vsub.f32 %v1647, %v1648
        %v1650 = vand.u32 %v1649, 4294901760
        %1651 = vmatpush1.msra.mxu0 %v1650
        %v1652 = vand.u32 %v367, 4294901760
        %v1653 = vsub.f32 %v367, %v1652
        %v1654 = vand.u32 %v1653, 4294901760
        %v1655 = vsub.f32 %v1653, %v1654
        %v1656 = vand.u32 %v1655, 4294901760
        %1657 = vmatprep.subr.mxu0 %v1656
        %v1658 = vand.u32 %v366, 4294901760
        %v1659 = vsub.f32 %v366, %v1658
        %v1660 = vand.u32 %v1659, 4294901760
        %v1661 = vsub.f32 %v1659, %v1660
        %v1662 = vand.u32 %v1661, 4294901760
        %1663 = vmatpush1.msra.mxu0 %v1662
        %v1664 = vand.u32 %v383, 4294901760
        %v1665 = vsub.f32 %v383, %v1664
        %v1666 = vand.u32 %v1665, 4294901760
        %v1667 = vsub.f32 %v1665, %v1666
        %v1668 = vand.u32 %v1667, 4294901760
        %1669 = vmatprep.subr.mxu0 %v1668
        %v1670 = vand.u32 %v382, 4294901760
        %v1671 = vsub.f32 %v382, %v1670
        %v1672 = vand.u32 %v1671, 4294901760
        %v1673 = vsub.f32 %v1671, %v1672
        %v1674 = vand.u32 %v1673, 4294901760
        %1675 = vmatpush1.msra.mxu0 %v1674
        %v1676 = vand.u32 %v399, 4294901760
        %v1677 = vsub.f32 %v399, %v1676
        %v1678 = vand.u32 %v1677, 4294901760
        %v1679 = vsub.f32 %v1677, %v1678
        %v1680 = vand.u32 %v1679, 4294901760
        %1681 = vmatprep.subr.mxu0 %v1680
        %v1682 = vand.u32 %v398, 4294901760
        %v1683 = vsub.f32 %v398, %v1682
        %v1684 = vand.u32 %v1683, 4294901760
        %v1685 = vsub.f32 %v1683, %v1684
        %v1686 = vand.u32 %v1685, 4294901760
        %1687 = vmatpush1.msra.mxu0 %v1686
        %v1688 = vand.u32 %v415, 4294901760
        %v1689 = vsub.f32 %v415, %v1688
        %v1690 = vand.u32 %v1689, 4294901760
        %v1691 = vsub.f32 %v1689, %v1690
        %v1692 = vand.u32 %v1691, 4294901760
        %1693 = vmatprep.subr.mxu0 %v1692
        %v1694 = vand.u32 %v414, 4294901760
        %v1695 = vsub.f32 %v414, %v1694
        %v1696 = vand.u32 %v1695, 4294901760
        %v1697 = vsub.f32 %v1695, %v1696
        %v1698 = vand.u32 %v1697, 4294901760
        %1699 = vmatpush1.msra.mxu0 %v1698
        %v1700 = vand.u32 %v431, 4294901760
        %v1701 = vsub.f32 %v431, %v1700
        %v1702 = vand.u32 %v1701, 4294901760
        %v1703 = vsub.f32 %v1701, %v1702
        %v1704 = vand.u32 %v1703, 4294901760
        %1705 = vmatprep.subr.mxu0 %v1704
        %v1706 = vand.u32 %v430, 4294901760
        %v1707 = vsub.f32 %v430, %v1706
        %v1708 = vand.u32 %v1707, 4294901760
        %v1709 = vsub.f32 %v1707, %v1708
        %v1710 = vand.u32 %v1709, 4294901760
        %1711 = vmatpush1.msra.mxu0 %v1710
        %v1712 = vand.u32 %v447, 4294901760
        %v1713 = vsub.f32 %v447, %v1712
        %v1714 = vand.u32 %v1713, 4294901760
        %v1715 = vsub.f32 %v1713, %v1714
        %v1716 = vand.u32 %v1715, 4294901760
        %1717 = vmatprep.subr.mxu0 %v1716
        %v1718 = vand.u32 %v446, 4294901760
        %v1719 = vsub.f32 %v446, %v1718
        %v1720 = vand.u32 %v1719, 4294901760
        %v1721 = vsub.f32 %v1719, %v1720
        %v1722 = vand.u32 %v1721, 4294901760
        %1723 = vmatpush1.msra.mxu0 %v1722
        %v1724 = vand.u32 %v463, 4294901760
        %v1725 = vsub.f32 %v463, %v1724
        %v1726 = vand.u32 %v1725, 4294901760
        %v1727 = vsub.f32 %v1725, %v1726
        %v1728 = vand.u32 %v1727, 4294901760
        %1729 = vmatprep.subr.mxu0 %v1728
        %v1730 = vand.u32 %v462, 4294901760
        %v1731 = vsub.f32 %v462, %v1730
        %v1732 = vand.u32 %v1731, 4294901760
        %v1733 = vsub.f32 %v1731, %v1732
        %v1734 = vand.u32 %v1733, 4294901760
        %1735 = vmatpush1.msra.mxu0 %v1734
        %v1736 = vand.u32 %v479, 4294901760
        %v1737 = vsub.f32 %v479, %v1736
        %v1738 = vand.u32 %v1737, 4294901760
        %v1739 = vsub.f32 %v1737, %v1738
        %v1740 = vand.u32 %v1739, 4294901760
        %1741 = vmatprep.subr.mxu0 %v1740
        %v1742 = vand.u32 %v478, 4294901760
        %v1743 = vsub.f32 %v478, %v1742
        %v1744 = vand.u32 %v1743, 4294901760
        %v1745 = vsub.f32 %v1743, %v1744
        %v1746 = vand.u32 %v1745, 4294901760
        %1747 = vmatpush1.msra.mxu0 %v1746
        %1748 = vmatprep.subr.mxu0 0.0
        %1749 = vmatpush1.msra.mxu0 0.0
        %1750 = vmatprep.subr.mxu0 0.0
        %1751 = vmatpush1.msra.mxu0 0.0
        %1752 = vmatprep.subr.mxu0 0.0
        %1753 = vmatpush1.msra.mxu0 0.0
        %1754 = vmatprep.subr.mxu0 0.0
        %1755 = vmatpush1.msra.mxu0 0.0
        %1756 = vmatprep.subr.mxu0 0.0
        %1757 = vmatpush1.msra.mxu0 0.0
        %1758 = vmatprep.subr.mxu0 0.0
        %1759 = vmatpush1.msra.mxu0 0.0
        %1760 = vmatprep.subr.mxu0 0.0
        %1761 = vmatpush1.msra.mxu0 0.0
        %1762 = vmatprep.subr.mxu0 0.0
        %1763 = vmatpush1.msra.mxu0 0.0
        %1764 = vmatprep.subr.mxu0 0.0
        %1765 = vmatpush1.msra.mxu0 0.0
        %1766 = vmatprep.subr.mxu0 0.0
        %1767 = vmatpush1.msra.mxu0 0.0
        %1768 = vmatprep.subr.mxu0 0.0
        %1769 = vmatpush1.msra.mxu0 0.0
        %1770 = vmatprep.subr.mxu0 0.0
        %1771 = vmatpush1.msra.mxu0 0.0
        %1772 = vmatprep.subr.mxu0 0.0
        %1773 = vmatpush1.msra.mxu0 0.0
        %1774 = vmatprep.subr.mxu0 0.0
        %1775 = vmatpush1.msra.mxu0 0.0
        %v1776 = vand.u32 %v493, 4294901760
        %1777 = vmatprep.mubr.f32.mxu0 %v1776
        %v1778 = vand.u32 %v202, 4294901760
        %1779 = vmatmul.mubr.f32.gmra.mrb[0].mxu0 %v1778
        %v1780 = vpop.f32.mrb[0].mxu0
        %v1781 = vadd.f32 %v1528, %v1780
        %v1782 = vpop.f32.mrb[0].mxu0
        %v1783 = vadd.f32 %v1530, %v1782
        %1784 = vdwg.mxu0
        %v1785 = vand.u32 %v207, 4294901760
        %v1786 = vsub.f32 %v207, %v1785
        %1787 = vmatprep.subr.mxu0 %v1786
        %v1788 = vand.u32 %v206, 4294901760
        %v1789 = vsub.f32 %v206, %v1788
        %1790 = vmatpush1.msra.mxu0 %v1789
        %v1791 = vand.u32 %v223, 4294901760
        %v1792 = vsub.f32 %v223, %v1791
        %1793 = vmatprep.subr.mxu0 %v1792
        %v1794 = vand.u32 %v222, 4294901760
        %v1795 = vsub.f32 %v222, %v1794
        %1796 = vmatpush1.msra.mxu0 %v1795
        %v1797 = vand.u32 %v239, 4294901760
        %v1798 = vsub.f32 %v239, %v1797
        %1799 = vmatprep.subr.mxu0 %v1798
        %v1800 = vand.u32 %v238, 4294901760
        %v1801 = vsub.f32 %v238, %v1800
        %1802 = vmatpush1.msra.mxu0 %v1801
        %v1803 = vand.u32 %v255, 4294901760
        %v1804 = vsub.f32 %v255, %v1803
        %1805 = vmatprep.subr.mxu0 %v1804
        %v1806 = vand.u32 %v254, 4294901760
        %v1807 = vsub.f32 %v254, %v1806
        %1808 = vmatpush1.msra.mxu0 %v1807
        %v1809 = vand.u32 %v271, 4294901760
        %v1810 = vsub.f32 %v271, %v1809
        %1811 = vmatprep.subr.mxu0 %v1810
        %v1812 = vand.u32 %v270, 4294901760
        %v1813 = vsub.f32 %v270, %v1812
        %1814 = vmatpush1.msra.mxu0 %v1813
        %v1815 = vand.u32 %v287, 4294901760
        %v1816 = vsub.f32 %v287, %v1815
        %1817 = vmatprep.subr.mxu0 %v1816
        %v1818 = vand.u32 %v286, 4294901760
        %v1819 = vsub.f32 %v286, %v1818
        %1820 = vmatpush1.msra.mxu0 %v1819
        %v1821 = vand.u32 %v303, 4294901760
        %v1822 = vsub.f32 %v303, %v1821
        %1823 = vmatprep.subr.mxu0 %v1822
        %v1824 = vand.u32 %v302, 4294901760
        %v1825 = vsub.f32 %v302, %v1824
        %1826 = vmatpush1.msra.mxu0 %v1825
        %v1827 = vand.u32 %v319, 4294901760
        %v1828 = vsub.f32 %v319, %v1827
        %1829 = vmatprep.subr.mxu0 %v1828
        %v1830 = vand.u32 %v318, 4294901760
        %v1831 = vsub.f32 %v318, %v1830
        %1832 = vmatpush1.msra.mxu0 %v1831
        %v1833 = vand.u32 %v335, 4294901760
        %v1834 = vsub.f32 %v335, %v1833
        %1835 = vmatprep.subr.mxu0 %v1834
        %v1836 = vand.u32 %v334, 4294901760
        %v1837 = vsub.f32 %v334, %v1836
        %1838 = vmatpush1.msra.mxu0 %v1837
        %v1839 = vand.u32 %v351, 4294901760
        %v1840 = vsub.f32 %v351, %v1839
        %1841 = vmatprep.subr.mxu0 %v1840
        %v1842 = vand.u32 %v350, 4294901760
        %v1843 = vsub.f32 %v350, %v1842
        %1844 = vmatpush1.msra.mxu0 %v1843
        %v1845 = vand.u32 %v367, 4294901760
        %v1846 = vsub.f32 %v367, %v1845
        %1847 = vmatprep.subr.mxu0 %v1846
        %v1848 = vand.u32 %v366, 4294901760
        %v1849 = vsub.f32 %v366, %v1848
        %1850 = vmatpush1.msra.mxu0 %v1849
        %v1851 = vand.u32 %v383, 4294901760
        %v1852 = vsub.f32 %v383, %v1851
        %1853 = vmatprep.subr.mxu0 %v1852
        %v1854 = vand.u32 %v382, 4294901760
        %v1855 = vsub.f32 %v382, %v1854
        %1856 = vmatpush1.msra.mxu0 %v1855
        %v1857 = vand.u32 %v399, 4294901760
        %v1858 = vsub.f32 %v399, %v1857
        %1859 = vmatprep.subr.mxu0 %v1858
        %v1860 = vand.u32 %v398, 4294901760
        %v1861 = vsub.f32 %v398, %v1860
        %1862 = vmatpush1.msra.mxu0 %v1861
        %v1863 = vand.u32 %v415, 4294901760
        %v1864 = vsub.f32 %v415, %v1863
        %1865 = vmatprep.subr.mxu0 %v1864
        %v1866 = vand.u32 %v414, 4294901760
        %v1867 = vsub.f32 %v414, %v1866
        %1868 = vmatpush1.msra.mxu0 %v1867
        %v1869 = vand.u32 %v431, 4294901760
        %v1870 = vsub.f32 %v431, %v1869
        %1871 = vmatprep.subr.mxu0 %v1870
        %v1872 = vand.u32 %v430, 4294901760
        %v1873 = vsub.f32 %v430, %v1872
        %1874 = vmatpush1.msra.mxu0 %v1873
        %v1875 = vand.u32 %v447, 4294901760
        %v1876 = vsub.f32 %v447, %v1875
        %1877 = vmatprep.subr.mxu0 %v1876
        %v1878 = vand.u32 %v446, 4294901760
        %v1879 = vsub.f32 %v446, %v1878
        %1880 = vmatpush1.msra.mxu0 %v1879
        %v1881 = vand.u32 %v463, 4294901760
        %v1882 = vsub.f32 %v463, %v1881
        %1883 = vmatprep.subr.mxu0 %v1882
        %v1884 = vand.u32 %v462, 4294901760
        %v1885 = vsub.f32 %v462, %v1884
        %1886 = vmatpush1.msra.mxu0 %v1885
        %v1887 = vand.u32 %v479, 4294901760
        %v1888 = vsub.f32 %v479, %v1887
        %1889 = vmatprep.subr.mxu0 %v1888
        %v1890 = vand.u32 %v478, 4294901760
        %v1891 = vsub.f32 %v478, %v1890
        %1892 = vmatpush1.msra.mxu0 %v1891
        %1893 = vmatprep.subr.mxu0 0.0
        %1894 = vmatpush1.msra.mxu0 0.0
        %1895 = vmatprep.subr.mxu0 0.0
        %1896 = vmatpush1.msra.mxu0 0.0
        %1897 = vmatprep.subr.mxu0 0.0
        %1898 = vmatpush1.msra.mxu0 0.0
        %1899 = vmatprep.subr.mxu0 0.0
        %1900 = vmatpush1.msra.mxu0 0.0
        %1901 = vmatprep.subr.mxu0 0.0
        %1902 = vmatpush1.msra.mxu0 0.0
        %1903 = vmatprep.subr.mxu0 0.0
        %1904 = vmatpush1.msra.mxu0 0.0
        %1905 = vmatprep.subr.mxu0 0.0
        %1906 = vmatpush1.msra.mxu0 0.0
        %1907 = vmatprep.subr.mxu0 0.0
        %1908 = vmatpush1.msra.mxu0 0.0
        %1909 = vmatprep.subr.mxu0 0.0
        %1910 = vmatpush1.msra.mxu0 0.0
        %1911 = vmatprep.subr.mxu0 0.0
        %1912 = vmatpush1.msra.mxu0 0.0
        %1913 = vmatprep.subr.mxu0 0.0
        %1914 = vmatpush1.msra.mxu0 0.0
        %1915 = vmatprep.subr.mxu0 0.0
        %1916 = vmatpush1.msra.mxu0 0.0
        %1917 = vmatprep.subr.mxu0 0.0
        %1918 = vmatpush1.msra.mxu0 0.0
        %1919 = vmatprep.subr.mxu0 0.0
        %1920 = vmatpush1.msra.mxu0 0.0
        %v1921 = vand.u32 %v493, 4294901760
        %v1922 = vsub.f32 %v493, %v1921
        %1923 = vmatprep.mubr.f32.mxu0 %v1922
        %v1924 = vand.u32 %v202, 4294901760
        %v1925 = vsub.f32 %v202, %v1924
        %1926 = vmatmul.mubr.f32.gmra.mrb[0].mxu0 %v1925
        %v1927 = vpop.f32.mrb[0].mxu0
        %v1928 = vadd.f32 %v1781, %v1927
        %v1929 = vpop.f32.mrb[0].mxu0
        %v1930 = vadd.f32 %v1783, %v1929
        %1931 = vdwg.mxu0
        %v1932 = vand.u32 %v207, 4294901760
        %1933 = vmatprep.subr.mxu0 %v1932
        %v1934 = vand.u32 %v206, 4294901760
        %1935 = vmatpush1.msra.mxu0 %v1934
        %v1936 = vand.u32 %v223, 4294901760
        %1937 = vmatprep.subr.mxu0 %v1936
        %v1938 = vand.u32 %v222, 4294901760
        %1939 = vmatpush1.msra.mxu0 %v1938
        %v1940 = vand.u32 %v239, 4294901760
        %1941 = vmatprep.subr.mxu0 %v1940
        %v1942 = vand.u32 %v238, 4294901760
        %1943 = vmatpush1.msra.mxu0 %v1942
        %v1944 = vand.u32 %v255, 4294901760
        %1945 = vmatprep.subr.mxu0 %v1944
        %v1946 = vand.u32 %v254, 4294901760
        %1947 = vmatpush1.msra.mxu0 %v1946
        %v1948 = vand.u32 %v271, 4294901760
        %1949 = vmatprep.subr.mxu0 %v1948
        %v1950 = vand.u32 %v270, 4294901760
        %1951 = vmatpush1.msra.mxu0 %v1950
        %v1952 = vand.u32 %v287, 4294901760
        %1953 = vmatprep.subr.mxu0 %v1952
        %v1954 = vand.u32 %v286, 4294901760
        %1955 = vmatpush1.msra.mxu0 %v1954
        %v1956 = vand.u32 %v303, 4294901760
        %1957 = vmatprep.subr.mxu0 %v1956
        %v1958 = vand.u32 %v302, 4294901760
        %1959 = vmatpush1.msra.mxu0 %v1958
        %v1960 = vand.u32 %v319, 4294901760
        %1961 = vmatprep.subr.mxu0 %v1960
        %v1962 = vand.u32 %v318, 4294901760
        %1963 = vmatpush1.msra.mxu0 %v1962
        %v1964 = vand.u32 %v335, 4294901760
        %1965 = vmatprep.subr.mxu0 %v1964
        %v1966 = vand.u32 %v334, 4294901760
        %1967 = vmatpush1.msra.mxu0 %v1966
        %v1968 = vand.u32 %v351, 4294901760
        %1969 = vmatprep.subr.mxu0 %v1968
        %v1970 = vand.u32 %v350, 4294901760
        %1971 = vmatpush1.msra.mxu0 %v1970
        %v1972 = vand.u32 %v367, 4294901760
        %1973 = vmatprep.subr.mxu0 %v1972
        %v1974 = vand.u32 %v366, 4294901760
        %1975 = vmatpush1.msra.mxu0 %v1974
        %v1976 = vand.u32 %v383, 4294901760
        %1977 = vmatprep.subr.mxu0 %v1976
        %v1978 = vand.u32 %v382, 4294901760
        %1979 = vmatpush1.msra.mxu0 %v1978
        %v1980 = vand.u32 %v399, 4294901760
        %1981 = vmatprep.subr.mxu0 %v1980
        %v1982 = vand.u32 %v398, 4294901760
        %1983 = vmatpush1.msra.mxu0 %v1982
        %v1984 = vand.u32 %v415, 4294901760
        %1985 = vmatprep.subr.mxu0 %v1984
        %v1986 = vand.u32 %v414, 4294901760
        %1987 = vmatpush1.msra.mxu0 %v1986
        %v1988 = vand.u32 %v431, 4294901760
        %1989 = vmatprep.subr.mxu0 %v1988
        %v1990 = vand.u32 %v430, 4294901760
        %1991 = vmatpush1.msra.mxu0 %v1990
        %v1992 = vand.u32 %v447, 4294901760
        %1993 = vmatprep.subr.mxu0 %v1992
        %v1994 = vand.u32 %v446, 4294901760
        %1995 = vmatpush1.msra.mxu0 %v1994
        %v1996 = vand.u32 %v463, 4294901760
        %1997 = vmatprep.subr.mxu0 %v1996
        %v1998 = vand.u32 %v462, 4294901760
        %1999 = vmatpush1.msra.mxu0 %v1998
        %v2000 = vand.u32 %v479, 4294901760
        %2001 = vmatprep.subr.mxu0 %v2000
        %v2002 = vand.u32 %v478, 4294901760
        %2003 = vmatpush1.msra.mxu0 %v2002
        %2004 = vmatprep.subr.mxu0 0.0
        %2005 = vmatpush1.msra.mxu0 0.0
        %2006 = vmatprep.subr.mxu0 0.0
        %2007 = vmatpush1.msra.mxu0 0.0
        %2008 = vmatprep.subr.mxu0 0.0
        %2009 = vmatpush1.msra.mxu0 0.0
        %2010 = vmatprep.subr.mxu0 0.0
        %2011 = vmatpush1.msra.mxu0 0.0
        %2012 = vmatprep.subr.mxu0 0.0
        %2013 = vmatpush1.msra.mxu0 0.0
        %2014 = vmatprep.subr.mxu0 0.0
        %2015 = vmatpush1.msra.mxu0 0.0
        %2016 = vmatprep.subr.mxu0 0.0
        %2017 = vmatpush1.msra.mxu0 0.0
        %2018 = vmatprep.subr.mxu0 0.0
        %2019 = vmatpush1.msra.mxu0 0.0
        %2020 = vmatprep.subr.mxu0 0.0
        %2021 = vmatpush1.msra.mxu0 0.0
        %2022 = vmatprep.subr.mxu0 0.0
        %2023 = vmatpush1.msra.mxu0 0.0
        %2024 = vmatprep.subr.mxu0 0.0
        %2025 = vmatpush1.msra.mxu0 0.0
        %2026 = vmatprep.subr.mxu0 0.0
        %2027 = vmatpush1.msra.mxu0 0.0
        %2028 = vmatprep.subr.mxu0 0.0
        %2029 = vmatpush1.msra.mxu0 0.0
        %2030 = vmatprep.subr.mxu0 0.0
        %2031 = vmatpush1.msra.mxu0 0.0
        %v2032 = vand.u32 %v493, 4294901760
        %v2033 = vsub.f32 %v493, %v2032
        %v2034 = vand.u32 %v2033, 4294901760
        %2035 = vmatprep.mubr.f32.mxu0 %v2034
        %v2036 = vand.u32 %v202, 4294901760
        %v2037 = vsub.f32 %v202, %v2036
        %v2038 = vand.u32 %v2037, 4294901760
        %2039 = vmatmul.mubr.f32.gmra.mrb[0].mxu0 %v2038
        %v2040 = vpop.f32.mrb[0].mxu0
        %v2041 = vadd.f32 %v1928, %v2040
        %v2042 = vpop.f32.mrb[0].mxu0
        %v2043 = vadd.f32 %v1930, %v2042
        %2044 = vdwg.mxu0
        %v2045 = vand.u32 %v207, 4294901760
        %v2046 = vsub.f32 %v207, %v2045
        %v2047 = vand.u32 %v2046, 4294901760
        %2048 = vmatprep.subr.mxu0 %v2047
        %v2049 = vand.u32 %v206, 4294901760
        %v2050 = vsub.f32 %v206, %v2049
        %v2051 = vand.u32 %v2050, 4294901760
        %2052 = vmatpush1.msra.mxu0 %v2051
        %v2053 = vand.u32 %v223, 4294901760
        %v2054 = vsub.f32 %v223, %v2053
        %v2055 = vand.u32 %v2054, 4294901760
        %2056 = vmatprep.subr.mxu0 %v2055
        %v2057 = vand.u32 %v222, 4294901760
        %v2058 = vsub.f32 %v222, %v2057
        %v2059 = vand.u32 %v2058, 4294901760
        %2060 = vmatpush1.msra.mxu0 %v2059
        %v2061 = vand.u32 %v239, 4294901760
        %v2062 = vsub.f32 %v239, %v2061
        %v2063 = vand.u32 %v2062, 4294901760
        %2064 = vmatprep.subr.mxu0 %v2063
        %v2065 = vand.u32 %v238, 4294901760
        %v2066 = vsub.f32 %v238, %v2065
        %v2067 = vand.u32 %v2066, 4294901760
        %2068 = vmatpush1.msra.mxu0 %v2067
        %v2069 = vand.u32 %v255, 4294901760
        %v2070 = vsub.f32 %v255, %v2069
        %v2071 = vand.u32 %v2070, 4294901760
        %2072 = vmatprep.subr.mxu0 %v2071
        %v2073 = vand.u32 %v254, 4294901760
        %v2074 = vsub.f32 %v254, %v2073
        %v2075 = vand.u32 %v2074, 4294901760
        %2076 = vmatpush1.msra.mxu0 %v2075
        %v2077 = vand.u32 %v271, 4294901760
        %v2078 = vsub.f32 %v271, %v2077
        %v2079 = vand.u32 %v2078, 4294901760
        %2080 = vmatprep.subr.mxu0 %v2079
        %v2081 = vand.u32 %v270, 4294901760
        %v2082 = vsub.f32 %v270, %v2081
        %v2083 = vand.u32 %v2082, 4294901760
        %2084 = vmatpush1.msra.mxu0 %v2083
        %v2085 = vand.u32 %v287, 4294901760
        %v2086 = vsub.f32 %v287, %v2085
        %v2087 = vand.u32 %v2086, 4294901760
        %2088 = vmatprep.subr.mxu0 %v2087
        %v2089 = vand.u32 %v286, 4294901760
        %v2090 = vsub.f32 %v286, %v2089
        %v2091 = vand.u32 %v2090, 4294901760
        %2092 = vmatpush1.msra.mxu0 %v2091
        %v2093 = vand.u32 %v303, 4294901760
        %v2094 = vsub.f32 %v303, %v2093
        %v2095 = vand.u32 %v2094, 4294901760
        %2096 = vmatprep.subr.mxu0 %v2095
        %v2097 = vand.u32 %v302, 4294901760
        %v2098 = vsub.f32 %v302, %v2097
        %v2099 = vand.u32 %v2098, 4294901760
        %2100 = vmatpush1.msra.mxu0 %v2099
        %v2101 = vand.u32 %v319, 4294901760
        %v2102 = vsub.f32 %v319, %v2101
        %v2103 = vand.u32 %v2102, 4294901760
        %2104 = vmatprep.subr.mxu0 %v2103
        %v2105 = vand.u32 %v318, 4294901760
        %v2106 = vsub.f32 %v318, %v2105
        %v2107 = vand.u32 %v2106, 4294901760
        %2108 = vmatpush1.msra.mxu0 %v2107
        %v2109 = vand.u32 %v335, 4294901760
        %v2110 = vsub.f32 %v335, %v2109
        %v2111 = vand.u32 %v2110, 4294901760
        %2112 = vmatprep.subr.mxu0 %v2111
        %v2113 = vand.u32 %v334, 4294901760
        %v2114 = vsub.f32 %v334, %v2113
        %v2115 = vand.u32 %v2114, 4294901760
        %2116 = vmatpush1.msra.mxu0 %v2115
        %v2117 = vand.u32 %v351, 4294901760
        %v2118 = vsub.f32 %v351, %v2117
        %v2119 = vand.u32 %v2118, 4294901760
        %2120 = vmatprep.subr.mxu0 %v2119
        %v2121 = vand.u32 %v350, 4294901760
        %v2122 = vsub.f32 %v350, %v2121
        %v2123 = vand.u32 %v2122, 4294901760
        %2124 = vmatpush1.msra.mxu0 %v2123
        %v2125 = vand.u32 %v367, 4294901760
        %v2126 = vsub.f32 %v367, %v2125
        %v2127 = vand.u32 %v2126, 4294901760
        %2128 = vmatprep.subr.mxu0 %v2127
        %v2129 = vand.u32 %v366, 4294901760
        %v2130 = vsub.f32 %v366, %v2129
        %v2131 = vand.u32 %v2130, 4294901760
        %2132 = vmatpush1.msra.mxu0 %v2131
        %v2133 = vand.u32 %v383, 4294901760
        %v2134 = vsub.f32 %v383, %v2133
        %v2135 = vand.u32 %v2134, 4294901760
        %2136 = vmatprep.subr.mxu0 %v2135
        %v2137 = vand.u32 %v382, 4294901760
        %v2138 = vsub.f32 %v382, %v2137
        %v2139 = vand.u32 %v2138, 4294901760
        %2140 = vmatpush1.msra.mxu0 %v2139
        %v2141 = vand.u32 %v399, 4294901760
        %v2142 = vsub.f32 %v399, %v2141
        %v2143 = vand.u32 %v2142, 4294901760
        %2144 = vmatprep.subr.mxu0 %v2143
        %v2145 = vand.u32 %v398, 4294901760
        %v2146 = vsub.f32 %v398, %v2145
        %v2147 = vand.u32 %v2146, 4294901760
        %2148 = vmatpush1.msra.mxu0 %v2147
        %v2149 = vand.u32 %v415, 4294901760
        %v2150 = vsub.f32 %v415, %v2149
        %v2151 = vand.u32 %v2150, 4294901760
        %2152 = vmatprep.subr.mxu0 %v2151
        %v2153 = vand.u32 %v414, 4294901760
        %v2154 = vsub.f32 %v414, %v2153
        %v2155 = vand.u32 %v2154, 4294901760
        %2156 = vmatpush1.msra.mxu0 %v2155
        %v2157 = vand.u32 %v431, 4294901760
        %v2158 = vsub.f32 %v431, %v2157
        %v2159 = vand.u32 %v2158, 4294901760
        %2160 = vmatprep.subr.mxu0 %v2159
        %v2161 = vand.u32 %v430, 4294901760
        %v2162 = vsub.f32 %v430, %v2161
        %v2163 = vand.u32 %v2162, 4294901760
        %2164 = vmatpush1.msra.mxu0 %v2163
        %v2165 = vand.u32 %v447, 4294901760
        %v2166 = vsub.f32 %v447, %v2165
        %v2167 = vand.u32 %v2166, 4294901760
        %2168 = vmatprep.subr.mxu0 %v2167
        %v2169 = vand.u32 %v446, 4294901760
        %v2170 = vsub.f32 %v446, %v2169
        %v2171 = vand.u32 %v2170, 4294901760
        %2172 = vmatpush1.msra.mxu0 %v2171
        %v2173 = vand.u32 %v463, 4294901760
        %v2174 = vsub.f32 %v463, %v2173
        %v2175 = vand.u32 %v2174, 4294901760
        %2176 = vmatprep.subr.mxu0 %v2175
        %v2177 = vand.u32 %v462, 4294901760
        %v2178 = vsub.f32 %v462, %v2177
        %v2179 = vand.u32 %v2178, 4294901760
        %2180 = vmatpush1.msra.mxu0 %v2179
        %v2181 = vand.u32 %v479, 4294901760
        %v2182 = vsub.f32 %v479, %v2181
        %v2183 = vand.u32 %v2182, 4294901760
        %2184 = vmatprep.subr.mxu0 %v2183
        %v2185 = vand.u32 %v478, 4294901760
        %v2186 = vsub.f32 %v478, %v2185
        %v2187 = vand.u32 %v2186, 4294901760
        %2188 = vmatpush1.msra.mxu0 %v2187
        %2189 = vmatprep.subr.mxu0 0.0
        %2190 = vmatpush1.msra.mxu0 0.0
        %2191 = vmatprep.subr.mxu0 0.0
        %2192 = vmatpush1.msra.mxu0 0.0
        %2193 = vmatprep.subr.mxu0 0.0
        %2194 = vmatpush1.msra.mxu0 0.0
        %2195 = vmatprep.subr.mxu0 0.0
        %2196 = vmatpush1.msra.mxu0 0.0
        %2197 = vmatprep.subr.mxu0 0.0
        %2198 = vmatpush1.msra.mxu0 0.0
        %2199 = vmatprep.subr.mxu0 0.0
        %2200 = vmatpush1.msra.mxu0 0.0
        %2201 = vmatprep.subr.mxu0 0.0
        %2202 = vmatpush1.msra.mxu0 0.0
        %2203 = vmatprep.subr.mxu0 0.0
        %2204 = vmatpush1.msra.mxu0 0.0
        %2205 = vmatprep.subr.mxu0 0.0
        %2206 = vmatpush1.msra.mxu0 0.0
        %2207 = vmatprep.subr.mxu0 0.0
        %2208 = vmatpush1.msra.mxu0 0.0
        %2209 = vmatprep.subr.mxu0 0.0
        %2210 = vmatpush1.msra.mxu0 0.0
        %2211 = vmatprep.subr.mxu0 0.0
        %2212 = vmatpush1.msra.mxu0 0.0
        %2213 = vmatprep.subr.mxu0 0.0
        %2214 = vmatpush1.msra.mxu0 0.0
        %2215 = vmatprep.subr.mxu0 0.0
        %2216 = vmatpush1.msra.mxu0 0.0
        %v2217 = vand.u32 %v493, 4294901760
        %2218 = vmatprep.mubr.f32.mxu0 %v2217
        %v2219 = vand.u32 %v202, 4294901760
        %2220 = vmatmul.mubr.f32.gmra.mrb[0].mxu0 %v2219
        %v2221 = vpop.f32.mrb[0].mxu0
        %v2222 = vadd.f32 %v2041, %v2221
        %v2223 = vpop.f32.mrb[0].mxu0
        %v2224 = vadd.f32 %v2043, %v2223
        %2225 = vdwg.mxu0
        %v2226 = vand.u32 %v207, 4294901760
        %2227 = vmatprep.subr.mxu0 %v2226
        %v2228 = vand.u32 %v206, 4294901760
        %2229 = vmatpush1.msra.mxu0 %v2228
        %v2230 = vand.u32 %v223, 4294901760
        %2231 = vmatprep.subr.mxu0 %v2230
        %v2232 = vand.u32 %v222, 4294901760
        %2233 = vmatpush1.msra.mxu0 %v2232
        %v2234 = vand.u32 %v239, 4294901760
        %2235 = vmatprep.subr.mxu0 %v2234
        %v2236 = vand.u32 %v238, 4294901760
        %2237 = vmatpush1.msra.mxu0 %v2236
        %v2238 = vand.u32 %v255, 4294901760
        %2239 = vmatprep.subr.mxu0 %v2238
        %v2240 = vand.u32 %v254, 4294901760
        %2241 = vmatpush1.msra.mxu0 %v2240
        %v2242 = vand.u32 %v271, 4294901760
        %2243 = vmatprep.subr.mxu0 %v2242
        %v2244 = vand.u32 %v270, 4294901760
        %2245 = vmatpush1.msra.mxu0 %v2244
        %v2246 = vand.u32 %v287, 4294901760
        %2247 = vmatprep.subr.mxu0 %v2246
        %v2248 = vand.u32 %v286, 4294901760
        %2249 = vmatpush1.msra.mxu0 %v2248
        %v2250 = vand.u32 %v303, 4294901760
        %2251 = vmatprep.subr.mxu0 %v2250
        %v2252 = vand.u32 %v302, 4294901760
        %2253 = vmatpush1.msra.mxu0 %v2252
        %v2254 = vand.u32 %v319, 4294901760
        %2255 = vmatprep.subr.mxu0 %v2254
        %v2256 = vand.u32 %v318, 4294901760
        %2257 = vmatpush1.msra.mxu0 %v2256
        %v2258 = vand.u32 %v335, 4294901760
        %2259 = vmatprep.subr.mxu0 %v2258
        %v2260 = vand.u32 %v334, 4294901760
        %2261 = vmatpush1.msra.mxu0 %v2260
        %v2262 = vand.u32 %v351, 4294901760
        %2263 = vmatprep.subr.mxu0 %v2262
        %v2264 = vand.u32 %v350, 4294901760
        %2265 = vmatpush1.msra.mxu0 %v2264
        %v2266 = vand.u32 %v367, 4294901760
        %2267 = vmatprep.subr.mxu0 %v2266
        %v2268 = vand.u32 %v366, 4294901760
        %2269 = vmatpush1.msra.mxu0 %v2268
        %v2270 = vand.u32 %v383, 4294901760
        %2271 = vmatprep.subr.mxu0 %v2270
        %v2272 = vand.u32 %v382, 4294901760
        %2273 = vmatpush1.msra.mxu0 %v2272
        %v2274 = vand.u32 %v399, 4294901760
        %2275 = vmatprep.subr.mxu0 %v2274
        %v2276 = vand.u32 %v398, 4294901760
        %2277 = vmatpush1.msra.mxu0 %v2276
        %v2278 = vand.u32 %v415, 4294901760
        %2279 = vmatprep.subr.mxu0 %v2278
        %v2280 = vand.u32 %v414, 4294901760
        %2281 = vmatpush1.msra.mxu0 %v2280
        %v2282 = vand.u32 %v431, 4294901760
        %2283 = vmatprep.subr.mxu0 %v2282
        %v2284 = vand.u32 %v430, 4294901760
        %2285 = vmatpush1.msra.mxu0 %v2284
        %v2286 = vand.u32 %v447, 4294901760
        %2287 = vmatprep.subr.mxu0 %v2286
        %v2288 = vand.u32 %v446, 4294901760
        %2289 = vmatpush1.msra.mxu0 %v2288
        %v2290 = vand.u32 %v463, 4294901760
        %2291 = vmatprep.subr.mxu0 %v2290
        %v2292 = vand.u32 %v462, 4294901760
        %2293 = vmatpush1.msra.mxu0 %v2292
        %v2294 = vand.u32 %v479, 4294901760
        %2295 = vmatprep.subr.mxu0 %v2294
        %v2296 = vand.u32 %v478, 4294901760
        %2297 = vmatpush1.msra.mxu0 %v2296
        %2298 = vmatprep.subr.mxu0 0.0
        %2299 = vmatpush1.msra.mxu0 0.0
        %2300 = vmatprep.subr.mxu0 0.0
        %2301 = vmatpush1.msra.mxu0 0.0
        %2302 = vmatprep.subr.mxu0 0.0
        %2303 = vmatpush1.msra.mxu0 0.0
        %2304 = vmatprep.subr.mxu0 0.0
        %2305 = vmatpush1.msra.mxu0 0.0
        %2306 = vmatprep.subr.mxu0 0.0
        %2307 = vmatpush1.msra.mxu0 0.0
        %2308 = vmatprep.subr.mxu0 0.0
        %2309 = vmatpush1.msra.mxu0 0.0
        %2310 = vmatprep.subr.mxu0 0.0
        %2311 = vmatpush1.msra.mxu0 0.0
        %2312 = vmatprep.subr.mxu0 0.0
        %2313 = vmatpush1.msra.mxu0 0.0
        %2314 = vmatprep.subr.mxu0 0.0
        %2315 = vmatpush1.msra.mxu0 0.0
        %2316 = vmatprep.subr.mxu0 0.0
        %2317 = vmatpush1.msra.mxu0 0.0
        %2318 = vmatprep.subr.mxu0 0.0
        %2319 = vmatpush1.msra.mxu0 0.0
        %2320 = vmatprep.subr.mxu0 0.0
        %2321 = vmatpush1.msra.mxu0 0.0
        %2322 = vmatprep.subr.mxu0 0.0
        %2323 = vmatpush1.msra.mxu0 0.0
        %2324 = vmatprep.subr.mxu0 0.0
        %2325 = vmatpush1.msra.mxu0 0.0
        %v2326 = vand.u32 %v493, 4294901760
        %2327 = vmatprep.mubr.f32.mxu0 %v2326
        %v2328 = vand.u32 %v202, 4294901760
        %2329 = vmatmul.mubr.f32.gmra.mrb[0].mxu0 %v2328
        %v2330 = vpop.f32.mrb[0].mxu0
        %v2331 = vadd.f32 %v2222, %v2330
        %v2332 = vpop.f32.mrb[0].mxu0
        %v2333 = vadd.f32 %v2224, %v2332
        %2334 = vdwg.mxu0
        %v2335 = vand.u32 %v209, 4294901760
        %2336 = vmatprep.subr.mxu0 %v2335
        %v2337 = vand.u32 %v208, 4294901760
        %2338 = vmatpush1.msra.mxu0 %v2337
        %v2339 = vand.u32 %v225, 4294901760
        %2340 = vmatprep.subr.mxu0 %v2339
        %v2341 = vand.u32 %v224, 4294901760
        %2342 = vmatpush1.msra.mxu0 %v2341
        %v2343 = vand.u32 %v241, 4294901760
        %2344 = vmatprep.subr.mxu0 %v2343
        %v2345 = vand.u32 %v240, 4294901760
        %2346 = vmatpush1.msra.mxu0 %v2345
        %v2347 = vand.u32 %v257, 4294901760
        %2348 = vmatprep.subr.mxu0 %v2347
        %v2349 = vand.u32 %v256, 4294901760
        %2350 = vmatpush1.msra.mxu0 %v2349
        %v2351 = vand.u32 %v273, 4294901760
        %2352 = vmatprep.subr.mxu0 %v2351
        %v2353 = vand.u32 %v272, 4294901760
        %2354 = vmatpush1.msra.mxu0 %v2353
        %v2355 = vand.u32 %v289, 4294901760
        %2356 = vmatprep.subr.mxu0 %v2355
        %v2357 = vand.u32 %v288, 4294901760
        %2358 = vmatpush1.msra.mxu0 %v2357
        %v2359 = vand.u32 %v305, 4294901760
        %2360 = vmatprep.subr.mxu0 %v2359
        %v2361 = vand.u32 %v304, 4294901760
        %2362 = vmatpush1.msra.mxu0 %v2361
        %v2363 = vand.u32 %v321, 4294901760
        %2364 = vmatprep.subr.mxu0 %v2363
        %v2365 = vand.u32 %v320, 4294901760
        %2366 = vmatpush1.msra.mxu0 %v2365
        %v2367 = vand.u32 %v337, 4294901760
        %2368 = vmatprep.subr.mxu0 %v2367
        %v2369 = vand.u32 %v336, 4294901760
        %2370 = vmatpush1.msra.mxu0 %v2369
        %v2371 = vand.u32 %v353, 4294901760
        %2372 = vmatprep.subr.mxu0 %v2371
        %v2373 = vand.u32 %v352, 4294901760
        %2374 = vmatpush1.msra.mxu0 %v2373
        %v2375 = vand.u32 %v369, 4294901760
        %2376 = vmatprep.subr.mxu0 %v2375
        %v2377 = vand.u32 %v368, 4294901760
        %2378 = vmatpush1.msra.mxu0 %v2377
        %v2379 = vand.u32 %v385, 4294901760
        %2380 = vmatprep.subr.mxu0 %v2379
        %v2381 = vand.u32 %v384, 4294901760
        %2382 = vmatpush1.msra.mxu0 %v2381
        %v2383 = vand.u32 %v401, 4294901760
        %2384 = vmatprep.subr.mxu0 %v2383
        %v2385 = vand.u32 %v400, 4294901760
        %2386 = vmatpush1.msra.mxu0 %v2385
        %v2387 = vand.u32 %v417, 4294901760
        %2388 = vmatprep.subr.mxu0 %v2387
        %v2389 = vand.u32 %v416, 4294901760
        %2390 = vmatpush1.msra.mxu0 %v2389
        %v2391 = vand.u32 %v433, 4294901760
        %2392 = vmatprep.subr.mxu0 %v2391
        %v2393 = vand.u32 %v432, 4294901760
        %2394 = vmatpush1.msra.mxu0 %v2393
        %v2395 = vand.u32 %v449, 4294901760
        %2396 = vmatprep.subr.mxu0 %v2395
        %v2397 = vand.u32 %v448, 4294901760
        %2398 = vmatpush1.msra.mxu0 %v2397
        %v2399 = vand.u32 %v465, 4294901760
        %2400 = vmatprep.subr.mxu0 %v2399
        %v2401 = vand.u32 %v464, 4294901760
        %2402 = vmatpush1.msra.mxu0 %v2401
        %v2403 = vand.u32 %v481, 4294901760
        %2404 = vmatprep.subr.mxu0 %v2403
        %v2405 = vand.u32 %v480, 4294901760
        %2406 = vmatpush1.msra.mxu0 %v2405
        %2407 = vmatprep.subr.mxu0 0.0
        %2408 = vmatpush1.msra.mxu0 0.0
        %2409 = vmatprep.subr.mxu0 0.0
        %2410 = vmatpush1.msra.mxu0 0.0
        %2411 = vmatprep.subr.mxu0 0.0
        %2412 = vmatpush1.msra.mxu0 0.0
        %2413 = vmatprep.subr.mxu0 0.0
        %2414 = vmatpush1.msra.mxu0 0.0
        %2415 = vmatprep.subr.mxu0 0.0
        %2416 = vmatpush1.msra.mxu0 0.0
        %2417 = vmatprep.subr.mxu0 0.0
        %2418 = vmatpush1.msra.mxu0 0.0
        %2419 = vmatprep.subr.mxu0 0.0
        %2420 = vmatpush1.msra.mxu0 0.0
        %2421 = vmatprep.subr.mxu0 0.0
        %2422 = vmatpush1.msra.mxu0 0.0
        %2423 = vmatprep.subr.mxu0 0.0
        %2424 = vmatpush1.msra.mxu0 0.0
        %2425 = vmatprep.subr.mxu0 0.0
        %2426 = vmatpush1.msra.mxu0 0.0
        %2427 = vmatprep.subr.mxu0 0.0
        %2428 = vmatpush1.msra.mxu0 0.0
        %2429 = vmatprep.subr.mxu0 0.0
        %2430 = vmatpush1.msra.mxu0 0.0
        %2431 = vmatprep.subr.mxu0 0.0
        %2432 = vmatpush1.msra.mxu0 0.0
        %2433 = vmatprep.subr.mxu0 0.0
        %2434 = vmatpush1.msra.mxu0 0.0
        %v2435 = vand.u32 %v493, 4294901760
        %v2436 = vsub.f32 %v493, %v2435
        %v2437 = vand.u32 %v2436, 4294901760
        %v2438 = vsub.f32 %v2436, %v2437
        %v2439 = vand.u32 %v2438, 4294901760
        %2440 = vmatprep.mubr.f32.mxu0 %v2439
        %v2441 = vand.u32 %v202, 4294901760
        %v2442 = vsub.f32 %v202, %v2441
        %v2443 = vand.u32 %v2442, 4294901760
        %v2444 = vsub.f32 %v2442, %v2443
        %v2445 = vand.u32 %v2444, 4294901760
        %2446 = vmatmul.mubr.f32.gmra.mrb[0].mxu0 %v2445
        %v2447 = vpop.f32.mrb[0].mxu0
        %v2448 = vadd.f32 0.0, %v2447
        %v2449 = vpop.f32.mrb[0].mxu0
        %v2450 = vadd.f32 0.0, %v2449
        %2451 = vdwg.mxu0
        %v2452 = vand.u32 %v209, 4294901760
        %v2453 = vsub.f32 %v209, %v2452
        %v2454 = vand.u32 %v2453, 4294901760
        %v2455 = vsub.f32 %v2453, %v2454
        %v2456 = vand.u32 %v2455, 4294901760
        %2457 = vmatprep.subr.mxu0 %v2456
        %v2458 = vand.u32 %v208, 4294901760
        %v2459 = vsub.f32 %v208, %v2458
        %v2460 = vand.u32 %v2459, 4294901760
        %v2461 = vsub.f32 %v2459, %v2460
        %v2462 = vand.u32 %v2461, 4294901760
        %2463 = vmatpush1.msra.mxu0 %v2462
        %v2464 = vand.u32 %v225, 4294901760
        %v2465 = vsub.f32 %v225, %v2464
        %v2466 = vand.u32 %v2465, 4294901760
        %v2467 = vsub.f32 %v2465, %v2466
        %v2468 = vand.u32 %v2467, 4294901760
        %2469 = vmatprep.subr.mxu0 %v2468
        %v2470 = vand.u32 %v224, 4294901760
        %v2471 = vsub.f32 %v224, %v2470
        %v2472 = vand.u32 %v2471, 4294901760
        %v2473 = vsub.f32 %v2471, %v2472
        %v2474 = vand.u32 %v2473, 4294901760
        %2475 = vmatpush1.msra.mxu0 %v2474
        %v2476 = vand.u32 %v241, 4294901760
        %v2477 = vsub.f32 %v241, %v2476
        %v2478 = vand.u32 %v2477, 4294901760
        %v2479 = vsub.f32 %v2477, %v2478
        %v2480 = vand.u32 %v2479, 4294901760
        %2481 = vmatprep.subr.mxu0 %v2480
        %v2482 = vand.u32 %v240, 4294901760
        %v2483 = vsub.f32 %v240, %v2482
        %v2484 = vand.u32 %v2483, 4294901760
        %v2485 = vsub.f32 %v2483, %v2484
        %v2486 = vand.u32 %v2485, 4294901760
        %2487 = vmatpush1.msra.mxu0 %v2486
        %v2488 = vand.u32 %v257, 4294901760
        %v2489 = vsub.f32 %v257, %v2488
        %v2490 = vand.u32 %v2489, 4294901760
        %v2491 = vsub.f32 %v2489, %v2490
        %v2492 = vand.u32 %v2491, 4294901760
        %2493 = vmatprep.subr.mxu0 %v2492
        %v2494 = vand.u32 %v256, 4294901760
        %v2495 = vsub.f32 %v256, %v2494
        %v2496 = vand.u32 %v2495, 4294901760
        %v2497 = vsub.f32 %v2495, %v2496
        %v2498 = vand.u32 %v2497, 4294901760
        %2499 = vmatpush1.msra.mxu0 %v2498
        %v2500 = vand.u32 %v273, 4294901760
        %v2501 = vsub.f32 %v273, %v2500
        %v2502 = vand.u32 %v2501, 4294901760
        %v2503 = vsub.f32 %v2501, %v2502
        %v2504 = vand.u32 %v2503, 4294901760
        %2505 = vmatprep.subr.mxu0 %v2504
        %v2506 = vand.u32 %v272, 4294901760
        %v2507 = vsub.f32 %v272, %v2506
        %v2508 = vand.u32 %v2507, 4294901760
        %v2509 = vsub.f32 %v2507, %v2508
        %v2510 = vand.u32 %v2509, 4294901760
        %2511 = vmatpush1.msra.mxu0 %v2510
        %v2512 = vand.u32 %v289, 4294901760
        %v2513 = vsub.f32 %v289, %v2512
        %v2514 = vand.u32 %v2513, 4294901760
        %v2515 = vsub.f32 %v2513, %v2514
        %v2516 = vand.u32 %v2515, 4294901760
        %2517 = vmatprep.subr.mxu0 %v2516
        %v2518 = vand.u32 %v288, 4294901760
        %v2519 = vsub.f32 %v288, %v2518
        %v2520 = vand.u32 %v2519, 4294901760
        %v2521 = vsub.f32 %v2519, %v2520
        %v2522 = vand.u32 %v2521, 4294901760
        %2523 = vmatpush1.msra.mxu0 %v2522
        %v2524 = vand.u32 %v305, 4294901760
        %v2525 = vsub.f32 %v305, %v2524
        %v2526 = vand.u32 %v2525, 4294901760
        %v2527 = vsub.f32 %v2525, %v2526
        %v2528 = vand.u32 %v2527, 4294901760
        %2529 = vmatprep.subr.mxu0 %v2528
        %v2530 = vand.u32 %v304, 4294901760
        %v2531 = vsub.f32 %v304, %v2530
        %v2532 = vand.u32 %v2531, 4294901760
        %v2533 = vsub.f32 %v2531, %v2532
        %v2534 = vand.u32 %v2533, 4294901760
        %2535 = vmatpush1.msra.mxu0 %v2534
        %v2536 = vand.u32 %v321, 4294901760
        %v2537 = vsub.f32 %v321, %v2536
        %v2538 = vand.u32 %v2537, 4294901760
        %v2539 = vsub.f32 %v2537, %v2538
        %v2540 = vand.u32 %v2539, 4294901760
        %2541 = vmatprep.subr.mxu0 %v2540
        %v2542 = vand.u32 %v320, 4294901760
        %v2543 = vsub.f32 %v320, %v2542
        %v2544 = vand.u32 %v2543, 4294901760
        %v2545 = vsub.f32 %v2543, %v2544
        %v2546 = vand.u32 %v2545, 4294901760
        %2547 = vmatpush1.msra.mxu0 %v2546
        %v2548 = vand.u32 %v337, 4294901760
        %v2549 = vsub.f32 %v337, %v2548
        %v2550 = vand.u32 %v2549, 4294901760
        %v2551 = vsub.f32 %v2549, %v2550
        %v2552 = vand.u32 %v2551, 4294901760
        %2553 = vmatprep.subr.mxu0 %v2552
        %v2554 = vand.u32 %v336, 4294901760
        %v2555 = vsub.f32 %v336, %v2554
        %v2556 = vand.u32 %v2555, 4294901760
        %v2557 = vsub.f32 %v2555, %v2556
        %v2558 = vand.u32 %v2557, 4294901760
        %2559 = vmatpush1.msra.mxu0 %v2558
        %v2560 = vand.u32 %v353, 4294901760
        %v2561 = vsub.f32 %v353, %v2560
        %v2562 = vand.u32 %v2561, 4294901760
        %v2563 = vsub.f32 %v2561, %v2562
        %v2564 = vand.u32 %v2563, 4294901760
        %2565 = vmatprep.subr.mxu0 %v2564
        %v2566 = vand.u32 %v352, 4294901760
        %v2567 = vsub.f32 %v352, %v2566
        %v2568 = vand.u32 %v2567, 4294901760
        %v2569 = vsub.f32 %v2567, %v2568
        %v2570 = vand.u32 %v2569, 4294901760
        %2571 = vmatpush1.msra.mxu0 %v2570
        %v2572 = vand.u32 %v369, 4294901760
        %v2573 = vsub.f32 %v369, %v2572
        %v2574 = vand.u32 %v2573, 4294901760
        %v2575 = vsub.f32 %v2573, %v2574
        %v2576 = vand.u32 %v2575, 4294901760
        %2577 = vmatprep.subr.mxu0 %v2576
        %v2578 = vand.u32 %v368, 4294901760
        %v2579 = vsub.f32 %v368, %v2578
        %v2580 = vand.u32 %v2579, 4294901760
        %v2581 = vsub.f32 %v2579, %v2580
        %v2582 = vand.u32 %v2581, 4294901760
        %2583 = vmatpush1.msra.mxu0 %v2582
        %v2584 = vand.u32 %v385, 4294901760
        %v2585 = vsub.f32 %v385, %v2584
        %v2586 = vand.u32 %v2585, 4294901760
        %v2587 = vsub.f32 %v2585, %v2586
        %v2588 = vand.u32 %v2587, 4294901760
        %2589 = vmatprep.subr.mxu0 %v2588
        %v2590 = vand.u32 %v384, 4294901760
        %v2591 = vsub.f32 %v384, %v2590
        %v2592 = vand.u32 %v2591, 4294901760
        %v2593 = vsub.f32 %v2591, %v2592
        %v2594 = vand.u32 %v2593, 4294901760
        %2595 = vmatpush1.msra.mxu0 %v2594
        %v2596 = vand.u32 %v401, 4294901760
        %v2597 = vsub.f32 %v401, %v2596
        %v2598 = vand.u32 %v2597, 4294901760
        %v2599 = vsub.f32 %v2597, %v2598
        %v2600 = vand.u32 %v2599, 4294901760
        %2601 = vmatprep.subr.mxu0 %v2600
        %v2602 = vand.u32 %v400, 4294901760
        %v2603 = vsub.f32 %v400, %v2602
        %v2604 = vand.u32 %v2603, 4294901760
        %v2605 = vsub.f32 %v2603, %v2604
        %v2606 = vand.u32 %v2605, 4294901760
        %2607 = vmatpush1.msra.mxu0 %v2606
        %v2608 = vand.u32 %v417, 4294901760
        %v2609 = vsub.f32 %v417, %v2608
        %v2610 = vand.u32 %v2609, 4294901760
        %v2611 = vsub.f32 %v2609, %v2610
        %v2612 = vand.u32 %v2611, 4294901760
        %2613 = vmatprep.subr.mxu0 %v2612
        %v2614 = vand.u32 %v416, 4294901760
        %v2615 = vsub.f32 %v416, %v2614
        %v2616 = vand.u32 %v2615, 4294901760
        %v2617 = vsub.f32 %v2615, %v2616
        %v2618 = vand.u32 %v2617, 4294901760
        %2619 = vmatpush1.msra.mxu0 %v2618
        %v2620 = vand.u32 %v433, 4294901760
        %v2621 = vsub.f32 %v433, %v2620
        %v2622 = vand.u32 %v2621, 4294901760
        %v2623 = vsub.f32 %v2621, %v2622
        %v2624 = vand.u32 %v2623, 4294901760
        %2625 = vmatprep.subr.mxu0 %v2624
        %v2626 = vand.u32 %v432, 4294901760
        %v2627 = vsub.f32 %v432, %v2626
        %v2628 = vand.u32 %v2627, 4294901760
        %v2629 = vsub.f32 %v2627, %v2628
        %v2630 = vand.u32 %v2629, 4294901760
        %2631 = vmatpush1.msra.mxu0 %v2630
        %v2632 = vand.u32 %v449, 4294901760
        %v2633 = vsub.f32 %v449, %v2632
        %v2634 = vand.u32 %v2633, 4294901760
        %v2635 = vsub.f32 %v2633, %v2634
        %v2636 = vand.u32 %v2635, 4294901760
        %2637 = vmatprep.subr.mxu0 %v2636
        %v2638 = vand.u32 %v448, 4294901760
        %v2639 = vsub.f32 %v448, %v2638
        %v2640 = vand.u32 %v2639, 4294901760
        %v2641 = vsub.f32 %v2639, %v2640
        %v2642 = vand.u32 %v2641, 4294901760
        %2643 = vmatpush1.msra.mxu0 %v2642
        %v2644 = vand.u32 %v465, 4294901760
        %v2645 = vsub.f32 %v465, %v2644
        %v2646 = vand.u32 %v2645, 4294901760
        %v2647 = vsub.f32 %v2645, %v2646
        %v2648 = vand.u32 %v2647, 4294901760
        %2649 = vmatprep.subr.mxu0 %v2648
        %v2650 = vand.u32 %v464, 4294901760
        %v2651 = vsub.f32 %v464, %v2650
        %v2652 = vand.u32 %v2651, 4294901760
        %v2653 = vsub.f32 %v2651, %v2652
        %v2654 = vand.u32 %v2653, 4294901760
        %2655 = vmatpush1.msra.mxu0 %v2654
        %v2656 = vand.u32 %v481, 4294901760
        %v2657 = vsub.f32 %v481, %v2656
        %v2658 = vand.u32 %v2657, 4294901760
        %v2659 = vsub.f32 %v2657, %v2658
        %v2660 = vand.u32 %v2659, 4294901760
        %2661 = vmatprep.subr.mxu0 %v2660
        %v2662 = vand.u32 %v480, 4294901760
        %v2663 = vsub.f32 %v480, %v2662
        %v2664 = vand.u32 %v2663, 4294901760
        %v2665 = vsub.f32 %v2663, %v2664
        %v2666 = vand.u32 %v2665, 4294901760
        %2667 = vmatpush1.msra.mxu0 %v2666
        %2668 = vmatprep.subr.mxu0 0.0
        %2669 = vmatpush1.msra.mxu0 0.0
        %2670 = vmatprep.subr.mxu0 0.0
        %2671 = vmatpush1.msra.mxu0 0.0
        %2672 = vmatprep.subr.mxu0 0.0
        %2673 = vmatpush1.msra.mxu0 0.0
        %2674 = vmatprep.subr.mxu0 0.0
        %2675 = vmatpush1.msra.mxu0 0.0
        %2676 = vmatprep.subr.mxu0 0.0
        %2677 = vmatpush1.msra.mxu0 0.0
        %2678 = vmatprep.subr.mxu0 0.0
        %2679 = vmatpush1.msra.mxu0 0.0
        %2680 = vmatprep.subr.mxu0 0.0
        %2681 = vmatpush1.msra.mxu0 0.0
        %2682 = vmatprep.subr.mxu0 0.0
        %2683 = vmatpush1.msra.mxu0 0.0
        %2684 = vmatprep.subr.mxu0 0.0
        %2685 = vmatpush1.msra.mxu0 0.0
        %2686 = vmatprep.subr.mxu0 0.0
        %2687 = vmatpush1.msra.mxu0 0.0
        %2688 = vmatprep.subr.mxu0 0.0
        %2689 = vmatpush1.msra.mxu0 0.0
        %2690 = vmatprep.subr.mxu0 0.0
        %2691 = vmatpush1.msra.mxu0 0.0
        %2692 = vmatprep.subr.mxu0 0.0
        %2693 = vmatpush1.msra.mxu0 0.0
        %2694 = vmatprep.subr.mxu0 0.0
        %2695 = vmatpush1.msra.mxu0 0.0
        %v2696 = vand.u32 %v493, 4294901760
        %2697 = vmatprep.mubr.f32.mxu0 %v2696
        %v2698 = vand.u32 %v202, 4294901760
        %2699 = vmatmul.mubr.f32.gmra.mrb[0].mxu0 %v2698
        %v2700 = vpop.f32.mrb[0].mxu0
        %v2701 = vadd.f32 %v2448, %v2700
        %v2702 = vpop.f32.mrb[0].mxu0
        %v2703 = vadd.f32 %v2450, %v2702
        %2704 = vdwg.mxu0
        %v2705 = vand.u32 %v209, 4294901760
        %v2706 = vsub.f32 %v209, %v2705
        %2707 = vmatprep.subr.mxu0 %v2706
        %v2708 = vand.u32 %v208, 4294901760
        %v2709 = vsub.f32 %v208, %v2708
        %2710 = vmatpush1.msra.mxu0 %v2709
        %v2711 = vand.u32 %v225, 4294901760
        %v2712 = vsub.f32 %v225, %v2711
        %2713 = vmatprep.subr.mxu0 %v2712
        %v2714 = vand.u32 %v224, 4294901760
        %v2715 = vsub.f32 %v224, %v2714
        %2716 = vmatpush1.msra.mxu0 %v2715
        %v2717 = vand.u32 %v241, 4294901760
        %v2718 = vsub.f32 %v241, %v2717
        %2719 = vmatprep.subr.mxu0 %v2718
        %v2720 = vand.u32 %v240, 4294901760
        %v2721 = vsub.f32 %v240, %v2720
        %2722 = vmatpush1.msra.mxu0 %v2721
        %v2723 = vand.u32 %v257, 4294901760
        %v2724 = vsub.f32 %v257, %v2723
        %2725 = vmatprep.subr.mxu0 %v2724
        %v2726 = vand.u32 %v256, 4294901760
        %v2727 = vsub.f32 %v256, %v2726
        %2728 = vmatpush1.msra.mxu0 %v2727
        %v2729 = vand.u32 %v273, 4294901760
        %v2730 = vsub.f32 %v273, %v2729
        %2731 = vmatprep.subr.mxu0 %v2730
        %v2732 = vand.u32 %v272, 4294901760
        %v2733 = vsub.f32 %v272, %v2732
        %2734 = vmatpush1.msra.mxu0 %v2733
        %v2735 = vand.u32 %v289, 4294901760
        %v2736 = vsub.f32 %v289, %v2735
        %2737 = vmatprep.subr.mxu0 %v2736
        %v2738 = vand.u32 %v288, 4294901760
        %v2739 = vsub.f32 %v288, %v2738
        %2740 = vmatpush1.msra.mxu0 %v2739
        %v2741 = vand.u32 %v305, 4294901760
        %v2742 = vsub.f32 %v305, %v2741
        %2743 = vmatprep.subr.mxu0 %v2742
        %v2744 = vand.u32 %v304, 4294901760
        %v2745 = vsub.f32 %v304, %v2744
        %2746 = vmatpush1.msra.mxu0 %v2745
        %v2747 = vand.u32 %v321, 4294901760
        %v2748 = vsub.f32 %v321, %v2747
        %2749 = vmatprep.subr.mxu0 %v2748
        %v2750 = vand.u32 %v320, 4294901760
        %v2751 = vsub.f32 %v320, %v2750
        %2752 = vmatpush1.msra.mxu0 %v2751
        %v2753 = vand.u32 %v337, 4294901760
        %v2754 = vsub.f32 %v337, %v2753
        %2755 = vmatprep.subr.mxu0 %v2754
        %v2756 = vand.u32 %v336, 4294901760
        %v2757 = vsub.f32 %v336, %v2756
        %2758 = vmatpush1.msra.mxu0 %v2757
        %v2759 = vand.u32 %v353, 4294901760
        %v2760 = vsub.f32 %v353, %v2759
        %2761 = vmatprep.subr.mxu0 %v2760
        %v2762 = vand.u32 %v352, 4294901760
        %v2763 = vsub.f32 %v352, %v2762
        %2764 = vmatpush1.msra.mxu0 %v2763
        %v2765 = vand.u32 %v369, 4294901760
        %v2766 = vsub.f32 %v369, %v2765
        %2767 = vmatprep.subr.mxu0 %v2766
        %v2768 = vand.u32 %v368, 4294901760
        %v2769 = vsub.f32 %v368, %v2768
        %2770 = vmatpush1.msra.mxu0 %v2769
        %v2771 = vand.u32 %v385, 4294901760
        %v2772 = vsub.f32 %v385, %v2771
        %2773 = vmatprep.subr.mxu0 %v2772
        %v2774 = vand.u32 %v384, 4294901760
        %v2775 = vsub.f32 %v384, %v2774
        %2776 = vmatpush1.msra.mxu0 %v2775
        %v2777 = vand.u32 %v401, 4294901760
        %v2778 = vsub.f32 %v401, %v2777
        %2779 = vmatprep.subr.mxu0 %v2778
        %v2780 = vand.u32 %v400, 4294901760
        %v2781 = vsub.f32 %v400, %v2780
        %2782 = vmatpush1.msra.mxu0 %v2781
        %v2783 = vand.u32 %v417, 4294901760
        %v2784 = vsub.f32 %v417, %v2783
        %2785 = vmatprep.subr.mxu0 %v2784
        %v2786 = vand.u32 %v416, 4294901760
        %v2787 = vsub.f32 %v416, %v2786
        %2788 = vmatpush1.msra.mxu0 %v2787
        %v2789 = vand.u32 %v433, 4294901760
        %v2790 = vsub.f32 %v433, %v2789
        %2791 = vmatprep.subr.mxu0 %v2790
        %v2792 = vand.u32 %v432, 4294901760
        %v2793 = vsub.f32 %v432, %v2792
        %2794 = vmatpush1.msra.mxu0 %v2793
        %v2795 = vand.u32 %v449, 4294901760
        %v2796 = vsub.f32 %v449, %v2795
        %2797 = vmatprep.subr.mxu0 %v2796
        %v2798 = vand.u32 %v448, 4294901760
        %v2799 = vsub.f32 %v448, %v2798
        %2800 = vmatpush1.msra.mxu0 %v2799
        %v2801 = vand.u32 %v465, 4294901760
        %v2802 = vsub.f32 %v465, %v2801
        %2803 = vmatprep.subr.mxu0 %v2802
        %v2804 = vand.u32 %v464, 4294901760
        %v2805 = vsub.f32 %v464, %v2804
        %2806 = vmatpush1.msra.mxu0 %v2805
        %v2807 = vand.u32 %v481, 4294901760
        %v2808 = vsub.f32 %v481, %v2807
        %2809 = vmatprep.subr.mxu0 %v2808
        %v2810 = vand.u32 %v480, 4294901760
        %v2811 = vsub.f32 %v480, %v2810
        %2812 = vmatpush1.msra.mxu0 %v2811
        %2813 = vmatprep.subr.mxu0 0.0
        %2814 = vmatpush1.msra.mxu0 0.0
        %2815 = vmatprep.subr.mxu0 0.0
        %2816 = vmatpush1.msra.mxu0 0.0
        %2817 = vmatprep.subr.mxu0 0.0
        %2818 = vmatpush1.msra.mxu0 0.0
        %2819 = vmatprep.subr.mxu0 0.0
        %2820 = vmatpush1.msra.mxu0 0.0
        %2821 = vmatprep.subr.mxu0 0.0
        %2822 = vmatpush1.msra.mxu0 0.0
        %2823 = vmatprep.subr.mxu0 0.0
        %2824 = vmatpush1.msra.mxu0 0.0
        %2825 = vmatprep.subr.mxu0 0.0
        %2826 = vmatpush1.msra.mxu0 0.0
        %2827 = vmatprep.subr.mxu0 0.0
        %2828 = vmatpush1.msra.mxu0 0.0
        %2829 = vmatprep.subr.mxu0 0.0
        %2830 = vmatpush1.msra.mxu0 0.0
        %2831 = vmatprep.subr.mxu0 0.0
        %2832 = vmatpush1.msra.mxu0 0.0
        %2833 = vmatprep.subr.mxu0 0.0
        %2834 = vmatpush1.msra.mxu0 0.0
        %2835 = vmatprep.subr.mxu0 0.0
        %2836 = vmatpush1.msra.mxu0 0.0
        %2837 = vmatprep.subr.mxu0 0.0
        %2838 = vmatpush1.msra.mxu0 0.0
        %2839 = vmatprep.subr.mxu0 0.0
        %2840 = vmatpush1.msra.mxu0 0.0
        %v2841 = vand.u32 %v493, 4294901760
        %v2842 = vsub.f32 %v493, %v2841
        %2843 = vmatprep.mubr.f32.mxu0 %v2842
        %v2844 = vand.u32 %v202, 4294901760
        %v2845 = vsub.f32 %v202, %v2844
        %2846 = vmatmul.mubr.f32.gmra.mrb[0].mxu0 %v2845
        %v2847 = vpop.f32.mrb[0].mxu0
        %v2848 = vadd.f32 %v2701, %v2847
        %v2849 = vpop.f32.mrb[0].mxu0
        %v2850 = vadd.f32 %v2703, %v2849
        %2851 = vdwg.mxu0
        %v2852 = vand.u32 %v209, 4294901760
        %2853 = vmatprep.subr.mxu0 %v2852
        %v2854 = vand.u32 %v208, 4294901760
        %2855 = vmatpush1.msra.mxu0 %v2854
        %v2856 = vand.u32 %v225, 4294901760
        %2857 = vmatprep.subr.mxu0 %v2856
        %v2858 = vand.u32 %v224, 4294901760
        %2859 = vmatpush1.msra.mxu0 %v2858
        %v2860 = vand.u32 %v241, 4294901760
        %2861 = vmatprep.subr.mxu0 %v2860
        %v2862 = vand.u32 %v240, 4294901760
        %2863 = vmatpush1.msra.mxu0 %v2862
        %v2864 = vand.u32 %v257, 4294901760
        %2865 = vmatprep.subr.mxu0 %v2864
        %v2866 = vand.u32 %v256, 4294901760
        %2867 = vmatpush1.msra.mxu0 %v2866
        %v2868 = vand.u32 %v273, 4294901760
        %2869 = vmatprep.subr.mxu0 %v2868
        %v2870 = vand.u32 %v272, 4294901760
        %2871 = vmatpush1.msra.mxu0 %v2870
        %v2872 = vand.u32 %v289, 4294901760
        %2873 = vmatprep.subr.mxu0 %v2872
        %v2874 = vand.u32 %v288, 4294901760
        %2875 = vmatpush1.msra.mxu0 %v2874
        %v2876 = vand.u32 %v305, 4294901760
        %2877 = vmatprep.subr.mxu0 %v2876
        %v2878 = vand.u32 %v304, 4294901760
        %2879 = vmatpush1.msra.mxu0 %v2878
        %v2880 = vand.u32 %v321, 4294901760
        %2881 = vmatprep.subr.mxu0 %v2880
        %v2882 = vand.u32 %v320, 4294901760
        %2883 = vmatpush1.msra.mxu0 %v2882
        %v2884 = vand.u32 %v337, 4294901760
        %2885 = vmatprep.subr.mxu0 %v2884
        %v2886 = vand.u32 %v336, 4294901760
        %2887 = vmatpush1.msra.mxu0 %v2886
        %v2888 = vand.u32 %v353, 4294901760
        %2889 = vmatprep.subr.mxu0 %v2888
        %v2890 = vand.u32 %v352, 4294901760
        %2891 = vmatpush1.msra.mxu0 %v2890
        %v2892 = vand.u32 %v369, 4294901760
        %2893 = vmatprep.subr.mxu0 %v2892
        %v2894 = vand.u32 %v368, 4294901760
        %2895 = vmatpush1.msra.mxu0 %v2894
        %v2896 = vand.u32 %v385, 4294901760
        %2897 = vmatprep.subr.mxu0 %v2896
        %v2898 = vand.u32 %v384, 4294901760
        %2899 = vmatpush1.msra.mxu0 %v2898
        %v2900 = vand.u32 %v401, 4294901760
        %2901 = vmatprep.subr.mxu0 %v2900
        %v2902 = vand.u32 %v400, 4294901760
        %2903 = vmatpush1.msra.mxu0 %v2902
        %v2904 = vand.u32 %v417, 4294901760
        %2905 = vmatprep.subr.mxu0 %v2904
        %v2906 = vand.u32 %v416, 4294901760
        %2907 = vmatpush1.msra.mxu0 %v2906
        %v2908 = vand.u32 %v433, 4294901760
        %2909 = vmatprep.subr.mxu0 %v2908
        %v2910 = vand.u32 %v432, 4294901760
        %2911 = vmatpush1.msra.mxu0 %v2910
        %v2912 = vand.u32 %v449, 4294901760
        %2913 = vmatprep.subr.mxu0 %v2912
        %v2914 = vand.u32 %v448, 4294901760
        %2915 = vmatpush1.msra.mxu0 %v2914
        %v2916 = vand.u32 %v465, 4294901760
        %2917 = vmatprep.subr.mxu0 %v2916
        %v2918 = vand.u32 %v464, 4294901760
        %2919 = vmatpush1.msra.mxu0 %v2918
        %v2920 = vand.u32 %v481, 4294901760
        %2921 = vmatprep.subr.mxu0 %v2920
        %v2922 = vand.u32 %v480, 4294901760
        %2923 = vmatpush1.msra.mxu0 %v2922
        %2924 = vmatprep.subr.mxu0 0.0
        %2925 = vmatpush1.msra.mxu0 0.0
        %2926 = vmatprep.subr.mxu0 0.0
        %2927 = vmatpush1.msra.mxu0 0.0
        %2928 = vmatprep.subr.mxu0 0.0
        %2929 = vmatpush1.msra.mxu0 0.0
        %2930 = vmatprep.subr.mxu0 0.0
        %2931 = vmatpush1.msra.mxu0 0.0
        %2932 = vmatprep.subr.mxu0 0.0
        %2933 = vmatpush1.msra.mxu0 0.0
        %2934 = vmatprep.subr.mxu0 0.0
        %2935 = vmatpush1.msra.mxu0 0.0
        %2936 = vmatprep.subr.mxu0 0.0
        %2937 = vmatpush1.msra.mxu0 0.0
        %2938 = vmatprep.subr.mxu0 0.0
        %2939 = vmatpush1.msra.mxu0 0.0
        %2940 = vmatprep.subr.mxu0 0.0
        %2941 = vmatpush1.msra.mxu0 0.0
        %2942 = vmatprep.subr.mxu0 0.0
        %2943 = vmatpush1.msra.mxu0 0.0
        %2944 = vmatprep.subr.mxu0 0.0
        %2945 = vmatpush1.msra.mxu0 0.0
        %2946 = vmatprep.subr.mxu0 0.0
        %2947 = vmatpush1.msra.mxu0 0.0
        %2948 = vmatprep.subr.mxu0 0.0
        %2949 = vmatpush1.msra.mxu0 0.0
        %2950 = vmatprep.subr.mxu0 0.0
        %2951 = vmatpush1.msra.mxu0 0.0
        %v2952 = vand.u32 %v493, 4294901760
        %v2953 = vsub.f32 %v493, %v2952
        %v2954 = vand.u32 %v2953, 4294901760
        %2955 = vmatprep.mubr.f32.mxu0 %v2954
        %v2956 = vand.u32 %v202, 4294901760
        %v2957 = vsub.f32 %v202, %v2956
        %v2958 = vand.u32 %v2957, 4294901760
        %2959 = vmatmul.mubr.f32.gmra.mrb[0].mxu0 %v2958
        %v2960 = vpop.f32.mrb[0].mxu0
        %v2961 = vadd.f32 %v2848, %v2960
        %v2962 = vpop.f32.mrb[0].mxu0
        %v2963 = vadd.f32 %v2850, %v2962
        %2964 = vdwg.mxu0
        %v2965 = vand.u32 %v209, 4294901760
        %v2966 = vsub.f32 %v209, %v2965
        %v2967 = vand.u32 %v2966, 4294901760
        %2968 = vmatprep.subr.mxu0 %v2967
        %v2969 = vand.u32 %v208, 4294901760
        %v2970 = vsub.f32 %v208, %v2969
        %v2971 = vand.u32 %v2970, 4294901760
        %2972 = vmatpush1.msra.mxu0 %v2971
        %v2973 = vand.u32 %v225, 4294901760
        %v2974 = vsub.f32 %v225, %v2973
        %v2975 = vand.u32 %v2974, 4294901760
        %2976 = vmatprep.subr.mxu0 %v2975
        %v2977 = vand.u32 %v224, 4294901760
        %v2978 = vsub.f32 %v224, %v2977
        %v2979 = vand.u32 %v2978, 4294901760
        %2980 = vmatpush1.msra.mxu0 %v2979
        %v2981 = vand.u32 %v241, 4294901760
        %v2982 = vsub.f32 %v241, %v2981
        %v2983 = vand.u32 %v2982, 4294901760
        %2984 = vmatprep.subr.mxu0 %v2983
        %v2985 = vand.u32 %v240, 4294901760
        %v2986 = vsub.f32 %v240, %v2985
        %v2987 = vand.u32 %v2986, 4294901760
        %2988 = vmatpush1.msra.mxu0 %v2987
        %v2989 = vand.u32 %v257, 4294901760
        %v2990 = vsub.f32 %v257, %v2989
        %v2991 = vand.u32 %v2990, 4294901760
        %2992 = vmatprep.subr.mxu0 %v2991
        %v2993 = vand.u32 %v256, 4294901760
        %v2994 = vsub.f32 %v256, %v2993
        %v2995 = vand.u32 %v2994, 4294901760
        %2996 = vmatpush1.msra.mxu0 %v2995
        %v2997 = vand.u32 %v273, 4294901760
        %v2998 = vsub.f32 %v273, %v2997
        %v2999 = vand.u32 %v2998, 4294901760
        %3000 = vmatprep.subr.mxu0 %v2999
        %v3001 = vand.u32 %v272, 4294901760
        %v3002 = vsub.f32 %v272, %v3001
        %v3003 = vand.u32 %v3002, 4294901760
        %3004 = vmatpush1.msra.mxu0 %v3003
        %v3005 = vand.u32 %v289, 4294901760
        %v3006 = vsub.f32 %v289, %v3005
        %v3007 = vand.u32 %v3006, 4294901760
        %3008 = vmatprep.subr.mxu0 %v3007
        %v3009 = vand.u32 %v288, 4294901760
        %v3010 = vsub.f32 %v288, %v3009
        %v3011 = vand.u32 %v3010, 4294901760
        %3012 = vmatpush1.msra.mxu0 %v3011
        %v3013 = vand.u32 %v305, 4294901760
        %v3014 = vsub.f32 %v305, %v3013
        %v3015 = vand.u32 %v3014, 4294901760
        %3016 = vmatprep.subr.mxu0 %v3015
        %v3017 = vand.u32 %v304, 4294901760
        %v3018 = vsub.f32 %v304, %v3017
        %v3019 = vand.u32 %v3018, 4294901760
        %3020 = vmatpush1.msra.mxu0 %v3019
        %v3021 = vand.u32 %v321, 4294901760
        %v3022 = vsub.f32 %v321, %v3021
        %v3023 = vand.u32 %v3022, 4294901760
        %3024 = vmatprep.subr.mxu0 %v3023
        %v3025 = vand.u32 %v320, 4294901760
        %v3026 = vsub.f32 %v320, %v3025
        %v3027 = vand.u32 %v3026, 4294901760
        %3028 = vmatpush1.msra.mxu0 %v3027
        %v3029 = vand.u32 %v337, 4294901760
        %v3030 = vsub.f32 %v337, %v3029
        %v3031 = vand.u32 %v3030, 4294901760
        %3032 = vmatprep.subr.mxu0 %v3031
        %v3033 = vand.u32 %v336, 4294901760
        %v3034 = vsub.f32 %v336, %v3033
        %v3035 = vand.u32 %v3034, 4294901760
        %3036 = vmatpush1.msra.mxu0 %v3035
        %v3037 = vand.u32 %v353, 4294901760
        %v3038 = vsub.f32 %v353, %v3037
        %v3039 = vand.u32 %v3038, 4294901760
        %3040 = vmatprep.subr.mxu0 %v3039
        %v3041 = vand.u32 %v352, 4294901760
        %v3042 = vsub.f32 %v352, %v3041
        %v3043 = vand.u32 %v3042, 4294901760
        %3044 = vmatpush1.msra.mxu0 %v3043
        %v3045 = vand.u32 %v369, 4294901760
        %v3046 = vsub.f32 %v369, %v3045
        %v3047 = vand.u32 %v3046, 4294901760
        %3048 = vmatprep.subr.mxu0 %v3047
        %v3049 = vand.u32 %v368, 4294901760
        %v3050 = vsub.f32 %v368, %v3049
        %v3051 = vand.u32 %v3050, 4294901760
        %3052 = vmatpush1.msra.mxu0 %v3051
        %v3053 = vand.u32 %v385, 4294901760
        %v3054 = vsub.f32 %v385, %v3053
        %v3055 = vand.u32 %v3054, 4294901760
        %3056 = vmatprep.subr.mxu0 %v3055
        %v3057 = vand.u32 %v384, 4294901760
        %v3058 = vsub.f32 %v384, %v3057
        %v3059 = vand.u32 %v3058, 4294901760
        %3060 = vmatpush1.msra.mxu0 %v3059
        %v3061 = vand.u32 %v401, 4294901760
        %v3062 = vsub.f32 %v401, %v3061
        %v3063 = vand.u32 %v3062, 4294901760
        %3064 = vmatprep.subr.mxu0 %v3063
        %v3065 = vand.u32 %v400, 4294901760
        %v3066 = vsub.f32 %v400, %v3065
        %v3067 = vand.u32 %v3066, 4294901760
        %3068 = vmatpush1.msra.mxu0 %v3067
        %v3069 = vand.u32 %v417, 4294901760
        %v3070 = vsub.f32 %v417, %v3069
        %v3071 = vand.u32 %v3070, 4294901760
        %3072 = vmatprep.subr.mxu0 %v3071
        %v3073 = vand.u32 %v416, 4294901760
        %v3074 = vsub.f32 %v416, %v3073
        %v3075 = vand.u32 %v3074, 4294901760
        %3076 = vmatpush1.msra.mxu0 %v3075
        %v3077 = vand.u32 %v433, 4294901760
        %v3078 = vsub.f32 %v433, %v3077
        %v3079 = vand.u32 %v3078, 4294901760
        %3080 = vmatprep.subr.mxu0 %v3079
        %v3081 = vand.u32 %v432, 4294901760
        %v3082 = vsub.f32 %v432, %v3081
        %v3083 = vand.u32 %v3082, 4294901760
        %3084 = vmatpush1.msra.mxu0 %v3083
        %v3085 = vand.u32 %v449, 4294901760
        %v3086 = vsub.f32 %v449, %v3085
        %v3087 = vand.u32 %v3086, 4294901760
        %3088 = vmatprep.subr.mxu0 %v3087
        %v3089 = vand.u32 %v448, 4294901760
        %v3090 = vsub.f32 %v448, %v3089
        %v3091 = vand.u32 %v3090, 4294901760
        %3092 = vmatpush1.msra.mxu0 %v3091
        %v3093 = vand.u32 %v465, 4294901760
        %v3094 = vsub.f32 %v465, %v3093
        %v3095 = vand.u32 %v3094, 4294901760
        %3096 = vmatprep.subr.mxu0 %v3095
        %v3097 = vand.u32 %v464, 4294901760
        %v3098 = vsub.f32 %v464, %v3097
        %v3099 = vand.u32 %v3098, 4294901760
        %3100 = vmatpush1.msra.mxu0 %v3099
        %v3101 = vand.u32 %v481, 4294901760
        %v3102 = vsub.f32 %v481, %v3101
        %v3103 = vand.u32 %v3102, 4294901760
        %3104 = vmatprep.subr.mxu0 %v3103
        %v3105 = vand.u32 %v480, 4294901760
        %v3106 = vsub.f32 %v480, %v3105
        %v3107 = vand.u32 %v3106, 4294901760
        %3108 = vmatpush1.msra.mxu0 %v3107
        %3109 = vmatprep.subr.mxu0 0.0
        %3110 = vmatpush1.msra.mxu0 0.0
        %3111 = vmatprep.subr.mxu0 0.0
        %3112 = vmatpush1.msra.mxu0 0.0
        %3113 = vmatprep.subr.mxu0 0.0
        %3114 = vmatpush1.msra.mxu0 0.0
        %3115 = vmatprep.subr.mxu0 0.0
        %3116 = vmatpush1.msra.mxu0 0.0
        %3117 = vmatprep.subr.mxu0 0.0
        %3118 = vmatpush1.msra.mxu0 0.0
        %3119 = vmatprep.subr.mxu0 0.0
        %3120 = vmatpush1.msra.mxu0 0.0
        %3121 = vmatprep.subr.mxu0 0.0
        %3122 = vmatpush1.msra.mxu0 0.0
        %3123 = vmatprep.subr.mxu0 0.0
        %3124 = vmatpush1.msra.mxu0 0.0
        %3125 = vmatprep.subr.mxu0 0.0
        %3126 = vmatpush1.msra.mxu0 0.0
        %3127 = vmatprep.subr.mxu0 0.0
        %3128 = vmatpush1.msra.mxu0 0.0
        %3129 = vmatprep.subr.mxu0 0.0
        %3130 = vmatpush1.msra.mxu0 0.0
        %3131 = vmatprep.subr.mxu0 0.0
        %3132 = vmatpush1.msra.mxu0 0.0
        %3133 = vmatprep.subr.mxu0 0.0
        %3134 = vmatpush1.msra.mxu0 0.0
        %3135 = vmatprep.subr.mxu0 0.0
        %3136 = vmatpush1.msra.mxu0 0.0
        %v3137 = vand.u32 %v493, 4294901760
        %3138 = vmatprep.mubr.f32.mxu0 %v3137
        %v3139 = vand.u32 %v202, 4294901760
        %3140 = vmatmul.mubr.f32.gmra.mrb[0].mxu0 %v3139
        %v3141 = vpop.f32.mrb[0].mxu0
        %v3142 = vadd.f32 %v2961, %v3141
        %v3143 = vpop.f32.mrb[0].mxu0
        %v3144 = vadd.f32 %v2963, %v3143
        %3145 = vdwg.mxu0
        %v3146 = vand.u32 %v209, 4294901760
        %3147 = vmatprep.subr.mxu0 %v3146
        %v3148 = vand.u32 %v208, 4294901760
        %3149 = vmatpush1.msra.mxu0 %v3148
        %v3150 = vand.u32 %v225, 4294901760
        %3151 = vmatprep.subr.mxu0 %v3150
        %v3152 = vand.u32 %v224, 4294901760
        %3153 = vmatpush1.msra.mxu0 %v3152
        %v3154 = vand.u32 %v241, 4294901760
        %3155 = vmatprep.subr.mxu0 %v3154
        %v3156 = vand.u32 %v240, 4294901760
        %3157 = vmatpush1.msra.mxu0 %v3156
        %v3158 = vand.u32 %v257, 4294901760
        %3159 = vmatprep.subr.mxu0 %v3158
        %v3160 = vand.u32 %v256, 4294901760
        %3161 = vmatpush1.msra.mxu0 %v3160
        %v3162 = vand.u32 %v273, 4294901760
        %3163 = vmatprep.subr.mxu0 %v3162
        %v3164 = vand.u32 %v272, 4294901760
        %3165 = vmatpush1.msra.mxu0 %v3164
        %v3166 = vand.u32 %v289, 4294901760
        %3167 = vmatprep.subr.mxu0 %v3166
        %v3168 = vand.u32 %v288, 4294901760
        %3169 = vmatpush1.msra.mxu0 %v3168
        %v3170 = vand.u32 %v305, 4294901760
        %3171 = vmatprep.subr.mxu0 %v3170
        %v3172 = vand.u32 %v304, 4294901760
        %3173 = vmatpush1.msra.mxu0 %v3172
        %v3174 = vand.u32 %v321, 4294901760
        %3175 = vmatprep.subr.mxu0 %v3174
        %v3176 = vand.u32 %v320, 4294901760
        %3177 = vmatpush1.msra.mxu0 %v3176
        %v3178 = vand.u32 %v337, 4294901760
        %3179 = vmatprep.subr.mxu0 %v3178
        %v3180 = vand.u32 %v336, 4294901760
        %3181 = vmatpush1.msra.mxu0 %v3180
        %v3182 = vand.u32 %v353, 4294901760
        %3183 = vmatprep.subr.mxu0 %v3182
        %v3184 = vand.u32 %v352, 4294901760
        %3185 = vmatpush1.msra.mxu0 %v3184
        %v3186 = vand.u32 %v369, 4294901760
        %3187 = vmatprep.subr.mxu0 %v3186
        %v3188 = vand.u32 %v368, 4294901760
        %3189 = vmatpush1.msra.mxu0 %v3188
        %v3190 = vand.u32 %v385, 4294901760
        %3191 = vmatprep.subr.mxu0 %v3190
        %v3192 = vand.u32 %v384, 4294901760
        %3193 = vmatpush1.msra.mxu0 %v3192
        %v3194 = vand.u32 %v401, 4294901760
        %3195 = vmatprep.subr.mxu0 %v3194
        %v3196 = vand.u32 %v400, 4294901760
        %3197 = vmatpush1.msra.mxu0 %v3196
        %v3198 = vand.u32 %v417, 4294901760
        %3199 = vmatprep.subr.mxu0 %v3198
        %v3200 = vand.u32 %v416, 4294901760
        %3201 = vmatpush1.msra.mxu0 %v3200
        %v3202 = vand.u32 %v433, 4294901760
        %3203 = vmatprep.subr.mxu0 %v3202
        %v3204 = vand.u32 %v432, 4294901760
        %3205 = vmatpush1.msra.mxu0 %v3204
        %v3206 = vand.u32 %v449, 4294901760
        %3207 = vmatprep.subr.mxu0 %v3206
        %v3208 = vand.u32 %v448, 4294901760
        %3209 = vmatpush1.msra.mxu0 %v3208
        %v3210 = vand.u32 %v465, 4294901760
        %3211 = vmatprep.subr.mxu0 %v3210
        %v3212 = vand.u32 %v464, 4294901760
        %3213 = vmatpush1.msra.mxu0 %v3212
        %v3214 = vand.u32 %v481, 4294901760
        %3215 = vmatprep.subr.mxu0 %v3214
        %v3216 = vand.u32 %v480, 4294901760
        %3217 = vmatpush1.msra.mxu0 %v3216
        %3218 = vmatprep.subr.mxu0 0.0
        %3219 = vmatpush1.msra.mxu0 0.0
        %3220 = vmatprep.subr.mxu0 0.0
        %3221 = vmatpush1.msra.mxu0 0.0
        %3222 = vmatprep.subr.mxu0 0.0
        %3223 = vmatpush1.msra.mxu0 0.0
        %3224 = vmatprep.subr.mxu0 0.0
        %3225 = vmatpush1.msra.mxu0 0.0
        %3226 = vmatprep.subr.mxu0 0.0
        %3227 = vmatpush1.msra.mxu0 0.0
        %3228 = vmatprep.subr.mxu0 0.0
        %3229 = vmatpush1.msra.mxu0 0.0
        %3230 = vmatprep.subr.mxu0 0.0
        %3231 = vmatpush1.msra.mxu0 0.0
        %3232 = vmatprep.subr.mxu0 0.0
        %3233 = vmatpush1.msra.mxu0 0.0
        %3234 = vmatprep.subr.mxu0 0.0
        %3235 = vmatpush1.msra.mxu0 0.0
        %3236 = vmatprep.subr.mxu0 0.0
        %3237 = vmatpush1.msra.mxu0 0.0
        %3238 = vmatprep.subr.mxu0 0.0
        %3239 = vmatpush1.msra.mxu0 0.0
        %3240 = vmatprep.subr.mxu0 0.0
        %3241 = vmatpush1.msra.mxu0 0.0
        %3242 = vmatprep.subr.mxu0 0.0
        %3243 = vmatpush1.msra.mxu0 0.0
        %3244 = vmatprep.subr.mxu0 0.0
        %3245 = vmatpush1.msra.mxu0 0.0
        %v3246 = vand.u32 %v493, 4294901760
        %3247 = vmatprep.mubr.f32.mxu0 %v3246
        %v3248 = vand.u32 %v202, 4294901760
        %3249 = vmatmul.mubr.f32.gmra.mrb[0].mxu0 %v3248
        %v3250 = vpop.f32.mrb[0].mxu0
        %v3251 = vadd.f32 %v3142, %v3250
        %v3252 = vpop.f32.mrb[0].mxu0
        %v3253 = vadd.f32 %v3144, %v3252
        %3254 = vdwg.mxu0
        %v3255 = vand.u32 %v211, 4294901760
        %3256 = vmatprep.subr.mxu0 %v3255
        %v3257 = vand.u32 %v210, 4294901760
        %3258 = vmatpush1.msra.mxu0 %v3257
        %v3259 = vand.u32 %v227, 4294901760
        %3260 = vmatprep.subr.mxu0 %v3259
        %v3261 = vand.u32 %v226, 4294901760
        %3262 = vmatpush1.msra.mxu0 %v3261
        %v3263 = vand.u32 %v243, 4294901760
        %3264 = vmatprep.subr.mxu0 %v3263
        %v3265 = vand.u32 %v242, 4294901760
        %3266 = vmatpush1.msra.mxu0 %v3265
        %v3267 = vand.u32 %v259, 4294901760
        %3268 = vmatprep.subr.mxu0 %v3267
        %v3269 = vand.u32 %v258, 4294901760
        %3270 = vmatpush1.msra.mxu0 %v3269
        %v3271 = vand.u32 %v275, 4294901760
        %3272 = vmatprep.subr.mxu0 %v3271
        %v3273 = vand.u32 %v274, 4294901760
        %3274 = vmatpush1.msra.mxu0 %v3273
        %v3275 = vand.u32 %v291, 4294901760
        %3276 = vmatprep.subr.mxu0 %v3275
        %v3277 = vand.u32 %v290, 4294901760
        %3278 = vmatpush1.msra.mxu0 %v3277
        %v3279 = vand.u32 %v307, 4294901760
        %3280 = vmatprep.subr.mxu0 %v3279
        %v3281 = vand.u32 %v306, 4294901760
        %3282 = vmatpush1.msra.mxu0 %v3281
        %v3283 = vand.u32 %v323, 4294901760
        %3284 = vmatprep.subr.mxu0 %v3283
        %v3285 = vand.u32 %v322, 4294901760
        %3286 = vmatpush1.msra.mxu0 %v3285
        %v3287 = vand.u32 %v339, 4294901760
        %3288 = vmatprep.subr.mxu0 %v3287
        %v3289 = vand.u32 %v338, 4294901760
        %3290 = vmatpush1.msra.mxu0 %v3289
        %v3291 = vand.u32 %v355, 4294901760
        %3292 = vmatprep.subr.mxu0 %v3291
        %v3293 = vand.u32 %v354, 4294901760
        %3294 = vmatpush1.msra.mxu0 %v3293
        %v3295 = vand.u32 %v371, 4294901760
        %3296 = vmatprep.subr.mxu0 %v3295
        %v3297 = vand.u32 %v370, 4294901760
        %3298 = vmatpush1.msra.mxu0 %v3297
        %v3299 = vand.u32 %v387, 4294901760
        %3300 = vmatprep.subr.mxu0 %v3299
        %v3301 = vand.u32 %v386, 4294901760
        %3302 = vmatpush1.msra.mxu0 %v3301
        %v3303 = vand.u32 %v403, 4294901760
        %3304 = vmatprep.subr.mxu0 %v3303
        %v3305 = vand.u32 %v402, 4294901760
        %3306 = vmatpush1.msra.mxu0 %v3305
        %v3307 = vand.u32 %v419, 4294901760
        %3308 = vmatprep.subr.mxu0 %v3307
        %v3309 = vand.u32 %v418, 4294901760
        %3310 = vmatpush1.msra.mxu0 %v3309
        %v3311 = vand.u32 %v435, 4294901760
        %3312 = vmatprep.subr.mxu0 %v3311
        %v3313 = vand.u32 %v434, 4294901760
        %3314 = vmatpush1.msra.mxu0 %v3313
        %v3315 = vand.u32 %v451, 4294901760
        %3316 = vmatprep.subr.mxu0 %v3315
        %v3317 = vand.u32 %v450, 4294901760
        %3318 = vmatpush1.msra.mxu0 %v3317
        %v3319 = vand.u32 %v467, 4294901760
        %3320 = vmatprep.subr.mxu0 %v3319
        %v3321 = vand.u32 %v466, 4294901760
        %3322 = vmatpush1.msra.mxu0 %v3321
        %v3323 = vand.u32 %v483, 4294901760
        %3324 = vmatprep.subr.mxu0 %v3323
        %v3325 = vand.u32 %v482, 4294901760
        %3326 = vmatpush1.msra.mxu0 %v3325
        %3327 = vmatprep.subr.mxu0 0.0
        %3328 = vmatpush1.msra.mxu0 0.0
        %3329 = vmatprep.subr.mxu0 0.0
        %3330 = vmatpush1.msra.mxu0 0.0
        %3331 = vmatprep.subr.mxu0 0.0
        %3332 = vmatpush1.msra.mxu0 0.0
        %3333 = vmatprep.subr.mxu0 0.0
        %3334 = vmatpush1.msra.mxu0 0.0
        %3335 = vmatprep.subr.mxu0 0.0
        %3336 = vmatpush1.msra.mxu0 0.0
        %3337 = vmatprep.subr.mxu0 0.0
        %3338 = vmatpush1.msra.mxu0 0.0
        %3339 = vmatprep.subr.mxu0 0.0
        %3340 = vmatpush1.msra.mxu0 0.0
        %3341 = vmatprep.subr.mxu0 0.0
        %3342 = vmatpush1.msra.mxu0 0.0
        %3343 = vmatprep.subr.mxu0 0.0
        %3344 = vmatpush1.msra.mxu0 0.0
        %3345 = vmatprep.subr.mxu0 0.0
        %3346 = vmatpush1.msra.mxu0 0.0
        %3347 = vmatprep.subr.mxu0 0.0
        %3348 = vmatpush1.msra.mxu0 0.0
        %3349 = vmatprep.subr.mxu0 0.0
        %3350 = vmatpush1.msra.mxu0 0.0
        %3351 = vmatprep.subr.mxu0 0.0
        %3352 = vmatpush1.msra.mxu0 0.0
        %3353 = vmatprep.subr.mxu0 0.0
        %3354 = vmatpush1.msra.mxu0 0.0
        %v3355 = vand.u32 %v493, 4294901760
        %v3356 = vsub.f32 %v493, %v3355
        %v3357 = vand.u32 %v3356, 4294901760
        %v3358 = vsub.f32 %v3356, %v3357
        %v3359 = vand.u32 %v3358, 4294901760
        %3360 = vmatprep.mubr.f32.mxu0 %v3359
        %v3361 = vand.u32 %v202, 4294901760
        %v3362 = vsub.f32 %v202, %v3361
        %v3363 = vand.u32 %v3362, 4294901760
        %v3364 = vsub.f32 %v3362, %v3363
        %v3365 = vand.u32 %v3364, 4294901760
        %3366 = vmatmul.mubr.f32.gmra.mrb[0].mxu0 %v3365
        %v3367 = vpop.f32.mrb[0].mxu0
        %v3368 = vadd.f32 0.0, %v3367
        %v3369 = vpop.f32.mrb[0].mxu0
        %v3370 = vadd.f32 0.0, %v3369
        %3371 = vdwg.mxu0
        %v3372 = vand.u32 %v211, 4294901760
        %v3373 = vsub.f32 %v211, %v3372
        %v3374 = vand.u32 %v3373, 4294901760
        %v3375 = vsub.f32 %v3373, %v3374
        %v3376 = vand.u32 %v3375, 4294901760
        %3377 = vmatprep.subr.mxu0 %v3376
        %v3378 = vand.u32 %v210, 4294901760
        %v3379 = vsub.f32 %v210, %v3378
        %v3380 = vand.u32 %v3379, 4294901760
        %v3381 = vsub.f32 %v3379, %v3380
        %v3382 = vand.u32 %v3381, 4294901760
        %3383 = vmatpush1.msra.mxu0 %v3382
        %v3384 = vand.u32 %v227, 4294901760
        %v3385 = vsub.f32 %v227, %v3384
        %v3386 = vand.u32 %v3385, 4294901760
        %v3387 = vsub.f32 %v3385, %v3386
        %v3388 = vand.u32 %v3387, 4294901760
        %3389 = vmatprep.subr.mxu0 %v3388
        %v3390 = vand.u32 %v226, 4294901760
        %v3391 = vsub.f32 %v226, %v3390
        %v3392 = vand.u32 %v3391, 4294901760
        %v3393 = vsub.f32 %v3391, %v3392
        %v3394 = vand.u32 %v3393, 4294901760
        %3395 = vmatpush1.msra.mxu0 %v3394
        %v3396 = vand.u32 %v243, 4294901760
        %v3397 = vsub.f32 %v243, %v3396
        %v3398 = vand.u32 %v3397, 4294901760
        %v3399 = vsub.f32 %v3397, %v3398
        %v3400 = vand.u32 %v3399, 4294901760
        %3401 = vmatprep.subr.mxu0 %v3400
        %v3402 = vand.u32 %v242, 4294901760
        %v3403 = vsub.f32 %v242, %v3402
        %v3404 = vand.u32 %v3403, 4294901760
        %v3405 = vsub.f32 %v3403, %v3404
        %v3406 = vand.u32 %v3405, 4294901760
        %3407 = vmatpush1.msra.mxu0 %v3406
        %v3408 = vand.u32 %v259, 4294901760
        %v3409 = vsub.f32 %v259, %v3408
        %v3410 = vand.u32 %v3409, 4294901760
        %v3411 = vsub.f32 %v3409, %v3410
        %v3412 = vand.u32 %v3411, 4294901760
        %3413 = vmatprep.subr.mxu0 %v3412
        %v3414 = vand.u32 %v258, 4294901760
        %v3415 = vsub.f32 %v258, %v3414
        %v3416 = vand.u32 %v3415, 4294901760
        %v3417 = vsub.f32 %v3415, %v3416
        %v3418 = vand.u32 %v3417, 4294901760
        %3419 = vmatpush1.msra.mxu0 %v3418
        %v3420 = vand.u32 %v275, 4294901760
        %v3421 = vsub.f32 %v275, %v3420
        %v3422 = vand.u32 %v3421, 4294901760
        %v3423 = vsub.f32 %v3421, %v3422
        %v3424 = vand.u32 %v3423, 4294901760
        %3425 = vmatprep.subr.mxu0 %v3424
        %v3426 = vand.u32 %v274, 4294901760
        %v3427 = vsub.f32 %v274, %v3426
        %v3428 = vand.u32 %v3427, 4294901760
        %v3429 = vsub.f32 %v3427, %v3428
        %v3430 = vand.u32 %v3429, 4294901760
        %3431 = vmatpush1.msra.mxu0 %v3430
        %v3432 = vand.u32 %v291, 4294901760
        %v3433 = vsub.f32 %v291, %v3432
        %v3434 = vand.u32 %v3433, 4294901760
        %v3435 = vsub.f32 %v3433, %v3434
        %v3436 = vand.u32 %v3435, 4294901760
        %3437 = vmatprep.subr.mxu0 %v3436
        %v3438 = vand.u32 %v290, 4294901760
        %v3439 = vsub.f32 %v290, %v3438
        %v3440 = vand.u32 %v3439, 4294901760
        %v3441 = vsub.f32 %v3439, %v3440
        %v3442 = vand.u32 %v3441, 4294901760
        %3443 = vmatpush1.msra.mxu0 %v3442
        %v3444 = vand.u32 %v307, 4294901760
        %v3445 = vsub.f32 %v307, %v3444
        %v3446 = vand.u32 %v3445, 4294901760
        %v3447 = vsub.f32 %v3445, %v3446
        %v3448 = vand.u32 %v3447, 4294901760
        %3449 = vmatprep.subr.mxu0 %v3448
        %v3450 = vand.u32 %v306, 4294901760
        %v3451 = vsub.f32 %v306, %v3450
        %v3452 = vand.u32 %v3451, 4294901760
        %v3453 = vsub.f32 %v3451, %v3452
        %v3454 = vand.u32 %v3453, 4294901760
        %3455 = vmatpush1.msra.mxu0 %v3454
        %v3456 = vand.u32 %v323, 4294901760
        %v3457 = vsub.f32 %v323, %v3456
        %v3458 = vand.u32 %v3457, 4294901760
        %v3459 = vsub.f32 %v3457, %v3458
        %v3460 = vand.u32 %v3459, 4294901760
        %3461 = vmatprep.subr.mxu0 %v3460
        %v3462 = vand.u32 %v322, 4294901760
        %v3463 = vsub.f32 %v322, %v3462
        %v3464 = vand.u32 %v3463, 4294901760
        %v3465 = vsub.f32 %v3463, %v3464
        %v3466 = vand.u32 %v3465, 4294901760
        %3467 = vmatpush1.msra.mxu0 %v3466
        %v3468 = vand.u32 %v339, 4294901760
        %v3469 = vsub.f32 %v339, %v3468
        %v3470 = vand.u32 %v3469, 4294901760
        %v3471 = vsub.f32 %v3469, %v3470
        %v3472 = vand.u32 %v3471, 4294901760
        %3473 = vmatprep.subr.mxu0 %v3472
        %v3474 = vand.u32 %v338, 4294901760
        %v3475 = vsub.f32 %v338, %v3474
        %v3476 = vand.u32 %v3475, 4294901760
        %v3477 = vsub.f32 %v3475, %v3476
        %v3478 = vand.u32 %v3477, 4294901760
        %3479 = vmatpush1.msra.mxu0 %v3478
        %v3480 = vand.u32 %v355, 4294901760
        %v3481 = vsub.f32 %v355, %v3480
        %v3482 = vand.u32 %v3481, 4294901760
        %v3483 = vsub.f32 %v3481, %v3482
        %v3484 = vand.u32 %v3483, 4294901760
        %3485 = vmatprep.subr.mxu0 %v3484
        %v3486 = vand.u32 %v354, 4294901760
        %v3487 = vsub.f32 %v354, %v3486
        %v3488 = vand.u32 %v3487, 4294901760
        %v3489 = vsub.f32 %v3487, %v3488
        %v3490 = vand.u32 %v3489, 4294901760
        %3491 = vmatpush1.msra.mxu0 %v3490
        %v3492 = vand.u32 %v371, 4294901760
        %v3493 = vsub.f32 %v371, %v3492
        %v3494 = vand.u32 %v3493, 4294901760
        %v3495 = vsub.f32 %v3493, %v3494
        %v3496 = vand.u32 %v3495, 4294901760
        %3497 = vmatprep.subr.mxu0 %v3496
        %v3498 = vand.u32 %v370, 4294901760
        %v3499 = vsub.f32 %v370, %v3498
        %v3500 = vand.u32 %v3499, 4294901760
        %v3501 = vsub.f32 %v3499, %v3500
        %v3502 = vand.u32 %v3501, 4294901760
        %3503 = vmatpush1.msra.mxu0 %v3502
        %v3504 = vand.u32 %v387, 4294901760
        %v3505 = vsub.f32 %v387, %v3504
        %v3506 = vand.u32 %v3505, 4294901760
        %v3507 = vsub.f32 %v3505, %v3506
        %v3508 = vand.u32 %v3507, 4294901760
        %3509 = vmatprep.subr.mxu0 %v3508
        %v3510 = vand.u32 %v386, 4294901760
        %v3511 = vsub.f32 %v386, %v3510
        %v3512 = vand.u32 %v3511, 4294901760
        %v3513 = vsub.f32 %v3511, %v3512
        %v3514 = vand.u32 %v3513, 4294901760
        %3515 = vmatpush1.msra.mxu0 %v3514
        %v3516 = vand.u32 %v403, 4294901760
        %v3517 = vsub.f32 %v403, %v3516
        %v3518 = vand.u32 %v3517, 4294901760
        %v3519 = vsub.f32 %v3517, %v3518
        %v3520 = vand.u32 %v3519, 4294901760
        %3521 = vmatprep.subr.mxu0 %v3520
        %v3522 = vand.u32 %v402, 4294901760
        %v3523 = vsub.f32 %v402, %v3522
        %v3524 = vand.u32 %v3523, 4294901760
        %v3525 = vsub.f32 %v3523, %v3524
        %v3526 = vand.u32 %v3525, 4294901760
        %3527 = vmatpush1.msra.mxu0 %v3526
        %v3528 = vand.u32 %v419, 4294901760
        %v3529 = vsub.f32 %v419, %v3528
        %v3530 = vand.u32 %v3529, 4294901760
        %v3531 = vsub.f32 %v3529, %v3530
        %v3532 = vand.u32 %v3531, 4294901760
        %3533 = vmatprep.subr.mxu0 %v3532
        %v3534 = vand.u32 %v418, 4294901760
        %v3535 = vsub.f32 %v418, %v3534
        %v3536 = vand.u32 %v3535, 4294901760
        %v3537 = vsub.f32 %v3535, %v3536
        %v3538 = vand.u32 %v3537, 4294901760
        %3539 = vmatpush1.msra.mxu0 %v3538
        %v3540 = vand.u32 %v435, 4294901760
        %v3541 = vsub.f32 %v435, %v3540
        %v3542 = vand.u32 %v3541, 4294901760
        %v3543 = vsub.f32 %v3541, %v3542
        %v3544 = vand.u32 %v3543, 4294901760
        %3545 = vmatprep.subr.mxu0 %v3544
        %v3546 = vand.u32 %v434, 4294901760
        %v3547 = vsub.f32 %v434, %v3546
        %v3548 = vand.u32 %v3547, 4294901760
        %v3549 = vsub.f32 %v3547, %v3548
        %v3550 = vand.u32 %v3549, 4294901760
        %3551 = vmatpush1.msra.mxu0 %v3550
        %v3552 = vand.u32 %v451, 4294901760
        %v3553 = vsub.f32 %v451, %v3552
        %v3554 = vand.u32 %v3553, 4294901760
        %v3555 = vsub.f32 %v3553, %v3554
        %v3556 = vand.u32 %v3555, 4294901760
        %3557 = vmatprep.subr.mxu0 %v3556
        %v3558 = vand.u32 %v450, 4294901760
        %v3559 = vsub.f32 %v450, %v3558
        %v3560 = vand.u32 %v3559, 4294901760
        %v3561 = vsub.f32 %v3559, %v3560
        %v3562 = vand.u32 %v3561, 4294901760
        %3563 = vmatpush1.msra.mxu0 %v3562
        %v3564 = vand.u32 %v467, 4294901760
        %v3565 = vsub.f32 %v467, %v3564
        %v3566 = vand.u32 %v3565, 4294901760
        %v3567 = vsub.f32 %v3565, %v3566
        %v3568 = vand.u32 %v3567, 4294901760
        %3569 = vmatprep.subr.mxu0 %v3568
        %v3570 = vand.u32 %v466, 4294901760
        %v3571 = vsub.f32 %v466, %v3570
        %v3572 = vand.u32 %v3571, 4294901760
        %v3573 = vsub.f32 %v3571, %v3572
        %v3574 = vand.u32 %v3573, 4294901760
        %3575 = vmatpush1.msra.mxu0 %v3574
        %v3576 = vand.u32 %v483, 4294901760
        %v3577 = vsub.f32 %v483, %v3576
        %v3578 = vand.u32 %v3577, 4294901760
        %v3579 = vsub.f32 %v3577, %v3578
        %v3580 = vand.u32 %v3579, 4294901760
        %3581 = vmatprep.subr.mxu0 %v3580
        %v3582 = vand.u32 %v482, 4294901760
        %v3583 = vsub.f32 %v482, %v3582
        %v3584 = vand.u32 %v3583, 4294901760
        %v3585 = vsub.f32 %v3583, %v3584
        %v3586 = vand.u32 %v3585, 4294901760
        %3587 = vmatpush1.msra.mxu0 %v3586
        %3588 = vmatprep.subr.mxu0 0.0
        %3589 = vmatpush1.msra.mxu0 0.0
        %3590 = vmatprep.subr.mxu0 0.0
        %3591 = vmatpush1.msra.mxu0 0.0
        %3592 = vmatprep.subr.mxu0 0.0
        %3593 = vmatpush1.msra.mxu0 0.0
        %3594 = vmatprep.subr.mxu0 0.0
        %3595 = vmatpush1.msra.mxu0 0.0
        %3596 = vmatprep.subr.mxu0 0.0
        %3597 = vmatpush1.msra.mxu0 0.0
        %3598 = vmatprep.subr.mxu0 0.0
        %3599 = vmatpush1.msra.mxu0 0.0
        %3600 = vmatprep.subr.mxu0 0.0
        %3601 = vmatpush1.msra.mxu0 0.0
        %3602 = vmatprep.subr.mxu0 0.0
        %3603 = vmatpush1.msra.mxu0 0.0
        %3604 = vmatprep.subr.mxu0 0.0
        %3605 = vmatpush1.msra.mxu0 0.0
        %3606 = vmatprep.subr.mxu0 0.0
        %3607 = vmatpush1.msra.mxu0 0.0
        %3608 = vmatprep.subr.mxu0 0.0
        %3609 = vmatpush1.msra.mxu0 0.0
        %3610 = vmatprep.subr.mxu0 0.0
        %3611 = vmatpush1.msra.mxu0 0.0
        %3612 = vmatprep.subr.mxu0 0.0
        %3613 = vmatpush1.msra.mxu0 0.0
        %3614 = vmatprep.subr.mxu0 0.0
        %3615 = vmatpush1.msra.mxu0 0.0
        %v3616 = vand.u32 %v493, 4294901760
        %3617 = vmatprep.mubr.f32.mxu0 %v3616
        %v3618 = vand.u32 %v202, 4294901760
        %3619 = vmatmul.mubr.f32.gmra.mrb[0].mxu0 %v3618
        %v3620 = vpop.f32.mrb[0].mxu0
        %v3621 = vadd.f32 %v3368, %v3620
        %v3622 = vpop.f32.mrb[0].mxu0
        %v3623 = vadd.f32 %v3370, %v3622
        %3624 = vdwg.mxu0
        %v3625 = vand.u32 %v211, 4294901760
        %v3626 = vsub.f32 %v211, %v3625
        %3627 = vmatprep.subr.mxu0 %v3626
        %v3628 = vand.u32 %v210, 4294901760
        %v3629 = vsub.f32 %v210, %v3628
        %3630 = vmatpush1.msra.mxu0 %v3629
        %v3631 = vand.u32 %v227, 4294901760
        %v3632 = vsub.f32 %v227, %v3631
        %3633 = vmatprep.subr.mxu0 %v3632
        %v3634 = vand.u32 %v226, 4294901760
        %v3635 = vsub.f32 %v226, %v3634
        %3636 = vmatpush1.msra.mxu0 %v3635
        %v3637 = vand.u32 %v243, 4294901760
        %v3638 = vsub.f32 %v243, %v3637
        %3639 = vmatprep.subr.mxu0 %v3638
        %v3640 = vand.u32 %v242, 4294901760
        %v3641 = vsub.f32 %v242, %v3640
        %3642 = vmatpush1.msra.mxu0 %v3641
        %v3643 = vand.u32 %v259, 4294901760
        %v3644 = vsub.f32 %v259, %v3643
        %3645 = vmatprep.subr.mxu0 %v3644
        %v3646 = vand.u32 %v258, 4294901760
        %v3647 = vsub.f32 %v258, %v3646
        %3648 = vmatpush1.msra.mxu0 %v3647
        %v3649 = vand.u32 %v275, 4294901760
        %v3650 = vsub.f32 %v275, %v3649
        %3651 = vmatprep.subr.mxu0 %v3650
        %v3652 = vand.u32 %v274, 4294901760
        %v3653 = vsub.f32 %v274, %v3652
        %3654 = vmatpush1.msra.mxu0 %v3653
        %v3655 = vand.u32 %v291, 4294901760
        %v3656 = vsub.f32 %v291, %v3655
        %3657 = vmatprep.subr.mxu0 %v3656
        %v3658 = vand.u32 %v290, 4294901760
        %v3659 = vsub.f32 %v290, %v3658
        %3660 = vmatpush1.msra.mxu0 %v3659
        %v3661 = vand.u32 %v307, 4294901760
        %v3662 = vsub.f32 %v307, %v3661
        %3663 = vmatprep.subr.mxu0 %v3662
        %v3664 = vand.u32 %v306, 4294901760
        %v3665 = vsub.f32 %v306, %v3664
        %3666 = vmatpush1.msra.mxu0 %v3665
        %v3667 = vand.u32 %v323, 4294901760
        %v3668 = vsub.f32 %v323, %v3667
        %3669 = vmatprep.subr.mxu0 %v3668
        %v3670 = vand.u32 %v322, 4294901760
        %v3671 = vsub.f32 %v322, %v3670
        %3672 = vmatpush1.msra.mxu0 %v3671
        %v3673 = vand.u32 %v339, 4294901760
        %v3674 = vsub.f32 %v339, %v3673
        %3675 = vmatprep.subr.mxu0 %v3674
        %v3676 = vand.u32 %v338, 4294901760
        %v3677 = vsub.f32 %v338, %v3676
        %3678 = vmatpush1.msra.mxu0 %v3677
        %v3679 = vand.u32 %v355, 4294901760
        %v3680 = vsub.f32 %v355, %v3679
        %3681 = vmatprep.subr.mxu0 %v3680
        %v3682 = vand.u32 %v354, 4294901760
        %v3683 = vsub.f32 %v354, %v3682
        %3684 = vmatpush1.msra.mxu0 %v3683
        %v3685 = vand.u32 %v371, 4294901760
        %v3686 = vsub.f32 %v371, %v3685
        %3687 = vmatprep.subr.mxu0 %v3686
        %v3688 = vand.u32 %v370, 4294901760
        %v3689 = vsub.f32 %v370, %v3688
        %3690 = vmatpush1.msra.mxu0 %v3689
        %v3691 = vand.u32 %v387, 4294901760
        %v3692 = vsub.f32 %v387, %v3691
        %3693 = vmatprep.subr.mxu0 %v3692
        %v3694 = vand.u32 %v386, 4294901760
        %v3695 = vsub.f32 %v386, %v3694
        %3696 = vmatpush1.msra.mxu0 %v3695
        %v3697 = vand.u32 %v403, 4294901760
        %v3698 = vsub.f32 %v403, %v3697
        %3699 = vmatprep.subr.mxu0 %v3698
        %v3700 = vand.u32 %v402, 4294901760
        %v3701 = vsub.f32 %v402, %v3700
        %3702 = vmatpush1.msra.mxu0 %v3701
        %v3703 = vand.u32 %v419, 4294901760
        %v3704 = vsub.f32 %v419, %v3703
        %3705 = vmatprep.subr.mxu0 %v3704
        %v3706 = vand.u32 %v418, 4294901760
        %v3707 = vsub.f32 %v418, %v3706
        %3708 = vmatpush1.msra.mxu0 %v3707
        %v3709 = vand.u32 %v435, 4294901760
        %v3710 = vsub.f32 %v435, %v3709
        %3711 = vmatprep.subr.mxu0 %v3710
        %v3712 = vand.u32 %v434, 4294901760
        %v3713 = vsub.f32 %v434, %v3712
        %3714 = vmatpush1.msra.mxu0 %v3713
        %v3715 = vand.u32 %v451, 4294901760
        %v3716 = vsub.f32 %v451, %v3715
        %3717 = vmatprep.subr.mxu0 %v3716
        %v3718 = vand.u32 %v450, 4294901760
        %v3719 = vsub.f32 %v450, %v3718
        %3720 = vmatpush1.msra.mxu0 %v3719
        %v3721 = vand.u32 %v467, 4294901760
        %v3722 = vsub.f32 %v467, %v3721
        %3723 = vmatprep.subr.mxu0 %v3722
        %v3724 = vand.u32 %v466, 4294901760
        %v3725 = vsub.f32 %v466, %v3724
        %3726 = vmatpush1.msra.mxu0 %v3725
        %v3727 = vand.u32 %v483, 4294901760
        %v3728 = vsub.f32 %v483, %v3727
        %3729 = vmatprep.subr.mxu0 %v3728
        %v3730 = vand.u32 %v482, 4294901760
        %v3731 = vsub.f32 %v482, %v3730
        %3732 = vmatpush1.msra.mxu0 %v3731
        %3733 = vmatprep.subr.mxu0 0.0
        %3734 = vmatpush1.msra.mxu0 0.0
        %3735 = vmatprep.subr.mxu0 0.0
        %3736 = vmatpush1.msra.mxu0 0.0
        %3737 = vmatprep.subr.mxu0 0.0
        %3738 = vmatpush1.msra.mxu0 0.0
        %3739 = vmatprep.subr.mxu0 0.0
        %3740 = vmatpush1.msra.mxu0 0.0
        %3741 = vmatprep.subr.mxu0 0.0
        %3742 = vmatpush1.msra.mxu0 0.0
        %3743 = vmatprep.subr.mxu0 0.0
        %3744 = vmatpush1.msra.mxu0 0.0
        %3745 = vmatprep.subr.mxu0 0.0
        %3746 = vmatpush1.msra.mxu0 0.0
        %3747 = vmatprep.subr.mxu0 0.0
        %3748 = vmatpush1.msra.mxu0 0.0
        %3749 = vmatprep.subr.mxu0 0.0
        %3750 = vmatpush1.msra.mxu0 0.0
        %3751 = vmatprep.subr.mxu0 0.0
        %3752 = vmatpush1.msra.mxu0 0.0
        %3753 = vmatprep.subr.mxu0 0.0
        %3754 = vmatpush1.msra.mxu0 0.0
        %3755 = vmatprep.subr.mxu0 0.0
        %3756 = vmatpush1.msra.mxu0 0.0
        %3757 = vmatprep.subr.mxu0 0.0
        %3758 = vmatpush1.msra.mxu0 0.0
        %3759 = vmatprep.subr.mxu0 0.0
        %3760 = vmatpush1.msra.mxu0 0.0
        %v3761 = vand.u32 %v493, 4294901760
        %v3762 = vsub.f32 %v493, %v3761
        %3763 = vmatprep.mubr.f32.mxu0 %v3762
        %v3764 = vand.u32 %v202, 4294901760
        %v3765 = vsub.f32 %v202, %v3764
        %3766 = vmatmul.mubr.f32.gmra.mrb[0].mxu0 %v3765
        %v3767 = vpop.f32.mrb[0].mxu0
        %v3768 = vadd.f32 %v3621, %v3767
        %v3769 = vpop.f32.mrb[0].mxu0
        %v3770 = vadd.f32 %v3623, %v3769
        %3771 = vdwg.mxu0
        %v3772 = vand.u32 %v211, 4294901760
        %3773 = vmatprep.subr.mxu0 %v3772
        %v3774 = vand.u32 %v210, 4294901760
        %3775 = vmatpush1.msra.mxu0 %v3774
        %v3776 = vand.u32 %v227, 4294901760
        %3777 = vmatprep.subr.mxu0 %v3776
        %v3778 = vand.u32 %v226, 4294901760
        %3779 = vmatpush1.msra.mxu0 %v3778
        %v3780 = vand.u32 %v243, 4294901760
        %3781 = vmatprep.subr.mxu0 %v3780
        %v3782 = vand.u32 %v242, 4294901760
        %3783 = vmatpush1.msra.mxu0 %v3782
        %v3784 = vand.u32 %v259, 4294901760
        %3785 = vmatprep.subr.mxu0 %v3784
        %v3786 = vand.u32 %v258, 4294901760
        %3787 = vmatpush1.msra.mxu0 %v3786
        %v3788 = vand.u32 %v275, 4294901760
        %3789 = vmatprep.subr.mxu0 %v3788
        %v3790 = vand.u32 %v274, 4294901760
        %3791 = vmatpush1.msra.mxu0 %v3790
        %v3792 = vand.u32 %v291, 4294901760
        %3793 = vmatprep.subr.mxu0 %v3792
        %v3794 = vand.u32 %v290, 4294901760
        %3795 = vmatpush1.msra.mxu0 %v3794
        %v3796 = vand.u32 %v307, 4294901760
        %3797 = vmatprep.subr.mxu0 %v3796
        %v3798 = vand.u32 %v306, 4294901760
        %3799 = vmatpush1.msra.mxu0 %v3798
        %v3800 = vand.u32 %v323, 4294901760
        %3801 = vmatprep.subr.mxu0 %v3800
        %v3802 = vand.u32 %v322, 4294901760
        %3803 = vmatpush1.msra.mxu0 %v3802
        %v3804 = vand.u32 %v339, 4294901760
        %3805 = vmatprep.subr.mxu0 %v3804
        %v3806 = vand.u32 %v338, 4294901760
        %3807 = vmatpush1.msra.mxu0 %v3806
        %v3808 = vand.u32 %v355, 4294901760
        %3809 = vmatprep.subr.mxu0 %v3808
        %v3810 = vand.u32 %v354, 4294901760
        %3811 = vmatpush1.msra.mxu0 %v3810
        %v3812 = vand.u32 %v371, 4294901760
        %3813 = vmatprep.subr.mxu0 %v3812
        %v3814 = vand.u32 %v370, 4294901760
        %3815 = vmatpush1.msra.mxu0 %v3814
        %v3816 = vand.u32 %v387, 4294901760
        %3817 = vmatprep.subr.mxu0 %v3816
        %v3818 = vand.u32 %v386, 4294901760
        %3819 = vmatpush1.msra.mxu0 %v3818
        %v3820 = vand.u32 %v403, 4294901760
        %3821 = vmatprep.subr.mxu0 %v3820
        %v3822 = vand.u32 %v402, 4294901760
        %3823 = vmatpush1.msra.mxu0 %v3822
        %v3824 = vand.u32 %v419, 4294901760
        %3825 = vmatprep.subr.mxu0 %v3824
        %v3826 = vand.u32 %v418, 4294901760
        %3827 = vmatpush1.msra.mxu0 %v3826
        %v3828 = vand.u32 %v435, 4294901760
        %3829 = vmatprep.subr.mxu0 %v3828
        %v3830 = vand.u32 %v434, 4294901760
        %3831 = vmatpush1.msra.mxu0 %v3830
        %v3832 = vand.u32 %v451, 4294901760
        %3833 = vmatprep.subr.mxu0 %v3832
        %v3834 = vand.u32 %v450, 4294901760
        %3835 = vmatpush1.msra.mxu0 %v3834
        %v3836 = vand.u32 %v467, 4294901760
        %3837 = vmatprep.subr.mxu0 %v3836
        %v3838 = vand.u32 %v466, 4294901760
        %3839 = vmatpush1.msra.mxu0 %v3838
        %v3840 = vand.u32 %v483, 4294901760
        %3841 = vmatprep.subr.mxu0 %v3840
        %v3842 = vand.u32 %v482, 4294901760
        %3843 = vmatpush1.msra.mxu0 %v3842
        %3844 = vmatprep.subr.mxu0 0.0
        %3845 = vmatpush1.msra.mxu0 0.0
        %3846 = vmatprep.subr.mxu0 0.0
        %3847 = vmatpush1.msra.mxu0 0.0
        %3848 = vmatprep.subr.mxu0 0.0
        %3849 = vmatpush1.msra.mxu0 0.0
        %3850 = vmatprep.subr.mxu0 0.0
        %3851 = vmatpush1.msra.mxu0 0.0
        %3852 = vmatprep.subr.mxu0 0.0
        %3853 = vmatpush1.msra.mxu0 0.0
        %3854 = vmatprep.subr.mxu0 0.0
        %3855 = vmatpush1.msra.mxu0 0.0
        %3856 = vmatprep.subr.mxu0 0.0
        %3857 = vmatpush1.msra.mxu0 0.0
        %3858 = vmatprep.subr.mxu0 0.0
        %3859 = vmatpush1.msra.mxu0 0.0
        %3860 = vmatprep.subr.mxu0 0.0
        %3861 = vmatpush1.msra.mxu0 0.0
        %3862 = vmatprep.subr.mxu0 0.0
        %3863 = vmatpush1.msra.mxu0 0.0
        %3864 = vmatprep.subr.mxu0 0.0
        %3865 = vmatpush1.msra.mxu0 0.0
        %3866 = vmatprep.subr.mxu0 0.0
        %3867 = vmatpush1.msra.mxu0 0.0
        %3868 = vmatprep.subr.mxu0 0.0
        %3869 = vmatpush1.msra.mxu0 0.0
        %3870 = vmatprep.subr.mxu0 0.0
        %3871 = vmatpush1.msra.mxu0 0.0
        %v3872 = vand.u32 %v493, 4294901760
        %v3873 = vsub.f32 %v493, %v3872
        %v3874 = vand.u32 %v3873, 4294901760
        %3875 = vmatprep.mubr.f32.mxu0 %v3874
        %v3876 = vand.u32 %v202, 4294901760
        %v3877 = vsub.f32 %v202, %v3876
        %v3878 = vand.u32 %v3877, 4294901760
        %3879 = vmatmul.mubr.f32.gmra.mrb[0].mxu0 %v3878
        %v3880 = vpop.f32.mrb[0].mxu0
        %v3881 = vadd.f32 %v3768, %v3880
        %v3882 = vpop.f32.mrb[0].mxu0
        %v3883 = vadd.f32 %v3770, %v3882
        %3884 = vdwg.mxu0
        %v3885 = vand.u32 %v211, 4294901760
        %v3886 = vsub.f32 %v211, %v3885
        %v3887 = vand.u32 %v3886, 4294901760
        %3888 = vmatprep.subr.mxu0 %v3887
        %v3889 = vand.u32 %v210, 4294901760
        %v3890 = vsub.f32 %v210, %v3889
        %v3891 = vand.u32 %v3890, 4294901760
        %3892 = vmatpush1.msra.mxu0 %v3891
        %v3893 = vand.u32 %v227, 4294901760
        %v3894 = vsub.f32 %v227, %v3893
        %v3895 = vand.u32 %v3894, 4294901760
        %3896 = vmatprep.subr.mxu0 %v3895
        %v3897 = vand.u32 %v226, 4294901760
        %v3898 = vsub.f32 %v226, %v3897
        %v3899 = vand.u32 %v3898, 4294901760
        %3900 = vmatpush1.msra.mxu0 %v3899
        %v3901 = vand.u32 %v243, 4294901760
        %v3902 = vsub.f32 %v243, %v3901
        %v3903 = vand.u32 %v3902, 4294901760
        %3904 = vmatprep.subr.mxu0 %v3903
        %v3905 = vand.u32 %v242, 4294901760
        %v3906 = vsub.f32 %v242, %v3905
        %v3907 = vand.u32 %v3906, 4294901760
        %3908 = vmatpush1.msra.mxu0 %v3907
        %v3909 = vand.u32 %v259, 4294901760
        %v3910 = vsub.f32 %v259, %v3909
        %v3911 = vand.u32 %v3910, 4294901760
        %3912 = vmatprep.subr.mxu0 %v3911
        %v3913 = vand.u32 %v258, 4294901760
        %v3914 = vsub.f32 %v258, %v3913
        %v3915 = vand.u32 %v3914, 4294901760
        %3916 = vmatpush1.msra.mxu0 %v3915
        %v3917 = vand.u32 %v275, 4294901760
        %v3918 = vsub.f32 %v275, %v3917
        %v3919 = vand.u32 %v3918, 4294901760
        %3920 = vmatprep.subr.mxu0 %v3919
        %v3921 = vand.u32 %v274, 4294901760
        %v3922 = vsub.f32 %v274, %v3921
        %v3923 = vand.u32 %v3922, 4294901760
        %3924 = vmatpush1.msra.mxu0 %v3923
        %v3925 = vand.u32 %v291, 4294901760
        %v3926 = vsub.f32 %v291, %v3925
        %v3927 = vand.u32 %v3926, 4294901760
        %3928 = vmatprep.subr.mxu0 %v3927
        %v3929 = vand.u32 %v290, 4294901760
        %v3930 = vsub.f32 %v290, %v3929
        %v3931 = vand.u32 %v3930, 4294901760
        %3932 = vmatpush1.msra.mxu0 %v3931
        %v3933 = vand.u32 %v307, 4294901760
        %v3934 = vsub.f32 %v307, %v3933
        %v3935 = vand.u32 %v3934, 4294901760
        %3936 = vmatprep.subr.mxu0 %v3935
        %v3937 = vand.u32 %v306, 4294901760
        %v3938 = vsub.f32 %v306, %v3937
        %v3939 = vand.u32 %v3938, 4294901760
        %3940 = vmatpush1.msra.mxu0 %v3939
        %v3941 = vand.u32 %v323, 4294901760
        %v3942 = vsub.f32 %v323, %v3941
        %v3943 = vand.u32 %v3942, 4294901760
        %3944 = vmatprep.subr.mxu0 %v3943
        %v3945 = vand.u32 %v322, 4294901760
        %v3946 = vsub.f32 %v322, %v3945
        %v3947 = vand.u32 %v3946, 4294901760
        %3948 = vmatpush1.msra.mxu0 %v3947
        %v3949 = vand.u32 %v339, 4294901760
        %v3950 = vsub.f32 %v339, %v3949
        %v3951 = vand.u32 %v3950, 4294901760
        %3952 = vmatprep.subr.mxu0 %v3951
        %v3953 = vand.u32 %v338, 4294901760
        %v3954 = vsub.f32 %v338, %v3953
        %v3955 = vand.u32 %v3954, 4294901760
        %3956 = vmatpush1.msra.mxu0 %v3955
        %v3957 = vand.u32 %v355, 4294901760
        %v3958 = vsub.f32 %v355, %v3957
        %v3959 = vand.u32 %v3958, 4294901760
        %3960 = vmatprep.subr.mxu0 %v3959
        %v3961 = vand.u32 %v354, 4294901760
        %v3962 = vsub.f32 %v354, %v3961
        %v3963 = vand.u32 %v3962, 4294901760
        %3964 = vmatpush1.msra.mxu0 %v3963
        %v3965 = vand.u32 %v371, 4294901760
        %v3966 = vsub.f32 %v371, %v3965
        %v3967 = vand.u32 %v3966, 4294901760
        %3968 = vmatprep.subr.mxu0 %v3967
        %v3969 = vand.u32 %v370, 4294901760
        %v3970 = vsub.f32 %v370, %v3969
        %v3971 = vand.u32 %v3970, 4294901760
        %3972 = vmatpush1.msra.mxu0 %v3971
        %v3973 = vand.u32 %v387, 4294901760
        %v3974 = vsub.f32 %v387, %v3973
        %v3975 = vand.u32 %v3974, 4294901760
        %3976 = vmatprep.subr.mxu0 %v3975
        %v3977 = vand.u32 %v386, 4294901760
        %v3978 = vsub.f32 %v386, %v3977
        %v3979 = vand.u32 %v3978, 4294901760
        %3980 = vmatpush1.msra.mxu0 %v3979
        %v3981 = vand.u32 %v403, 4294901760
        %v3982 = vsub.f32 %v403, %v3981
        %v3983 = vand.u32 %v3982, 4294901760
        %3984 = vmatprep.subr.mxu0 %v3983
        %v3985 = vand.u32 %v402, 4294901760
        %v3986 = vsub.f32 %v402, %v3985
        %v3987 = vand.u32 %v3986, 4294901760
        %3988 = vmatpush1.msra.mxu0 %v3987
        %v3989 = vand.u32 %v419, 4294901760
        %v3990 = vsub.f32 %v419, %v3989
        %v3991 = vand.u32 %v3990, 4294901760
        %3992 = vmatprep.subr.mxu0 %v3991
        %v3993 = vand.u32 %v418, 4294901760
        %v3994 = vsub.f32 %v418, %v3993
        %v3995 = vand.u32 %v3994, 4294901760
        %3996 = vmatpush1.msra.mxu0 %v3995
        %v3997 = vand.u32 %v435, 4294901760
        %v3998 = vsub.f32 %v435, %v3997
        %v3999 = vand.u32 %v3998, 4294901760
        %4000 = vmatprep.subr.mxu0 %v3999
        %v4001 = vand.u32 %v434, 4294901760
        %v4002 = vsub.f32 %v434, %v4001
        %v4003 = vand.u32 %v4002, 4294901760
        %4004 = vmatpush1.msra.mxu0 %v4003
        %v4005 = vand.u32 %v451, 4294901760
        %v4006 = vsub.f32 %v451, %v4005
        %v4007 = vand.u32 %v4006, 4294901760
        %4008 = vmatprep.subr.mxu0 %v4007
        %v4009 = vand.u32 %v450, 4294901760
        %v4010 = vsub.f32 %v450, %v4009
        %v4011 = vand.u32 %v4010, 4294901760
        %4012 = vmatpush1.msra.mxu0 %v4011
        %v4013 = vand.u32 %v467, 4294901760
        %v4014 = vsub.f32 %v467, %v4013
        %v4015 = vand.u32 %v4014, 4294901760
        %4016 = vmatprep.subr.mxu0 %v4015
        %v4017 = vand.u32 %v466, 4294901760
        %v4018 = vsub.f32 %v466, %v4017
        %v4019 = vand.u32 %v4018, 4294901760
        %4020 = vmatpush1.msra.mxu0 %v4019
        %v4021 = vand.u32 %v483, 4294901760
        %v4022 = vsub.f32 %v483, %v4021
        %v4023 = vand.u32 %v4022, 4294901760
        %4024 = vmatprep.subr.mxu0 %v4023
        %v4025 = vand.u32 %v482, 4294901760
        %v4026 = vsub.f32 %v482, %v4025
        %v4027 = vand.u32 %v4026, 4294901760
        %4028 = vmatpush1.msra.mxu0 %v4027
        %4029 = vmatprep.subr.mxu0 0.0
        %4030 = vmatpush1.msra.mxu0 0.0
        %4031 = vmatprep.subr.mxu0 0.0
        %4032 = vmatpush1.msra.mxu0 0.0
        %4033 = vmatprep.subr.mxu0 0.0
        %4034 = vmatpush1.msra.mxu0 0.0
        %4035 = vmatprep.subr.mxu0 0.0
        %4036 = vmatpush1.msra.mxu0 0.0
        %4037 = vmatprep.subr.mxu0 0.0
        %4038 = vmatpush1.msra.mxu0 0.0
        %4039 = vmatprep.subr.mxu0 0.0
        %4040 = vmatpush1.msra.mxu0 0.0
        %4041 = vmatprep.subr.mxu0 0.0
        %4042 = vmatpush1.msra.mxu0 0.0
        %4043 = vmatprep.subr.mxu0 0.0
        %4044 = vmatpush1.msra.mxu0 0.0
        %4045 = vmatprep.subr.mxu0 0.0
        %4046 = vmatpush1.msra.mxu0 0.0
        %4047 = vmatprep.subr.mxu0 0.0
        %4048 = vmatpush1.msra.mxu0 0.0
        %4049 = vmatprep.subr.mxu0 0.0
        %4050 = vmatpush1.msra.mxu0 0.0
        %4051 = vmatprep.subr.mxu0 0.0
        %4052 = vmatpush1.msra.mxu0 0.0
        %4053 = vmatprep.subr.mxu0 0.0
        %4054 = vmatpush1.msra.mxu0 0.0
        %4055 = vmatprep.subr.mxu0 0.0
        %4056 = vmatpush1.msra.mxu0 0.0
        %v4057 = vand.u32 %v493, 4294901760
        %4058 = vmatprep.mubr.f32.mxu0 %v4057
        %v4059 = vand.u32 %v202, 4294901760
        %4060 = vmatmul.mubr.f32.gmra.mrb[0].mxu0 %v4059
        %v4061 = vpop.f32.mrb[0].mxu0
        %v4062 = vadd.f32 %v3881, %v4061
        %v4063 = vpop.f32.mrb[0].mxu0
        %v4064 = vadd.f32 %v3883, %v4063
        %4065 = vdwg.mxu0
        %v4066 = vand.u32 %v211, 4294901760
        %4067 = vmatprep.subr.mxu0 %v4066
        %v4068 = vand.u32 %v210, 4294901760
        %4069 = vmatpush1.msra.mxu0 %v4068
        %v4070 = vand.u32 %v227, 4294901760
        %4071 = vmatprep.subr.mxu0 %v4070
        %v4072 = vand.u32 %v226, 4294901760
        %4073 = vmatpush1.msra.mxu0 %v4072
        %v4074 = vand.u32 %v243, 4294901760
        %4075 = vmatprep.subr.mxu0 %v4074
        %v4076 = vand.u32 %v242, 4294901760
        %4077 = vmatpush1.msra.mxu0 %v4076
        %v4078 = vand.u32 %v259, 4294901760
        %4079 = vmatprep.subr.mxu0 %v4078
        %v4080 = vand.u32 %v258, 4294901760
        %4081 = vmatpush1.msra.mxu0 %v4080
        %v4082 = vand.u32 %v275, 4294901760
        %4083 = vmatprep.subr.mxu0 %v4082
        %v4084 = vand.u32 %v274, 4294901760
        %4085 = vmatpush1.msra.mxu0 %v4084
        %v4086 = vand.u32 %v291, 4294901760
        %4087 = vmatprep.subr.mxu0 %v4086
        %v4088 = vand.u32 %v290, 4294901760
        %4089 = vmatpush1.msra.mxu0 %v4088
        %v4090 = vand.u32 %v307, 4294901760
        %4091 = vmatprep.subr.mxu0 %v4090
        %v4092 = vand.u32 %v306, 4294901760
        %4093 = vmatpush1.msra.mxu0 %v4092
        %v4094 = vand.u32 %v323, 4294901760
        %4095 = vmatprep.subr.mxu0 %v4094
        %v4096 = vand.u32 %v322, 4294901760
        %4097 = vmatpush1.msra.mxu0 %v4096
        %v4098 = vand.u32 %v339, 4294901760
        %4099 = vmatprep.subr.mxu0 %v4098
        %v4100 = vand.u32 %v338, 4294901760
        %4101 = vmatpush1.msra.mxu0 %v4100
        %v4102 = vand.u32 %v355, 4294901760
        %4103 = vmatprep.subr.mxu0 %v4102
        %v4104 = vand.u32 %v354, 4294901760
        %4105 = vmatpush1.msra.mxu0 %v4104
        %v4106 = vand.u32 %v371, 4294901760
        %4107 = vmatprep.subr.mxu0 %v4106
        %v4108 = vand.u32 %v370, 4294901760
        %4109 = vmatpush1.msra.mxu0 %v4108
        %v4110 = vand.u32 %v387, 4294901760
        %4111 = vmatprep.subr.mxu0 %v4110
        %v4112 = vand.u32 %v386, 4294901760
        %4113 = vmatpush1.msra.mxu0 %v4112
        %v4114 = vand.u32 %v403, 4294901760
        %4115 = vmatprep.subr.mxu0 %v4114
        %v4116 = vand.u32 %v402, 4294901760
        %4117 = vmatpush1.msra.mxu0 %v4116
        %v4118 = vand.u32 %v419, 4294901760
        %4119 = vmatprep.subr.mxu0 %v4118
        %v4120 = vand.u32 %v418, 4294901760
        %4121 = vmatpush1.msra.mxu0 %v4120
        %v4122 = vand.u32 %v435, 4294901760
        %4123 = vmatprep.subr.mxu0 %v4122
        %v4124 = vand.u32 %v434, 4294901760
        %4125 = vmatpush1.msra.mxu0 %v4124
        %v4126 = vand.u32 %v451, 4294901760
        %4127 = vmatprep.subr.mxu0 %v4126
        %v4128 = vand.u32 %v450, 4294901760
        %4129 = vmatpush1.msra.mxu0 %v4128
        %v4130 = vand.u32 %v467, 4294901760
        %4131 = vmatprep.subr.mxu0 %v4130
        %v4132 = vand.u32 %v466, 4294901760
        %4133 = vmatpush1.msra.mxu0 %v4132
        %v4134 = vand.u32 %v483, 4294901760
        %4135 = vmatprep.subr.mxu0 %v4134
        %v4136 = vand.u32 %v482, 4294901760
        %4137 = vmatpush1.msra.mxu0 %v4136
        %4138 = vmatprep.subr.mxu0 0.0
        %4139 = vmatpush1.msra.mxu0 0.0
        %4140 = vmatprep.subr.mxu0 0.0
        %4141 = vmatpush1.msra.mxu0 0.0
        %4142 = vmatprep.subr.mxu0 0.0
        %4143 = vmatpush1.msra.mxu0 0.0
        %4144 = vmatprep.subr.mxu0 0.0
        %4145 = vmatpush1.msra.mxu0 0.0
        %4146 = vmatprep.subr.mxu0 0.0
        %4147 = vmatpush1.msra.mxu0 0.0
        %4148 = vmatprep.subr.mxu0 0.0
        %4149 = vmatpush1.msra.mxu0 0.0
        %4150 = vmatprep.subr.mxu0 0.0
        %4151 = vmatpush1.msra.mxu0 0.0
        %4152 = vmatprep.subr.mxu0 0.0
        %4153 = vmatpush1.msra.mxu0 0.0
        %4154 = vmatprep.subr.mxu0 0.0
        %4155 = vmatpush1.msra.mxu0 0.0
        %4156 = vmatprep.subr.mxu0 0.0
        %4157 = vmatpush1.msra.mxu0 0.0
        %4158 = vmatprep.subr.mxu0 0.0
        %4159 = vmatpush1.msra.mxu0 0.0
        %4160 = vmatprep.subr.mxu0 0.0
        %4161 = vmatpush1.msra.mxu0 0.0
        %4162 = vmatprep.subr.mxu0 0.0
        %4163 = vmatpush1.msra.mxu0 0.0
        %4164 = vmatprep.subr.mxu0 0.0
        %4165 = vmatpush1.msra.mxu0 0.0
        %v4166 = vand.u32 %v493, 4294901760
        %4167 = vmatprep.mubr.f32.mxu0 %v4166
        %v4168 = vand.u32 %v202, 4294901760
        %4169 = vmatmul.mubr.f32.gmra.mrb[0].mxu0 %v4168
        %v4170 = vpop.f32.mrb[0].mxu0
        %v4171 = vadd.f32 %v4062, %v4170
        %v4172 = vpop.f32.mrb[0].mxu0
        %v4173 = vadd.f32 %v4064, %v4172
        %4174 = vdwg.mxu0
        %v4175 = vand.u32 %v213, 4294901760
        %4176 = vmatprep.subr.mxu0 %v4175
        %v4177 = vand.u32 %v212, 4294901760
        %4178 = vmatpush1.msra.mxu0 %v4177
        %v4179 = vand.u32 %v229, 4294901760
        %4180 = vmatprep.subr.mxu0 %v4179
        %v4181 = vand.u32 %v228, 4294901760
        %4182 = vmatpush1.msra.mxu0 %v4181
        %v4183 = vand.u32 %v245, 4294901760
        %4184 = vmatprep.subr.mxu0 %v4183
        %v4185 = vand.u32 %v244, 4294901760
        %4186 = vmatpush1.msra.mxu0 %v4185
        %v4187 = vand.u32 %v261, 4294901760
        %4188 = vmatprep.subr.mxu0 %v4187
        %v4189 = vand.u32 %v260, 4294901760
        %4190 = vmatpush1.msra.mxu0 %v4189
        %v4191 = vand.u32 %v277, 4294901760
        %4192 = vmatprep.subr.mxu0 %v4191
        %v4193 = vand.u32 %v276, 4294901760
        %4194 = vmatpush1.msra.mxu0 %v4193
        %v4195 = vand.u32 %v293, 4294901760
        %4196 = vmatprep.subr.mxu0 %v4195
        %v4197 = vand.u32 %v292, 4294901760
        %4198 = vmatpush1.msra.mxu0 %v4197
        %v4199 = vand.u32 %v309, 4294901760
        %4200 = vmatprep.subr.mxu0 %v4199
        %v4201 = vand.u32 %v308, 4294901760
        %4202 = vmatpush1.msra.mxu0 %v4201
        %v4203 = vand.u32 %v325, 4294901760
        %4204 = vmatprep.subr.mxu0 %v4203
        %v4205 = vand.u32 %v324, 4294901760
        %4206 = vmatpush1.msra.mxu0 %v4205
        %v4207 = vand.u32 %v341, 4294901760
        %4208 = vmatprep.subr.mxu0 %v4207
        %v4209 = vand.u32 %v340, 4294901760
        %4210 = vmatpush1.msra.mxu0 %v4209
        %v4211 = vand.u32 %v357, 4294901760
        %4212 = vmatprep.subr.mxu0 %v4211
        %v4213 = vand.u32 %v356, 4294901760
        %4214 = vmatpush1.msra.mxu0 %v4213
        %v4215 = vand.u32 %v373, 4294901760
        %4216 = vmatprep.subr.mxu0 %v4215
        %v4217 = vand.u32 %v372, 4294901760
        %4218 = vmatpush1.msra.mxu0 %v4217
        %v4219 = vand.u32 %v389, 4294901760
        %4220 = vmatprep.subr.mxu0 %v4219
        %v4221 = vand.u32 %v388, 4294901760
        %4222 = vmatpush1.msra.mxu0 %v4221
        %v4223 = vand.u32 %v405, 4294901760
        %4224 = vmatprep.subr.mxu0 %v4223
        %v4225 = vand.u32 %v404, 4294901760
        %4226 = vmatpush1.msra.mxu0 %v4225
        %v4227 = vand.u32 %v421, 4294901760
        %4228 = vmatprep.subr.mxu0 %v4227
        %v4229 = vand.u32 %v420, 4294901760
        %4230 = vmatpush1.msra.mxu0 %v4229
        %v4231 = vand.u32 %v437, 4294901760
        %4232 = vmatprep.subr.mxu0 %v4231
        %v4233 = vand.u32 %v436, 4294901760
        %4234 = vmatpush1.msra.mxu0 %v4233
        %v4235 = vand.u32 %v453, 4294901760
        %4236 = vmatprep.subr.mxu0 %v4235
        %v4237 = vand.u32 %v452, 4294901760
        %4238 = vmatpush1.msra.mxu0 %v4237
        %v4239 = vand.u32 %v469, 4294901760
        %4240 = vmatprep.subr.mxu0 %v4239
        %v4241 = vand.u32 %v468, 4294901760
        %4242 = vmatpush1.msra.mxu0 %v4241
        %v4243 = vand.u32 %v485, 4294901760
        %4244 = vmatprep.subr.mxu0 %v4243
        %v4245 = vand.u32 %v484, 4294901760
        %4246 = vmatpush1.msra.mxu0 %v4245
        %4247 = vmatprep.subr.mxu0 0.0
        %4248 = vmatpush1.msra.mxu0 0.0
        %4249 = vmatprep.subr.mxu0 0.0
        %4250 = vmatpush1.msra.mxu0 0.0
        %4251 = vmatprep.subr.mxu0 0.0
        %4252 = vmatpush1.msra.mxu0 0.0
        %4253 = vmatprep.subr.mxu0 0.0
        %4254 = vmatpush1.msra.mxu0 0.0
        %4255 = vmatprep.subr.mxu0 0.0
        %4256 = vmatpush1.msra.mxu0 0.0
        %4257 = vmatprep.subr.mxu0 0.0
        %4258 = vmatpush1.msra.mxu0 0.0
        %4259 = vmatprep.subr.mxu0 0.0
        %4260 = vmatpush1.msra.mxu0 0.0
        %4261 = vmatprep.subr.mxu0 0.0
        %4262 = vmatpush1.msra.mxu0 0.0
        %4263 = vmatprep.subr.mxu0 0.0
        %4264 = vmatpush1.msra.mxu0 0.0
        %4265 = vmatprep.subr.mxu0 0.0
        %4266 = vmatpush1.msra.mxu0 0.0
        %4267 = vmatprep.subr.mxu0 0.0
        %4268 = vmatpush1.msra.mxu0 0.0
        %4269 = vmatprep.subr.mxu0 0.0
        %4270 = vmatpush1.msra.mxu0 0.0
        %4271 = vmatprep.subr.mxu0 0.0
        %4272 = vmatpush1.msra.mxu0 0.0
        %4273 = vmatprep.subr.mxu0 0.0
        %4274 = vmatpush1.msra.mxu0 0.0
        %v4275 = vand.u32 %v493, 4294901760
        %v4276 = vsub.f32 %v493, %v4275
        %v4277 = vand.u32 %v4276, 4294901760
        %v4278 = vsub.f32 %v4276, %v4277
        %v4279 = vand.u32 %v4278, 4294901760
        %4280 = vmatprep.mubr.f32.mxu0 %v4279
        %v4281 = vand.u32 %v202, 4294901760
        %v4282 = vsub.f32 %v202, %v4281
        %v4283 = vand.u32 %v4282, 4294901760
        %v4284 = vsub.f32 %v4282, %v4283
        %v4285 = vand.u32 %v4284, 4294901760
        %4286 = vmatmul.mubr.f32.gmra.mrb[0].mxu0 %v4285
        %v4287 = vpop.f32.mrb[0].mxu0
        %v4288 = vadd.f32 0.0, %v4287
        %v4289 = vpop.f32.mrb[0].mxu0
        %v4290 = vadd.f32 0.0, %v4289
        %4291 = vdwg.mxu0
        %v4292 = vand.u32 %v213, 4294901760
        %v4293 = vsub.f32 %v213, %v4292
        %v4294 = vand.u32 %v4293, 4294901760
        %v4295 = vsub.f32 %v4293, %v4294
        %v4296 = vand.u32 %v4295, 4294901760
        %4297 = vmatprep.subr.mxu0 %v4296
        %v4298 = vand.u32 %v212, 4294901760
        %v4299 = vsub.f32 %v212, %v4298
        %v4300 = vand.u32 %v4299, 4294901760
        %v4301 = vsub.f32 %v4299, %v4300
        %v4302 = vand.u32 %v4301, 4294901760
        %4303 = vmatpush1.msra.mxu0 %v4302
        %v4304 = vand.u32 %v229, 4294901760
        %v4305 = vsub.f32 %v229, %v4304
        %v4306 = vand.u32 %v4305, 4294901760
        %v4307 = vsub.f32 %v4305, %v4306
        %v4308 = vand.u32 %v4307, 4294901760
        %4309 = vmatprep.subr.mxu0 %v4308
        %v4310 = vand.u32 %v228, 4294901760
        %v4311 = vsub.f32 %v228, %v4310
        %v4312 = vand.u32 %v4311, 4294901760
        %v4313 = vsub.f32 %v4311, %v4312
        %v4314 = vand.u32 %v4313, 4294901760
        %4315 = vmatpush1.msra.mxu0 %v4314
        %v4316 = vand.u32 %v245, 4294901760
        %v4317 = vsub.f32 %v245, %v4316
        %v4318 = vand.u32 %v4317, 4294901760
        %v4319 = vsub.f32 %v4317, %v4318
        %v4320 = vand.u32 %v4319, 4294901760
        %4321 = vmatprep.subr.mxu0 %v4320
        %v4322 = vand.u32 %v244, 4294901760
        %v4323 = vsub.f32 %v244, %v4322
        %v4324 = vand.u32 %v4323, 4294901760
        %v4325 = vsub.f32 %v4323, %v4324
        %v4326 = vand.u32 %v4325, 4294901760
        %4327 = vmatpush1.msra.mxu0 %v4326
        %v4328 = vand.u32 %v261, 4294901760
        %v4329 = vsub.f32 %v261, %v4328
        %v4330 = vand.u32 %v4329, 4294901760
        %v4331 = vsub.f32 %v4329, %v4330
        %v4332 = vand.u32 %v4331, 4294901760
        %4333 = vmatprep.subr.mxu0 %v4332
        %v4334 = vand.u32 %v260, 4294901760
        %v4335 = vsub.f32 %v260, %v4334
        %v4336 = vand.u32 %v4335, 4294901760
        %v4337 = vsub.f32 %v4335, %v4336
        %v4338 = vand.u32 %v4337, 4294901760
        %4339 = vmatpush1.msra.mxu0 %v4338
        %v4340 = vand.u32 %v277, 4294901760
        %v4341 = vsub.f32 %v277, %v4340
        %v4342 = vand.u32 %v4341, 4294901760
        %v4343 = vsub.f32 %v4341, %v4342
        %v4344 = vand.u32 %v4343, 4294901760
        %4345 = vmatprep.subr.mxu0 %v4344
        %v4346 = vand.u32 %v276, 4294901760
        %v4347 = vsub.f32 %v276, %v4346
        %v4348 = vand.u32 %v4347, 4294901760
        %v4349 = vsub.f32 %v4347, %v4348
        %v4350 = vand.u32 %v4349, 4294901760
        %4351 = vmatpush1.msra.mxu0 %v4350
        %v4352 = vand.u32 %v293, 4294901760
        %v4353 = vsub.f32 %v293, %v4352
        %v4354 = vand.u32 %v4353, 4294901760
        %v4355 = vsub.f32 %v4353, %v4354
        %v4356 = vand.u32 %v4355, 4294901760
        %4357 = vmatprep.subr.mxu0 %v4356
        %v4358 = vand.u32 %v292, 4294901760
        %v4359 = vsub.f32 %v292, %v4358
        %v4360 = vand.u32 %v4359, 4294901760
        %v4361 = vsub.f32 %v4359, %v4360
        %v4362 = vand.u32 %v4361, 4294901760
        %4363 = vmatpush1.msra.mxu0 %v4362
        %v4364 = vand.u32 %v309, 4294901760
        %v4365 = vsub.f32 %v309, %v4364
        %v4366 = vand.u32 %v4365, 4294901760
        %v4367 = vsub.f32 %v4365, %v4366
        %v4368 = vand.u32 %v4367, 4294901760
        %4369 = vmatprep.subr.mxu0 %v4368
        %v4370 = vand.u32 %v308, 4294901760
        %v4371 = vsub.f32 %v308, %v4370
        %v4372 = vand.u32 %v4371, 4294901760
        %v4373 = vsub.f32 %v4371, %v4372
        %v4374 = vand.u32 %v4373, 4294901760
        %4375 = vmatpush1.msra.mxu0 %v4374
        %v4376 = vand.u32 %v325, 4294901760
        %v4377 = vsub.f32 %v325, %v4376
        %v4378 = vand.u32 %v4377, 4294901760
        %v4379 = vsub.f32 %v4377, %v4378
        %v4380 = vand.u32 %v4379, 4294901760
        %4381 = vmatprep.subr.mxu0 %v4380
        %v4382 = vand.u32 %v324, 4294901760
        %v4383 = vsub.f32 %v324, %v4382
        %v4384 = vand.u32 %v4383, 4294901760
        %v4385 = vsub.f32 %v4383, %v4384
        %v4386 = vand.u32 %v4385, 4294901760
        %4387 = vmatpush1.msra.mxu0 %v4386
        %v4388 = vand.u32 %v341, 4294901760
        %v4389 = vsub.f32 %v341, %v4388
        %v4390 = vand.u32 %v4389, 4294901760
        %v4391 = vsub.f32 %v4389, %v4390
        %v4392 = vand.u32 %v4391, 4294901760
        %4393 = vmatprep.subr.mxu0 %v4392
        %v4394 = vand.u32 %v340, 4294901760
        %v4395 = vsub.f32 %v340, %v4394
        %v4396 = vand.u32 %v4395, 4294901760
        %v4397 = vsub.f32 %v4395, %v4396
        %v4398 = vand.u32 %v4397, 4294901760
        %4399 = vmatpush1.msra.mxu0 %v4398
        %v4400 = vand.u32 %v357, 4294901760
        %v4401 = vsub.f32 %v357, %v4400
        %v4402 = vand.u32 %v4401, 4294901760
        %v4403 = vsub.f32 %v4401, %v4402
        %v4404 = vand.u32 %v4403, 4294901760
        %4405 = vmatprep.subr.mxu0 %v4404
        %v4406 = vand.u32 %v356, 4294901760
        %v4407 = vsub.f32 %v356, %v4406
        %v4408 = vand.u32 %v4407, 4294901760
        %v4409 = vsub.f32 %v4407, %v4408
        %v4410 = vand.u32 %v4409, 4294901760
        %4411 = vmatpush1.msra.mxu0 %v4410
        %v4412 = vand.u32 %v373, 4294901760
        %v4413 = vsub.f32 %v373, %v4412
        %v4414 = vand.u32 %v4413, 4294901760
        %v4415 = vsub.f32 %v4413, %v4414
        %v4416 = vand.u32 %v4415, 4294901760
        %4417 = vmatprep.subr.mxu0 %v4416
        %v4418 = vand.u32 %v372, 4294901760
        %v4419 = vsub.f32 %v372, %v4418
        %v4420 = vand.u32 %v4419, 4294901760
        %v4421 = vsub.f32 %v4419, %v4420
        %v4422 = vand.u32 %v4421, 4294901760
        %4423 = vmatpush1.msra.mxu0 %v4422
        %v4424 = vand.u32 %v389, 4294901760
        %v4425 = vsub.f32 %v389, %v4424
        %v4426 = vand.u32 %v4425, 4294901760
        %v4427 = vsub.f32 %v4425, %v4426
        %v4428 = vand.u32 %v4427, 4294901760
        %4429 = vmatprep.subr.mxu0 %v4428
        %v4430 = vand.u32 %v388, 4294901760
        %v4431 = vsub.f32 %v388, %v4430
        %v4432 = vand.u32 %v4431, 4294901760
        %v4433 = vsub.f32 %v4431, %v4432
        %v4434 = vand.u32 %v4433, 4294901760
        %4435 = vmatpush1.msra.mxu0 %v4434
        %v4436 = vand.u32 %v405, 4294901760
        %v4437 = vsub.f32 %v405, %v4436
        %v4438 = vand.u32 %v4437, 4294901760
        %v4439 = vsub.f32 %v4437, %v4438
        %v4440 = vand.u32 %v4439, 4294901760
        %4441 = vmatprep.subr.mxu0 %v4440
        %v4442 = vand.u32 %v404, 4294901760
        %v4443 = vsub.f32 %v404, %v4442
        %v4444 = vand.u32 %v4443, 4294901760
        %v4445 = vsub.f32 %v4443, %v4444
        %v4446 = vand.u32 %v4445, 4294901760
        %4447 = vmatpush1.msra.mxu0 %v4446
        %v4448 = vand.u32 %v421, 4294901760
        %v4449 = vsub.f32 %v421, %v4448
        %v4450 = vand.u32 %v4449, 4294901760
        %v4451 = vsub.f32 %v4449, %v4450
        %v4452 = vand.u32 %v4451, 4294901760
        %4453 = vmatprep.subr.mxu0 %v4452
        %v4454 = vand.u32 %v420, 4294901760
        %v4455 = vsub.f32 %v420, %v4454
        %v4456 = vand.u32 %v4455, 4294901760
        %v4457 = vsub.f32 %v4455, %v4456
        %v4458 = vand.u32 %v4457, 4294901760
        %4459 = vmatpush1.msra.mxu0 %v4458
        %v4460 = vand.u32 %v437, 4294901760
        %v4461 = vsub.f32 %v437, %v4460
        %v4462 = vand.u32 %v4461, 4294901760
        %v4463 = vsub.f32 %v4461, %v4462
        %v4464 = vand.u32 %v4463, 4294901760
        %4465 = vmatprep.subr.mxu0 %v4464
        %v4466 = vand.u32 %v436, 4294901760
        %v4467 = vsub.f32 %v436, %v4466
        %v4468 = vand.u32 %v4467, 4294901760
        %v4469 = vsub.f32 %v4467, %v4468
        %v4470 = vand.u32 %v4469, 4294901760
        %4471 = vmatpush1.msra.mxu0 %v4470
        %v4472 = vand.u32 %v453, 4294901760
        %v4473 = vsub.f32 %v453, %v4472
        %v4474 = vand.u32 %v4473, 4294901760
        %v4475 = vsub.f32 %v4473, %v4474
        %v4476 = vand.u32 %v4475, 4294901760
        %4477 = vmatprep.subr.mxu0 %v4476
        %v4478 = vand.u32 %v452, 4294901760
        %v4479 = vsub.f32 %v452, %v4478
        %v4480 = vand.u32 %v4479, 4294901760
        %v4481 = vsub.f32 %v4479, %v4480
        %v4482 = vand.u32 %v4481, 4294901760
        %4483 = vmatpush1.msra.mxu0 %v4482
        %v4484 = vand.u32 %v469, 4294901760
        %v4485 = vsub.f32 %v469, %v4484
        %v4486 = vand.u32 %v4485, 4294901760
        %v4487 = vsub.f32 %v4485, %v4486
        %v4488 = vand.u32 %v4487, 4294901760
        %4489 = vmatprep.subr.mxu0 %v4488
        %v4490 = vand.u32 %v468, 4294901760
        %v4491 = vsub.f32 %v468, %v4490
        %v4492 = vand.u32 %v4491, 4294901760
        %v4493 = vsub.f32 %v4491, %v4492
        %v4494 = vand.u32 %v4493, 4294901760
        %4495 = vmatpush1.msra.mxu0 %v4494
        %v4496 = vand.u32 %v485, 4294901760
        %v4497 = vsub.f32 %v485, %v4496
        %v4498 = vand.u32 %v4497, 4294901760
        %v4499 = vsub.f32 %v4497, %v4498
        %v4500 = vand.u32 %v4499, 4294901760
        %4501 = vmatprep.subr.mxu0 %v4500
        %v4502 = vand.u32 %v484, 4294901760
        %v4503 = vsub.f32 %v484, %v4502
        %v4504 = vand.u32 %v4503, 4294901760
        %v4505 = vsub.f32 %v4503, %v4504
        %v4506 = vand.u32 %v4505, 4294901760
        %4507 = vmatpush1.msra.mxu0 %v4506
        %4508 = vmatprep.subr.mxu0 0.0
        %4509 = vmatpush1.msra.mxu0 0.0
        %4510 = vmatprep.subr.mxu0 0.0
        %4511 = vmatpush1.msra.mxu0 0.0
        %4512 = vmatprep.subr.mxu0 0.0
        %4513 = vmatpush1.msra.mxu0 0.0
        %4514 = vmatprep.subr.mxu0 0.0
        %4515 = vmatpush1.msra.mxu0 0.0
        %4516 = vmatprep.subr.mxu0 0.0
        %4517 = vmatpush1.msra.mxu0 0.0
        %4518 = vmatprep.subr.mxu0 0.0
        %4519 = vmatpush1.msra.mxu0 0.0
        %4520 = vmatprep.subr.mxu0 0.0
        %4521 = vmatpush1.msra.mxu0 0.0
        %4522 = vmatprep.subr.mxu0 0.0
        %4523 = vmatpush1.msra.mxu0 0.0
        %4524 = vmatprep.subr.mxu0 0.0
        %4525 = vmatpush1.msra.mxu0 0.0
        %4526 = vmatprep.subr.mxu0 0.0
        %4527 = vmatpush1.msra.mxu0 0.0
        %4528 = vmatprep.subr.mxu0 0.0
        %4529 = vmatpush1.msra.mxu0 0.0
        %4530 = vmatprep.subr.mxu0 0.0
        %4531 = vmatpush1.msra.mxu0 0.0
        %4532 = vmatprep.subr.mxu0 0.0
        %4533 = vmatpush1.msra.mxu0 0.0
        %4534 = vmatprep.subr.mxu0 0.0
        %4535 = vmatpush1.msra.mxu0 0.0
        %v4536 = vand.u32 %v493, 4294901760
        %4537 = vmatprep.mubr.f32.mxu0 %v4536
        %v4538 = vand.u32 %v202, 4294901760
        %4539 = vmatmul.mubr.f32.gmra.mrb[0].mxu0 %v4538
        %v4540 = vpop.f32.mrb[0].mxu0
        %v4541 = vadd.f32 %v4288, %v4540
        %v4542 = vpop.f32.mrb[0].mxu0
        %v4543 = vadd.f32 %v4290, %v4542
        %4544 = vdwg.mxu0
        %v4545 = vand.u32 %v213, 4294901760
        %v4546 = vsub.f32 %v213, %v4545
        %4547 = vmatprep.subr.mxu0 %v4546
        %v4548 = vand.u32 %v212, 4294901760
        %v4549 = vsub.f32 %v212, %v4548
        %4550 = vmatpush1.msra.mxu0 %v4549
        %v4551 = vand.u32 %v229, 4294901760
        %v4552 = vsub.f32 %v229, %v4551
        %4553 = vmatprep.subr.mxu0 %v4552
        %v4554 = vand.u32 %v228, 4294901760
        %v4555 = vsub.f32 %v228, %v4554
        %4556 = vmatpush1.msra.mxu0 %v4555
        %v4557 = vand.u32 %v245, 4294901760
        %v4558 = vsub.f32 %v245, %v4557
        %4559 = vmatprep.subr.mxu0 %v4558
        %v4560 = vand.u32 %v244, 4294901760
        %v4561 = vsub.f32 %v244, %v4560
        %4562 = vmatpush1.msra.mxu0 %v4561
        %v4563 = vand.u32 %v261, 4294901760
        %v4564 = vsub.f32 %v261, %v4563
        %4565 = vmatprep.subr.mxu0 %v4564
        %v4566 = vand.u32 %v260, 4294901760
        %v4567 = vsub.f32 %v260, %v4566
        %4568 = vmatpush1.msra.mxu0 %v4567
        %v4569 = vand.u32 %v277, 4294901760
        %v4570 = vsub.f32 %v277, %v4569
        %4571 = vmatprep.subr.mxu0 %v4570
        %v4572 = vand.u32 %v276, 4294901760
        %v4573 = vsub.f32 %v276, %v4572
        %4574 = vmatpush1.msra.mxu0 %v4573
        %v4575 = vand.u32 %v293, 4294901760
        %v4576 = vsub.f32 %v293, %v4575
        %4577 = vmatprep.subr.mxu0 %v4576
        %v4578 = vand.u32 %v292, 4294901760
        %v4579 = vsub.f32 %v292, %v4578
        %4580 = vmatpush1.msra.mxu0 %v4579
        %v4581 = vand.u32 %v309, 4294901760
        %v4582 = vsub.f32 %v309, %v4581
        %4583 = vmatprep.subr.mxu0 %v4582
        %v4584 = vand.u32 %v308, 4294901760
        %v4585 = vsub.f32 %v308, %v4584
        %4586 = vmatpush1.msra.mxu0 %v4585
        %v4587 = vand.u32 %v325, 4294901760
        %v4588 = vsub.f32 %v325, %v4587
        %4589 = vmatprep.subr.mxu0 %v4588
        %v4590 = vand.u32 %v324, 4294901760
        %v4591 = vsub.f32 %v324, %v4590
        %4592 = vmatpush1.msra.mxu0 %v4591
        %v4593 = vand.u32 %v341, 4294901760
        %v4594 = vsub.f32 %v341, %v4593
        %4595 = vmatprep.subr.mxu0 %v4594
        %v4596 = vand.u32 %v340, 4294901760
        %v4597 = vsub.f32 %v340, %v4596
        %4598 = vmatpush1.msra.mxu0 %v4597
        %v4599 = vand.u32 %v357, 4294901760
        %v4600 = vsub.f32 %v357, %v4599
        %4601 = vmatprep.subr.mxu0 %v4600
        %v4602 = vand.u32 %v356, 4294901760
        %v4603 = vsub.f32 %v356, %v4602
        %4604 = vmatpush1.msra.mxu0 %v4603
        %v4605 = vand.u32 %v373, 4294901760
        %v4606 = vsub.f32 %v373, %v4605
        %4607 = vmatprep.subr.mxu0 %v4606
        %v4608 = vand.u32 %v372, 4294901760
        %v4609 = vsub.f32 %v372, %v4608
        %4610 = vmatpush1.msra.mxu0 %v4609
        %v4611 = vand.u32 %v389, 4294901760
        %v4612 = vsub.f32 %v389, %v4611
        %4613 = vmatprep.subr.mxu0 %v4612
        %v4614 = vand.u32 %v388, 4294901760
        %v4615 = vsub.f32 %v388, %v4614
        %4616 = vmatpush1.msra.mxu0 %v4615
        %v4617 = vand.u32 %v405, 4294901760
        %v4618 = vsub.f32 %v405, %v4617
        %4619 = vmatprep.subr.mxu0 %v4618
        %v4620 = vand.u32 %v404, 4294901760
        %v4621 = vsub.f32 %v404, %v4620
        %4622 = vmatpush1.msra.mxu0 %v4621
        %v4623 = vand.u32 %v421, 4294901760
        %v4624 = vsub.f32 %v421, %v4623
        %4625 = vmatprep.subr.mxu0 %v4624
        %v4626 = vand.u32 %v420, 4294901760
        %v4627 = vsub.f32 %v420, %v4626
        %4628 = vmatpush1.msra.mxu0 %v4627
        %v4629 = vand.u32 %v437, 4294901760
        %v4630 = vsub.f32 %v437, %v4629
        %4631 = vmatprep.subr.mxu0 %v4630
        %v4632 = vand.u32 %v436, 4294901760
        %v4633 = vsub.f32 %v436, %v4632
        %4634 = vmatpush1.msra.mxu0 %v4633
        %v4635 = vand.u32 %v453, 4294901760
        %v4636 = vsub.f32 %v453, %v4635
        %4637 = vmatprep.subr.mxu0 %v4636
        %v4638 = vand.u32 %v452, 4294901760
        %v4639 = vsub.f32 %v452, %v4638
        %4640 = vmatpush1.msra.mxu0 %v4639
        %v4641 = vand.u32 %v469, 4294901760
        %v4642 = vsub.f32 %v469, %v4641
        %4643 = vmatprep.subr.mxu0 %v4642
        %v4644 = vand.u32 %v468, 4294901760
        %v4645 = vsub.f32 %v468, %v4644
        %4646 = vmatpush1.msra.mxu0 %v4645
        %v4647 = vand.u32 %v485, 4294901760
        %v4648 = vsub.f32 %v485, %v4647
        %4649 = vmatprep.subr.mxu0 %v4648
        %v4650 = vand.u32 %v484, 4294901760
        %v4651 = vsub.f32 %v484, %v4650
        %4652 = vmatpush1.msra.mxu0 %v4651
        %4653 = vmatprep.subr.mxu0 0.0
        %4654 = vmatpush1.msra.mxu0 0.0
        %4655 = vmatprep.subr.mxu0 0.0
        %4656 = vmatpush1.msra.mxu0 0.0
        %4657 = vmatprep.subr.mxu0 0.0
        %4658 = vmatpush1.msra.mxu0 0.0
        %4659 = vmatprep.subr.mxu0 0.0
        %4660 = vmatpush1.msra.mxu0 0.0
        %4661 = vmatprep.subr.mxu0 0.0
        %4662 = vmatpush1.msra.mxu0 0.0
        %4663 = vmatprep.subr.mxu0 0.0
        %4664 = vmatpush1.msra.mxu0 0.0
        %4665 = vmatprep.subr.mxu0 0.0
        %4666 = vmatpush1.msra.mxu0 0.0
        %4667 = vmatprep.subr.mxu0 0.0
        %4668 = vmatpush1.msra.mxu0 0.0
        %4669 = vmatprep.subr.mxu0 0.0
        %4670 = vmatpush1.msra.mxu0 0.0
        %4671 = vmatprep.subr.mxu0 0.0
        %4672 = vmatpush1.msra.mxu0 0.0
        %4673 = vmatprep.subr.mxu0 0.0
        %4674 = vmatpush1.msra.mxu0 0.0
        %4675 = vmatprep.subr.mxu0 0.0
        %4676 = vmatpush1.msra.mxu0 0.0
        %4677 = vmatprep.subr.mxu0 0.0
        %4678 = vmatpush1.msra.mxu0 0.0
        %4679 = vmatprep.subr.mxu0 0.0
        %4680 = vmatpush1.msra.mxu0 0.0
        %v4681 = vand.u32 %v493, 4294901760
        %v4682 = vsub.f32 %v493, %v4681
        %4683 = vmatprep.mubr.f32.mxu0 %v4682
        %v4684 = vand.u32 %v202, 4294901760
        %v4685 = vsub.f32 %v202, %v4684
        %4686 = vmatmul.mubr.f32.gmra.mrb[0].mxu0 %v4685
        %v4687 = vpop.f32.mrb[0].mxu0
        %v4688 = vadd.f32 %v4541, %v4687
        %v4689 = vpop.f32.mrb[0].mxu0
        %v4690 = vadd.f32 %v4543, %v4689
        %4691 = vdwg.mxu0
        %v4692 = vand.u32 %v213, 4294901760
        %4693 = vmatprep.subr.mxu0 %v4692
        %v4694 = vand.u32 %v212, 4294901760
        %4695 = vmatpush1.msra.mxu0 %v4694
        %v4696 = vand.u32 %v229, 4294901760
        %4697 = vmatprep.subr.mxu0 %v4696
        %v4698 = vand.u32 %v228, 4294901760
        %4699 = vmatpush1.msra.mxu0 %v4698
        %v4700 = vand.u32 %v245, 4294901760
        %4701 = vmatprep.subr.mxu0 %v4700
        %v4702 = vand.u32 %v244, 4294901760
        %4703 = vmatpush1.msra.mxu0 %v4702
        %v4704 = vand.u32 %v261, 4294901760
        %4705 = vmatprep.subr.mxu0 %v4704
        %v4706 = vand.u32 %v260, 4294901760
        %4707 = vmatpush1.msra.mxu0 %v4706
        %v4708 = vand.u32 %v277, 4294901760
        %4709 = vmatprep.subr.mxu0 %v4708
        %v4710 = vand.u32 %v276, 4294901760
        %4711 = vmatpush1.msra.mxu0 %v4710
        %v4712 = vand.u32 %v293, 4294901760
        %4713 = vmatprep.subr.mxu0 %v4712
        %v4714 = vand.u32 %v292, 4294901760
        %4715 = vmatpush1.msra.mxu0 %v4714
        %v4716 = vand.u32 %v309, 4294901760
        %4717 = vmatprep.subr.mxu0 %v4716
        %v4718 = vand.u32 %v308, 4294901760
        %4719 = vmatpush1.msra.mxu0 %v4718
        %v4720 = vand.u32 %v325, 4294901760
        %4721 = vmatprep.subr.mxu0 %v4720
        %v4722 = vand.u32 %v324, 4294901760
        %4723 = vmatpush1.msra.mxu0 %v4722
        %v4724 = vand.u32 %v341, 4294901760
        %4725 = vmatprep.subr.mxu0 %v4724
        %v4726 = vand.u32 %v340, 4294901760
        %4727 = vmatpush1.msra.mxu0 %v4726
        %v4728 = vand.u32 %v357, 4294901760
        %4729 = vmatprep.subr.mxu0 %v4728
        %v4730 = vand.u32 %v356, 4294901760
        %4731 = vmatpush1.msra.mxu0 %v4730
        %v4732 = vand.u32 %v373, 4294901760
        %4733 = vmatprep.subr.mxu0 %v4732
        %v4734 = vand.u32 %v372, 4294901760
        %4735 = vmatpush1.msra.mxu0 %v4734
        %v4736 = vand.u32 %v389, 4294901760
        %4737 = vmatprep.subr.mxu0 %v4736
        %v4738 = vand.u32 %v388, 4294901760
        %4739 = vmatpush1.msra.mxu0 %v4738
        %v4740 = vand.u32 %v405, 4294901760
        %4741 = vmatprep.subr.mxu0 %v4740
        %v4742 = vand.u32 %v404, 4294901760
        %4743 = vmatpush1.msra.mxu0 %v4742
        %v4744 = vand.u32 %v421, 4294901760
        %4745 = vmatprep.subr.mxu0 %v4744
        %v4746 = vand.u32 %v420, 4294901760
        %4747 = vmatpush1.msra.mxu0 %v4746
        %v4748 = vand.u32 %v437, 4294901760
        %4749 = vmatprep.subr.mxu0 %v4748
        %v4750 = vand.u32 %v436, 4294901760
        %4751 = vmatpush1.msra.mxu0 %v4750
        %v4752 = vand.u32 %v453, 4294901760
        %4753 = vmatprep.subr.mxu0 %v4752
        %v4754 = vand.u32 %v452, 4294901760
        %4755 = vmatpush1.msra.mxu0 %v4754
        %v4756 = vand.u32 %v469, 4294901760
        %4757 = vmatprep.subr.mxu0 %v4756
        %v4758 = vand.u32 %v468, 4294901760
        %4759 = vmatpush1.msra.mxu0 %v4758
        %v4760 = vand.u32 %v485, 4294901760
        %4761 = vmatprep.subr.mxu0 %v4760
        %v4762 = vand.u32 %v484, 4294901760
        %4763 = vmatpush1.msra.mxu0 %v4762
        %4764 = vmatprep.subr.mxu0 0.0
        %4765 = vmatpush1.msra.mxu0 0.0
        %4766 = vmatprep.subr.mxu0 0.0
        %4767 = vmatpush1.msra.mxu0 0.0
        %4768 = vmatprep.subr.mxu0 0.0
        %4769 = vmatpush1.msra.mxu0 0.0
        %4770 = vmatprep.subr.mxu0 0.0
        %4771 = vmatpush1.msra.mxu0 0.0
        %4772 = vmatprep.subr.mxu0 0.0
        %4773 = vmatpush1.msra.mxu0 0.0
        %4774 = vmatprep.subr.mxu0 0.0
        %4775 = vmatpush1.msra.mxu0 0.0
        %4776 = vmatprep.subr.mxu0 0.0
        %4777 = vmatpush1.msra.mxu0 0.0
        %4778 = vmatprep.subr.mxu0 0.0
        %4779 = vmatpush1.msra.mxu0 0.0
        %4780 = vmatprep.subr.mxu0 0.0
        %4781 = vmatpush1.msra.mxu0 0.0
        %4782 = vmatprep.subr.mxu0 0.0
        %4783 = vmatpush1.msra.mxu0 0.0
        %4784 = vmatprep.subr.mxu0 0.0
        %4785 = vmatpush1.msra.mxu0 0.0
        %4786 = vmatprep.subr.mxu0 0.0
        %4787 = vmatpush1.msra.mxu0 0.0
        %4788 = vmatprep.subr.mxu0 0.0
        %4789 = vmatpush1.msra.mxu0 0.0
        %4790 = vmatprep.subr.mxu0 0.0
        %4791 = vmatpush1.msra.mxu0 0.0
        %v4792 = vand.u32 %v493, 4294901760
        %v4793 = vsub.f32 %v493, %v4792
        %v4794 = vand.u32 %v4793, 4294901760
        %4795 = vmatprep.mubr.f32.mxu0 %v4794
        %v4796 = vand.u32 %v202, 4294901760
        %v4797 = vsub.f32 %v202, %v4796
        %v4798 = vand.u32 %v4797, 4294901760
        %4799 = vmatmul.mubr.f32.gmra.mrb[0].mxu0 %v4798
        %v4800 = vpop.f32.mrb[0].mxu0
        %v4801 = vadd.f32 %v4688, %v4800
        %v4802 = vpop.f32.mrb[0].mxu0
        %v4803 = vadd.f32 %v4690, %v4802
        %4804 = vdwg.mxu0
        %v4805 = vand.u32 %v213, 4294901760
        %v4806 = vsub.f32 %v213, %v4805
        %v4807 = vand.u32 %v4806, 4294901760
        %4808 = vmatprep.subr.mxu0 %v4807
        %v4809 = vand.u32 %v212, 4294901760
        %v4810 = vsub.f32 %v212, %v4809
        %v4811 = vand.u32 %v4810, 4294901760
        %4812 = vmatpush1.msra.mxu0 %v4811
        %v4813 = vand.u32 %v229, 4294901760
        %v4814 = vsub.f32 %v229, %v4813
        %v4815 = vand.u32 %v4814, 4294901760
        %4816 = vmatprep.subr.mxu0 %v4815
        %v4817 = vand.u32 %v228, 4294901760
        %v4818 = vsub.f32 %v228, %v4817
        %v4819 = vand.u32 %v4818, 4294901760
        %4820 = vmatpush1.msra.mxu0 %v4819
        %v4821 = vand.u32 %v245, 4294901760
        %v4822 = vsub.f32 %v245, %v4821
        %v4823 = vand.u32 %v4822, 4294901760
        %4824 = vmatprep.subr.mxu0 %v4823
        %v4825 = vand.u32 %v244, 4294901760
        %v4826 = vsub.f32 %v244, %v4825
        %v4827 = vand.u32 %v4826, 4294901760
        %4828 = vmatpush1.msra.mxu0 %v4827
        %v4829 = vand.u32 %v261, 4294901760
        %v4830 = vsub.f32 %v261, %v4829
        %v4831 = vand.u32 %v4830, 4294901760
        %4832 = vmatprep.subr.mxu0 %v4831
        %v4833 = vand.u32 %v260, 4294901760
        %v4834 = vsub.f32 %v260, %v4833
        %v4835 = vand.u32 %v4834, 4294901760
        %4836 = vmatpush1.msra.mxu0 %v4835
        %v4837 = vand.u32 %v277, 4294901760
        %v4838 = vsub.f32 %v277, %v4837
        %v4839 = vand.u32 %v4838, 4294901760
        %4840 = vmatprep.subr.mxu0 %v4839
        %v4841 = vand.u32 %v276, 4294901760
        %v4842 = vsub.f32 %v276, %v4841
        %v4843 = vand.u32 %v4842, 4294901760
        %4844 = vmatpush1.msra.mxu0 %v4843
        %v4845 = vand.u32 %v293, 4294901760
        %v4846 = vsub.f32 %v293, %v4845
        %v4847 = vand.u32 %v4846, 4294901760
        %4848 = vmatprep.subr.mxu0 %v4847
        %v4849 = vand.u32 %v292, 4294901760
        %v4850 = vsub.f32 %v292, %v4849
        %v4851 = vand.u32 %v4850, 4294901760
        %4852 = vmatpush1.msra.mxu0 %v4851
        %v4853 = vand.u32 %v309, 4294901760
        %v4854 = vsub.f32 %v309, %v4853
        %v4855 = vand.u32 %v4854, 4294901760
        %4856 = vmatprep.subr.mxu0 %v4855
        %v4857 = vand.u32 %v308, 4294901760
        %v4858 = vsub.f32 %v308, %v4857
        %v4859 = vand.u32 %v4858, 4294901760
        %4860 = vmatpush1.msra.mxu0 %v4859
        %v4861 = vand.u32 %v325, 4294901760
        %v4862 = vsub.f32 %v325, %v4861
        %v4863 = vand.u32 %v4862, 4294901760
        %4864 = vmatprep.subr.mxu0 %v4863
        %v4865 = vand.u32 %v324, 4294901760
        %v4866 = vsub.f32 %v324, %v4865
        %v4867 = vand.u32 %v4866, 4294901760
        %4868 = vmatpush1.msra.mxu0 %v4867
        %v4869 = vand.u32 %v341, 4294901760
        %v4870 = vsub.f32 %v341, %v4869
        %v4871 = vand.u32 %v4870, 4294901760
        %4872 = vmatprep.subr.mxu0 %v4871
        %v4873 = vand.u32 %v340, 4294901760
        %v4874 = vsub.f32 %v340, %v4873
        %v4875 = vand.u32 %v4874, 4294901760
        %4876 = vmatpush1.msra.mxu0 %v4875
        %v4877 = vand.u32 %v357, 4294901760
        %v4878 = vsub.f32 %v357, %v4877
        %v4879 = vand.u32 %v4878, 4294901760
        %4880 = vmatprep.subr.mxu0 %v4879
        %v4881 = vand.u32 %v356, 4294901760
        %v4882 = vsub.f32 %v356, %v4881
        %v4883 = vand.u32 %v4882, 4294901760
        %4884 = vmatpush1.msra.mxu0 %v4883
        %v4885 = vand.u32 %v373, 4294901760
        %v4886 = vsub.f32 %v373, %v4885
        %v4887 = vand.u32 %v4886, 4294901760
        %4888 = vmatprep.subr.mxu0 %v4887
        %v4889 = vand.u32 %v372, 4294901760
        %v4890 = vsub.f32 %v372, %v4889
        %v4891 = vand.u32 %v4890, 4294901760
        %4892 = vmatpush1.msra.mxu0 %v4891
        %v4893 = vand.u32 %v389, 4294901760
        %v4894 = vsub.f32 %v389, %v4893
        %v4895 = vand.u32 %v4894, 4294901760
        %4896 = vmatprep.subr.mxu0 %v4895
        %v4897 = vand.u32 %v388, 4294901760
        %v4898 = vsub.f32 %v388, %v4897
        %v4899 = vand.u32 %v4898, 4294901760
        %4900 = vmatpush1.msra.mxu0 %v4899
        %v4901 = vand.u32 %v405, 4294901760
        %v4902 = vsub.f32 %v405, %v4901
        %v4903 = vand.u32 %v4902, 4294901760
        %4904 = vmatprep.subr.mxu0 %v4903
        %v4905 = vand.u32 %v404, 4294901760
        %v4906 = vsub.f32 %v404, %v4905
        %v4907 = vand.u32 %v4906, 4294901760
        %4908 = vmatpush1.msra.mxu0 %v4907
        %v4909 = vand.u32 %v421, 4294901760
        %v4910 = vsub.f32 %v421, %v4909
        %v4911 = vand.u32 %v4910, 4294901760
        %4912 = vmatprep.subr.mxu0 %v4911
        %v4913 = vand.u32 %v420, 4294901760
        %v4914 = vsub.f32 %v420, %v4913
        %v4915 = vand.u32 %v4914, 4294901760
        %4916 = vmatpush1.msra.mxu0 %v4915
        %v4917 = vand.u32 %v437, 4294901760
        %v4918 = vsub.f32 %v437, %v4917
        %v4919 = vand.u32 %v4918, 4294901760
        %4920 = vmatprep.subr.mxu0 %v4919
        %v4921 = vand.u32 %v436, 4294901760
        %v4922 = vsub.f32 %v436, %v4921
        %v4923 = vand.u32 %v4922, 4294901760
        %4924 = vmatpush1.msra.mxu0 %v4923
        %v4925 = vand.u32 %v453, 4294901760
        %v4926 = vsub.f32 %v453, %v4925
        %v4927 = vand.u32 %v4926, 4294901760
        %4928 = vmatprep.subr.mxu0 %v4927
        %v4929 = vand.u32 %v452, 4294901760
        %v4930 = vsub.f32 %v452, %v4929
        %v4931 = vand.u32 %v4930, 4294901760
        %4932 = vmatpush1.msra.mxu0 %v4931
        %v4933 = vand.u32 %v469, 4294901760
        %v4934 = vsub.f32 %v469, %v4933
        %v4935 = vand.u32 %v4934, 4294901760
        %4936 = vmatprep.subr.mxu0 %v4935
        %v4937 = vand.u32 %v468, 4294901760
        %v4938 = vsub.f32 %v468, %v4937
        %v4939 = vand.u32 %v4938, 4294901760
        %4940 = vmatpush1.msra.mxu0 %v4939
        %v4941 = vand.u32 %v485, 4294901760
        %v4942 = vsub.f32 %v485, %v4941
        %v4943 = vand.u32 %v4942, 4294901760
        %4944 = vmatprep.subr.mxu0 %v4943
        %v4945 = vand.u32 %v484, 4294901760
        %v4946 = vsub.f32 %v484, %v4945
        %v4947 = vand.u32 %v4946, 4294901760
        %4948 = vmatpush1.msra.mxu0 %v4947
        %4949 = vmatprep.subr.mxu0 0.0
        %4950 = vmatpush1.msra.mxu0 0.0
        %4951 = vmatprep.subr.mxu0 0.0
        %4952 = vmatpush1.msra.mxu0 0.0
        %4953 = vmatprep.subr.mxu0 0.0
        %4954 = vmatpush1.msra.mxu0 0.0
        %4955 = vmatprep.subr.mxu0 0.0
        %4956 = vmatpush1.msra.mxu0 0.0
        %4957 = vmatprep.subr.mxu0 0.0
        %4958 = vmatpush1.msra.mxu0 0.0
        %4959 = vmatprep.subr.mxu0 0.0
        %4960 = vmatpush1.msra.mxu0 0.0
        %4961 = vmatprep.subr.mxu0 0.0
        %4962 = vmatpush1.msra.mxu0 0.0
        %4963 = vmatprep.subr.mxu0 0.0
        %4964 = vmatpush1.msra.mxu0 0.0
        %4965 = vmatprep.subr.mxu0 0.0
        %4966 = vmatpush1.msra.mxu0 0.0
        %4967 = vmatprep.subr.mxu0 0.0
        %4968 = vmatpush1.msra.mxu0 0.0
        %4969 = vmatprep.subr.mxu0 0.0
        %4970 = vmatpush1.msra.mxu0 0.0
        %4971 = vmatprep.subr.mxu0 0.0
        %4972 = vmatpush1.msra.mxu0 0.0
        %4973 = vmatprep.subr.mxu0 0.0
        %4974 = vmatpush1.msra.mxu0 0.0
        %4975 = vmatprep.subr.mxu0 0.0
        %4976 = vmatpush1.msra.mxu0 0.0
        %v4977 = vand.u32 %v493, 4294901760
        %4978 = vmatprep.mubr.f32.mxu0 %v4977
        %v4979 = vand.u32 %v202, 4294901760
        %4980 = vmatmul.mubr.f32.gmra.mrb[0].mxu0 %v4979
        %v4981 = vpop.f32.mrb[0].mxu0
        %v4982 = vadd.f32 %v4801, %v4981
        %v4983 = vpop.f32.mrb[0].mxu0
        %v4984 = vadd.f32 %v4803, %v4983
        %4985 = vdwg.mxu0
        %v4986 = vand.u32 %v213, 4294901760
        %4987 = vmatprep.subr.mxu0 %v4986
        %v4988 = vand.u32 %v212, 4294901760
        %4989 = vmatpush1.msra.mxu0 %v4988
        %v4990 = vand.u32 %v229, 4294901760
        %4991 = vmatprep.subr.mxu0 %v4990
        %v4992 = vand.u32 %v228, 4294901760
        %4993 = vmatpush1.msra.mxu0 %v4992
        %v4994 = vand.u32 %v245, 4294901760
        %4995 = vmatprep.subr.mxu0 %v4994
        %v4996 = vand.u32 %v244, 4294901760
        %4997 = vmatpush1.msra.mxu0 %v4996
        %v4998 = vand.u32 %v261, 4294901760
        %4999 = vmatprep.subr.mxu0 %v4998
        %v5000 = vand.u32 %v260, 4294901760
        %5001 = vmatpush1.msra.mxu0 %v5000
        %v5002 = vand.u32 %v277, 4294901760
        %5003 = vmatprep.subr.mxu0 %v5002
        %v5004 = vand.u32 %v276, 4294901760
        %5005 = vmatpush1.msra.mxu0 %v5004
        %v5006 = vand.u32 %v293, 4294901760
        %5007 = vmatprep.subr.mxu0 %v5006
        %v5008 = vand.u32 %v292, 4294901760
        %5009 = vmatpush1.msra.mxu0 %v5008
        %v5010 = vand.u32 %v309, 4294901760
        %5011 = vmatprep.subr.mxu0 %v5010
        %v5012 = vand.u32 %v308, 4294901760
        %5013 = vmatpush1.msra.mxu0 %v5012
        %v5014 = vand.u32 %v325, 4294901760
        %5015 = vmatprep.subr.mxu0 %v5014
        %v5016 = vand.u32 %v324, 4294901760
        %5017 = vmatpush1.msra.mxu0 %v5016
        %v5018 = vand.u32 %v341, 4294901760
        %5019 = vmatprep.subr.mxu0 %v5018
        %v5020 = vand.u32 %v340, 4294901760
        %5021 = vmatpush1.msra.mxu0 %v5020
        %v5022 = vand.u32 %v357, 4294901760
        %5023 = vmatprep.subr.mxu0 %v5022
        %v5024 = vand.u32 %v356, 4294901760
        %5025 = vmatpush1.msra.mxu0 %v5024
        %v5026 = vand.u32 %v373, 4294901760
        %5027 = vmatprep.subr.mxu0 %v5026
        %v5028 = vand.u32 %v372, 4294901760
        %5029 = vmatpush1.msra.mxu0 %v5028
        %v5030 = vand.u32 %v389, 4294901760
        %5031 = vmatprep.subr.mxu0 %v5030
        %v5032 = vand.u32 %v388, 4294901760
        %5033 = vmatpush1.msra.mxu0 %v5032
        %v5034 = vand.u32 %v405, 4294901760
        %5035 = vmatprep.subr.mxu0 %v5034
        %v5036 = vand.u32 %v404, 4294901760
        %5037 = vmatpush1.msra.mxu0 %v5036
        %v5038 = vand.u32 %v421, 4294901760
        %5039 = vmatprep.subr.mxu0 %v5038
        %v5040 = vand.u32 %v420, 4294901760
        %5041 = vmatpush1.msra.mxu0 %v5040
        %v5042 = vand.u32 %v437, 4294901760
        %5043 = vmatprep.subr.mxu0 %v5042
        %v5044 = vand.u32 %v436, 4294901760
        %5045 = vmatpush1.msra.mxu0 %v5044
        %v5046 = vand.u32 %v453, 4294901760
        %5047 = vmatprep.subr.mxu0 %v5046
        %v5048 = vand.u32 %v452, 4294901760
        %5049 = vmatpush1.msra.mxu0 %v5048
        %v5050 = vand.u32 %v469, 4294901760
        %5051 = vmatprep.subr.mxu0 %v5050
        %v5052 = vand.u32 %v468, 4294901760
        %5053 = vmatpush1.msra.mxu0 %v5052
        %v5054 = vand.u32 %v485, 4294901760
        %5055 = vmatprep.subr.mxu0 %v5054
        %v5056 = vand.u32 %v484, 4294901760
        %5057 = vmatpush1.msra.mxu0 %v5056
        %5058 = vmatprep.subr.mxu0 0.0
        %5059 = vmatpush1.msra.mxu0 0.0
        %5060 = vmatprep.subr.mxu0 0.0
        %5061 = vmatpush1.msra.mxu0 0.0
        %5062 = vmatprep.subr.mxu0 0.0
        %5063 = vmatpush1.msra.mxu0 0.0
        %5064 = vmatprep.subr.mxu0 0.0
        %5065 = vmatpush1.msra.mxu0 0.0
        %5066 = vmatprep.subr.mxu0 0.0
        %5067 = vmatpush1.msra.mxu0 0.0
        %5068 = vmatprep.subr.mxu0 0.0
        %5069 = vmatpush1.msra.mxu0 0.0
        %5070 = vmatprep.subr.mxu0 0.0
        %5071 = vmatpush1.msra.mxu0 0.0
        %5072 = vmatprep.subr.mxu0 0.0
        %5073 = vmatpush1.msra.mxu0 0.0
        %5074 = vmatprep.subr.mxu0 0.0
        %5075 = vmatpush1.msra.mxu0 0.0
        %5076 = vmatprep.subr.mxu0 0.0
        %5077 = vmatpush1.msra.mxu0 0.0
        %5078 = vmatprep.subr.mxu0 0.0
        %5079 = vmatpush1.msra.mxu0 0.0
        %5080 = vmatprep.subr.mxu0 0.0
        %5081 = vmatpush1.msra.mxu0 0.0
        %5082 = vmatprep.subr.mxu0 0.0
        %5083 = vmatpush1.msra.mxu0 0.0
        %5084 = vmatprep.subr.mxu0 0.0
        %5085 = vmatpush1.msra.mxu0 0.0
        %v5086 = vand.u32 %v493, 4294901760
        %5087 = vmatprep.mubr.f32.mxu0 %v5086
        %v5088 = vand.u32 %v202, 4294901760
        %5089 = vmatmul.mubr.f32.gmra.mrb[0].mxu0 %v5088
        %v5090 = vpop.f32.mrb[0].mxu0
        %v5091 = vadd.f32 %v4982, %v5090
        %v5092 = vpop.f32.mrb[0].mxu0
        %v5093 = vadd.f32 %v4984, %v5092
        %5094 = vdwg.mxu0
        %v5095 = vand.u32 %v215, 4294901760
        %5096 = vmatprep.subr.mxu0 %v5095
        %v5097 = vand.u32 %v214, 4294901760
        %5098 = vmatpush1.msra.mxu0 %v5097
        %v5099 = vand.u32 %v231, 4294901760
        %5100 = vmatprep.subr.mxu0 %v5099
        %v5101 = vand.u32 %v230, 4294901760
        %5102 = vmatpush1.msra.mxu0 %v5101
        %v5103 = vand.u32 %v247, 4294901760
        %5104 = vmatprep.subr.mxu0 %v5103
        %v5105 = vand.u32 %v246, 4294901760
        %5106 = vmatpush1.msra.mxu0 %v5105
        %v5107 = vand.u32 %v263, 4294901760
        %5108 = vmatprep.subr.mxu0 %v5107
        %v5109 = vand.u32 %v262, 4294901760
        %5110 = vmatpush1.msra.mxu0 %v5109
        %v5111 = vand.u32 %v279, 4294901760
        %5112 = vmatprep.subr.mxu0 %v5111
        %v5113 = vand.u32 %v278, 4294901760
        %5114 = vmatpush1.msra.mxu0 %v5113
        %v5115 = vand.u32 %v295, 4294901760
        %5116 = vmatprep.subr.mxu0 %v5115
        %v5117 = vand.u32 %v294, 4294901760
        %5118 = vmatpush1.msra.mxu0 %v5117
        %v5119 = vand.u32 %v311, 4294901760
        %5120 = vmatprep.subr.mxu0 %v5119
        %v5121 = vand.u32 %v310, 4294901760
        %5122 = vmatpush1.msra.mxu0 %v5121
        %v5123 = vand.u32 %v327, 4294901760
        %5124 = vmatprep.subr.mxu0 %v5123
        %v5125 = vand.u32 %v326, 4294901760
        %5126 = vmatpush1.msra.mxu0 %v5125
        %v5127 = vand.u32 %v343, 4294901760
        %5128 = vmatprep.subr.mxu0 %v5127
        %v5129 = vand.u32 %v342, 4294901760
        %5130 = vmatpush1.msra.mxu0 %v5129
        %v5131 = vand.u32 %v359, 4294901760
        %5132 = vmatprep.subr.mxu0 %v5131
        %v5133 = vand.u32 %v358, 4294901760
        %5134 = vmatpush1.msra.mxu0 %v5133
        %v5135 = vand.u32 %v375, 4294901760
        %5136 = vmatprep.subr.mxu0 %v5135
        %v5137 = vand.u32 %v374, 4294901760
        %5138 = vmatpush1.msra.mxu0 %v5137
        %v5139 = vand.u32 %v391, 4294901760
        %5140 = vmatprep.subr.mxu0 %v5139
        %v5141 = vand.u32 %v390, 4294901760
        %5142 = vmatpush1.msra.mxu0 %v5141
        %v5143 = vand.u32 %v407, 4294901760
        %5144 = vmatprep.subr.mxu0 %v5143
        %v5145 = vand.u32 %v406, 4294901760
        %5146 = vmatpush1.msra.mxu0 %v5145
        %v5147 = vand.u32 %v423, 4294901760
        %5148 = vmatprep.subr.mxu0 %v5147
        %v5149 = vand.u32 %v422, 4294901760
        %5150 = vmatpush1.msra.mxu0 %v5149
        %v5151 = vand.u32 %v439, 4294901760
        %5152 = vmatprep.subr.mxu0 %v5151
        %v5153 = vand.u32 %v438, 4294901760
        %5154 = vmatpush1.msra.mxu0 %v5153
        %v5155 = vand.u32 %v455, 4294901760
        %5156 = vmatprep.subr.mxu0 %v5155
        %v5157 = vand.u32 %v454, 4294901760
        %5158 = vmatpush1.msra.mxu0 %v5157
        %v5159 = vand.u32 %v471, 4294901760
        %5160 = vmatprep.subr.mxu0 %v5159
        %v5161 = vand.u32 %v470, 4294901760
        %5162 = vmatpush1.msra.mxu0 %v5161
        %v5163 = vand.u32 %v487, 4294901760
        %5164 = vmatprep.subr.mxu0 %v5163
        %v5165 = vand.u32 %v486, 4294901760
        %5166 = vmatpush1.msra.mxu0 %v5165
        %5167 = vmatprep.subr.mxu0 0.0
        %5168 = vmatpush1.msra.mxu0 0.0
        %5169 = vmatprep.subr.mxu0 0.0
        %5170 = vmatpush1.msra.mxu0 0.0
        %5171 = vmatprep.subr.mxu0 0.0
        %5172 = vmatpush1.msra.mxu0 0.0
        %5173 = vmatprep.subr.mxu0 0.0
        %5174 = vmatpush1.msra.mxu0 0.0
        %5175 = vmatprep.subr.mxu0 0.0
        %5176 = vmatpush1.msra.mxu0 0.0
        %5177 = vmatprep.subr.mxu0 0.0
        %5178 = vmatpush1.msra.mxu0 0.0
        %5179 = vmatprep.subr.mxu0 0.0
        %5180 = vmatpush1.msra.mxu0 0.0
        %5181 = vmatprep.subr.mxu0 0.0
        %5182 = vmatpush1.msra.mxu0 0.0
        %5183 = vmatprep.subr.mxu0 0.0
        %5184 = vmatpush1.msra.mxu0 0.0
        %5185 = vmatprep.subr.mxu0 0.0
        %5186 = vmatpush1.msra.mxu0 0.0
        %5187 = vmatprep.subr.mxu0 0.0
        %5188 = vmatpush1.msra.mxu0 0.0
        %5189 = vmatprep.subr.mxu0 0.0
        %5190 = vmatpush1.msra.mxu0 0.0
        %5191 = vmatprep.subr.mxu0 0.0
        %5192 = vmatpush1.msra.mxu0 0.0
        %5193 = vmatprep.subr.mxu0 0.0
        %5194 = vmatpush1.msra.mxu0 0.0
        %v5195 = vand.u32 %v493, 4294901760
        %v5196 = vsub.f32 %v493, %v5195
        %v5197 = vand.u32 %v5196, 4294901760
        %v5198 = vsub.f32 %v5196, %v5197
        %v5199 = vand.u32 %v5198, 4294901760
        %5200 = vmatprep.mubr.f32.mxu0 %v5199
        %v5201 = vand.u32 %v202, 4294901760
        %v5202 = vsub.f32 %v202, %v5201
        %v5203 = vand.u32 %v5202, 4294901760
        %v5204 = vsub.f32 %v5202, %v5203
        %v5205 = vand.u32 %v5204, 4294901760
        %5206 = vmatmul.mubr.f32.gmra.mrb[0].mxu0 %v5205
        %v5207 = vpop.f32.mrb[0].mxu0
        %v5208 = vadd.f32 0.0, %v5207
        %v5209 = vpop.f32.mrb[0].mxu0
        %v5210 = vadd.f32 0.0, %v5209
        %5211 = vdwg.mxu0
        %v5212 = vand.u32 %v215, 4294901760
        %v5213 = vsub.f32 %v215, %v5212
        %v5214 = vand.u32 %v5213, 4294901760
        %v5215 = vsub.f32 %v5213, %v5214
        %v5216 = vand.u32 %v5215, 4294901760
        %5217 = vmatprep.subr.mxu0 %v5216
        %v5218 = vand.u32 %v214, 4294901760
        %v5219 = vsub.f32 %v214, %v5218
        %v5220 = vand.u32 %v5219, 4294901760
        %v5221 = vsub.f32 %v5219, %v5220
        %v5222 = vand.u32 %v5221, 4294901760
        %5223 = vmatpush1.msra.mxu0 %v5222
        %v5224 = vand.u32 %v231, 4294901760
        %v5225 = vsub.f32 %v231, %v5224
        %v5226 = vand.u32 %v5225, 4294901760
        %v5227 = vsub.f32 %v5225, %v5226
        %v5228 = vand.u32 %v5227, 4294901760
        %5229 = vmatprep.subr.mxu0 %v5228
        %v5230 = vand.u32 %v230, 4294901760
        %v5231 = vsub.f32 %v230, %v5230
        %v5232 = vand.u32 %v5231, 4294901760
        %v5233 = vsub.f32 %v5231, %v5232
        %v5234 = vand.u32 %v5233, 4294901760
        %5235 = vmatpush1.msra.mxu0 %v5234
        %v5236 = vand.u32 %v247, 4294901760
        %v5237 = vsub.f32 %v247, %v5236
        %v5238 = vand.u32 %v5237, 4294901760
        %v5239 = vsub.f32 %v5237, %v5238
        %v5240 = vand.u32 %v5239, 4294901760
        %5241 = vmatprep.subr.mxu0 %v5240
        %v5242 = vand.u32 %v246, 4294901760
        %v5243 = vsub.f32 %v246, %v5242
        %v5244 = vand.u32 %v5243, 4294901760
        %v5245 = vsub.f32 %v5243, %v5244
        %v5246 = vand.u32 %v5245, 4294901760
        %5247 = vmatpush1.msra.mxu0 %v5246
        %v5248 = vand.u32 %v263, 4294901760
        %v5249 = vsub.f32 %v263, %v5248
        %v5250 = vand.u32 %v5249, 4294901760
        %v5251 = vsub.f32 %v5249, %v5250
        %v5252 = vand.u32 %v5251, 4294901760
        %5253 = vmatprep.subr.mxu0 %v5252
        %v5254 = vand.u32 %v262, 4294901760
        %v5255 = vsub.f32 %v262, %v5254
        %v5256 = vand.u32 %v5255, 4294901760
        %v5257 = vsub.f32 %v5255, %v5256
        %v5258 = vand.u32 %v5257, 4294901760
        %5259 = vmatpush1.msra.mxu0 %v5258
        %v5260 = vand.u32 %v279, 4294901760
        %v5261 = vsub.f32 %v279, %v5260
        %v5262 = vand.u32 %v5261, 4294901760
        %v5263 = vsub.f32 %v5261, %v5262
        %v5264 = vand.u32 %v5263, 4294901760
        %5265 = vmatprep.subr.mxu0 %v5264
        %v5266 = vand.u32 %v278, 4294901760
        %v5267 = vsub.f32 %v278, %v5266
        %v5268 = vand.u32 %v5267, 4294901760
        %v5269 = vsub.f32 %v5267, %v5268
        %v5270 = vand.u32 %v5269, 4294901760
        %5271 = vmatpush1.msra.mxu0 %v5270
        %v5272 = vand.u32 %v295, 4294901760
        %v5273 = vsub.f32 %v295, %v5272
        %v5274 = vand.u32 %v5273, 4294901760
        %v5275 = vsub.f32 %v5273, %v5274
        %v5276 = vand.u32 %v5275, 4294901760
        %5277 = vmatprep.subr.mxu0 %v5276
        %v5278 = vand.u32 %v294, 4294901760
        %v5279 = vsub.f32 %v294, %v5278
        %v5280 = vand.u32 %v5279, 4294901760
        %v5281 = vsub.f32 %v5279, %v5280
        %v5282 = vand.u32 %v5281, 4294901760
        %5283 = vmatpush1.msra.mxu0 %v5282
        %v5284 = vand.u32 %v311, 4294901760
        %v5285 = vsub.f32 %v311, %v5284
        %v5286 = vand.u32 %v5285, 4294901760
        %v5287 = vsub.f32 %v5285, %v5286
        %v5288 = vand.u32 %v5287, 4294901760
        %5289 = vmatprep.subr.mxu0 %v5288
        %v5290 = vand.u32 %v310, 4294901760
        %v5291 = vsub.f32 %v310, %v5290
        %v5292 = vand.u32 %v5291, 4294901760
        %v5293 = vsub.f32 %v5291, %v5292
        %v5294 = vand.u32 %v5293, 4294901760
        %5295 = vmatpush1.msra.mxu0 %v5294
        %v5296 = vand.u32 %v327, 4294901760
        %v5297 = vsub.f32 %v327, %v5296
        %v5298 = vand.u32 %v5297, 4294901760
        %v5299 = vsub.f32 %v5297, %v5298
        %v5300 = vand.u32 %v5299, 4294901760
        %5301 = vmatprep.subr.mxu0 %v5300
        %v5302 = vand.u32 %v326, 4294901760
        %v5303 = vsub.f32 %v326, %v5302
        %v5304 = vand.u32 %v5303, 4294901760
        %v5305 = vsub.f32 %v5303, %v5304
        %v5306 = vand.u32 %v5305, 4294901760
        %5307 = vmatpush1.msra.mxu0 %v5306
        %v5308 = vand.u32 %v343, 4294901760
        %v5309 = vsub.f32 %v343, %v5308
        %v5310 = vand.u32 %v5309, 4294901760
        %v5311 = vsub.f32 %v5309, %v5310
        %v5312 = vand.u32 %v5311, 4294901760
        %5313 = vmatprep.subr.mxu0 %v5312
        %v5314 = vand.u32 %v342, 4294901760
        %v5315 = vsub.f32 %v342, %v5314
        %v5316 = vand.u32 %v5315, 4294901760
        %v5317 = vsub.f32 %v5315, %v5316
        %v5318 = vand.u32 %v5317, 4294901760
        %5319 = vmatpush1.msra.mxu0 %v5318
        %v5320 = vand.u32 %v359, 4294901760
        %v5321 = vsub.f32 %v359, %v5320
        %v5322 = vand.u32 %v5321, 4294901760
        %v5323 = vsub.f32 %v5321, %v5322
        %v5324 = vand.u32 %v5323, 4294901760
        %5325 = vmatprep.subr.mxu0 %v5324
        %v5326 = vand.u32 %v358, 4294901760
        %v5327 = vsub.f32 %v358, %v5326
        %v5328 = vand.u32 %v5327, 4294901760
        %v5329 = vsub.f32 %v5327, %v5328
        %v5330 = vand.u32 %v5329, 4294901760
        %5331 = vmatpush1.msra.mxu0 %v5330
        %v5332 = vand.u32 %v375, 4294901760
        %v5333 = vsub.f32 %v375, %v5332
        %v5334 = vand.u32 %v5333, 4294901760
        %v5335 = vsub.f32 %v5333, %v5334
        %v5336 = vand.u32 %v5335, 4294901760
        %5337 = vmatprep.subr.mxu0 %v5336
        %v5338 = vand.u32 %v374, 4294901760
        %v5339 = vsub.f32 %v374, %v5338
        %v5340 = vand.u32 %v5339, 4294901760
        %v5341 = vsub.f32 %v5339, %v5340
        %v5342 = vand.u32 %v5341, 4294901760
        %5343 = vmatpush1.msra.mxu0 %v5342
        %v5344 = vand.u32 %v391, 4294901760
        %v5345 = vsub.f32 %v391, %v5344
        %v5346 = vand.u32 %v5345, 4294901760
        %v5347 = vsub.f32 %v5345, %v5346
        %v5348 = vand.u32 %v5347, 4294901760
        %5349 = vmatprep.subr.mxu0 %v5348
        %v5350 = vand.u32 %v390, 4294901760
        %v5351 = vsub.f32 %v390, %v5350
        %v5352 = vand.u32 %v5351, 4294901760
        %v5353 = vsub.f32 %v5351, %v5352
        %v5354 = vand.u32 %v5353, 4294901760
        %5355 = vmatpush1.msra.mxu0 %v5354
        %v5356 = vand.u32 %v407, 4294901760
        %v5357 = vsub.f32 %v407, %v5356
        %v5358 = vand.u32 %v5357, 4294901760
        %v5359 = vsub.f32 %v5357, %v5358
        %v5360 = vand.u32 %v5359, 4294901760
        %5361 = vmatprep.subr.mxu0 %v5360
        %v5362 = vand.u32 %v406, 4294901760
        %v5363 = vsub.f32 %v406, %v5362
        %v5364 = vand.u32 %v5363, 4294901760
        %v5365 = vsub.f32 %v5363, %v5364
        %v5366 = vand.u32 %v5365, 4294901760
        %5367 = vmatpush1.msra.mxu0 %v5366
        %v5368 = vand.u32 %v423, 4294901760
        %v5369 = vsub.f32 %v423, %v5368
        %v5370 = vand.u32 %v5369, 4294901760
        %v5371 = vsub.f32 %v5369, %v5370
        %v5372 = vand.u32 %v5371, 4294901760
        %5373 = vmatprep.subr.mxu0 %v5372
        %v5374 = vand.u32 %v422, 4294901760
        %v5375 = vsub.f32 %v422, %v5374
        %v5376 = vand.u32 %v5375, 4294901760
        %v5377 = vsub.f32 %v5375, %v5376
        %v5378 = vand.u32 %v5377, 4294901760
        %5379 = vmatpush1.msra.mxu0 %v5378
        %v5380 = vand.u32 %v439, 4294901760
        %v5381 = vsub.f32 %v439, %v5380
        %v5382 = vand.u32 %v5381, 4294901760
        %v5383 = vsub.f32 %v5381, %v5382
        %v5384 = vand.u32 %v5383, 4294901760
        %5385 = vmatprep.subr.mxu0 %v5384
        %v5386 = vand.u32 %v438, 4294901760
        %v5387 = vsub.f32 %v438, %v5386
        %v5388 = vand.u32 %v5387, 4294901760
        %v5389 = vsub.f32 %v5387, %v5388
        %v5390 = vand.u32 %v5389, 4294901760
        %5391 = vmatpush1.msra.mxu0 %v5390
        %v5392 = vand.u32 %v455, 4294901760
        %v5393 = vsub.f32 %v455, %v5392
        %v5394 = vand.u32 %v5393, 4294901760
        %v5395 = vsub.f32 %v5393, %v5394
        %v5396 = vand.u32 %v5395, 4294901760
        %5397 = vmatprep.subr.mxu0 %v5396
        %v5398 = vand.u32 %v454, 4294901760
        %v5399 = vsub.f32 %v454, %v5398
        %v5400 = vand.u32 %v5399, 4294901760
        %v5401 = vsub.f32 %v5399, %v5400
        %v5402 = vand.u32 %v5401, 4294901760
        %5403 = vmatpush1.msra.mxu0 %v5402
        %v5404 = vand.u32 %v471, 4294901760
        %v5405 = vsub.f32 %v471, %v5404
        %v5406 = vand.u32 %v5405, 4294901760
        %v5407 = vsub.f32 %v5405, %v5406
        %v5408 = vand.u32 %v5407, 4294901760
        %5409 = vmatprep.subr.mxu0 %v5408
        %v5410 = vand.u32 %v470, 4294901760
        %v5411 = vsub.f32 %v470, %v5410
        %v5412 = vand.u32 %v5411, 4294901760
        %v5413 = vsub.f32 %v5411, %v5412
        %v5414 = vand.u32 %v5413, 4294901760
        %5415 = vmatpush1.msra.mxu0 %v5414
        %v5416 = vand.u32 %v487, 4294901760
        %v5417 = vsub.f32 %v487, %v5416
        %v5418 = vand.u32 %v5417, 4294901760
        %v5419 = vsub.f32 %v5417, %v5418
        %v5420 = vand.u32 %v5419, 4294901760
        %5421 = vmatprep.subr.mxu0 %v5420
        %v5422 = vand.u32 %v486, 4294901760
        %v5423 = vsub.f32 %v486, %v5422
        %v5424 = vand.u32 %v5423, 4294901760
        %v5425 = vsub.f32 %v5423, %v5424
        %v5426 = vand.u32 %v5425, 4294901760
        %5427 = vmatpush1.msra.mxu0 %v5426
        %5428 = vmatprep.subr.mxu0 0.0
        %5429 = vmatpush1.msra.mxu0 0.0
        %5430 = vmatprep.subr.mxu0 0.0
        %5431 = vmatpush1.msra.mxu0 0.0
        %5432 = vmatprep.subr.mxu0 0.0
        %5433 = vmatpush1.msra.mxu0 0.0
        %5434 = vmatprep.subr.mxu0 0.0
        %5435 = vmatpush1.msra.mxu0 0.0
        %5436 = vmatprep.subr.mxu0 0.0
        %5437 = vmatpush1.msra.mxu0 0.0
        %5438 = vmatprep.subr.mxu0 0.0
        %5439 = vmatpush1.msra.mxu0 0.0
        %5440 = vmatprep.subr.mxu0 0.0
        %5441 = vmatpush1.msra.mxu0 0.0
        %5442 = vmatprep.subr.mxu0 0.0
        %5443 = vmatpush1.msra.mxu0 0.0
        %5444 = vmatprep.subr.mxu0 0.0
        %5445 = vmatpush1.msra.mxu0 0.0
        %5446 = vmatprep.subr.mxu0 0.0
        %5447 = vmatpush1.msra.mxu0 0.0
        %5448 = vmatprep.subr.mxu0 0.0
        %5449 = vmatpush1.msra.mxu0 0.0
        %5450 = vmatprep.subr.mxu0 0.0
        %5451 = vmatpush1.msra.mxu0 0.0
        %5452 = vmatprep.subr.mxu0 0.0
        %5453 = vmatpush1.msra.mxu0 0.0
        %5454 = vmatprep.subr.mxu0 0.0
        %5455 = vmatpush1.msra.mxu0 0.0
        %v5456 = vand.u32 %v493, 4294901760
        %5457 = vmatprep.mubr.f32.mxu0 %v5456
        %v5458 = vand.u32 %v202, 4294901760
        %5459 = vmatmul.mubr.f32.gmra.mrb[0].mxu0 %v5458
        %v5460 = vpop.f32.mrb[0].mxu0
        %v5461 = vadd.f32 %v5208, %v5460
        %v5462 = vpop.f32.mrb[0].mxu0
        %v5463 = vadd.f32 %v5210, %v5462
        %5464 = vdwg.mxu0
        %v5465 = vand.u32 %v215, 4294901760
        %v5466 = vsub.f32 %v215, %v5465
        %5467 = vmatprep.subr.mxu0 %v5466
        %v5468 = vand.u32 %v214, 4294901760
        %v5469 = vsub.f32 %v214, %v5468
        %5470 = vmatpush1.msra.mxu0 %v5469
        %v5471 = vand.u32 %v231, 4294901760
        %v5472 = vsub.f32 %v231, %v5471
        %5473 = vmatprep.subr.mxu0 %v5472
        %v5474 = vand.u32 %v230, 4294901760
        %v5475 = vsub.f32 %v230, %v5474
        %5476 = vmatpush1.msra.mxu0 %v5475
        %v5477 = vand.u32 %v247, 4294901760
        %v5478 = vsub.f32 %v247, %v5477
        %5479 = vmatprep.subr.mxu0 %v5478
        %v5480 = vand.u32 %v246, 4294901760
        %v5481 = vsub.f32 %v246, %v5480
        %5482 = vmatpush1.msra.mxu0 %v5481
        %v5483 = vand.u32 %v263, 4294901760
        %v5484 = vsub.f32 %v263, %v5483
        %5485 = vmatprep.subr.mxu0 %v5484
        %v5486 = vand.u32 %v262, 4294901760
        %v5487 = vsub.f32 %v262, %v5486
        %5488 = vmatpush1.msra.mxu0 %v5487
        %v5489 = vand.u32 %v279, 4294901760
        %v5490 = vsub.f32 %v279, %v5489
        %5491 = vmatprep.subr.mxu0 %v5490
        %v5492 = vand.u32 %v278, 4294901760
        %v5493 = vsub.f32 %v278, %v5492
        %5494 = vmatpush1.msra.mxu0 %v5493
        %v5495 = vand.u32 %v295, 4294901760
        %v5496 = vsub.f32 %v295, %v5495
        %5497 = vmatprep.subr.mxu0 %v5496
        %v5498 = vand.u32 %v294, 4294901760
        %v5499 = vsub.f32 %v294, %v5498
        %5500 = vmatpush1.msra.mxu0 %v5499
        %v5501 = vand.u32 %v311, 4294901760
        %v5502 = vsub.f32 %v311, %v5501
        %5503 = vmatprep.subr.mxu0 %v5502
        %v5504 = vand.u32 %v310, 4294901760
        %v5505 = vsub.f32 %v310, %v5504
        %5506 = vmatpush1.msra.mxu0 %v5505
        %v5507 = vand.u32 %v327, 4294901760
        %v5508 = vsub.f32 %v327, %v5507
        %5509 = vmatprep.subr.mxu0 %v5508
        %v5510 = vand.u32 %v326, 4294901760
        %v5511 = vsub.f32 %v326, %v5510
        %5512 = vmatpush1.msra.mxu0 %v5511
        %v5513 = vand.u32 %v343, 4294901760
        %v5514 = vsub.f32 %v343, %v5513
        %5515 = vmatprep.subr.mxu0 %v5514
        %v5516 = vand.u32 %v342, 4294901760
        %v5517 = vsub.f32 %v342, %v5516
        %5518 = vmatpush1.msra.mxu0 %v5517
        %v5519 = vand.u32 %v359, 4294901760
        %v5520 = vsub.f32 %v359, %v5519
        %5521 = vmatprep.subr.mxu0 %v5520
        %v5522 = vand.u32 %v358, 4294901760
        %v5523 = vsub.f32 %v358, %v5522
        %5524 = vmatpush1.msra.mxu0 %v5523
        %v5525 = vand.u32 %v375, 4294901760
        %v5526 = vsub.f32 %v375, %v5525
        %5527 = vmatprep.subr.mxu0 %v5526
        %v5528 = vand.u32 %v374, 4294901760
        %v5529 = vsub.f32 %v374, %v5528
        %5530 = vmatpush1.msra.mxu0 %v5529
        %v5531 = vand.u32 %v391, 4294901760
        %v5532 = vsub.f32 %v391, %v5531
        %5533 = vmatprep.subr.mxu0 %v5532
        %v5534 = vand.u32 %v390, 4294901760
        %v5535 = vsub.f32 %v390, %v5534
        %5536 = vmatpush1.msra.mxu0 %v5535
        %v5537 = vand.u32 %v407, 4294901760
        %v5538 = vsub.f32 %v407, %v5537
        %5539 = vmatprep.subr.mxu0 %v5538
        %v5540 = vand.u32 %v406, 4294901760
        %v5541 = vsub.f32 %v406, %v5540
        %5542 = vmatpush1.msra.mxu0 %v5541
        %v5543 = vand.u32 %v423, 4294901760
        %v5544 = vsub.f32 %v423, %v5543
        %5545 = vmatprep.subr.mxu0 %v5544
        %v5546 = vand.u32 %v422, 4294901760
        %v5547 = vsub.f32 %v422, %v5546
        %5548 = vmatpush1.msra.mxu0 %v5547
        %v5549 = vand.u32 %v439, 4294901760
        %v5550 = vsub.f32 %v439, %v5549
        %5551 = vmatprep.subr.mxu0 %v5550
        %v5552 = vand.u32 %v438, 4294901760
        %v5553 = vsub.f32 %v438, %v5552
        %5554 = vmatpush1.msra.mxu0 %v5553
        %v5555 = vand.u32 %v455, 4294901760
        %v5556 = vsub.f32 %v455, %v5555
        %5557 = vmatprep.subr.mxu0 %v5556
        %v5558 = vand.u32 %v454, 4294901760
        %v5559 = vsub.f32 %v454, %v5558
        %5560 = vmatpush1.msra.mxu0 %v5559
        %v5561 = vand.u32 %v471, 4294901760
        %v5562 = vsub.f32 %v471, %v5561
        %5563 = vmatprep.subr.mxu0 %v5562
        %v5564 = vand.u32 %v470, 4294901760
        %v5565 = vsub.f32 %v470, %v5564
        %5566 = vmatpush1.msra.mxu0 %v5565
        %v5567 = vand.u32 %v487, 4294901760
        %v5568 = vsub.f32 %v487, %v5567
        %5569 = vmatprep.subr.mxu0 %v5568
        %v5570 = vand.u32 %v486, 4294901760
        %v5571 = vsub.f32 %v486, %v5570
        %5572 = vmatpush1.msra.mxu0 %v5571
        %5573 = vmatprep.subr.mxu0 0.0
        %5574 = vmatpush1.msra.mxu0 0.0
        %5575 = vmatprep.subr.mxu0 0.0
        %5576 = vmatpush1.msra.mxu0 0.0
        %5577 = vmatprep.subr.mxu0 0.0
        %5578 = vmatpush1.msra.mxu0 0.0
        %5579 = vmatprep.subr.mxu0 0.0
        %5580 = vmatpush1.msra.mxu0 0.0
        %5581 = vmatprep.subr.mxu0 0.0
        %5582 = vmatpush1.msra.mxu0 0.0
        %5583 = vmatprep.subr.mxu0 0.0
        %5584 = vmatpush1.msra.mxu0 0.0
        %5585 = vmatprep.subr.mxu0 0.0
        %5586 = vmatpush1.msra.mxu0 0.0
        %5587 = vmatprep.subr.mxu0 0.0
        %5588 = vmatpush1.msra.mxu0 0.0
        %5589 = vmatprep.subr.mxu0 0.0
        %5590 = vmatpush1.msra.mxu0 0.0
        %5591 = vmatprep.subr.mxu0 0.0
        %5592 = vmatpush1.msra.mxu0 0.0
        %5593 = vmatprep.subr.mxu0 0.0
        %5594 = vmatpush1.msra.mxu0 0.0
        %5595 = vmatprep.subr.mxu0 0.0
        %5596 = vmatpush1.msra.mxu0 0.0
        %5597 = vmatprep.subr.mxu0 0.0
        %5598 = vmatpush1.msra.mxu0 0.0
        %5599 = vmatprep.subr.mxu0 0.0
        %5600 = vmatpush1.msra.mxu0 0.0
        %v5601 = vand.u32 %v493, 4294901760
        %v5602 = vsub.f32 %v493, %v5601
        %5603 = vmatprep.mubr.f32.mxu0 %v5602
        %v5604 = vand.u32 %v202, 4294901760
        %v5605 = vsub.f32 %v202, %v5604
        %5606 = vmatmul.mubr.f32.gmra.mrb[0].mxu0 %v5605
        %v5607 = vpop.f32.mrb[0].mxu0
        %v5608 = vadd.f32 %v5461, %v5607
        %v5609 = vpop.f32.mrb[0].mxu0
        %v5610 = vadd.f32 %v5463, %v5609
        %5611 = vdwg.mxu0
        %v5612 = vand.u32 %v215, 4294901760
        %5613 = vmatprep.subr.mxu0 %v5612
        %v5614 = vand.u32 %v214, 4294901760
        %5615 = vmatpush1.msra.mxu0 %v5614
        %v5616 = vand.u32 %v231, 4294901760
        %5617 = vmatprep.subr.mxu0 %v5616
        %v5618 = vand.u32 %v230, 4294901760
        %5619 = vmatpush1.msra.mxu0 %v5618
        %v5620 = vand.u32 %v247, 4294901760
        %5621 = vmatprep.subr.mxu0 %v5620
        %v5622 = vand.u32 %v246, 4294901760
        %5623 = vmatpush1.msra.mxu0 %v5622
        %v5624 = vand.u32 %v263, 4294901760
        %5625 = vmatprep.subr.mxu0 %v5624
        %v5626 = vand.u32 %v262, 4294901760
        %5627 = vmatpush1.msra.mxu0 %v5626
        %v5628 = vand.u32 %v279, 4294901760
        %5629 = vmatprep.subr.mxu0 %v5628
        %v5630 = vand.u32 %v278, 4294901760
        %5631 = vmatpush1.msra.mxu0 %v5630
        %v5632 = vand.u32 %v295, 4294901760
        %5633 = vmatprep.subr.mxu0 %v5632
        %v5634 = vand.u32 %v294, 4294901760
        %5635 = vmatpush1.msra.mxu0 %v5634
        %v5636 = vand.u32 %v311, 4294901760
        %5637 = vmatprep.subr.mxu0 %v5636
        %v5638 = vand.u32 %v310, 4294901760
        %5639 = vmatpush1.msra.mxu0 %v5638
        %v5640 = vand.u32 %v327, 4294901760
        %5641 = vmatprep.subr.mxu0 %v5640
        %v5642 = vand.u32 %v326, 4294901760
        %5643 = vmatpush1.msra.mxu0 %v5642
        %v5644 = vand.u32 %v343, 4294901760
        %5645 = vmatprep.subr.mxu0 %v5644
        %v5646 = vand.u32 %v342, 4294901760
        %5647 = vmatpush1.msra.mxu0 %v5646
        %v5648 = vand.u32 %v359, 4294901760
        %5649 = vmatprep.subr.mxu0 %v5648
        %v5650 = vand.u32 %v358, 4294901760
        %5651 = vmatpush1.msra.mxu0 %v5650
        %v5652 = vand.u32 %v375, 4294901760
        %5653 = vmatprep.subr.mxu0 %v5652
        %v5654 = vand.u32 %v374, 4294901760
        %5655 = vmatpush1.msra.mxu0 %v5654
        %v5656 = vand.u32 %v391, 4294901760
        %5657 = vmatprep.subr.mxu0 %v5656
        %v5658 = vand.u32 %v390, 4294901760
        %5659 = vmatpush1.msra.mxu0 %v5658
        %v5660 = vand.u32 %v407, 4294901760
        %5661 = vmatprep.subr.mxu0 %v5660
        %v5662 = vand.u32 %v406, 4294901760
        %5663 = vmatpush1.msra.mxu0 %v5662
        %v5664 = vand.u32 %v423, 4294901760
        %5665 = vmatprep.subr.mxu0 %v5664
        %v5666 = vand.u32 %v422, 4294901760
        %5667 = vmatpush1.msra.mxu0 %v5666
        %v5668 = vand.u32 %v439, 4294901760
        %5669 = vmatprep.subr.mxu0 %v5668
        %v5670 = vand.u32 %v438, 4294901760
        %5671 = vmatpush1.msra.mxu0 %v5670
        %v5672 = vand.u32 %v455, 4294901760
        %5673 = vmatprep.subr.mxu0 %v5672
        %v5674 = vand.u32 %v454, 4294901760
        %5675 = vmatpush1.msra.mxu0 %v5674
        %v5676 = vand.u32 %v471, 4294901760
        %5677 = vmatprep.subr.mxu0 %v5676
        %v5678 = vand.u32 %v470, 4294901760
        %5679 = vmatpush1.msra.mxu0 %v5678
        %v5680 = vand.u32 %v487, 4294901760
        %5681 = vmatprep.subr.mxu0 %v5680
        %v5682 = vand.u32 %v486, 4294901760
        %5683 = vmatpush1.msra.mxu0 %v5682
        %5684 = vmatprep.subr.mxu0 0.0
        %5685 = vmatpush1.msra.mxu0 0.0
        %5686 = vmatprep.subr.mxu0 0.0
        %5687 = vmatpush1.msra.mxu0 0.0
        %5688 = vmatprep.subr.mxu0 0.0
        %5689 = vmatpush1.msra.mxu0 0.0
        %5690 = vmatprep.subr.mxu0 0.0
        %5691 = vmatpush1.msra.mxu0 0.0
        %5692 = vmatprep.subr.mxu0 0.0
        %5693 = vmatpush1.msra.mxu0 0.0
        %5694 = vmatprep.subr.mxu0 0.0
        %5695 = vmatpush1.msra.mxu0 0.0
        %5696 = vmatprep.subr.mxu0 0.0
        %5697 = vmatpush1.msra.mxu0 0.0
        %5698 = vmatprep.subr.mxu0 0.0
        %5699 = vmatpush1.msra.mxu0 0.0
        %5700 = vmatprep.subr.mxu0 0.0
        %5701 = vmatpush1.msra.mxu0 0.0
        %5702 = vmatprep.subr.mxu0 0.0
        %5703 = vmatpush1.msra.mxu0 0.0
        %5704 = vmatprep.subr.mxu0 0.0
        %5705 = vmatpush1.msra.mxu0 0.0
        %5706 = vmatprep.subr.mxu0 0.0
        %5707 = vmatpush1.msra.mxu0 0.0
        %5708 = vmatprep.subr.mxu0 0.0
        %5709 = vmatpush1.msra.mxu0 0.0
        %5710 = vmatprep.subr.mxu0 0.0
        %5711 = vmatpush1.msra.mxu0 0.0
        %v5712 = vand.u32 %v493, 4294901760
        %v5713 = vsub.f32 %v493, %v5712
        %v5714 = vand.u32 %v5713, 4294901760
        %5715 = vmatprep.mubr.f32.mxu0 %v5714
        %v5716 = vand.u32 %v202, 4294901760
        %v5717 = vsub.f32 %v202, %v5716
        %v5718 = vand.u32 %v5717, 4294901760
        %5719 = vmatmul.mubr.f32.gmra.mrb[0].mxu0 %v5718
        %v5720 = vpop.f32.mrb[0].mxu0
        %v5721 = vadd.f32 %v5608, %v5720
        %v5722 = vpop.f32.mrb[0].mxu0
        %v5723 = vadd.f32 %v5610, %v5722
        %5724 = vdwg.mxu0
        %v5725 = vand.u32 %v215, 4294901760
        %v5726 = vsub.f32 %v215, %v5725
        %v5727 = vand.u32 %v5726, 4294901760
        %5728 = vmatprep.subr.mxu0 %v5727
        %v5729 = vand.u32 %v214, 4294901760
        %v5730 = vsub.f32 %v214, %v5729
        %v5731 = vand.u32 %v5730, 4294901760
        %5732 = vmatpush1.msra.mxu0 %v5731
        %v5733 = vand.u32 %v231, 4294901760
        %v5734 = vsub.f32 %v231, %v5733
        %v5735 = vand.u32 %v5734, 4294901760
        %5736 = vmatprep.subr.mxu0 %v5735
        %v5737 = vand.u32 %v230, 4294901760
        %v5738 = vsub.f32 %v230, %v5737
        %v5739 = vand.u32 %v5738, 4294901760
        %5740 = vmatpush1.msra.mxu0 %v5739
        %v5741 = vand.u32 %v247, 4294901760
        %v5742 = vsub.f32 %v247, %v5741
        %v5743 = vand.u32 %v5742, 4294901760
        %5744 = vmatprep.subr.mxu0 %v5743
        %v5745 = vand.u32 %v246, 4294901760
        %v5746 = vsub.f32 %v246, %v5745
        %v5747 = vand.u32 %v5746, 4294901760
        %5748 = vmatpush1.msra.mxu0 %v5747
        %v5749 = vand.u32 %v263, 4294901760
        %v5750 = vsub.f32 %v263, %v5749
        %v5751 = vand.u32 %v5750, 4294901760
        %5752 = vmatprep.subr.mxu0 %v5751
        %v5753 = vand.u32 %v262, 4294901760
        %v5754 = vsub.f32 %v262, %v5753
        %v5755 = vand.u32 %v5754, 4294901760
        %5756 = vmatpush1.msra.mxu0 %v5755
        %v5757 = vand.u32 %v279, 4294901760
        %v5758 = vsub.f32 %v279, %v5757
        %v5759 = vand.u32 %v5758, 4294901760
        %5760 = vmatprep.subr.mxu0 %v5759
        %v5761 = vand.u32 %v278, 4294901760
        %v5762 = vsub.f32 %v278, %v5761
        %v5763 = vand.u32 %v5762, 4294901760
        %5764 = vmatpush1.msra.mxu0 %v5763
        %v5765 = vand.u32 %v295, 4294901760
        %v5766 = vsub.f32 %v295, %v5765
        %v5767 = vand.u32 %v5766, 4294901760
        %5768 = vmatprep.subr.mxu0 %v5767
        %v5769 = vand.u32 %v294, 4294901760
        %v5770 = vsub.f32 %v294, %v5769
        %v5771 = vand.u32 %v5770, 4294901760
        %5772 = vmatpush1.msra.mxu0 %v5771
        %v5773 = vand.u32 %v311, 4294901760
        %v5774 = vsub.f32 %v311, %v5773
        %v5775 = vand.u32 %v5774, 4294901760
        %5776 = vmatprep.subr.mxu0 %v5775
        %v5777 = vand.u32 %v310, 4294901760
        %v5778 = vsub.f32 %v310, %v5777
        %v5779 = vand.u32 %v5778, 4294901760
        %5780 = vmatpush1.msra.mxu0 %v5779
        %v5781 = vand.u32 %v327, 4294901760
        %v5782 = vsub.f32 %v327, %v5781
        %v5783 = vand.u32 %v5782, 4294901760
        %5784 = vmatprep.subr.mxu0 %v5783
        %v5785 = vand.u32 %v326, 4294901760
        %v5786 = vsub.f32 %v326, %v5785
        %v5787 = vand.u32 %v5786, 4294901760
        %5788 = vmatpush1.msra.mxu0 %v5787
        %v5789 = vand.u32 %v343, 4294901760
        %v5790 = vsub.f32 %v343, %v5789
        %v5791 = vand.u32 %v5790, 4294901760
        %5792 = vmatprep.subr.mxu0 %v5791
        %v5793 = vand.u32 %v342, 4294901760
        %v5794 = vsub.f32 %v342, %v5793
        %v5795 = vand.u32 %v5794, 4294901760
        %5796 = vmatpush1.msra.mxu0 %v5795
        %v5797 = vand.u32 %v359, 4294901760
        %v5798 = vsub.f32 %v359, %v5797
        %v5799 = vand.u32 %v5798, 4294901760
        %5800 = vmatprep.subr.mxu0 %v5799
        %v5801 = vand.u32 %v358, 4294901760
        %v5802 = vsub.f32 %v358, %v5801
        %v5803 = vand.u32 %v5802, 4294901760
        %5804 = vmatpush1.msra.mxu0 %v5803
        %v5805 = vand.u32 %v375, 4294901760
        %v5806 = vsub.f32 %v375, %v5805
        %v5807 = vand.u32 %v5806, 4294901760
        %5808 = vmatprep.subr.mxu0 %v5807
        %v5809 = vand.u32 %v374, 4294901760
        %v5810 = vsub.f32 %v374, %v5809
        %v5811 = vand.u32 %v5810, 4294901760
        %5812 = vmatpush1.msra.mxu0 %v5811
        %v5813 = vand.u32 %v391, 4294901760
        %v5814 = vsub.f32 %v391, %v5813
        %v5815 = vand.u32 %v5814, 4294901760
        %5816 = vmatprep.subr.mxu0 %v5815
        %v5817 = vand.u32 %v390, 4294901760
        %v5818 = vsub.f32 %v390, %v5817
        %v5819 = vand.u32 %v5818, 4294901760
        %5820 = vmatpush1.msra.mxu0 %v5819
        %v5821 = vand.u32 %v407, 4294901760
        %v5822 = vsub.f32 %v407, %v5821
        %v5823 = vand.u32 %v5822, 4294901760
        %5824 = vmatprep.subr.mxu0 %v5823
        %v5825 = vand.u32 %v406, 4294901760
        %v5826 = vsub.f32 %v406, %v5825
        %v5827 = vand.u32 %v5826, 4294901760
        %5828 = vmatpush1.msra.mxu0 %v5827
        %v5829 = vand.u32 %v423, 4294901760
        %v5830 = vsub.f32 %v423, %v5829
        %v5831 = vand.u32 %v5830, 4294901760
        %5832 = vmatprep.subr.mxu0 %v5831
        %v5833 = vand.u32 %v422, 4294901760
        %v5834 = vsub.f32 %v422, %v5833
        %v5835 = vand.u32 %v5834, 4294901760
        %5836 = vmatpush1.msra.mxu0 %v5835
        %v5837 = vand.u32 %v439, 4294901760
        %v5838 = vsub.f32 %v439, %v5837
        %v5839 = vand.u32 %v5838, 4294901760
        %5840 = vmatprep.subr.mxu0 %v5839
        %v5841 = vand.u32 %v438, 4294901760
        %v5842 = vsub.f32 %v438, %v5841
        %v5843 = vand.u32 %v5842, 4294901760
        %5844 = vmatpush1.msra.mxu0 %v5843
        %v5845 = vand.u32 %v455, 4294901760
        %v5846 = vsub.f32 %v455, %v5845
        %v5847 = vand.u32 %v5846, 4294901760
        %5848 = vmatprep.subr.mxu0 %v5847
        %v5849 = vand.u32 %v454, 4294901760
        %v5850 = vsub.f32 %v454, %v5849
        %v5851 = vand.u32 %v5850, 4294901760
        %5852 = vmatpush1.msra.mxu0 %v5851
        %v5853 = vand.u32 %v471, 4294901760
        %v5854 = vsub.f32 %v471, %v5853
        %v5855 = vand.u32 %v5854, 4294901760
        %5856 = vmatprep.subr.mxu0 %v5855
        %v5857 = vand.u32 %v470, 4294901760
        %v5858 = vsub.f32 %v470, %v5857
        %v5859 = vand.u32 %v5858, 4294901760
        %5860 = vmatpush1.msra.mxu0 %v5859
        %v5861 = vand.u32 %v487, 4294901760
        %v5862 = vsub.f32 %v487, %v5861
        %v5863 = vand.u32 %v5862, 4294901760
        %5864 = vmatprep.subr.mxu0 %v5863
        %v5865 = vand.u32 %v486, 4294901760
        %v5866 = vsub.f32 %v486, %v5865
        %v5867 = vand.u32 %v5866, 4294901760
        %5868 = vmatpush1.msra.mxu0 %v5867
        %5869 = vmatprep.subr.mxu0 0.0
        %5870 = vmatpush1.msra.mxu0 0.0
        %5871 = vmatprep.subr.mxu0 0.0
        %5872 = vmatpush1.msra.mxu0 0.0
        %5873 = vmatprep.subr.mxu0 0.0
        %5874 = vmatpush1.msra.mxu0 0.0
        %5875 = vmatprep.subr.mxu0 0.0
        %5876 = vmatpush1.msra.mxu0 0.0
        %5877 = vmatprep.subr.mxu0 0.0
        %5878 = vmatpush1.msra.mxu0 0.0
        %5879 = vmatprep.subr.mxu0 0.0
        %5880 = vmatpush1.msra.mxu0 0.0
        %5881 = vmatprep.subr.mxu0 0.0
        %5882 = vmatpush1.msra.mxu0 0.0
        %5883 = vmatprep.subr.mxu0 0.0
        %5884 = vmatpush1.msra.mxu0 0.0
        %5885 = vmatprep.subr.mxu0 0.0
        %5886 = vmatpush1.msra.mxu0 0.0
        %5887 = vmatprep.subr.mxu0 0.0
        %5888 = vmatpush1.msra.mxu0 0.0
        %5889 = vmatprep.subr.mxu0 0.0
        %5890 = vmatpush1.msra.mxu0 0.0
        %5891 = vmatprep.subr.mxu0 0.0
        %5892 = vmatpush1.msra.mxu0 0.0
        %5893 = vmatprep.subr.mxu0 0.0
        %5894 = vmatpush1.msra.mxu0 0.0
        %5895 = vmatprep.subr.mxu0 0.0
        %5896 = vmatpush1.msra.mxu0 0.0
        %v5897 = vand.u32 %v493, 4294901760
        %5898 = vmatprep.mubr.f32.mxu0 %v5897
        %v5899 = vand.u32 %v202, 4294901760
        %5900 = vmatmul.mubr.f32.gmra.mrb[0].mxu0 %v5899
        %v5901 = vpop.f32.mrb[0].mxu0
        %v5902 = vadd.f32 %v5721, %v5901
        %v5903 = vpop.f32.mrb[0].mxu0
        %v5904 = vadd.f32 %v5723, %v5903
        %5905 = vdwg.mxu0
        %v5906 = vand.u32 %v215, 4294901760
        %5907 = vmatprep.subr.mxu0 %v5906
        %v5908 = vand.u32 %v214, 4294901760
        %5909 = vmatpush1.msra.mxu0 %v5908
        %v5910 = vand.u32 %v231, 4294901760
        %5911 = vmatprep.subr.mxu0 %v5910
        %v5912 = vand.u32 %v230, 4294901760
        %5913 = vmatpush1.msra.mxu0 %v5912
        %v5914 = vand.u32 %v247, 4294901760
        %5915 = vmatprep.subr.mxu0 %v5914
        %v5916 = vand.u32 %v246, 4294901760
        %5917 = vmatpush1.msra.mxu0 %v5916
        %v5918 = vand.u32 %v263, 4294901760
        %5919 = vmatprep.subr.mxu0 %v5918
        %v5920 = vand.u32 %v262, 4294901760
        %5921 = vmatpush1.msra.mxu0 %v5920
        %v5922 = vand.u32 %v279, 4294901760
        %5923 = vmatprep.subr.mxu0 %v5922
        %v5924 = vand.u32 %v278, 4294901760
        %5925 = vmatpush1.msra.mxu0 %v5924
        %v5926 = vand.u32 %v295, 4294901760
        %5927 = vmatprep.subr.mxu0 %v5926
        %v5928 = vand.u32 %v294, 4294901760
        %5929 = vmatpush1.msra.mxu0 %v5928
        %v5930 = vand.u32 %v311, 4294901760
        %5931 = vmatprep.subr.mxu0 %v5930
        %v5932 = vand.u32 %v310, 4294901760
        %5933 = vmatpush1.msra.mxu0 %v5932
        %v5934 = vand.u32 %v327, 4294901760
        %5935 = vmatprep.subr.mxu0 %v5934
        %v5936 = vand.u32 %v326, 4294901760
        %5937 = vmatpush1.msra.mxu0 %v5936
        %v5938 = vand.u32 %v343, 4294901760
        %5939 = vmatprep.subr.mxu0 %v5938
        %v5940 = vand.u32 %v342, 4294901760
        %5941 = vmatpush1.msra.mxu0 %v5940
        %v5942 = vand.u32 %v359, 4294901760
        %5943 = vmatprep.subr.mxu0 %v5942
        %v5944 = vand.u32 %v358, 4294901760
        %5945 = vmatpush1.msra.mxu0 %v5944
        %v5946 = vand.u32 %v375, 4294901760
        %5947 = vmatprep.subr.mxu0 %v5946
        %v5948 = vand.u32 %v374, 4294901760
        %5949 = vmatpush1.msra.mxu0 %v5948
        %v5950 = vand.u32 %v391, 4294901760
        %5951 = vmatprep.subr.mxu0 %v5950
        %v5952 = vand.u32 %v390, 4294901760
        %5953 = vmatpush1.msra.mxu0 %v5952
        %v5954 = vand.u32 %v407, 4294901760
        %5955 = vmatprep.subr.mxu0 %v5954
        %v5956 = vand.u32 %v406, 4294901760
        %5957 = vmatpush1.msra.mxu0 %v5956
        %v5958 = vand.u32 %v423, 4294901760
        %5959 = vmatprep.subr.mxu0 %v5958
        %v5960 = vand.u32 %v422, 4294901760
        %5961 = vmatpush1.msra.mxu0 %v5960
        %v5962 = vand.u32 %v439, 4294901760
        %5963 = vmatprep.subr.mxu0 %v5962
        %v5964 = vand.u32 %v438, 4294901760
        %5965 = vmatpush1.msra.mxu0 %v5964
        %v5966 = vand.u32 %v455, 4294901760
        %5967 = vmatprep.subr.mxu0 %v5966
        %v5968 = vand.u32 %v454, 4294901760
        %5969 = vmatpush1.msra.mxu0 %v5968
        %v5970 = vand.u32 %v471, 4294901760
        %5971 = vmatprep.subr.mxu0 %v5970
        %v5972 = vand.u32 %v470, 4294901760
        %5973 = vmatpush1.msra.mxu0 %v5972
        %v5974 = vand.u32 %v487, 4294901760
        %5975 = vmatprep.subr.mxu0 %v5974
        %v5976 = vand.u32 %v486, 4294901760
        %5977 = vmatpush1.msra.mxu0 %v5976
        %5978 = vmatprep.subr.mxu0 0.0
        %5979 = vmatpush1.msra.mxu0 0.0
        %5980 = vmatprep.subr.mxu0 0.0
        %5981 = vmatpush1.msra.mxu0 0.0
        %5982 = vmatprep.subr.mxu0 0.0
        %5983 = vmatpush1.msra.mxu0 0.0
        %5984 = vmatprep.subr.mxu0 0.0
        %5985 = vmatpush1.msra.mxu0 0.0
        %5986 = vmatprep.subr.mxu0 0.0
        %5987 = vmatpush1.msra.mxu0 0.0
        %5988 = vmatprep.subr.mxu0 0.0
        %5989 = vmatpush1.msra.mxu0 0.0
        %5990 = vmatprep.subr.mxu0 0.0
        %5991 = vmatpush1.msra.mxu0 0.0
        %5992 = vmatprep.subr.mxu0 0.0
        %5993 = vmatpush1.msra.mxu0 0.0
        %5994 = vmatprep.subr.mxu0 0.0
        %5995 = vmatpush1.msra.mxu0 0.0
        %5996 = vmatprep.subr.mxu0 0.0
        %5997 = vmatpush1.msra.mxu0 0.0
        %5998 = vmatprep.subr.mxu0 0.0
        %5999 = vmatpush1.msra.mxu0 0.0
        %6000 = vmatprep.subr.mxu0 0.0
        %6001 = vmatpush1.msra.mxu0 0.0
        %6002 = vmatprep.subr.mxu0 0.0
        %6003 = vmatpush1.msra.mxu0 0.0
        %6004 = vmatprep.subr.mxu0 0.0
        %6005 = vmatpush1.msra.mxu0 0.0
        %v6006 = vand.u32 %v493, 4294901760
        %6007 = vmatprep.mubr.f32.mxu0 %v6006
        %v6008 = vand.u32 %v202, 4294901760
        %6009 = vmatmul.mubr.f32.gmra.mrb[0].mxu0 %v6008
        %v6010 = vpop.f32.mrb[0].mxu0
        %v6011 = vadd.f32 %v5902, %v6010
        %v6012 = vpop.f32.mrb[0].mxu0
        %v6013 = vadd.f32 %v5904, %v6012
        %6014 = vdwg.mxu0
        %v6015 = vand.u32 %v217, 4294901760
        %6016 = vmatprep.subr.mxu0 %v6015
        %v6017 = vand.u32 %v216, 4294901760
        %6018 = vmatpush1.msra.mxu0 %v6017
        %v6019 = vand.u32 %v233, 4294901760
        %6020 = vmatprep.subr.mxu0 %v6019
        %v6021 = vand.u32 %v232, 4294901760
        %6022 = vmatpush1.msra.mxu0 %v6021
        %v6023 = vand.u32 %v249, 4294901760
        %6024 = vmatprep.subr.mxu0 %v6023
        %v6025 = vand.u32 %v248, 4294901760
        %6026 = vmatpush1.msra.mxu0 %v6025
        %v6027 = vand.u32 %v265, 4294901760
        %6028 = vmatprep.subr.mxu0 %v6027
        %v6029 = vand.u32 %v264, 4294901760
        %6030 = vmatpush1.msra.mxu0 %v6029
        %v6031 = vand.u32 %v281, 4294901760
        %6032 = vmatprep.subr.mxu0 %v6031
        %v6033 = vand.u32 %v280, 4294901760
        %6034 = vmatpush1.msra.mxu0 %v6033
        %v6035 = vand.u32 %v297, 4294901760
        %6036 = vmatprep.subr.mxu0 %v6035
        %v6037 = vand.u32 %v296, 4294901760
        %6038 = vmatpush1.msra.mxu0 %v6037
        %v6039 = vand.u32 %v313, 4294901760
        %6040 = vmatprep.subr.mxu0 %v6039
        %v6041 = vand.u32 %v312, 4294901760
        %6042 = vmatpush1.msra.mxu0 %v6041
        %v6043 = vand.u32 %v329, 4294901760
        %6044 = vmatprep.subr.mxu0 %v6043
        %v6045 = vand.u32 %v328, 4294901760
        %6046 = vmatpush1.msra.mxu0 %v6045
        %v6047 = vand.u32 %v345, 4294901760
        %6048 = vmatprep.subr.mxu0 %v6047
        %v6049 = vand.u32 %v344, 4294901760
        %6050 = vmatpush1.msra.mxu0 %v6049
        %v6051 = vand.u32 %v361, 4294901760
        %6052 = vmatprep.subr.mxu0 %v6051
        %v6053 = vand.u32 %v360, 4294901760
        %6054 = vmatpush1.msra.mxu0 %v6053
        %v6055 = vand.u32 %v377, 4294901760
        %6056 = vmatprep.subr.mxu0 %v6055
        %v6057 = vand.u32 %v376, 4294901760
        %6058 = vmatpush1.msra.mxu0 %v6057
        %v6059 = vand.u32 %v393, 4294901760
        %6060 = vmatprep.subr.mxu0 %v6059
        %v6061 = vand.u32 %v392, 4294901760
        %6062 = vmatpush1.msra.mxu0 %v6061
        %v6063 = vand.u32 %v409, 4294901760
        %6064 = vmatprep.subr.mxu0 %v6063
        %v6065 = vand.u32 %v408, 4294901760
        %6066 = vmatpush1.msra.mxu0 %v6065
        %v6067 = vand.u32 %v425, 4294901760
        %6068 = vmatprep.subr.mxu0 %v6067
        %v6069 = vand.u32 %v424, 4294901760
        %6070 = vmatpush1.msra.mxu0 %v6069
        %v6071 = vand.u32 %v441, 4294901760
        %6072 = vmatprep.subr.mxu0 %v6071
        %v6073 = vand.u32 %v440, 4294901760
        %6074 = vmatpush1.msra.mxu0 %v6073
        %v6075 = vand.u32 %v457, 4294901760
        %6076 = vmatprep.subr.mxu0 %v6075
        %v6077 = vand.u32 %v456, 4294901760
        %6078 = vmatpush1.msra.mxu0 %v6077
        %v6079 = vand.u32 %v473, 4294901760
        %6080 = vmatprep.subr.mxu0 %v6079
        %v6081 = vand.u32 %v472, 4294901760
        %6082 = vmatpush1.msra.mxu0 %v6081
        %v6083 = vand.u32 %v489, 4294901760
        %6084 = vmatprep.subr.mxu0 %v6083
        %v6085 = vand.u32 %v488, 4294901760
        %6086 = vmatpush1.msra.mxu0 %v6085
        %6087 = vmatprep.subr.mxu0 0.0
        %6088 = vmatpush1.msra.mxu0 0.0
        %6089 = vmatprep.subr.mxu0 0.0
        %6090 = vmatpush1.msra.mxu0 0.0
        %6091 = vmatprep.subr.mxu0 0.0
        %6092 = vmatpush1.msra.mxu0 0.0
        %6093 = vmatprep.subr.mxu0 0.0
        %6094 = vmatpush1.msra.mxu0 0.0
        %6095 = vmatprep.subr.mxu0 0.0
        %6096 = vmatpush1.msra.mxu0 0.0
        %6097 = vmatprep.subr.mxu0 0.0
        %6098 = vmatpush1.msra.mxu0 0.0
        %6099 = vmatprep.subr.mxu0 0.0
        %6100 = vmatpush1.msra.mxu0 0.0
        %6101 = vmatprep.subr.mxu0 0.0
        %6102 = vmatpush1.msra.mxu0 0.0
        %6103 = vmatprep.subr.mxu0 0.0
        %6104 = vmatpush1.msra.mxu0 0.0
        %6105 = vmatprep.subr.mxu0 0.0
        %6106 = vmatpush1.msra.mxu0 0.0
        %6107 = vmatprep.subr.mxu0 0.0
        %6108 = vmatpush1.msra.mxu0 0.0
        %6109 = vmatprep.subr.mxu0 0.0
        %6110 = vmatpush1.msra.mxu0 0.0
        %6111 = vmatprep.subr.mxu0 0.0
        %6112 = vmatpush1.msra.mxu0 0.0
        %6113 = vmatprep.subr.mxu0 0.0
        %6114 = vmatpush1.msra.mxu0 0.0
        %v6115 = vand.u32 %v493, 4294901760
        %v6116 = vsub.f32 %v493, %v6115
        %v6117 = vand.u32 %v6116, 4294901760
        %v6118 = vsub.f32 %v6116, %v6117
        %v6119 = vand.u32 %v6118, 4294901760
        %6120 = vmatprep.mubr.f32.mxu0 %v6119
        %v6121 = vand.u32 %v202, 4294901760
        %v6122 = vsub.f32 %v202, %v6121
        %v6123 = vand.u32 %v6122, 4294901760
        %v6124 = vsub.f32 %v6122, %v6123
        %v6125 = vand.u32 %v6124, 4294901760
        %6126 = vmatmul.mubr.f32.gmra.mrb[0].mxu0 %v6125
        %v6127 = vpop.f32.mrb[0].mxu0
        %v6128 = vadd.f32 0.0, %v6127
        %v6129 = vpop.f32.mrb[0].mxu0
        %v6130 = vadd.f32 0.0, %v6129
        %6131 = vdwg.mxu0
        %v6132 = vand.u32 %v217, 4294901760
        %v6133 = vsub.f32 %v217, %v6132
        %v6134 = vand.u32 %v6133, 4294901760
        %v6135 = vsub.f32 %v6133, %v6134
        %v6136 = vand.u32 %v6135, 4294901760
        %6137 = vmatprep.subr.mxu0 %v6136
        %v6138 = vand.u32 %v216, 4294901760
        %v6139 = vsub.f32 %v216, %v6138
        %v6140 = vand.u32 %v6139, 4294901760
        %v6141 = vsub.f32 %v6139, %v6140
        %v6142 = vand.u32 %v6141, 4294901760
        %6143 = vmatpush1.msra.mxu0 %v6142
        %v6144 = vand.u32 %v233, 4294901760
        %v6145 = vsub.f32 %v233, %v6144
        %v6146 = vand.u32 %v6145, 4294901760
        %v6147 = vsub.f32 %v6145, %v6146
        %v6148 = vand.u32 %v6147, 4294901760
        %6149 = vmatprep.subr.mxu0 %v6148
        %v6150 = vand.u32 %v232, 4294901760
        %v6151 = vsub.f32 %v232, %v6150
        %v6152 = vand.u32 %v6151, 4294901760
        %v6153 = vsub.f32 %v6151, %v6152
        %v6154 = vand.u32 %v6153, 4294901760
        %6155 = vmatpush1.msra.mxu0 %v6154
        %v6156 = vand.u32 %v249, 4294901760
        %v6157 = vsub.f32 %v249, %v6156
        %v6158 = vand.u32 %v6157, 4294901760
        %v6159 = vsub.f32 %v6157, %v6158
        %v6160 = vand.u32 %v6159, 4294901760
        %6161 = vmatprep.subr.mxu0 %v6160
        %v6162 = vand.u32 %v248, 4294901760
        %v6163 = vsub.f32 %v248, %v6162
        %v6164 = vand.u32 %v6163, 4294901760
        %v6165 = vsub.f32 %v6163, %v6164
        %v6166 = vand.u32 %v6165, 4294901760
        %6167 = vmatpush1.msra.mxu0 %v6166
        %v6168 = vand.u32 %v265, 4294901760
        %v6169 = vsub.f32 %v265, %v6168
        %v6170 = vand.u32 %v6169, 4294901760
        %v6171 = vsub.f32 %v6169, %v6170
        %v6172 = vand.u32 %v6171, 4294901760
        %6173 = vmatprep.subr.mxu0 %v6172
        %v6174 = vand.u32 %v264, 4294901760
        %v6175 = vsub.f32 %v264, %v6174
        %v6176 = vand.u32 %v6175, 4294901760
        %v6177 = vsub.f32 %v6175, %v6176
        %v6178 = vand.u32 %v6177, 4294901760
        %6179 = vmatpush1.msra.mxu0 %v6178
        %v6180 = vand.u32 %v281, 4294901760
        %v6181 = vsub.f32 %v281, %v6180
        %v6182 = vand.u32 %v6181, 4294901760
        %v6183 = vsub.f32 %v6181, %v6182
        %v6184 = vand.u32 %v6183, 4294901760
        %6185 = vmatprep.subr.mxu0 %v6184
        %v6186 = vand.u32 %v280, 4294901760
        %v6187 = vsub.f32 %v280, %v6186
        %v6188 = vand.u32 %v6187, 4294901760
        %v6189 = vsub.f32 %v6187, %v6188
        %v6190 = vand.u32 %v6189, 4294901760
        %6191 = vmatpush1.msra.mxu0 %v6190
        %v6192 = vand.u32 %v297, 4294901760
        %v6193 = vsub.f32 %v297, %v6192
        %v6194 = vand.u32 %v6193, 4294901760
        %v6195 = vsub.f32 %v6193, %v6194
        %v6196 = vand.u32 %v6195, 4294901760
        %6197 = vmatprep.subr.mxu0 %v6196
        %v6198 = vand.u32 %v296, 4294901760
        %v6199 = vsub.f32 %v296, %v6198
        %v6200 = vand.u32 %v6199, 4294901760
        %v6201 = vsub.f32 %v6199, %v6200
        %v6202 = vand.u32 %v6201, 4294901760
        %6203 = vmatpush1.msra.mxu0 %v6202
        %v6204 = vand.u32 %v313, 4294901760
        %v6205 = vsub.f32 %v313, %v6204
        %v6206 = vand.u32 %v6205, 4294901760
        %v6207 = vsub.f32 %v6205, %v6206
        %v6208 = vand.u32 %v6207, 4294901760
        %6209 = vmatprep.subr.mxu0 %v6208
        %v6210 = vand.u32 %v312, 4294901760
        %v6211 = vsub.f32 %v312, %v6210
        %v6212 = vand.u32 %v6211, 4294901760
        %v6213 = vsub.f32 %v6211, %v6212
        %v6214 = vand.u32 %v6213, 4294901760
        %6215 = vmatpush1.msra.mxu0 %v6214
        %v6216 = vand.u32 %v329, 4294901760
        %v6217 = vsub.f32 %v329, %v6216
        %v6218 = vand.u32 %v6217, 4294901760
        %v6219 = vsub.f32 %v6217, %v6218
        %v6220 = vand.u32 %v6219, 4294901760
        %6221 = vmatprep.subr.mxu0 %v6220
        %v6222 = vand.u32 %v328, 4294901760
        %v6223 = vsub.f32 %v328, %v6222
        %v6224 = vand.u32 %v6223, 4294901760
        %v6225 = vsub.f32 %v6223, %v6224
        %v6226 = vand.u32 %v6225, 4294901760
        %6227 = vmatpush1.msra.mxu0 %v6226
        %v6228 = vand.u32 %v345, 4294901760
        %v6229 = vsub.f32 %v345, %v6228
        %v6230 = vand.u32 %v6229, 4294901760
        %v6231 = vsub.f32 %v6229, %v6230
        %v6232 = vand.u32 %v6231, 4294901760
        %6233 = vmatprep.subr.mxu0 %v6232
        %v6234 = vand.u32 %v344, 4294901760
        %v6235 = vsub.f32 %v344, %v6234
        %v6236 = vand.u32 %v6235, 4294901760
        %v6237 = vsub.f32 %v6235, %v6236
        %v6238 = vand.u32 %v6237, 4294901760
        %6239 = vmatpush1.msra.mxu0 %v6238
        %v6240 = vand.u32 %v361, 4294901760
        %v6241 = vsub.f32 %v361, %v6240
        %v6242 = vand.u32 %v6241, 4294901760
        %v6243 = vsub.f32 %v6241, %v6242
        %v6244 = vand.u32 %v6243, 4294901760
        %6245 = vmatprep.subr.mxu0 %v6244
        %v6246 = vand.u32 %v360, 4294901760
        %v6247 = vsub.f32 %v360, %v6246
        %v6248 = vand.u32 %v6247, 4294901760
        %v6249 = vsub.f32 %v6247, %v6248
        %v6250 = vand.u32 %v6249, 4294901760
        %6251 = vmatpush1.msra.mxu0 %v6250
        %v6252 = vand.u32 %v377, 4294901760
        %v6253 = vsub.f32 %v377, %v6252
        %v6254 = vand.u32 %v6253, 4294901760
        %v6255 = vsub.f32 %v6253, %v6254
        %v6256 = vand.u32 %v6255, 4294901760
        %6257 = vmatprep.subr.mxu0 %v6256
        %v6258 = vand.u32 %v376, 4294901760
        %v6259 = vsub.f32 %v376, %v6258
        %v6260 = vand.u32 %v6259, 4294901760
        %v6261 = vsub.f32 %v6259, %v6260
        %v6262 = vand.u32 %v6261, 4294901760
        %6263 = vmatpush1.msra.mxu0 %v6262
        %v6264 = vand.u32 %v393, 4294901760
        %v6265 = vsub.f32 %v393, %v6264
        %v6266 = vand.u32 %v6265, 4294901760
        %v6267 = vsub.f32 %v6265, %v6266
        %v6268 = vand.u32 %v6267, 4294901760
        %6269 = vmatprep.subr.mxu0 %v6268
        %v6270 = vand.u32 %v392, 4294901760
        %v6271 = vsub.f32 %v392, %v6270
        %v6272 = vand.u32 %v6271, 4294901760
        %v6273 = vsub.f32 %v6271, %v6272
        %v6274 = vand.u32 %v6273, 4294901760
        %6275 = vmatpush1.msra.mxu0 %v6274
        %v6276 = vand.u32 %v409, 4294901760
        %v6277 = vsub.f32 %v409, %v6276
        %v6278 = vand.u32 %v6277, 4294901760
        %v6279 = vsub.f32 %v6277, %v6278
        %v6280 = vand.u32 %v6279, 4294901760
        %6281 = vmatprep.subr.mxu0 %v6280
        %v6282 = vand.u32 %v408, 4294901760
        %v6283 = vsub.f32 %v408, %v6282
        %v6284 = vand.u32 %v6283, 4294901760
        %v6285 = vsub.f32 %v6283, %v6284
        %v6286 = vand.u32 %v6285, 4294901760
        %6287 = vmatpush1.msra.mxu0 %v6286
        %v6288 = vand.u32 %v425, 4294901760
        %v6289 = vsub.f32 %v425, %v6288
        %v6290 = vand.u32 %v6289, 4294901760
        %v6291 = vsub.f32 %v6289, %v6290
        %v6292 = vand.u32 %v6291, 4294901760
        %6293 = vmatprep.subr.mxu0 %v6292
        %v6294 = vand.u32 %v424, 4294901760
        %v6295 = vsub.f32 %v424, %v6294
        %v6296 = vand.u32 %v6295, 4294901760
        %v6297 = vsub.f32 %v6295, %v6296
        %v6298 = vand.u32 %v6297, 4294901760
        %6299 = vmatpush1.msra.mxu0 %v6298
        %v6300 = vand.u32 %v441, 4294901760
        %v6301 = vsub.f32 %v441, %v6300
        %v6302 = vand.u32 %v6301, 4294901760
        %v6303 = vsub.f32 %v6301, %v6302
        %v6304 = vand.u32 %v6303, 4294901760
        %6305 = vmatprep.subr.mxu0 %v6304
        %v6306 = vand.u32 %v440, 4294901760
        %v6307 = vsub.f32 %v440, %v6306
        %v6308 = vand.u32 %v6307, 4294901760
        %v6309 = vsub.f32 %v6307, %v6308
        %v6310 = vand.u32 %v6309, 4294901760
        %6311 = vmatpush1.msra.mxu0 %v6310
        %v6312 = vand.u32 %v457, 4294901760
        %v6313 = vsub.f32 %v457, %v6312
        %v6314 = vand.u32 %v6313, 4294901760
        %v6315 = vsub.f32 %v6313, %v6314
        %v6316 = vand.u32 %v6315, 4294901760
        %6317 = vmatprep.subr.mxu0 %v6316
        %v6318 = vand.u32 %v456, 4294901760
        %v6319 = vsub.f32 %v456, %v6318
        %v6320 = vand.u32 %v6319, 4294901760
        %v6321 = vsub.f32 %v6319, %v6320
        %v6322 = vand.u32 %v6321, 4294901760
        %6323 = vmatpush1.msra.mxu0 %v6322
        %v6324 = vand.u32 %v473, 4294901760
        %v6325 = vsub.f32 %v473, %v6324
        %v6326 = vand.u32 %v6325, 4294901760
        %v6327 = vsub.f32 %v6325, %v6326
        %v6328 = vand.u32 %v6327, 4294901760
        %6329 = vmatprep.subr.mxu0 %v6328
        %v6330 = vand.u32 %v472, 4294901760
        %v6331 = vsub.f32 %v472, %v6330
        %v6332 = vand.u32 %v6331, 4294901760
        %v6333 = vsub.f32 %v6331, %v6332
        %v6334 = vand.u32 %v6333, 4294901760
        %6335 = vmatpush1.msra.mxu0 %v6334
        %v6336 = vand.u32 %v489, 4294901760
        %v6337 = vsub.f32 %v489, %v6336
        %v6338 = vand.u32 %v6337, 4294901760
        %v6339 = vsub.f32 %v6337, %v6338
        %v6340 = vand.u32 %v6339, 4294901760
        %6341 = vmatprep.subr.mxu0 %v6340
        %v6342 = vand.u32 %v488, 4294901760
        %v6343 = vsub.f32 %v488, %v6342
        %v6344 = vand.u32 %v6343, 4294901760
        %v6345 = vsub.f32 %v6343, %v6344
        %v6346 = vand.u32 %v6345, 4294901760
        %6347 = vmatpush1.msra.mxu0 %v6346
        %6348 = vmatprep.subr.mxu0 0.0
        %6349 = vmatpush1.msra.mxu0 0.0
        %6350 = vmatprep.subr.mxu0 0.0
        %6351 = vmatpush1.msra.mxu0 0.0
        %6352 = vmatprep.subr.mxu0 0.0
        %6353 = vmatpush1.msra.mxu0 0.0
        %6354 = vmatprep.subr.mxu0 0.0
        %6355 = vmatpush1.msra.mxu0 0.0
        %6356 = vmatprep.subr.mxu0 0.0
        %6357 = vmatpush1.msra.mxu0 0.0
        %6358 = vmatprep.subr.mxu0 0.0
        %6359 = vmatpush1.msra.mxu0 0.0
        %6360 = vmatprep.subr.mxu0 0.0
        %6361 = vmatpush1.msra.mxu0 0.0
        %6362 = vmatprep.subr.mxu0 0.0
        %6363 = vmatpush1.msra.mxu0 0.0
        %6364 = vmatprep.subr.mxu0 0.0
        %6365 = vmatpush1.msra.mxu0 0.0
        %6366 = vmatprep.subr.mxu0 0.0
        %6367 = vmatpush1.msra.mxu0 0.0
        %6368 = vmatprep.subr.mxu0 0.0
        %6369 = vmatpush1.msra.mxu0 0.0
        %6370 = vmatprep.subr.mxu0 0.0
        %6371 = vmatpush1.msra.mxu0 0.0
        %6372 = vmatprep.subr.mxu0 0.0
        %6373 = vmatpush1.msra.mxu0 0.0
        %6374 = vmatprep.subr.mxu0 0.0
        %6375 = vmatpush1.msra.mxu0 0.0
        %v6376 = vand.u32 %v493, 4294901760
        %6377 = vmatprep.mubr.f32.mxu0 %v6376
        %v6378 = vand.u32 %v202, 4294901760
        %6379 = vmatmul.mubr.f32.gmra.mrb[0].mxu0 %v6378
        %v6380 = vpop.f32.mrb[0].mxu0
        %v6381 = vadd.f32 %v6128, %v6380
        %v6382 = vpop.f32.mrb[0].mxu0
        %v6383 = vadd.f32 %v6130, %v6382
        %6384 = vdwg.mxu0
        %v6385 = vand.u32 %v217, 4294901760
        %v6386 = vsub.f32 %v217, %v6385
        %6387 = vmatprep.subr.mxu0 %v6386
        %v6388 = vand.u32 %v216, 4294901760
        %v6389 = vsub.f32 %v216, %v6388
        %6390 = vmatpush1.msra.mxu0 %v6389
        %v6391 = vand.u32 %v233, 4294901760
        %v6392 = vsub.f32 %v233, %v6391
        %6393 = vmatprep.subr.mxu0 %v6392
        %v6394 = vand.u32 %v232, 4294901760
        %v6395 = vsub.f32 %v232, %v6394
        %6396 = vmatpush1.msra.mxu0 %v6395
        %v6397 = vand.u32 %v249, 4294901760
        %v6398 = vsub.f32 %v249, %v6397
        %6399 = vmatprep.subr.mxu0 %v6398
        %v6400 = vand.u32 %v248, 4294901760
        %v6401 = vsub.f32 %v248, %v6400
        %6402 = vmatpush1.msra.mxu0 %v6401
        %v6403 = vand.u32 %v265, 4294901760
        %v6404 = vsub.f32 %v265, %v6403
        %6405 = vmatprep.subr.mxu0 %v6404
        %v6406 = vand.u32 %v264, 4294901760
        %v6407 = vsub.f32 %v264, %v6406
        %6408 = vmatpush1.msra.mxu0 %v6407
        %v6409 = vand.u32 %v281, 4294901760
        %v6410 = vsub.f32 %v281, %v6409
        %6411 = vmatprep.subr.mxu0 %v6410
        %v6412 = vand.u32 %v280, 4294901760
        %v6413 = vsub.f32 %v280, %v6412
        %6414 = vmatpush1.msra.mxu0 %v6413
        %v6415 = vand.u32 %v297, 4294901760
        %v6416 = vsub.f32 %v297, %v6415
        %6417 = vmatprep.subr.mxu0 %v6416
        %v6418 = vand.u32 %v296, 4294901760
        %v6419 = vsub.f32 %v296, %v6418
        %6420 = vmatpush1.msra.mxu0 %v6419
        %v6421 = vand.u32 %v313, 4294901760
        %v6422 = vsub.f32 %v313, %v6421
        %6423 = vmatprep.subr.mxu0 %v6422
        %v6424 = vand.u32 %v312, 4294901760
        %v6425 = vsub.f32 %v312, %v6424
        %6426 = vmatpush1.msra.mxu0 %v6425
        %v6427 = vand.u32 %v329, 4294901760
        %v6428 = vsub.f32 %v329, %v6427
        %6429 = vmatprep.subr.mxu0 %v6428
        %v6430 = vand.u32 %v328, 4294901760
        %v6431 = vsub.f32 %v328, %v6430
        %6432 = vmatpush1.msra.mxu0 %v6431
        %v6433 = vand.u32 %v345, 4294901760
        %v6434 = vsub.f32 %v345, %v6433
        %6435 = vmatprep.subr.mxu0 %v6434
        %v6436 = vand.u32 %v344, 4294901760
        %v6437 = vsub.f32 %v344, %v6436
        %6438 = vmatpush1.msra.mxu0 %v6437
        %v6439 = vand.u32 %v361, 4294901760
        %v6440 = vsub.f32 %v361, %v6439
        %6441 = vmatprep.subr.mxu0 %v6440
        %v6442 = vand.u32 %v360, 4294901760
        %v6443 = vsub.f32 %v360, %v6442
        %6444 = vmatpush1.msra.mxu0 %v6443
        %v6445 = vand.u32 %v377, 4294901760
        %v6446 = vsub.f32 %v377, %v6445
        %6447 = vmatprep.subr.mxu0 %v6446
        %v6448 = vand.u32 %v376, 4294901760
        %v6449 = vsub.f32 %v376, %v6448
        %6450 = vmatpush1.msra.mxu0 %v6449
        %v6451 = vand.u32 %v393, 4294901760
        %v6452 = vsub.f32 %v393, %v6451
        %6453 = vmatprep.subr.mxu0 %v6452
        %v6454 = vand.u32 %v392, 4294901760
        %v6455 = vsub.f32 %v392, %v6454
        %6456 = vmatpush1.msra.mxu0 %v6455
        %v6457 = vand.u32 %v409, 4294901760
        %v6458 = vsub.f32 %v409, %v6457
        %6459 = vmatprep.subr.mxu0 %v6458
        %v6460 = vand.u32 %v408, 4294901760
        %v6461 = vsub.f32 %v408, %v6460
        %6462 = vmatpush1.msra.mxu0 %v6461
        %v6463 = vand.u32 %v425, 4294901760
        %v6464 = vsub.f32 %v425, %v6463
        %6465 = vmatprep.subr.mxu0 %v6464
        %v6466 = vand.u32 %v424, 4294901760
        %v6467 = vsub.f32 %v424, %v6466
        %6468 = vmatpush1.msra.mxu0 %v6467
        %v6469 = vand.u32 %v441, 4294901760
        %v6470 = vsub.f32 %v441, %v6469
        %6471 = vmatprep.subr.mxu0 %v6470
        %v6472 = vand.u32 %v440, 4294901760
        %v6473 = vsub.f32 %v440, %v6472
        %6474 = vmatpush1.msra.mxu0 %v6473
        %v6475 = vand.u32 %v457, 4294901760
        %v6476 = vsub.f32 %v457, %v6475
        %6477 = vmatprep.subr.mxu0 %v6476
        %v6478 = vand.u32 %v456, 4294901760
        %v6479 = vsub.f32 %v456, %v6478
        %6480 = vmatpush1.msra.mxu0 %v6479
        %v6481 = vand.u32 %v473, 4294901760
        %v6482 = vsub.f32 %v473, %v6481
        %6483 = vmatprep.subr.mxu0 %v6482
        %v6484 = vand.u32 %v472, 4294901760
        %v6485 = vsub.f32 %v472, %v6484
        %6486 = vmatpush1.msra.mxu0 %v6485
        %v6487 = vand.u32 %v489, 4294901760
        %v6488 = vsub.f32 %v489, %v6487
        %6489 = vmatprep.subr.mxu0 %v6488
        %v6490 = vand.u32 %v488, 4294901760
        %v6491 = vsub.f32 %v488, %v6490
        %6492 = vmatpush1.msra.mxu0 %v6491
        %6493 = vmatprep.subr.mxu0 0.0
        %6494 = vmatpush1.msra.mxu0 0.0
        %6495 = vmatprep.subr.mxu0 0.0
        %6496 = vmatpush1.msra.mxu0 0.0
        %6497 = vmatprep.subr.mxu0 0.0
        %6498 = vmatpush1.msra.mxu0 0.0
        %6499 = vmatprep.subr.mxu0 0.0
        %6500 = vmatpush1.msra.mxu0 0.0
        %6501 = vmatprep.subr.mxu0 0.0
        %6502 = vmatpush1.msra.mxu0 0.0
        %6503 = vmatprep.subr.mxu0 0.0
        %6504 = vmatpush1.msra.mxu0 0.0
        %6505 = vmatprep.subr.mxu0 0.0
        %6506 = vmatpush1.msra.mxu0 0.0
        %6507 = vmatprep.subr.mxu0 0.0
        %6508 = vmatpush1.msra.mxu0 0.0
        %6509 = vmatprep.subr.mxu0 0.0
        %6510 = vmatpush1.msra.mxu0 0.0
        %6511 = vmatprep.subr.mxu0 0.0
        %6512 = vmatpush1.msra.mxu0 0.0
        %6513 = vmatprep.subr.mxu0 0.0
        %6514 = vmatpush1.msra.mxu0 0.0
        %6515 = vmatprep.subr.mxu0 0.0
        %6516 = vmatpush1.msra.mxu0 0.0
        %6517 = vmatprep.subr.mxu0 0.0
        %6518 = vmatpush1.msra.mxu0 0.0
        %6519 = vmatprep.subr.mxu0 0.0
        %6520 = vmatpush1.msra.mxu0 0.0
        %v6521 = vand.u32 %v493, 4294901760
        %v6522 = vsub.f32 %v493, %v6521
        %6523 = vmatprep.mubr.f32.mxu0 %v6522
        %v6524 = vand.u32 %v202, 4294901760
        %v6525 = vsub.f32 %v202, %v6524
        %6526 = vmatmul.mubr.f32.gmra.mrb[0].mxu0 %v6525
        %v6527 = vpop.f32.mrb[0].mxu0
        %v6528 = vadd.f32 %v6381, %v6527
        %v6529 = vpop.f32.mrb[0].mxu0
        %v6530 = vadd.f32 %v6383, %v6529
        %6531 = vdwg.mxu0
        %v6532 = vand.u32 %v217, 4294901760
        %6533 = vmatprep.subr.mxu0 %v6532
        %v6534 = vand.u32 %v216, 4294901760
        %6535 = vmatpush1.msra.mxu0 %v6534
        %v6536 = vand.u32 %v233, 4294901760
        %6537 = vmatprep.subr.mxu0 %v6536
        %v6538 = vand.u32 %v232, 4294901760
        %6539 = vmatpush1.msra.mxu0 %v6538
        %v6540 = vand.u32 %v249, 4294901760
        %6541 = vmatprep.subr.mxu0 %v6540
        %v6542 = vand.u32 %v248, 4294901760
        %6543 = vmatpush1.msra.mxu0 %v6542
        %v6544 = vand.u32 %v265, 4294901760
        %6545 = vmatprep.subr.mxu0 %v6544
        %v6546 = vand.u32 %v264, 4294901760
        %6547 = vmatpush1.msra.mxu0 %v6546
        %v6548 = vand.u32 %v281, 4294901760
        %6549 = vmatprep.subr.mxu0 %v6548
        %v6550 = vand.u32 %v280, 4294901760
        %6551 = vmatpush1.msra.mxu0 %v6550
        %v6552 = vand.u32 %v297, 4294901760
        %6553 = vmatprep.subr.mxu0 %v6552
        %v6554 = vand.u32 %v296, 4294901760
        %6555 = vmatpush1.msra.mxu0 %v6554
        %v6556 = vand.u32 %v313, 4294901760
        %6557 = vmatprep.subr.mxu0 %v6556
        %v6558 = vand.u32 %v312, 4294901760
        %6559 = vmatpush1.msra.mxu0 %v6558
        %v6560 = vand.u32 %v329, 4294901760
        %6561 = vmatprep.subr.mxu0 %v6560
        %v6562 = vand.u32 %v328, 4294901760
        %6563 = vmatpush1.msra.mxu0 %v6562
        %v6564 = vand.u32 %v345, 4294901760
        %6565 = vmatprep.subr.mxu0 %v6564
        %v6566 = vand.u32 %v344, 4294901760
        %6567 = vmatpush1.msra.mxu0 %v6566
        %v6568 = vand.u32 %v361, 4294901760
        %6569 = vmatprep.subr.mxu0 %v6568
        %v6570 = vand.u32 %v360, 4294901760
        %6571 = vmatpush1.msra.mxu0 %v6570
        %v6572 = vand.u32 %v377, 4294901760
        %6573 = vmatprep.subr.mxu0 %v6572
        %v6574 = vand.u32 %v376, 4294901760
        %6575 = vmatpush1.msra.mxu0 %v6574
        %v6576 = vand.u32 %v393, 4294901760
        %6577 = vmatprep.subr.mxu0 %v6576
        %v6578 = vand.u32 %v392, 4294901760
        %6579 = vmatpush1.msra.mxu0 %v6578
        %v6580 = vand.u32 %v409, 4294901760
        %6581 = vmatprep.subr.mxu0 %v6580
        %v6582 = vand.u32 %v408, 4294901760
        %6583 = vmatpush1.msra.mxu0 %v6582
        %v6584 = vand.u32 %v425, 4294901760
        %6585 = vmatprep.subr.mxu0 %v6584
        %v6586 = vand.u32 %v424, 4294901760
        %6587 = vmatpush1.msra.mxu0 %v6586
        %v6588 = vand.u32 %v441, 4294901760
        %6589 = vmatprep.subr.mxu0 %v6588
        %v6590 = vand.u32 %v440, 4294901760
        %6591 = vmatpush1.msra.mxu0 %v6590
        %v6592 = vand.u32 %v457, 4294901760
        %6593 = vmatprep.subr.mxu0 %v6592
        %v6594 = vand.u32 %v456, 4294901760
        %6595 = vmatpush1.msra.mxu0 %v6594
        %v6596 = vand.u32 %v473, 4294901760
        %6597 = vmatprep.subr.mxu0 %v6596
        %v6598 = vand.u32 %v472, 4294901760
        %6599 = vmatpush1.msra.mxu0 %v6598
        %v6600 = vand.u32 %v489, 4294901760
        %6601 = vmatprep.subr.mxu0 %v6600
        %v6602 = vand.u32 %v488, 4294901760
        %6603 = vmatpush1.msra.mxu0 %v6602
        %6604 = vmatprep.subr.mxu0 0.0
        %6605 = vmatpush1.msra.mxu0 0.0
        %6606 = vmatprep.subr.mxu0 0.0
        %6607 = vmatpush1.msra.mxu0 0.0
        %6608 = vmatprep.subr.mxu0 0.0
        %6609 = vmatpush1.msra.mxu0 0.0
        %6610 = vmatprep.subr.mxu0 0.0
        %6611 = vmatpush1.msra.mxu0 0.0
        %6612 = vmatprep.subr.mxu0 0.0
        %6613 = vmatpush1.msra.mxu0 0.0
        %6614 = vmatprep.subr.mxu0 0.0
        %6615 = vmatpush1.msra.mxu0 0.0
        %6616 = vmatprep.subr.mxu0 0.0
        %6617 = vmatpush1.msra.mxu0 0.0
        %6618 = vmatprep.subr.mxu0 0.0
        %6619 = vmatpush1.msra.mxu0 0.0
        %6620 = vmatprep.subr.mxu0 0.0
        %6621 = vmatpush1.msra.mxu0 0.0
        %6622 = vmatprep.subr.mxu0 0.0
        %6623 = vmatpush1.msra.mxu0 0.0
        %6624 = vmatprep.subr.mxu0 0.0
        %6625 = vmatpush1.msra.mxu0 0.0
        %6626 = vmatprep.subr.mxu0 0.0
        %6627 = vmatpush1.msra.mxu0 0.0
        %6628 = vmatprep.subr.mxu0 0.0
        %6629 = vmatpush1.msra.mxu0 0.0
        %6630 = vmatprep.subr.mxu0 0.0
        %6631 = vmatpush1.msra.mxu0 0.0
        %v6632 = vand.u32 %v493, 4294901760
        %v6633 = vsub.f32 %v493, %v6632
        %v6634 = vand.u32 %v6633, 4294901760
        %6635 = vmatprep.mubr.f32.mxu0 %v6634
        %v6636 = vand.u32 %v202, 4294901760
        %v6637 = vsub.f32 %v202, %v6636
        %v6638 = vand.u32 %v6637, 4294901760
        %6639 = vmatmul.mubr.f32.gmra.mrb[0].mxu0 %v6638
        %v6640 = vpop.f32.mrb[0].mxu0
        %v6641 = vadd.f32 %v6528, %v6640
        %v6642 = vpop.f32.mrb[0].mxu0
        %v6643 = vadd.f32 %v6530, %v6642
        %6644 = vdwg.mxu0
        %v6645 = vand.u32 %v217, 4294901760
        %v6646 = vsub.f32 %v217, %v6645
        %v6647 = vand.u32 %v6646, 4294901760
        %6648 = vmatprep.subr.mxu0 %v6647
        %v6649 = vand.u32 %v216, 4294901760
        %v6650 = vsub.f32 %v216, %v6649
        %v6651 = vand.u32 %v6650, 4294901760
        %6652 = vmatpush1.msra.mxu0 %v6651
        %v6653 = vand.u32 %v233, 4294901760
        %v6654 = vsub.f32 %v233, %v6653
        %v6655 = vand.u32 %v6654, 4294901760
        %6656 = vmatprep.subr.mxu0 %v6655
        %v6657 = vand.u32 %v232, 4294901760
        %v6658 = vsub.f32 %v232, %v6657
        %v6659 = vand.u32 %v6658, 4294901760
        %6660 = vmatpush1.msra.mxu0 %v6659
        %v6661 = vand.u32 %v249, 4294901760
        %v6662 = vsub.f32 %v249, %v6661
        %v6663 = vand.u32 %v6662, 4294901760
        %6664 = vmatprep.subr.mxu0 %v6663
        %v6665 = vand.u32 %v248, 4294901760
        %v6666 = vsub.f32 %v248, %v6665
        %v6667 = vand.u32 %v6666, 4294901760
        %6668 = vmatpush1.msra.mxu0 %v6667
        %v6669 = vand.u32 %v265, 4294901760
        %v6670 = vsub.f32 %v265, %v6669
        %v6671 = vand.u32 %v6670, 4294901760
        %6672 = vmatprep.subr.mxu0 %v6671
        %v6673 = vand.u32 %v264, 4294901760
        %v6674 = vsub.f32 %v264, %v6673
        %v6675 = vand.u32 %v6674, 4294901760
        %6676 = vmatpush1.msra.mxu0 %v6675
        %v6677 = vand.u32 %v281, 4294901760
        %v6678 = vsub.f32 %v281, %v6677
        %v6679 = vand.u32 %v6678, 4294901760
        %6680 = vmatprep.subr.mxu0 %v6679
        %v6681 = vand.u32 %v280, 4294901760
        %v6682 = vsub.f32 %v280, %v6681
        %v6683 = vand.u32 %v6682, 4294901760
        %6684 = vmatpush1.msra.mxu0 %v6683
        %v6685 = vand.u32 %v297, 4294901760
        %v6686 = vsub.f32 %v297, %v6685
        %v6687 = vand.u32 %v6686, 4294901760
        %6688 = vmatprep.subr.mxu0 %v6687
        %v6689 = vand.u32 %v296, 4294901760
        %v6690 = vsub.f32 %v296, %v6689
        %v6691 = vand.u32 %v6690, 4294901760
        %6692 = vmatpush1.msra.mxu0 %v6691
        %v6693 = vand.u32 %v313, 4294901760
        %v6694 = vsub.f32 %v313, %v6693
        %v6695 = vand.u32 %v6694, 4294901760
        %6696 = vmatprep.subr.mxu0 %v6695
        %v6697 = vand.u32 %v312, 4294901760
        %v6698 = vsub.f32 %v312, %v6697
        %v6699 = vand.u32 %v6698, 4294901760
        %6700 = vmatpush1.msra.mxu0 %v6699
        %v6701 = vand.u32 %v329, 4294901760
        %v6702 = vsub.f32 %v329, %v6701
        %v6703 = vand.u32 %v6702, 4294901760
        %6704 = vmatprep.subr.mxu0 %v6703
        %v6705 = vand.u32 %v328, 4294901760
        %v6706 = vsub.f32 %v328, %v6705
        %v6707 = vand.u32 %v6706, 4294901760
        %6708 = vmatpush1.msra.mxu0 %v6707
        %v6709 = vand.u32 %v345, 4294901760
        %v6710 = vsub.f32 %v345, %v6709
        %v6711 = vand.u32 %v6710, 4294901760
        %6712 = vmatprep.subr.mxu0 %v6711
        %v6713 = vand.u32 %v344, 4294901760
        %v6714 = vsub.f32 %v344, %v6713
        %v6715 = vand.u32 %v6714, 4294901760
        %6716 = vmatpush1.msra.mxu0 %v6715
        %v6717 = vand.u32 %v361, 4294901760
        %v6718 = vsub.f32 %v361, %v6717
        %v6719 = vand.u32 %v6718, 4294901760
        %6720 = vmatprep.subr.mxu0 %v6719
        %v6721 = vand.u32 %v360, 4294901760
        %v6722 = vsub.f32 %v360, %v6721
        %v6723 = vand.u32 %v6722, 4294901760
        %6724 = vmatpush1.msra.mxu0 %v6723
        %v6725 = vand.u32 %v377, 4294901760
        %v6726 = vsub.f32 %v377, %v6725
        %v6727 = vand.u32 %v6726, 4294901760
        %6728 = vmatprep.subr.mxu0 %v6727
        %v6729 = vand.u32 %v376, 4294901760
        %v6730 = vsub.f32 %v376, %v6729
        %v6731 = vand.u32 %v6730, 4294901760
        %6732 = vmatpush1.msra.mxu0 %v6731
        %v6733 = vand.u32 %v393, 4294901760
        %v6734 = vsub.f32 %v393, %v6733
        %v6735 = vand.u32 %v6734, 4294901760
        %6736 = vmatprep.subr.mxu0 %v6735
        %v6737 = vand.u32 %v392, 4294901760
        %v6738 = vsub.f32 %v392, %v6737
        %v6739 = vand.u32 %v6738, 4294901760
        %6740 = vmatpush1.msra.mxu0 %v6739
        %v6741 = vand.u32 %v409, 4294901760
        %v6742 = vsub.f32 %v409, %v6741
        %v6743 = vand.u32 %v6742, 4294901760
        %6744 = vmatprep.subr.mxu0 %v6743
        %v6745 = vand.u32 %v408, 4294901760
        %v6746 = vsub.f32 %v408, %v6745
        %v6747 = vand.u32 %v6746, 4294901760
        %6748 = vmatpush1.msra.mxu0 %v6747
        %v6749 = vand.u32 %v425, 4294901760
        %v6750 = vsub.f32 %v425, %v6749
        %v6751 = vand.u32 %v6750, 4294901760
        %6752 = vmatprep.subr.mxu0 %v6751
        %v6753 = vand.u32 %v424, 4294901760
        %v6754 = vsub.f32 %v424, %v6753
        %v6755 = vand.u32 %v6754, 4294901760
        %6756 = vmatpush1.msra.mxu0 %v6755
        %v6757 = vand.u32 %v441, 4294901760
        %v6758 = vsub.f32 %v441, %v6757
        %v6759 = vand.u32 %v6758, 4294901760
        %6760 = vmatprep.subr.mxu0 %v6759
        %v6761 = vand.u32 %v440, 4294901760
        %v6762 = vsub.f32 %v440, %v6761
        %v6763 = vand.u32 %v6762, 4294901760
        %6764 = vmatpush1.msra.mxu0 %v6763
        %v6765 = vand.u32 %v457, 4294901760
        %v6766 = vsub.f32 %v457, %v6765
        %v6767 = vand.u32 %v6766, 4294901760
        %6768 = vmatprep.subr.mxu0 %v6767
        %v6769 = vand.u32 %v456, 4294901760
        %v6770 = vsub.f32 %v456, %v6769
        %v6771 = vand.u32 %v6770, 4294901760
        %6772 = vmatpush1.msra.mxu0 %v6771
        %v6773 = vand.u32 %v473, 4294901760
        %v6774 = vsub.f32 %v473, %v6773
        %v6775 = vand.u32 %v6774, 4294901760
        %6776 = vmatprep.subr.mxu0 %v6775
        %v6777 = vand.u32 %v472, 4294901760
        %v6778 = vsub.f32 %v472, %v6777
        %v6779 = vand.u32 %v6778, 4294901760
        %6780 = vmatpush1.msra.mxu0 %v6779
        %v6781 = vand.u32 %v489, 4294901760
        %v6782 = vsub.f32 %v489, %v6781
        %v6783 = vand.u32 %v6782, 4294901760
        %6784 = vmatprep.subr.mxu0 %v6783
        %v6785 = vand.u32 %v488, 4294901760
        %v6786 = vsub.f32 %v488, %v6785
        %v6787 = vand.u32 %v6786, 4294901760
        %6788 = vmatpush1.msra.mxu0 %v6787
        %6789 = vmatprep.subr.mxu0 0.0
        %6790 = vmatpush1.msra.mxu0 0.0
        %6791 = vmatprep.subr.mxu0 0.0
        %6792 = vmatpush1.msra.mxu0 0.0
        %6793 = vmatprep.subr.mxu0 0.0
        %6794 = vmatpush1.msra.mxu0 0.0
        %6795 = vmatprep.subr.mxu0 0.0
        %6796 = vmatpush1.msra.mxu0 0.0
        %6797 = vmatprep.subr.mxu0 0.0
        %6798 = vmatpush1.msra.mxu0 0.0
        %6799 = vmatprep.subr.mxu0 0.0
        %6800 = vmatpush1.msra.mxu0 0.0
        %6801 = vmatprep.subr.mxu0 0.0
        %6802 = vmatpush1.msra.mxu0 0.0
        %6803 = vmatprep.subr.mxu0 0.0
        %6804 = vmatpush1.msra.mxu0 0.0
        %6805 = vmatprep.subr.mxu0 0.0
        %6806 = vmatpush1.msra.mxu0 0.0
        %6807 = vmatprep.subr.mxu0 0.0
        %6808 = vmatpush1.msra.mxu0 0.0
        %6809 = vmatprep.subr.mxu0 0.0
        %6810 = vmatpush1.msra.mxu0 0.0
        %6811 = vmatprep.subr.mxu0 0.0
        %6812 = vmatpush1.msra.mxu0 0.0
        %6813 = vmatprep.subr.mxu0 0.0
        %6814 = vmatpush1.msra.mxu0 0.0
        %6815 = vmatprep.subr.mxu0 0.0
        %6816 = vmatpush1.msra.mxu0 0.0
        %v6817 = vand.u32 %v493, 4294901760
        %6818 = vmatprep.mubr.f32.mxu0 %v6817
        %v6819 = vand.u32 %v202, 4294901760
        %6820 = vmatmul.mubr.f32.gmra.mrb[0].mxu0 %v6819
        %v6821 = vpop.f32.mrb[0].mxu0
        %v6822 = vadd.f32 %v6641, %v6821
        %v6823 = vpop.f32.mrb[0].mxu0
        %v6824 = vadd.f32 %v6643, %v6823
        %6825 = vdwg.mxu0
        %v6826 = vand.u32 %v217, 4294901760
        %6827 = vmatprep.subr.mxu0 %v6826
        %v6828 = vand.u32 %v216, 4294901760
        %6829 = vmatpush1.msra.mxu0 %v6828
        %v6830 = vand.u32 %v233, 4294901760
        %6831 = vmatprep.subr.mxu0 %v6830
        %v6832 = vand.u32 %v232, 4294901760
        %6833 = vmatpush1.msra.mxu0 %v6832
        %v6834 = vand.u32 %v249, 4294901760
        %6835 = vmatprep.subr.mxu0 %v6834
        %v6836 = vand.u32 %v248, 4294901760
        %6837 = vmatpush1.msra.mxu0 %v6836
        %v6838 = vand.u32 %v265, 4294901760
        %6839 = vmatprep.subr.mxu0 %v6838
        %v6840 = vand.u32 %v264, 4294901760
        %6841 = vmatpush1.msra.mxu0 %v6840
        %v6842 = vand.u32 %v281, 4294901760
        %6843 = vmatprep.subr.mxu0 %v6842
        %v6844 = vand.u32 %v280, 4294901760
        %6845 = vmatpush1.msra.mxu0 %v6844
        %v6846 = vand.u32 %v297, 4294901760
        %6847 = vmatprep.subr.mxu0 %v6846
        %v6848 = vand.u32 %v296, 4294901760
        %6849 = vmatpush1.msra.mxu0 %v6848
        %v6850 = vand.u32 %v313, 4294901760
        %6851 = vmatprep.subr.mxu0 %v6850
        %v6852 = vand.u32 %v312, 4294901760
        %6853 = vmatpush1.msra.mxu0 %v6852
        %v6854 = vand.u32 %v329, 4294901760
        %6855 = vmatprep.subr.mxu0 %v6854
        %v6856 = vand.u32 %v328, 4294901760
        %6857 = vmatpush1.msra.mxu0 %v6856
        %v6858 = vand.u32 %v345, 4294901760
        %6859 = vmatprep.subr.mxu0 %v6858
        %v6860 = vand.u32 %v344, 4294901760
        %6861 = vmatpush1.msra.mxu0 %v6860
        %v6862 = vand.u32 %v361, 4294901760
        %6863 = vmatprep.subr.mxu0 %v6862
        %v6864 = vand.u32 %v360, 4294901760
        %6865 = vmatpush1.msra.mxu0 %v6864
        %v6866 = vand.u32 %v377, 4294901760
        %6867 = vmatprep.subr.mxu0 %v6866
        %v6868 = vand.u32 %v376, 4294901760
        %6869 = vmatpush1.msra.mxu0 %v6868
        %v6870 = vand.u32 %v393, 4294901760
        %6871 = vmatprep.subr.mxu0 %v6870
        %v6872 = vand.u32 %v392, 4294901760
        %6873 = vmatpush1.msra.mxu0 %v6872
        %v6874 = vand.u32 %v409, 4294901760
        %6875 = vmatprep.subr.mxu0 %v6874
        %v6876 = vand.u32 %v408, 4294901760
        %6877 = vmatpush1.msra.mxu0 %v6876
        %v6878 = vand.u32 %v425, 4294901760
        %6879 = vmatprep.subr.mxu0 %v6878
        %v6880 = vand.u32 %v424, 4294901760
        %6881 = vmatpush1.msra.mxu0 %v6880
        %v6882 = vand.u32 %v441, 4294901760
        %6883 = vmatprep.subr.mxu0 %v6882
        %v6884 = vand.u32 %v440, 4294901760
        %6885 = vmatpush1.msra.mxu0 %v6884
        %v6886 = vand.u32 %v457, 4294901760
        %6887 = vmatprep.subr.mxu0 %v6886
        %v6888 = vand.u32 %v456, 4294901760
        %6889 = vmatpush1.msra.mxu0 %v6888
        %v6890 = vand.u32 %v473, 4294901760
        %6891 = vmatprep.subr.mxu0 %v6890
        %v6892 = vand.u32 %v472, 4294901760
        %6893 = vmatpush1.msra.mxu0 %v6892
        %v6894 = vand.u32 %v489, 4294901760
        %6895 = vmatprep.subr.mxu0 %v6894
        %v6896 = vand.u32 %v488, 4294901760
        %6897 = vmatpush1.msra.mxu0 %v6896
        %6898 = vmatprep.subr.mxu0 0.0
        %6899 = vmatpush1.msra.mxu0 0.0
        %6900 = vmatprep.subr.mxu0 0.0
        %6901 = vmatpush1.msra.mxu0 0.0
        %6902 = vmatprep.subr.mxu0 0.0
        %6903 = vmatpush1.msra.mxu0 0.0
        %6904 = vmatprep.subr.mxu0 0.0
        %6905 = vmatpush1.msra.mxu0 0.0
        %6906 = vmatprep.subr.mxu0 0.0
        %6907 = vmatpush1.msra.mxu0 0.0
        %6908 = vmatprep.subr.mxu0 0.0
        %6909 = vmatpush1.msra.mxu0 0.0
        %6910 = vmatprep.subr.mxu0 0.0
        %6911 = vmatpush1.msra.mxu0 0.0
        %6912 = vmatprep.subr.mxu0 0.0
        %6913 = vmatpush1.msra.mxu0 0.0
        %6914 = vmatprep.subr.mxu0 0.0
        %6915 = vmatpush1.msra.mxu0 0.0
        %6916 = vmatprep.subr.mxu0 0.0
        %6917 = vmatpush1.msra.mxu0 0.0
        %6918 = vmatprep.subr.mxu0 0.0
        %6919 = vmatpush1.msra.mxu0 0.0
        %6920 = vmatprep.subr.mxu0 0.0
        %6921 = vmatpush1.msra.mxu0 0.0
        %6922 = vmatprep.subr.mxu0 0.0
        %6923 = vmatpush1.msra.mxu0 0.0
        %6924 = vmatprep.subr.mxu0 0.0
        %6925 = vmatpush1.msra.mxu0 0.0
        %v6926 = vand.u32 %v493, 4294901760
        %6927 = vmatprep.mubr.f32.mxu0 %v6926
        %v6928 = vand.u32 %v202, 4294901760
        %6929 = vmatmul.mubr.f32.gmra.mrb[0].mxu0 %v6928
        %v6930 = vpop.f32.mrb[0].mxu0
        %v6931 = vadd.f32 %v6822, %v6930
        %v6932 = vpop.f32.mrb[0].mxu0
        %v6933 = vadd.f32 %v6824, %v6932
        %6934 = vdwg.mxu0
        %v6935 = vand.u32 %v219, 4294901760
        %6936 = vmatprep.subr.mxu0 %v6935
        %v6937 = vand.u32 %v218, 4294901760
        %6938 = vmatpush1.msra.mxu0 %v6937
        %v6939 = vand.u32 %v235, 4294901760
        %6940 = vmatprep.subr.mxu0 %v6939
        %v6941 = vand.u32 %v234, 4294901760
        %6942 = vmatpush1.msra.mxu0 %v6941
        %v6943 = vand.u32 %v251, 4294901760
        %6944 = vmatprep.subr.mxu0 %v6943
        %v6945 = vand.u32 %v250, 4294901760
        %6946 = vmatpush1.msra.mxu0 %v6945
        %v6947 = vand.u32 %v267, 4294901760
        %6948 = vmatprep.subr.mxu0 %v6947
        %v6949 = vand.u32 %v266, 4294901760
        %6950 = vmatpush1.msra.mxu0 %v6949
        %v6951 = vand.u32 %v283, 4294901760
        %6952 = vmatprep.subr.mxu0 %v6951
        %v6953 = vand.u32 %v282, 4294901760
        %6954 = vmatpush1.msra.mxu0 %v6953
        %v6955 = vand.u32 %v299, 4294901760
        %6956 = vmatprep.subr.mxu0 %v6955
        %v6957 = vand.u32 %v298, 4294901760
        %6958 = vmatpush1.msra.mxu0 %v6957
        %v6959 = vand.u32 %v315, 4294901760
        %6960 = vmatprep.subr.mxu0 %v6959
        %v6961 = vand.u32 %v314, 4294901760
        %6962 = vmatpush1.msra.mxu0 %v6961
        %v6963 = vand.u32 %v331, 4294901760
        %6964 = vmatprep.subr.mxu0 %v6963
        %v6965 = vand.u32 %v330, 4294901760
        %6966 = vmatpush1.msra.mxu0 %v6965
        %v6967 = vand.u32 %v347, 4294901760
        %6968 = vmatprep.subr.mxu0 %v6967
        %v6969 = vand.u32 %v346, 4294901760
        %6970 = vmatpush1.msra.mxu0 %v6969
        %v6971 = vand.u32 %v363, 4294901760
        %6972 = vmatprep.subr.mxu0 %v6971
        %v6973 = vand.u32 %v362, 4294901760
        %6974 = vmatpush1.msra.mxu0 %v6973
        %v6975 = vand.u32 %v379, 4294901760
        %6976 = vmatprep.subr.mxu0 %v6975
        %v6977 = vand.u32 %v378, 4294901760
        %6978 = vmatpush1.msra.mxu0 %v6977
        %v6979 = vand.u32 %v395, 4294901760
        %6980 = vmatprep.subr.mxu0 %v6979
        %v6981 = vand.u32 %v394, 4294901760
        %6982 = vmatpush1.msra.mxu0 %v6981
        %v6983 = vand.u32 %v411, 4294901760
        %6984 = vmatprep.subr.mxu0 %v6983
        %v6985 = vand.u32 %v410, 4294901760
        %6986 = vmatpush1.msra.mxu0 %v6985
        %v6987 = vand.u32 %v427, 4294901760
        %6988 = vmatprep.subr.mxu0 %v6987
        %v6989 = vand.u32 %v426, 4294901760
        %6990 = vmatpush1.msra.mxu0 %v6989
        %v6991 = vand.u32 %v443, 4294901760
        %6992 = vmatprep.subr.mxu0 %v6991
        %v6993 = vand.u32 %v442, 4294901760
        %6994 = vmatpush1.msra.mxu0 %v6993
        %v6995 = vand.u32 %v459, 4294901760
        %6996 = vmatprep.subr.mxu0 %v6995
        %v6997 = vand.u32 %v458, 4294901760
        %6998 = vmatpush1.msra.mxu0 %v6997
        %v6999 = vand.u32 %v475, 4294901760
        %7000 = vmatprep.subr.mxu0 %v6999
        %v7001 = vand.u32 %v474, 4294901760
        %7002 = vmatpush1.msra.mxu0 %v7001
        %v7003 = vand.u32 %v491, 4294901760
        %7004 = vmatprep.subr.mxu0 %v7003
        %v7005 = vand.u32 %v490, 4294901760
        %7006 = vmatpush1.msra.mxu0 %v7005
        %7007 = vmatprep.subr.mxu0 0.0
        %7008 = vmatpush1.msra.mxu0 0.0
        %7009 = vmatprep.subr.mxu0 0.0
        %7010 = vmatpush1.msra.mxu0 0.0
        %7011 = vmatprep.subr.mxu0 0.0
        %7012 = vmatpush1.msra.mxu0 0.0
        %7013 = vmatprep.subr.mxu0 0.0
        %7014 = vmatpush1.msra.mxu0 0.0
        %7015 = vmatprep.subr.mxu0 0.0
        %7016 = vmatpush1.msra.mxu0 0.0
        %7017 = vmatprep.subr.mxu0 0.0
        %7018 = vmatpush1.msra.mxu0 0.0
        %7019 = vmatprep.subr.mxu0 0.0
        %7020 = vmatpush1.msra.mxu0 0.0
        %7021 = vmatprep.subr.mxu0 0.0
        %7022 = vmatpush1.msra.mxu0 0.0
        %7023 = vmatprep.subr.mxu0 0.0
        %7024 = vmatpush1.msra.mxu0 0.0
        %7025 = vmatprep.subr.mxu0 0.0
        %7026 = vmatpush1.msra.mxu0 0.0
        %7027 = vmatprep.subr.mxu0 0.0
        %7028 = vmatpush1.msra.mxu0 0.0
        %7029 = vmatprep.subr.mxu0 0.0
        %7030 = vmatpush1.msra.mxu0 0.0
        %7031 = vmatprep.subr.mxu0 0.0
        %7032 = vmatpush1.msra.mxu0 0.0
        %7033 = vmatprep.subr.mxu0 0.0
        %7034 = vmatpush1.msra.mxu0 0.0
        %v7035 = vand.u32 %v493, 4294901760
        %v7036 = vsub.f32 %v493, %v7035
        %v7037 = vand.u32 %v7036, 4294901760
        %v7038 = vsub.f32 %v7036, %v7037
        %v7039 = vand.u32 %v7038, 4294901760
        %7040 = vmatprep.mubr.f32.mxu0 %v7039
        %v7041 = vand.u32 %v202, 4294901760
        %v7042 = vsub.f32 %v202, %v7041
        %v7043 = vand.u32 %v7042, 4294901760
        %v7044 = vsub.f32 %v7042, %v7043
        %v7045 = vand.u32 %v7044, 4294901760
        %7046 = vmatmul.mubr.f32.gmra.mrb[0].mxu0 %v7045
        %v7047 = vpop.f32.mrb[0].mxu0
        %v7048 = vadd.f32 0.0, %v7047
        %v7049 = vpop.f32.mrb[0].mxu0
        %v7050 = vadd.f32 0.0, %v7049
        %7051 = vdwg.mxu0
        %v7052 = vand.u32 %v219, 4294901760
        %v7053 = vsub.f32 %v219, %v7052
        %v7054 = vand.u32 %v7053, 4294901760
        %v7055 = vsub.f32 %v7053, %v7054
        %v7056 = vand.u32 %v7055, 4294901760
        %7057 = vmatprep.subr.mxu0 %v7056
        %v7058 = vand.u32 %v218, 4294901760
        %v7059 = vsub.f32 %v218, %v7058
        %v7060 = vand.u32 %v7059, 4294901760
        %v7061 = vsub.f32 %v7059, %v7060
        %v7062 = vand.u32 %v7061, 4294901760
        %7063 = vmatpush1.msra.mxu0 %v7062
        %v7064 = vand.u32 %v235, 4294901760
        %v7065 = vsub.f32 %v235, %v7064
        %v7066 = vand.u32 %v7065, 4294901760
        %v7067 = vsub.f32 %v7065, %v7066
        %v7068 = vand.u32 %v7067, 4294901760
        %7069 = vmatprep.subr.mxu0 %v7068
        %v7070 = vand.u32 %v234, 4294901760
        %v7071 = vsub.f32 %v234, %v7070
        %v7072 = vand.u32 %v7071, 4294901760
        %v7073 = vsub.f32 %v7071, %v7072
        %v7074 = vand.u32 %v7073, 4294901760
        %7075 = vmatpush1.msra.mxu0 %v7074
        %v7076 = vand.u32 %v251, 4294901760
        %v7077 = vsub.f32 %v251, %v7076
        %v7078 = vand.u32 %v7077, 4294901760
        %v7079 = vsub.f32 %v7077, %v7078
        %v7080 = vand.u32 %v7079, 4294901760
        %7081 = vmatprep.subr.mxu0 %v7080
        %v7082 = vand.u32 %v250, 4294901760
        %v7083 = vsub.f32 %v250, %v7082
        %v7084 = vand.u32 %v7083, 4294901760
        %v7085 = vsub.f32 %v7083, %v7084
        %v7086 = vand.u32 %v7085, 4294901760
        %7087 = vmatpush1.msra.mxu0 %v7086
        %v7088 = vand.u32 %v267, 4294901760
        %v7089 = vsub.f32 %v267, %v7088
        %v7090 = vand.u32 %v7089, 4294901760
        %v7091 = vsub.f32 %v7089, %v7090
        %v7092 = vand.u32 %v7091, 4294901760
        %7093 = vmatprep.subr.mxu0 %v7092
        %v7094 = vand.u32 %v266, 4294901760
        %v7095 = vsub.f32 %v266, %v7094
        %v7096 = vand.u32 %v7095, 4294901760
        %v7097 = vsub.f32 %v7095, %v7096
        %v7098 = vand.u32 %v7097, 4294901760
        %7099 = vmatpush1.msra.mxu0 %v7098
        %v7100 = vand.u32 %v283, 4294901760
        %v7101 = vsub.f32 %v283, %v7100
        %v7102 = vand.u32 %v7101, 4294901760
        %v7103 = vsub.f32 %v7101, %v7102
        %v7104 = vand.u32 %v7103, 4294901760
        %7105 = vmatprep.subr.mxu0 %v7104
        %v7106 = vand.u32 %v282, 4294901760
        %v7107 = vsub.f32 %v282, %v7106
        %v7108 = vand.u32 %v7107, 4294901760
        %v7109 = vsub.f32 %v7107, %v7108
        %v7110 = vand.u32 %v7109, 4294901760
        %7111 = vmatpush1.msra.mxu0 %v7110
        %v7112 = vand.u32 %v299, 4294901760
        %v7113 = vsub.f32 %v299, %v7112
        %v7114 = vand.u32 %v7113, 4294901760
        %v7115 = vsub.f32 %v7113, %v7114
        %v7116 = vand.u32 %v7115, 4294901760
        %7117 = vmatprep.subr.mxu0 %v7116
        %v7118 = vand.u32 %v298, 4294901760
        %v7119 = vsub.f32 %v298, %v7118
        %v7120 = vand.u32 %v7119, 4294901760
        %v7121 = vsub.f32 %v7119, %v7120
        %v7122 = vand.u32 %v7121, 4294901760
        %7123 = vmatpush1.msra.mxu0 %v7122
        %v7124 = vand.u32 %v315, 4294901760
        %v7125 = vsub.f32 %v315, %v7124
        %v7126 = vand.u32 %v7125, 4294901760
        %v7127 = vsub.f32 %v7125, %v7126
        %v7128 = vand.u32 %v7127, 4294901760
        %7129 = vmatprep.subr.mxu0 %v7128
        %v7130 = vand.u32 %v314, 4294901760
        %v7131 = vsub.f32 %v314, %v7130
        %v7132 = vand.u32 %v7131, 4294901760
        %v7133 = vsub.f32 %v7131, %v7132
        %v7134 = vand.u32 %v7133, 4294901760
        %7135 = vmatpush1.msra.mxu0 %v7134
        %v7136 = vand.u32 %v331, 4294901760
        %v7137 = vsub.f32 %v331, %v7136
        %v7138 = vand.u32 %v7137, 4294901760
        %v7139 = vsub.f32 %v7137, %v7138
        %v7140 = vand.u32 %v7139, 4294901760
        %7141 = vmatprep.subr.mxu0 %v7140
        %v7142 = vand.u32 %v330, 4294901760
        %v7143 = vsub.f32 %v330, %v7142
        %v7144 = vand.u32 %v7143, 4294901760
        %v7145 = vsub.f32 %v7143, %v7144
        %v7146 = vand.u32 %v7145, 4294901760
        %7147 = vmatpush1.msra.mxu0 %v7146
        %v7148 = vand.u32 %v347, 4294901760
        %v7149 = vsub.f32 %v347, %v7148
        %v7150 = vand.u32 %v7149, 4294901760
        %v7151 = vsub.f32 %v7149, %v7150
        %v7152 = vand.u32 %v7151, 4294901760
        %7153 = vmatprep.subr.mxu0 %v7152
        %v7154 = vand.u32 %v346, 4294901760
        %v7155 = vsub.f32 %v346, %v7154
        %v7156 = vand.u32 %v7155, 4294901760
        %v7157 = vsub.f32 %v7155, %v7156
        %v7158 = vand.u32 %v7157, 4294901760
        %7159 = vmatpush1.msra.mxu0 %v7158
        %v7160 = vand.u32 %v363, 4294901760
        %v7161 = vsub.f32 %v363, %v7160
        %v7162 = vand.u32 %v7161, 4294901760
        %v7163 = vsub.f32 %v7161, %v7162
        %v7164 = vand.u32 %v7163, 4294901760
        %7165 = vmatprep.subr.mxu0 %v7164
        %v7166 = vand.u32 %v362, 4294901760
        %v7167 = vsub.f32 %v362, %v7166
        %v7168 = vand.u32 %v7167, 4294901760
        %v7169 = vsub.f32 %v7167, %v7168
        %v7170 = vand.u32 %v7169, 4294901760
        %7171 = vmatpush1.msra.mxu0 %v7170
        %v7172 = vand.u32 %v379, 4294901760
        %v7173 = vsub.f32 %v379, %v7172
        %v7174 = vand.u32 %v7173, 4294901760
        %v7175 = vsub.f32 %v7173, %v7174
        %v7176 = vand.u32 %v7175, 4294901760
        %7177 = vmatprep.subr.mxu0 %v7176
        %v7178 = vand.u32 %v378, 4294901760
        %v7179 = vsub.f32 %v378, %v7178
        %v7180 = vand.u32 %v7179, 4294901760
        %v7181 = vsub.f32 %v7179, %v7180
        %v7182 = vand.u32 %v7181, 4294901760
        %7183 = vmatpush1.msra.mxu0 %v7182
        %v7184 = vand.u32 %v395, 4294901760
        %v7185 = vsub.f32 %v395, %v7184
        %v7186 = vand.u32 %v7185, 4294901760
        %v7187 = vsub.f32 %v7185, %v7186
        %v7188 = vand.u32 %v7187, 4294901760
        %7189 = vmatprep.subr.mxu0 %v7188
        %v7190 = vand.u32 %v394, 4294901760
        %v7191 = vsub.f32 %v394, %v7190
        %v7192 = vand.u32 %v7191, 4294901760
        %v7193 = vsub.f32 %v7191, %v7192
        %v7194 = vand.u32 %v7193, 4294901760
        %7195 = vmatpush1.msra.mxu0 %v7194
        %v7196 = vand.u32 %v411, 4294901760
        %v7197 = vsub.f32 %v411, %v7196
        %v7198 = vand.u32 %v7197, 4294901760
        %v7199 = vsub.f32 %v7197, %v7198
        %v7200 = vand.u32 %v7199, 4294901760
        %7201 = vmatprep.subr.mxu0 %v7200
        %v7202 = vand.u32 %v410, 4294901760
        %v7203 = vsub.f32 %v410, %v7202
        %v7204 = vand.u32 %v7203, 4294901760
        %v7205 = vsub.f32 %v7203, %v7204
        %v7206 = vand.u32 %v7205, 4294901760
        %7207 = vmatpush1.msra.mxu0 %v7206
        %v7208 = vand.u32 %v427, 4294901760
        %v7209 = vsub.f32 %v427, %v7208
        %v7210 = vand.u32 %v7209, 4294901760
        %v7211 = vsub.f32 %v7209, %v7210
        %v7212 = vand.u32 %v7211, 4294901760
        %7213 = vmatprep.subr.mxu0 %v7212
        %v7214 = vand.u32 %v426, 4294901760
        %v7215 = vsub.f32 %v426, %v7214
        %v7216 = vand.u32 %v7215, 4294901760
        %v7217 = vsub.f32 %v7215, %v7216
        %v7218 = vand.u32 %v7217, 4294901760
        %7219 = vmatpush1.msra.mxu0 %v7218
        %v7220 = vand.u32 %v443, 4294901760
        %v7221 = vsub.f32 %v443, %v7220
        %v7222 = vand.u32 %v7221, 4294901760
        %v7223 = vsub.f32 %v7221, %v7222
        %v7224 = vand.u32 %v7223, 4294901760
        %7225 = vmatprep.subr.mxu0 %v7224
        %v7226 = vand.u32 %v442, 4294901760
        %v7227 = vsub.f32 %v442, %v7226
        %v7228 = vand.u32 %v7227, 4294901760
        %v7229 = vsub.f32 %v7227, %v7228
        %v7230 = vand.u32 %v7229, 4294901760
        %7231 = vmatpush1.msra.mxu0 %v7230
        %v7232 = vand.u32 %v459, 4294901760
        %v7233 = vsub.f32 %v459, %v7232
        %v7234 = vand.u32 %v7233, 4294901760
        %v7235 = vsub.f32 %v7233, %v7234
        %v7236 = vand.u32 %v7235, 4294901760
        %7237 = vmatprep.subr.mxu0 %v7236
        %v7238 = vand.u32 %v458, 4294901760
        %v7239 = vsub.f32 %v458, %v7238
        %v7240 = vand.u32 %v7239, 4294901760
        %v7241 = vsub.f32 %v7239, %v7240
        %v7242 = vand.u32 %v7241, 4294901760
        %7243 = vmatpush1.msra.mxu0 %v7242
        %v7244 = vand.u32 %v475, 4294901760
        %v7245 = vsub.f32 %v475, %v7244
        %v7246 = vand.u32 %v7245, 4294901760
        %v7247 = vsub.f32 %v7245, %v7246
        %v7248 = vand.u32 %v7247, 4294901760
        %7249 = vmatprep.subr.mxu0 %v7248
        %v7250 = vand.u32 %v474, 4294901760
        %v7251 = vsub.f32 %v474, %v7250
        %v7252 = vand.u32 %v7251, 4294901760
        %v7253 = vsub.f32 %v7251, %v7252
        %v7254 = vand.u32 %v7253, 4294901760
        %7255 = vmatpush1.msra.mxu0 %v7254
        %v7256 = vand.u32 %v491, 4294901760
        %v7257 = vsub.f32 %v491, %v7256
        %v7258 = vand.u32 %v7257, 4294901760
        %v7259 = vsub.f32 %v7257, %v7258
        %v7260 = vand.u32 %v7259, 4294901760
        %7261 = vmatprep.subr.mxu0 %v7260
        %v7262 = vand.u32 %v490, 4294901760
        %v7263 = vsub.f32 %v490, %v7262
        %v7264 = vand.u32 %v7263, 4294901760
        %v7265 = vsub.f32 %v7263, %v7264
        %v7266 = vand.u32 %v7265, 4294901760
        %7267 = vmatpush1.msra.mxu0 %v7266
        %7268 = vmatprep.subr.mxu0 0.0
        %7269 = vmatpush1.msra.mxu0 0.0
        %7270 = vmatprep.subr.mxu0 0.0
        %7271 = vmatpush1.msra.mxu0 0.0
        %7272 = vmatprep.subr.mxu0 0.0
        %7273 = vmatpush1.msra.mxu0 0.0
        %7274 = vmatprep.subr.mxu0 0.0
        %7275 = vmatpush1.msra.mxu0 0.0
        %7276 = vmatprep.subr.mxu0 0.0
        %7277 = vmatpush1.msra.mxu0 0.0
        %7278 = vmatprep.subr.mxu0 0.0
        %7279 = vmatpush1.msra.mxu0 0.0
        %7280 = vmatprep.subr.mxu0 0.0
        %7281 = vmatpush1.msra.mxu0 0.0
        %7282 = vmatprep.subr.mxu0 0.0
        %7283 = vmatpush1.msra.mxu0 0.0
        %7284 = vmatprep.subr.mxu0 0.0
        %7285 = vmatpush1.msra.mxu0 0.0
        %7286 = vmatprep.subr.mxu0 0.0
        %7287 = vmatpush1.msra.mxu0 0.0
        %7288 = vmatprep.subr.mxu0 0.0
        %7289 = vmatpush1.msra.mxu0 0.0
        %7290 = vmatprep.subr.mxu0 0.0
        %7291 = vmatpush1.msra.mxu0 0.0
        %7292 = vmatprep.subr.mxu0 0.0
        %7293 = vmatpush1.msra.mxu0 0.0
        %7294 = vmatprep.subr.mxu0 0.0
        %7295 = vmatpush1.msra.mxu0 0.0
        %v7296 = vand.u32 %v493, 4294901760
        %7297 = vmatprep.mubr.f32.mxu0 %v7296
        %v7298 = vand.u32 %v202, 4294901760
        %7299 = vmatmul.mubr.f32.gmra.mrb[0].mxu0 %v7298
        %v7300 = vpop.f32.mrb[0].mxu0
        %v7301 = vadd.f32 %v7048, %v7300
        %v7302 = vpop.f32.mrb[0].mxu0
        %v7303 = vadd.f32 %v7050, %v7302
        %7304 = vdwg.mxu0
        %v7305 = vand.u32 %v219, 4294901760
        %v7306 = vsub.f32 %v219, %v7305
        %7307 = vmatprep.subr.mxu0 %v7306
        %v7308 = vand.u32 %v218, 4294901760
        %v7309 = vsub.f32 %v218, %v7308
        %7310 = vmatpush1.msra.mxu0 %v7309
        %v7311 = vand.u32 %v235, 4294901760
        %v7312 = vsub.f32 %v235, %v7311
        %7313 = vmatprep.subr.mxu0 %v7312
        %v7314 = vand.u32 %v234, 4294901760
        %v7315 = vsub.f32 %v234, %v7314
        %7316 = vmatpush1.msra.mxu0 %v7315
        %v7317 = vand.u32 %v251, 4294901760
        %v7318 = vsub.f32 %v251, %v7317
        %7319 = vmatprep.subr.mxu0 %v7318
        %v7320 = vand.u32 %v250, 4294901760
        %v7321 = vsub.f32 %v250, %v7320
        %7322 = vmatpush1.msra.mxu0 %v7321
        %v7323 = vand.u32 %v267, 4294901760
        %v7324 = vsub.f32 %v267, %v7323
        %7325 = vmatprep.subr.mxu0 %v7324
        %v7326 = vand.u32 %v266, 4294901760
        %v7327 = vsub.f32 %v266, %v7326
        %7328 = vmatpush1.msra.mxu0 %v7327
        %v7329 = vand.u32 %v283, 4294901760
        %v7330 = vsub.f32 %v283, %v7329
        %7331 = vmatprep.subr.mxu0 %v7330
        %v7332 = vand.u32 %v282, 4294901760
        %v7333 = vsub.f32 %v282, %v7332
        %7334 = vmatpush1.msra.mxu0 %v7333
        %v7335 = vand.u32 %v299, 4294901760
        %v7336 = vsub.f32 %v299, %v7335
        %7337 = vmatprep.subr.mxu0 %v7336
        %v7338 = vand.u32 %v298, 4294901760
        %v7339 = vsub.f32 %v298, %v7338
        %7340 = vmatpush1.msra.mxu0 %v7339
        %v7341 = vand.u32 %v315, 4294901760
        %v7342 = vsub.f32 %v315, %v7341
        %7343 = vmatprep.subr.mxu0 %v7342
        %v7344 = vand.u32 %v314, 4294901760
        %v7345 = vsub.f32 %v314, %v7344
        %7346 = vmatpush1.msra.mxu0 %v7345
        %v7347 = vand.u32 %v331, 4294901760
        %v7348 = vsub.f32 %v331, %v7347
        %7349 = vmatprep.subr.mxu0 %v7348
        %v7350 = vand.u32 %v330, 4294901760
        %v7351 = vsub.f32 %v330, %v7350
        %7352 = vmatpush1.msra.mxu0 %v7351
        %v7353 = vand.u32 %v347, 4294901760
        %v7354 = vsub.f32 %v347, %v7353
        %7355 = vmatprep.subr.mxu0 %v7354
        %v7356 = vand.u32 %v346, 4294901760
        %v7357 = vsub.f32 %v346, %v7356
        %7358 = vmatpush1.msra.mxu0 %v7357
        %v7359 = vand.u32 %v363, 4294901760
        %v7360 = vsub.f32 %v363, %v7359
        %7361 = vmatprep.subr.mxu0 %v7360
        %v7362 = vand.u32 %v362, 4294901760
        %v7363 = vsub.f32 %v362, %v7362
        %7364 = vmatpush1.msra.mxu0 %v7363
        %v7365 = vand.u32 %v379, 4294901760
        %v7366 = vsub.f32 %v379, %v7365
        %7367 = vmatprep.subr.mxu0 %v7366
        %v7368 = vand.u32 %v378, 4294901760
        %v7369 = vsub.f32 %v378, %v7368
        %7370 = vmatpush1.msra.mxu0 %v7369
        %v7371 = vand.u32 %v395, 4294901760
        %v7372 = vsub.f32 %v395, %v7371
        %7373 = vmatprep.subr.mxu0 %v7372
        %v7374 = vand.u32 %v394, 4294901760
        %v7375 = vsub.f32 %v394, %v7374
        %7376 = vmatpush1.msra.mxu0 %v7375
        %v7377 = vand.u32 %v411, 4294901760
        %v7378 = vsub.f32 %v411, %v7377
        %7379 = vmatprep.subr.mxu0 %v7378
        %v7380 = vand.u32 %v410, 4294901760
        %v7381 = vsub.f32 %v410, %v7380
        %7382 = vmatpush1.msra.mxu0 %v7381
        %v7383 = vand.u32 %v427, 4294901760
        %v7384 = vsub.f32 %v427, %v7383
        %7385 = vmatprep.subr.mxu0 %v7384
        %v7386 = vand.u32 %v426, 4294901760
        %v7387 = vsub.f32 %v426, %v7386
        %7388 = vmatpush1.msra.mxu0 %v7387
        %v7389 = vand.u32 %v443, 4294901760
        %v7390 = vsub.f32 %v443, %v7389
        %7391 = vmatprep.subr.mxu0 %v7390
        %v7392 = vand.u32 %v442, 4294901760
        %v7393 = vsub.f32 %v442, %v7392
        %7394 = vmatpush1.msra.mxu0 %v7393
        %v7395 = vand.u32 %v459, 4294901760
        %v7396 = vsub.f32 %v459, %v7395
        %7397 = vmatprep.subr.mxu0 %v7396
        %v7398 = vand.u32 %v458, 4294901760
        %v7399 = vsub.f32 %v458, %v7398
        %7400 = vmatpush1.msra.mxu0 %v7399
        %v7401 = vand.u32 %v475, 4294901760
        %v7402 = vsub.f32 %v475, %v7401
        %7403 = vmatprep.subr.mxu0 %v7402
        %v7404 = vand.u32 %v474, 4294901760
        %v7405 = vsub.f32 %v474, %v7404
        %7406 = vmatpush1.msra.mxu0 %v7405
        %v7407 = vand.u32 %v491, 4294901760
        %v7408 = vsub.f32 %v491, %v7407
        %7409 = vmatprep.subr.mxu0 %v7408
        %v7410 = vand.u32 %v490, 4294901760
        %v7411 = vsub.f32 %v490, %v7410
        %7412 = vmatpush1.msra.mxu0 %v7411
        %7413 = vmatprep.subr.mxu0 0.0
        %7414 = vmatpush1.msra.mxu0 0.0
        %7415 = vmatprep.subr.mxu0 0.0
        %7416 = vmatpush1.msra.mxu0 0.0
        %7417 = vmatprep.subr.mxu0 0.0
        %7418 = vmatpush1.msra.mxu0 0.0
        %7419 = vmatprep.subr.mxu0 0.0
        %7420 = vmatpush1.msra.mxu0 0.0
        %7421 = vmatprep.subr.mxu0 0.0
        %7422 = vmatpush1.msra.mxu0 0.0
        %7423 = vmatprep.subr.mxu0 0.0
        %7424 = vmatpush1.msra.mxu0 0.0
        %7425 = vmatprep.subr.mxu0 0.0
        %7426 = vmatpush1.msra.mxu0 0.0
        %7427 = vmatprep.subr.mxu0 0.0
        %7428 = vmatpush1.msra.mxu0 0.0
        %7429 = vmatprep.subr.mxu0 0.0
        %7430 = vmatpush1.msra.mxu0 0.0
        %7431 = vmatprep.subr.mxu0 0.0
        %7432 = vmatpush1.msra.mxu0 0.0
        %7433 = vmatprep.subr.mxu0 0.0
        %7434 = vmatpush1.msra.mxu0 0.0
        %7435 = vmatprep.subr.mxu0 0.0
        %7436 = vmatpush1.msra.mxu0 0.0
        %7437 = vmatprep.subr.mxu0 0.0
        %7438 = vmatpush1.msra.mxu0 0.0
        %7439 = vmatprep.subr.mxu0 0.0
        %7440 = vmatpush1.msra.mxu0 0.0
        %v7441 = vand.u32 %v493, 4294901760
        %v7442 = vsub.f32 %v493, %v7441
        %7443 = vmatprep.mubr.f32.mxu0 %v7442
        %v7444 = vand.u32 %v202, 4294901760
        %v7445 = vsub.f32 %v202, %v7444
        %7446 = vmatmul.mubr.f32.gmra.mrb[0].mxu0 %v7445
        %v7447 = vpop.f32.mrb[0].mxu0
        %v7448 = vadd.f32 %v7301, %v7447
        %v7449 = vpop.f32.mrb[0].mxu0
        %v7450 = vadd.f32 %v7303, %v7449
        %7451 = vdwg.mxu0
        %v7452 = vand.u32 %v219, 4294901760
        %7453 = vmatprep.subr.mxu0 %v7452
        %v7454 = vand.u32 %v218, 4294901760
        %7455 = vmatpush1.msra.mxu0 %v7454
        %v7456 = vand.u32 %v235, 4294901760
        %7457 = vmatprep.subr.mxu0 %v7456
        %v7458 = vand.u32 %v234, 4294901760
        %7459 = vmatpush1.msra.mxu0 %v7458
        %v7460 = vand.u32 %v251, 4294901760
        %7461 = vmatprep.subr.mxu0 %v7460
        %v7462 = vand.u32 %v250, 4294901760
        %7463 = vmatpush1.msra.mxu0 %v7462
        %v7464 = vand.u32 %v267, 4294901760
        %7465 = vmatprep.subr.mxu0 %v7464
        %v7466 = vand.u32 %v266, 4294901760
        %7467 = vmatpush1.msra.mxu0 %v7466
        %v7468 = vand.u32 %v283, 4294901760
        %7469 = vmatprep.subr.mxu0 %v7468
        %v7470 = vand.u32 %v282, 4294901760
        %7471 = vmatpush1.msra.mxu0 %v7470
        %v7472 = vand.u32 %v299, 4294901760
        %7473 = vmatprep.subr.mxu0 %v7472
        %v7474 = vand.u32 %v298, 4294901760
        %7475 = vmatpush1.msra.mxu0 %v7474
        %v7476 = vand.u32 %v315, 4294901760
        %7477 = vmatprep.subr.mxu0 %v7476
        %v7478 = vand.u32 %v314, 4294901760
        %7479 = vmatpush1.msra.mxu0 %v7478
        %v7480 = vand.u32 %v331, 4294901760
        %7481 = vmatprep.subr.mxu0 %v7480
        %v7482 = vand.u32 %v330, 4294901760
        %7483 = vmatpush1.msra.mxu0 %v7482
        %v7484 = vand.u32 %v347, 4294901760
        %7485 = vmatprep.subr.mxu0 %v7484
        %v7486 = vand.u32 %v346, 4294901760
        %7487 = vmatpush1.msra.mxu0 %v7486
        %v7488 = vand.u32 %v363, 4294901760
        %7489 = vmatprep.subr.mxu0 %v7488
        %v7490 = vand.u32 %v362, 4294901760
        %7491 = vmatpush1.msra.mxu0 %v7490
        %v7492 = vand.u32 %v379, 4294901760
        %7493 = vmatprep.subr.mxu0 %v7492
        %v7494 = vand.u32 %v378, 4294901760
        %7495 = vmatpush1.msra.mxu0 %v7494
        %v7496 = vand.u32 %v395, 4294901760
        %7497 = vmatprep.subr.mxu0 %v7496
        %v7498 = vand.u32 %v394, 4294901760
        %7499 = vmatpush1.msra.mxu0 %v7498
        %v7500 = vand.u32 %v411, 4294901760
        %7501 = vmatprep.subr.mxu0 %v7500
        %v7502 = vand.u32 %v410, 4294901760
        %7503 = vmatpush1.msra.mxu0 %v7502
        %v7504 = vand.u32 %v427, 4294901760
        %7505 = vmatprep.subr.mxu0 %v7504
        %v7506 = vand.u32 %v426, 4294901760
        %7507 = vmatpush1.msra.mxu0 %v7506
        %v7508 = vand.u32 %v443, 4294901760
        %7509 = vmatprep.subr.mxu0 %v7508
        %v7510 = vand.u32 %v442, 4294901760
        %7511 = vmatpush1.msra.mxu0 %v7510
        %v7512 = vand.u32 %v459, 4294901760
        %7513 = vmatprep.subr.mxu0 %v7512
        %v7514 = vand.u32 %v458, 4294901760
        %7515 = vmatpush1.msra.mxu0 %v7514
        %v7516 = vand.u32 %v475, 4294901760
        %7517 = vmatprep.subr.mxu0 %v7516
        %v7518 = vand.u32 %v474, 4294901760
        %7519 = vmatpush1.msra.mxu0 %v7518
        %v7520 = vand.u32 %v491, 4294901760
        %7521 = vmatprep.subr.mxu0 %v7520
        %v7522 = vand.u32 %v490, 4294901760
        %7523 = vmatpush1.msra.mxu0 %v7522
        %7524 = vmatprep.subr.mxu0 0.0
        %7525 = vmatpush1.msra.mxu0 0.0
        %7526 = vmatprep.subr.mxu0 0.0
        %7527 = vmatpush1.msra.mxu0 0.0
        %7528 = vmatprep.subr.mxu0 0.0
        %7529 = vmatpush1.msra.mxu0 0.0
        %7530 = vmatprep.subr.mxu0 0.0
        %7531 = vmatpush1.msra.mxu0 0.0
        %7532 = vmatprep.subr.mxu0 0.0
        %7533 = vmatpush1.msra.mxu0 0.0
        %7534 = vmatprep.subr.mxu0 0.0
        %7535 = vmatpush1.msra.mxu0 0.0
        %7536 = vmatprep.subr.mxu0 0.0
        %7537 = vmatpush1.msra.mxu0 0.0
        %7538 = vmatprep.subr.mxu0 0.0
        %7539 = vmatpush1.msra.mxu0 0.0
        %7540 = vmatprep.subr.mxu0 0.0
        %7541 = vmatpush1.msra.mxu0 0.0
        %7542 = vmatprep.subr.mxu0 0.0
        %7543 = vmatpush1.msra.mxu0 0.0
        %7544 = vmatprep.subr.mxu0 0.0
        %7545 = vmatpush1.msra.mxu0 0.0
        %7546 = vmatprep.subr.mxu0 0.0
        %7547 = vmatpush1.msra.mxu0 0.0
        %7548 = vmatprep.subr.mxu0 0.0
        %7549 = vmatpush1.msra.mxu0 0.0
        %7550 = vmatprep.subr.mxu0 0.0
        %7551 = vmatpush1.msra.mxu0 0.0
        %v7552 = vand.u32 %v493, 4294901760
        %v7553 = vsub.f32 %v493, %v7552
        %v7554 = vand.u32 %v7553, 4294901760
        %7555 = vmatprep.mubr.f32.mxu0 %v7554
        %v7556 = vand.u32 %v202, 4294901760
        %v7557 = vsub.f32 %v202, %v7556
        %v7558 = vand.u32 %v7557, 4294901760
        %7559 = vmatmul.mubr.f32.gmra.mrb[0].mxu0 %v7558
        %v7560 = vpop.f32.mrb[0].mxu0
        %v7561 = vadd.f32 %v7448, %v7560
        %v7562 = vpop.f32.mrb[0].mxu0
        %v7563 = vadd.f32 %v7450, %v7562
        %7564 = vdwg.mxu0
        %v7565 = vand.u32 %v219, 4294901760
        %v7566 = vsub.f32 %v219, %v7565
        %v7567 = vand.u32 %v7566, 4294901760
        %7568 = vmatprep.subr.mxu0 %v7567
        %v7569 = vand.u32 %v218, 4294901760
        %v7570 = vsub.f32 %v218, %v7569
        %v7571 = vand.u32 %v7570, 4294901760
        %7572 = vmatpush1.msra.mxu0 %v7571
        %v7573 = vand.u32 %v235, 4294901760
        %v7574 = vsub.f32 %v235, %v7573
        %v7575 = vand.u32 %v7574, 4294901760
        %7576 = vmatprep.subr.mxu0 %v7575
        %v7577 = vand.u32 %v234, 4294901760
        %v7578 = vsub.f32 %v234, %v7577
        %v7579 = vand.u32 %v7578, 4294901760
        %7580 = vmatpush1.msra.mxu0 %v7579
        %v7581 = vand.u32 %v251, 4294901760
        %v7582 = vsub.f32 %v251, %v7581
        %v7583 = vand.u32 %v7582, 4294901760
        %7584 = vmatprep.subr.mxu0 %v7583
        %v7585 = vand.u32 %v250, 4294901760
        %v7586 = vsub.f32 %v250, %v7585
        %v7587 = vand.u32 %v7586, 4294901760
        %7588 = vmatpush1.msra.mxu0 %v7587
        %v7589 = vand.u32 %v267, 4294901760
        %v7590 = vsub.f32 %v267, %v7589
        %v7591 = vand.u32 %v7590, 4294901760
        %7592 = vmatprep.subr.mxu0 %v7591
        %v7593 = vand.u32 %v266, 4294901760
        %v7594 = vsub.f32 %v266, %v7593
        %v7595 = vand.u32 %v7594, 4294901760
        %7596 = vmatpush1.msra.mxu0 %v7595
        %v7597 = vand.u32 %v283, 4294901760
        %v7598 = vsub.f32 %v283, %v7597
        %v7599 = vand.u32 %v7598, 4294901760
        %7600 = vmatprep.subr.mxu0 %v7599
        %v7601 = vand.u32 %v282, 4294901760
        %v7602 = vsub.f32 %v282, %v7601
        %v7603 = vand.u32 %v7602, 4294901760
        %7604 = vmatpush1.msra.mxu0 %v7603
        %v7605 = vand.u32 %v299, 4294901760
        %v7606 = vsub.f32 %v299, %v7605
        %v7607 = vand.u32 %v7606, 4294901760
        %7608 = vmatprep.subr.mxu0 %v7607
        %v7609 = vand.u32 %v298, 4294901760
        %v7610 = vsub.f32 %v298, %v7609
        %v7611 = vand.u32 %v7610, 4294901760
        %7612 = vmatpush1.msra.mxu0 %v7611
        %v7613 = vand.u32 %v315, 4294901760
        %v7614 = vsub.f32 %v315, %v7613
        %v7615 = vand.u32 %v7614, 4294901760
        %7616 = vmatprep.subr.mxu0 %v7615
        %v7617 = vand.u32 %v314, 4294901760
        %v7618 = vsub.f32 %v314, %v7617
        %v7619 = vand.u32 %v7618, 4294901760
        %7620 = vmatpush1.msra.mxu0 %v7619
        %v7621 = vand.u32 %v331, 4294901760
        %v7622 = vsub.f32 %v331, %v7621
        %v7623 = vand.u32 %v7622, 4294901760
        %7624 = vmatprep.subr.mxu0 %v7623
        %v7625 = vand.u32 %v330, 4294901760
        %v7626 = vsub.f32 %v330, %v7625
        %v7627 = vand.u32 %v7626, 4294901760
        %7628 = vmatpush1.msra.mxu0 %v7627
        %v7629 = vand.u32 %v347, 4294901760
        %v7630 = vsub.f32 %v347, %v7629
        %v7631 = vand.u32 %v7630, 4294901760
        %7632 = vmatprep.subr.mxu0 %v7631
        %v7633 = vand.u32 %v346, 4294901760
        %v7634 = vsub.f32 %v346, %v7633
        %v7635 = vand.u32 %v7634, 4294901760
        %7636 = vmatpush1.msra.mxu0 %v7635
        %v7637 = vand.u32 %v363, 4294901760
        %v7638 = vsub.f32 %v363, %v7637
        %v7639 = vand.u32 %v7638, 4294901760
        %7640 = vmatprep.subr.mxu0 %v7639
        %v7641 = vand.u32 %v362, 4294901760
        %v7642 = vsub.f32 %v362, %v7641
        %v7643 = vand.u32 %v7642, 4294901760
        %7644 = vmatpush1.msra.mxu0 %v7643
        %v7645 = vand.u32 %v379, 4294901760
        %v7646 = vsub.f32 %v379, %v7645
        %v7647 = vand.u32 %v7646, 4294901760
        %7648 = vmatprep.subr.mxu0 %v7647
        %v7649 = vand.u32 %v378, 4294901760
        %v7650 = vsub.f32 %v378, %v7649
        %v7651 = vand.u32 %v7650, 4294901760
        %7652 = vmatpush1.msra.mxu0 %v7651
        %v7653 = vand.u32 %v395, 4294901760
        %v7654 = vsub.f32 %v395, %v7653
        %v7655 = vand.u32 %v7654, 4294901760
        %7656 = vmatprep.subr.mxu0 %v7655
        %v7657 = vand.u32 %v394, 4294901760
        %v7658 = vsub.f32 %v394, %v7657
        %v7659 = vand.u32 %v7658, 4294901760
        %7660 = vmatpush1.msra.mxu0 %v7659
        %v7661 = vand.u32 %v411, 4294901760
        %v7662 = vsub.f32 %v411, %v7661
        %v7663 = vand.u32 %v7662, 4294901760
        %7664 = vmatprep.subr.mxu0 %v7663
        %v7665 = vand.u32 %v410, 4294901760
        %v7666 = vsub.f32 %v410, %v7665
        %v7667 = vand.u32 %v7666, 4294901760
        %7668 = vmatpush1.msra.mxu0 %v7667
        %v7669 = vand.u32 %v427, 4294901760
        %v7670 = vsub.f32 %v427, %v7669
        %v7671 = vand.u32 %v7670, 4294901760
        %7672 = vmatprep.subr.mxu0 %v7671
        %v7673 = vand.u32 %v426, 4294901760
        %v7674 = vsub.f32 %v426, %v7673
        %v7675 = vand.u32 %v7674, 4294901760
        %7676 = vmatpush1.msra.mxu0 %v7675
        %v7677 = vand.u32 %v443, 4294901760
        %v7678 = vsub.f32 %v443, %v7677
        %v7679 = vand.u32 %v7678, 4294901760
        %7680 = vmatprep.subr.mxu0 %v7679
        %v7681 = vand.u32 %v442, 4294901760
        %v7682 = vsub.f32 %v442, %v7681
        %v7683 = vand.u32 %v7682, 4294901760
        %7684 = vmatpush1.msra.mxu0 %v7683
        %v7685 = vand.u32 %v459, 4294901760
        %v7686 = vsub.f32 %v459, %v7685
        %v7687 = vand.u32 %v7686, 4294901760
        %7688 = vmatprep.subr.mxu0 %v7687
        %v7689 = vand.u32 %v458, 4294901760
        %v7690 = vsub.f32 %v458, %v7689
        %v7691 = vand.u32 %v7690, 4294901760
        %7692 = vmatpush1.msra.mxu0 %v7691
        %v7693 = vand.u32 %v475, 4294901760
        %v7694 = vsub.f32 %v475, %v7693
        %v7695 = vand.u32 %v7694, 4294901760
        %7696 = vmatprep.subr.mxu0 %v7695
        %v7697 = vand.u32 %v474, 4294901760
        %v7698 = vsub.f32 %v474, %v7697
        %v7699 = vand.u32 %v7698, 4294901760
        %7700 = vmatpush1.msra.mxu0 %v7699
        %v7701 = vand.u32 %v491, 4294901760
        %v7702 = vsub.f32 %v491, %v7701
        %v7703 = vand.u32 %v7702, 4294901760
        %7704 = vmatprep.subr.mxu0 %v7703
        %v7705 = vand.u32 %v490, 4294901760
        %v7706 = vsub.f32 %v490, %v7705
        %v7707 = vand.u32 %v7706, 4294901760
        %7708 = vmatpush1.msra.mxu0 %v7707
        %7709 = vmatprep.subr.mxu0 0.0
        %7710 = vmatpush1.msra.mxu0 0.0
        %7711 = vmatprep.subr.mxu0 0.0
        %7712 = vmatpush1.msra.mxu0 0.0
        %7713 = vmatprep.subr.mxu0 0.0
        %7714 = vmatpush1.msra.mxu0 0.0
        %7715 = vmatprep.subr.mxu0 0.0
        %7716 = vmatpush1.msra.mxu0 0.0
        %7717 = vmatprep.subr.mxu0 0.0
        %7718 = vmatpush1.msra.mxu0 0.0
        %7719 = vmatprep.subr.mxu0 0.0
        %7720 = vmatpush1.msra.mxu0 0.0
        %7721 = vmatprep.subr.mxu0 0.0
        %7722 = vmatpush1.msra.mxu0 0.0
        %7723 = vmatprep.subr.mxu0 0.0
        %7724 = vmatpush1.msra.mxu0 0.0
        %7725 = vmatprep.subr.mxu0 0.0
        %7726 = vmatpush1.msra.mxu0 0.0
        %7727 = vmatprep.subr.mxu0 0.0
        %7728 = vmatpush1.msra.mxu0 0.0
        %7729 = vmatprep.subr.mxu0 0.0
        %7730 = vmatpush1.msra.mxu0 0.0
        %7731 = vmatprep.subr.mxu0 0.0
        %7732 = vmatpush1.msra.mxu0 0.0
        %7733 = vmatprep.subr.mxu0 0.0
        %7734 = vmatpush1.msra.mxu0 0.0
        %7735 = vmatprep.subr.mxu0 0.0
        %7736 = vmatpush1.msra.mxu0 0.0
        %v7737 = vand.u32 %v493, 4294901760
        %7738 = vmatprep.mubr.f32.mxu0 %v7737
        %v7739 = vand.u32 %v202, 4294901760
        %7740 = vmatmul.mubr.f32.gmra.mrb[0].mxu0 %v7739
        %v7741 = vpop.f32.mrb[0].mxu0
        %v7742 = vadd.f32 %v7561, %v7741
        %v7743 = vpop.f32.mrb[0].mxu0
        %v7744 = vadd.f32 %v7563, %v7743
        %7745 = vdwg.mxu0
        %v7746 = vand.u32 %v219, 4294901760
        %7747 = vmatprep.subr.mxu0 %v7746
        %v7748 = vand.u32 %v218, 4294901760
        %7749 = vmatpush1.msra.mxu0 %v7748
        %v7750 = vand.u32 %v235, 4294901760
        %7751 = vmatprep.subr.mxu0 %v7750
        %v7752 = vand.u32 %v234, 4294901760
        %7753 = vmatpush1.msra.mxu0 %v7752
        %v7754 = vand.u32 %v251, 4294901760
        %7755 = vmatprep.subr.mxu0 %v7754
        %v7756 = vand.u32 %v250, 4294901760
        %7757 = vmatpush1.msra.mxu0 %v7756
        %v7758 = vand.u32 %v267, 4294901760
        %7759 = vmatprep.subr.mxu0 %v7758
        %v7760 = vand.u32 %v266, 4294901760
        %7761 = vmatpush1.msra.mxu0 %v7760
        %v7762 = vand.u32 %v283, 4294901760
        %7763 = vmatprep.subr.mxu0 %v7762
        %v7764 = vand.u32 %v282, 4294901760
        %7765 = vmatpush1.msra.mxu0 %v7764
        %v7766 = vand.u32 %v299, 4294901760
        %7767 = vmatprep.subr.mxu0 %v7766
        %v7768 = vand.u32 %v298, 4294901760
        %7769 = vmatpush1.msra.mxu0 %v7768
        %v7770 = vand.u32 %v315, 4294901760
        %7771 = vmatprep.subr.mxu0 %v7770
        %v7772 = vand.u32 %v314, 4294901760
        %7773 = vmatpush1.msra.mxu0 %v7772
        %v7774 = vand.u32 %v331, 4294901760
        %7775 = vmatprep.subr.mxu0 %v7774
        %v7776 = vand.u32 %v330, 4294901760
        %7777 = vmatpush1.msra.mxu0 %v7776
        %v7778 = vand.u32 %v347, 4294901760
        %7779 = vmatprep.subr.mxu0 %v7778
        %v7780 = vand.u32 %v346, 4294901760
        %7781 = vmatpush1.msra.mxu0 %v7780
        %v7782 = vand.u32 %v363, 4294901760
        %7783 = vmatprep.subr.mxu0 %v7782
        %v7784 = vand.u32 %v362, 4294901760
        %7785 = vmatpush1.msra.mxu0 %v7784
        %v7786 = vand.u32 %v379, 4294901760
        %7787 = vmatprep.subr.mxu0 %v7786
        %v7788 = vand.u32 %v378, 4294901760
        %7789 = vmatpush1.msra.mxu0 %v7788
        %v7790 = vand.u32 %v395, 4294901760
        %7791 = vmatprep.subr.mxu0 %v7790
        %v7792 = vand.u32 %v394, 4294901760
        %7793 = vmatpush1.msra.mxu0 %v7792
        %v7794 = vand.u32 %v411, 4294901760
        %7795 = vmatprep.subr.mxu0 %v7794
        %v7796 = vand.u32 %v410, 4294901760
        %7797 = vmatpush1.msra.mxu0 %v7796
        %v7798 = vand.u32 %v427, 4294901760
        %7799 = vmatprep.subr.mxu0 %v7798
        %v7800 = vand.u32 %v426, 4294901760
        %7801 = vmatpush1.msra.mxu0 %v7800
        %v7802 = vand.u32 %v443, 4294901760
        %7803 = vmatprep.subr.mxu0 %v7802
        %v7804 = vand.u32 %v442, 4294901760
        %7805 = vmatpush1.msra.mxu0 %v7804
        %v7806 = vand.u32 %v459, 4294901760
        %7807 = vmatprep.subr.mxu0 %v7806
        %v7808 = vand.u32 %v458, 4294901760
        %7809 = vmatpush1.msra.mxu0 %v7808
        %v7810 = vand.u32 %v475, 4294901760
        %7811 = vmatprep.subr.mxu0 %v7810
        %v7812 = vand.u32 %v474, 4294901760
        %7813 = vmatpush1.msra.mxu0 %v7812
        %v7814 = vand.u32 %v491, 4294901760
        %7815 = vmatprep.subr.mxu0 %v7814
        %v7816 = vand.u32 %v490, 4294901760
        %7817 = vmatpush1.msra.mxu0 %v7816
        %7818 = vmatprep.subr.mxu0 0.0
        %7819 = vmatpush1.msra.mxu0 0.0
        %7820 = vmatprep.subr.mxu0 0.0
        %7821 = vmatpush1.msra.mxu0 0.0
        %7822 = vmatprep.subr.mxu0 0.0
        %7823 = vmatpush1.msra.mxu0 0.0
        %7824 = vmatprep.subr.mxu0 0.0
        %7825 = vmatpush1.msra.mxu0 0.0
        %7826 = vmatprep.subr.mxu0 0.0
        %7827 = vmatpush1.msra.mxu0 0.0
        %7828 = vmatprep.subr.mxu0 0.0
        %7829 = vmatpush1.msra.mxu0 0.0
        %7830 = vmatprep.subr.mxu0 0.0
        %7831 = vmatpush1.msra.mxu0 0.0
        %7832 = vmatprep.subr.mxu0 0.0
        %7833 = vmatpush1.msra.mxu0 0.0
        %7834 = vmatprep.subr.mxu0 0.0
        %7835 = vmatpush1.msra.mxu0 0.0
        %7836 = vmatprep.subr.mxu0 0.0
        %7837 = vmatpush1.msra.mxu0 0.0
        %7838 = vmatprep.subr.mxu0 0.0
        %7839 = vmatpush1.msra.mxu0 0.0
        %7840 = vmatprep.subr.mxu0 0.0
        %7841 = vmatpush1.msra.mxu0 0.0
        %7842 = vmatprep.subr.mxu0 0.0
        %7843 = vmatpush1.msra.mxu0 0.0
        %7844 = vmatprep.subr.mxu0 0.0
        %7845 = vmatpush1.msra.mxu0 0.0
        %v7846 = vand.u32 %v493, 4294901760
        %7847 = vmatprep.mubr.f32.mxu0 %v7846
        %v7848 = vand.u32 %v202, 4294901760
        %7849 = vmatmul.mubr.f32.gmra.mrb[0].mxu0 %v7848
        %v7850 = vpop.f32.mrb[0].mxu0
        %v7851 = vadd.f32 %v7742, %v7850
        %v7852 = vpop.f32.mrb[0].mxu0
        %v7853 = vadd.f32 %v7744, %v7852
        %7854 = vdwg.mxu0
        %7855 = vst [vmem:[#allocation2] sm:$0xff] %v7853
        %7856 = vst [vmem:[%s190] sm:$0xff] %v1411
        %s7857 = scalar_lea.vmem %s190, 8 [#allocation8]
        %7858 = vst [vmem:[%s7857] sm:$0xff] %v1413
        %s7859 = scalar_lea.vmem %s190, 16 [#allocation8]
        %7860 = vst [vmem:[%s7859] sm:$0xff] %v2331
        %s7861 = scalar_lea.vmem %s190, 24 [#allocation8]
        %7862 = vst [vmem:[%s7861] sm:$0xff] %v2333
        %s7863 = scalar_lea.vmem %s190, 32 [#allocation8]
        %7864 = vst [vmem:[%s7863] sm:$0xff] %v3251
        %s7865 = scalar_lea.vmem %s190, 40 [#allocation8]
        %7866 = vst [vmem:[%s7865] sm:$0xff] %v3253
        %s7867 = scalar_lea.vmem %s190, 48 [#allocation8]
        %7868 = vst [vmem:[%s7867] sm:$0xff] %v4171
        %s7869 = scalar_lea.vmem %s190, 56 [#allocation8]
        %7870 = vst [vmem:[%s7869] sm:$0xff] %v4173
        %s7871 = scalar_lea.vmem %s190, 64 [#allocation8]
        %7872 = vst [vmem:[%s7871] sm:$0xff] %v5091
        %s7873 = scalar_lea.vmem %s190, 72 [#allocation8]
        %7874 = vst [vmem:[%s7873] sm:$0xff] %v5093
        %s7875 = scalar_lea.vmem %s190, 80 [#allocation8]
        %7876 = vst [vmem:[%s7875] sm:$0xff] %v6011
        %s7877 = scalar_lea.vmem %s190, 88 [#allocation8]
        %7878 = vst [vmem:[%s7877] sm:$0xff] %v6013
        %s7879 = scalar_lea.vmem %s190, 96 [#allocation8]
        %7880 = vst [vmem:[%s7879] sm:$0xff] %v6931
        %s7881 = scalar_lea.vmem %s190, 104 [#allocation8]
        %7882 = vst [vmem:[%s7881] sm:$0xff] %v6933
        %s7883 = scalar_lea.vmem %s190, 112 [#allocation8]
        %7884 = vst [vmem:[%s7883] sm:$0xff] %v7851
        %s7885 = scalar_lea.vmem %s190, 120 [#allocation8]
        %7886 = vst [vmem:[%s7885] sm:$0xff] %v7853
        %s7887 = sand.u32 %s91, 1
        %s7888 = scalar_lea.sflag [#allocation5], %s7887
        %s7889 = sand.u32 %s91, 1
        %s7890 = smul.addr %s7889, 128
        %s7891 = scalar_lea.vmem [#allocation8], %s7890
        // Predicated region
        $region41: #{tpu_custom_call.1} parent=27 // pred_check
          %p7892 = pneg %p101
        $region42: #{tpu_custom_call.1} parent=27 // pred_check_branch
          %7894 = sbr.rel (%p7892) target = $region44
        $region43: #{tpu_custom_call.1} parent=27 // pred_region
          %s7895 = smul.u32 16, %s25
          %s7897 = ssub.s32 2048, 2048
          %7898 = vsyncadd %s7888, %s7897
          %s7899 = sadd.s32 %s24, %s7895
          %s7900 = smul.addr %s7899, 128
          %s7901 = scalar_lea.hbm %s2, %s7900
          %s7902 = sshll.u32 %s7891, 4
          %s7903 = int_to_ptr.vmem [resolvable:$true] %s7902
          %7908 = dma.vmem_to_hbm [thread:$0]  %s7903, 2048, %s7901, %s7888, 128, 128, 8
        $region44: #{tpu_custom_call.1} parent=27 // pred_fallthru
          _
      $region28: #{tpu_custom_call.1} parent=5 // pred_fallthru
        _
      %p7909 = scmp.le.s32.totalorder 2, %s15
      // Predicated region
      $region45: #{tpu_custom_call.1} parent=5 // pred_check
        %p7910 = pneg %p7909
      $region46: #{tpu_custom_call.1} parent=5 // pred_check_branch
        %7912 = sbr.rel (%p7910) target = $region48
      $region47: #{tpu_custom_call.1} parent=5 // pred_region
        %s7913 = ssub.s32 %s15, 2
        // Predicated region
        $region49: #{tpu_custom_call.1} parent=47 // pred_check
          %p7914 = pneg %p107
        $region50: #{tpu_custom_call.1} parent=47 // pred_check_branch
          %7916 = sbr.rel (%p7914) target = $region52
        $region51: #{tpu_custom_call.1} parent=47 // pred_region
          %s7917 = sand.u32 %s92, 1
          %s7918 = scalar_lea.sflag [#allocation5], %s7917
          %s7919 = sand.u32 %s92, 1
          %s7920 = smul.addr %s7919, 128
          %s7921 = scalar_lea.vmem [#allocation8], %s7920
          %7922 = dma.done %s7918, 2048
        $region52: #{tpu_custom_call.1} parent=47 // pred_fallthru
          _
      $region48: #{tpu_custom_call.1} parent=5 // pred_fallthru
        _
    $region6: #{tpu_custom_call.1} parent=1 // loop_footer
      %s19 = sadd.s32 1, %s15
    $region7: #{tpu_custom_call.1} parent=1 // loop_footer_branch
      %14 = sbr.rel target = $region3
    $region8: #{tpu_custom_call.1} parent=1 // loop_exit
      _
    %7923 = vsyncpa [#allocation4], 1
    %s7924 = scalar_lea.sflag [#allocation4], 1
    %7925 = vsyncpa %s7924, 1
    %7926 = vsyncpa [#allocation7], 1
    %7927 = vsyncpa [#allocation5], 1
    %s7928 = scalar_lea.sflag [#allocation5], 1
    %7929 = vsyncpa %s7928, 1

</llo_original>
